<compile_context>
chip_gen: v7x
topology: tpu7x:2x2x1
jax: 0.10.0
libtpu: 0.0.40
codegen_flags: <defaults>
</compile_context>

<pallas_src>
from functools import partial

import jax
import jax.numpy as jnp
from jax import lax
from jax.experimental import pallas as pl
from jax.experimental.pallas import tpu as pltpu


def _make_divisible(ch, divisor=8, min_ch=None):
    if min_ch is None:
        min_ch = divisor
    new_ch = max(min_ch, int(ch + divisor / 2) // divisor * divisor)
    if new_ch < 0.9 * ch:
        new_ch += divisor
    return new_ch


def _hardswish(x):
    return x * jnp.clip(x + 3.0, 0.0, 6.0) * (1.0 / 6.0)


def _hardsigmoid(x):
    return jnp.clip(x + 3.0, 0.0, 6.0) * (1.0 / 6.0)


# ---------------------------------------------------------------------------
# Fused kernel: Bblk batch images per grid step, channel-major (C, H*W) layout.
# ---------------------------------------------------------------------------
def _fused_inverted_residual_kernel(
        x_ref, wexp_ref, bexp_ref, wmask_ref, bdw_ref,
        sew1_ref, seb1_ref, sew2_ref, seb2_ref, wpj_ref, bpj_ref,
        o_ref, *, W, HW, ksize, Bblk, use_se, use_res):
    pad = (ksize - 1) // 2

    def one_image(b, carry):
        # ---- expand 1x1 conv (BN scale folded, bf16 MXU operands) + HS ----
        xb = x_ref[b]                                         # (Cin, HW) f32
        y = jnp.dot(wexp_ref[...], xb.astype(jnp.bfloat16),
                    preferred_element_type=jnp.float32)
        y = _hardswish(y + bexp_ref[...])                     # (Cexp, HW) f32

        # ---- depthwise KxK 'same' conv (stride 1) + BN bias + Hardswish ----
        # Shifted taps via XLU lane rolls along the flattened spatial axis;
        # zero padding at the image border is baked into the host-precomputed
        # weighted masks (mask * BN-folded dw weight): one mul + one add/tap.
        acc = jnp.zeros_like(y)
        for kh in range(ksize):
            for kw in range(ksize):
                shift = (kh - pad) * W + (kw - pad)
                src = y if shift == 0 else pltpu.roll(y, shift=(-shift) % HW, axis=1)
                acc = acc + src * wmask_ref[kh * ksize + kw]
        z = _hardswish(acc + bdw_ref[...])                    # (Cexp, HW) f32

        # ---- squeeze & excitation (VPU/XLU broadcast-mul + reductions) ----
        if use_se:
            pooled = jnp.mean(z, axis=1, keepdims=True)       # (Cexp, 1)
            s1 = jnp.sum(sew1_ref[...] * pooled, axis=0, keepdims=True) + seb1_ref[...]
            s1 = jnp.maximum(s1, 0.0)                         # (1, Csq)
            s2 = jnp.sum(sew2_ref[...] * s1, axis=1, keepdims=True) + seb2_ref[...]
            z = z * _hardsigmoid(s2)                          # (Cexp, HW)

        # ---- project 1x1 conv (BN folded, bf16 MXU operands) + HS + res ----
        out = jnp.dot(wpj_ref[...], z.astype(jnp.bfloat16),
                      preferred_element_type=jnp.float32)
        out = _hardswish(out + bpj_ref[...])                  # (Cout, HW) lane-dense
        if use_res:
            out = out + x_ref[b]          # re-read x here: short f32 live range
        o_ref[b] = out.astype(o_ref.dtype)
        return carry

    lax.fori_loop(0, Bblk, one_image, 0, unroll=True)


# ---------------------------------------------------------------------------
# Wrapper: NCHW in / NCHW out (only reshapes on the host, no transposes).
# ---------------------------------------------------------------------------
def inverted_residual(x_nchw, params, *, Cexp, Cout, Csq, ksize, stride, use_se):
    N, Cin, H, W = x_nchw.shape
    assert stride == 1  # TODO(synk): stride=2 depthwise downsampling variant not implemented
    use_res = (stride == 1) and (Cin == Cout)
    HW = H * W
    pad = (ksize - 1) // 2
    kk = ksize * ksize

    # Batch block per grid step: amortize per-step overhead while keeping the
    # grid >= 2 steps when possible so both v7x TensorCores get work.
    Bblk = 1
    for cand in (8, 4, 2):
        if N % cand == 0 and N // cand >= 2:
            Bblk = cand
            break

    x = x_nchw.reshape(N, Cin, HW).astype(jnp.float32)   # channel-major, lane-dense

    # Fold BN scale into conv weights on the host; biases stay as in-kernel adds.
    # MXU operands are pre-cast to bf16 (f32 accumulation in-kernel).
    w_exp = (params['w_exp'] * params['exp_scale']).T.astype(jnp.bfloat16)   # (Cexp, Cin)
    b_exp = params['exp_bias'].reshape(Cexp, 1)
    b_dw = params['dw_bias'].reshape(Cexp, 1)
    se_w1 = params['se_w1']                                                  # (Cexp, Csq)
    se_b1 = params['se_b1']                                                  # (1, Csq)
    se_w2 = params['se_w2'].T                                                # (Cexp, Csq)
    se_b2 = params['se_b2'].reshape(Cexp, 1)
    w_pj = (params['w_proj'] * params['proj_scale']).T.astype(jnp.bfloat16)  # (Cout, Cexp)
    b_pj = params['proj_bias'].reshape(Cout, 1)

    # Per-tap weighted masks: 0/1 border mask * BN-folded depthwise weight,
    # shape (k*k, Cexp, HW). Grid-invariant (held in VMEM for the whole grid).
    pp = jnp.arange(HW)
    hh, ww = pp // W, pp % W
    planes = []
    for kh in range(ksize):
        for kw in range(ksize):
            dh, dw = kh - pad, kw - pad
            valid = (hh + dh >= 0) & (hh + dh < H) & (ww + dw >= 0) & (ww + dw < W)
            planes.append(valid.astype(jnp.float32))
    mask = jnp.stack(planes, axis=0)                          # (kk, HW)
    w_dw_folded = params['w_dw'] * params['dw_scale']         # (kk, Cexp)
    wmask = w_dw_folded[:, :, None] * mask[:, None, :]        # (kk, Cexp, HW)

    # Explicit scoped-VMEM budget: double-buffered in/out blocks + invariant
    # weighted-mask planes + headroom for in-kernel f32 temporaries.
    f32b = 4
    vmem_limit = (2 * (Bblk * Cin * HW * f32b + Bblk * Cout * HW * f32b)
                  + 2 * kk * Cexp * HW * f32b + (8 << 20))
    vmem_limit = int(min(vmem_limit, 96 * 1024 * 1024))

    kernel = partial(_fused_inverted_residual_kernel, W=W, HW=HW, ksize=ksize,
                     Bblk=Bblk, use_se=use_se, use_res=use_res)
    out = pl.pallas_call(
        kernel,
        out_shape=jax.ShapeDtypeStruct((N, Cout, HW), jnp.float32),
        grid_spec=pltpu.PrefetchScalarGridSpec(
            num_scalar_prefetch=0,
            grid=(N // Bblk,),
            in_specs=[
                pl.BlockSpec((Bblk, Cin, HW), lambda n: (n, 0, 0)),
                pl.BlockSpec((Cexp, Cin), lambda n: (0, 0)),
                pl.BlockSpec((Cexp, 1), lambda n: (0, 0)),
                pl.BlockSpec((kk, Cexp, HW), lambda n: (0, 0, 0)),
                pl.BlockSpec((Cexp, 1), lambda n: (0, 0)),
                pl.BlockSpec((Cexp, Csq), lambda n: (0, 0)),
                pl.BlockSpec((1, Csq), lambda n: (0, 0)),
                pl.BlockSpec((Cexp, Csq), lambda n: (0, 0)),
                pl.BlockSpec((Cexp, 1), lambda n: (0, 0)),
                pl.BlockSpec((Cout, Cexp), lambda n: (0, 0)),
                pl.BlockSpec((Cout, 1), lambda n: (0, 0)),
            ],
            out_specs=pl.BlockSpec((Bblk, Cout, HW), lambda n: (n, 0, 0))),
        compiler_params=pltpu.CompilerParams(
            dimension_semantics=("parallel",),
            vmem_limit_bytes=vmem_limit),
    )(x, w_exp, b_exp, wmask, b_dw, se_w1, se_b1, se_w2, se_b2, w_pj, b_pj)

    return out.reshape(N, Cout, H, W)


# ---------------------------------------------------------------------------
# Deterministic parameter construction (inference-mode BN folded to scale/bias).
# ---------------------------------------------------------------------------
def make_params(key, Cin, Cexp, Csq, Cout, ksize):
    ks = jax.random.split(key, 16)

    def bn_fold(i, C):
        gamma = 1.0 + 0.1 * jax.random.normal(ks[i], (C,), jnp.float32)
        beta = 0.1 * jax.random.normal(ks[i + 1], (C,), jnp.float32)
        mean = 0.1 * jax.random.normal(ks[i + 2], (C,), jnp.float32)
        var = 0.5 + jnp.abs(jax.random.normal(ks[i + 3], (C,), jnp.float32))
        scale = gamma / jnp.sqrt(var + 1e-5)
        bias = beta - mean * scale
        return scale.reshape(1, C), bias.reshape(1, C)

    exp_scale, exp_bias = bn_fold(0, Cexp)
    dw_scale, dw_bias = bn_fold(4, Cexp)
    proj_scale, proj_bias = bn_fold(8, Cout)

    w_exp = 0.1 * jax.random.normal(ks[12], (Cin, Cexp), jnp.float32)
    w_dw = 0.1 * jax.random.normal(ks[13], (ksize * ksize, Cexp), jnp.float32)
    w_proj = 0.1 * jax.random.normal(ks[14], (Cexp, Cout), jnp.float32)
    kse = jax.random.split(ks[15], 4)
    se_w1 = 0.1 * jax.random.normal(kse[0], (Cexp, Csq), jnp.float32)
    se_b1 = 0.1 * jax.random.normal(kse[1], (1, Csq), jnp.float32)
    se_w2 = 0.1 * jax.random.normal(kse[2], (Csq, Cexp), jnp.float32)
    se_b2 = 0.1 * jax.random.normal(kse[3], (1, Cexp), jnp.float32)

    return dict(w_exp=w_exp, exp_scale=exp_scale, exp_bias=exp_bias,
                w_dw=w_dw, dw_scale=dw_scale, dw_bias=dw_bias,
                se_w1=se_w1, se_b1=se_b1, se_w2=se_w2, se_b2=se_b2,
                w_proj=w_proj, proj_scale=proj_scale, proj_bias=proj_bias)


# ---------------------------------------------------------------------------
# Pure-JAX reference (NHWC). Same math as the module; the only deviation from
# pure-f32 torch numerics is that it mirrors the kernel's bf16 MXU operand
# casting for the two 1x1 convs (f32 accumulation), so the comparison isolates
# the kernel's structural correctness (layout / rolls / masks / SE / residual).
# ---------------------------------------------------------------------------
def reference(x_nchw, params, *, Cexp, Cout, ksize, use_se):
    N, Cin, H, W = x_nchw.shape
    bf16 = jnp.bfloat16
    x = jnp.transpose(x_nchw, (0, 2, 3, 1)).astype(jnp.float32)

    w_exp = (params['w_exp'] * params['exp_scale']).astype(bf16)       # (Cin, Cexp)
    y = jnp.einsum('nhwc,cd->nhwd', x.astype(bf16), w_exp,
                   preferred_element_type=jnp.float32)
    y = _hardswish(y + params['exp_bias'])

    pad = (ksize - 1) // 2
    yp = jnp.pad(y, ((0, 0), (pad, pad), (pad, pad), (0, 0)))
    w_dw = params['w_dw'] * params['dw_scale']                          # (kk, Cexp)
    acc = jnp.zeros((N, H, W, Cexp), jnp.float32)
    for kh in range(ksize):
        for kw in range(ksize):
            acc = acc + yp[:, kh:kh + H, kw:kw + W, :] \
                * w_dw[kh * ksize + kw].reshape(1, 1, 1, Cexp)
    z = _hardswish(acc + params['dw_bias'])

    if use_se:
        pooled = jnp.mean(z, axis=(1, 2))                               # (N, Cexp)
        s = jnp.maximum(pooled @ params['se_w1'] + params['se_b1'], 0.0)
        s = _hardsigmoid(s @ params['se_w2'] + params['se_b2'])
        z = z * s[:, None, None, :]

    w_pj = (params['w_proj'] * params['proj_scale']).astype(bf16)       # (Cexp, Cout)
    out = jnp.einsum('nhwc,cd->nhwd', z.astype(bf16), w_pj,
                     preferred_element_type=jnp.float32)
    out = _hardswish(out + params['proj_bias'])
    if Cin == Cout:
        out = out + x
    return jnp.transpose(out, (0, 3, 1, 2))


if __name__ == "__main__":
    # config: input_c=16, kernel=3, expanded_c=64, out_c=16, SE, HS, stride=1
    N, Cin, H, W = 8, 16, 16, 16
    Cexp, Cout, ksize, stride, use_se = 64, 16, 3, 1, True
    Csq = _make_divisible(Cexp // 4, 8)   # = 16

    key = jax.random.PRNGKey(0)
    kx, kp = jax.random.split(key)
    x = jax.random.normal(kx, (N, Cin, H, W), jnp.float32)
    params = make_params(kp, Cin, Cexp, Csq, Cout, ksize)

    out = inverted_residual(x, params, Cexp=Cexp, Cout=Cout, Csq=Csq,
                            ksize=ksize, stride=stride, use_se=use_se)
    out = jax.block_until_ready(out)

    ref = reference(x, params, Cexp=Cexp, Cout=Cout, ksize=ksize, use_se=use_se)
    assert out.shape == (N, Cout, H, W)
    if not bool(jnp.allclose(out, ref, atol=1e-2, rtol=1e-2)):
        raise AssertionError("Pallas kernel result mismatch vs reference")
    print("KERNEL_OK")
</pallas_src>

<mosaic_0001>
module attributes {stable_mosaic.version = 11 : i64} {
  func.func @_fused_inverted_residual_kernel(%arg0: i32, %arg1: memref<4x16x256xf32, #tpu.memory_space<vmem>>, %arg2: memref<64x16xbf16, #tpu.memory_space<vmem>>, %arg3: memref<64x1xf32, #tpu.memory_space<vmem>>, %arg4: memref<9x64x256xf32, #tpu.memory_space<vmem>>, %arg5: memref<64x1xf32, #tpu.memory_space<vmem>>, %arg6: memref<64x16xf32, #tpu.memory_space<vmem>>, %arg7: memref<1x16xf32, #tpu.memory_space<vmem>>, %arg8: memref<64x16xf32, #tpu.memory_space<vmem>>, %arg9: memref<64x1xf32, #tpu.memory_space<vmem>>, %arg10: memref<16x64xbf16, #tpu.memory_space<vmem>>, %arg11: memref<16x1xf32, #tpu.memory_space<vmem>>, %arg12: memref<4x16x256xf32, #tpu.memory_space<vmem>>) attributes {dimension_semantics = [#tpu.dimension_semantics<parallel>], iteration_bounds = array<i64: 2>, scalar_prefetch = 0 : i64, scratch_operands = 0 : i64, tpu.core_type = #tpu.core_type<tc>, window_params = [{transform_indices = @transform_0, window_bounds = array<i64: 4, 16, 256>}, {pipeline_mode = #tpu.pipeline_mode<synchronous>, transform_indices = @transform_1, window_bounds = array<i64: 64, 16>}, {pipeline_mode = #tpu.pipeline_mode<synchronous>, transform_indices = @transform_2, window_bounds = array<i64: 64, 1>}, {pipeline_mode = #tpu.pipeline_mode<synchronous>, transform_indices = @transform_3, window_bounds = array<i64: 9, 64, 256>}, {pipeline_mode = #tpu.pipeline_mode<synchronous>, transform_indices = @transform_4, window_bounds = array<i64: 64, 1>}, {pipeline_mode = #tpu.pipeline_mode<synchronous>, transform_indices = @transform_5, window_bounds = array<i64: 64, 16>}, {pipeline_mode = #tpu.pipeline_mode<synchronous>, transform_indices = @transform_6, window_bounds = array<i64: 1, 16>}, {pipeline_mode = #tpu.pipeline_mode<synchronous>, transform_indices = @transform_7, window_bounds = array<i64: 64, 16>}, {pipeline_mode = #tpu.pipeline_mode<synchronous>, transform_indices = @transform_8, window_bounds = array<i64: 64, 1>}, {pipeline_mode = #tpu.pipeline_mode<synchronous>, transform_indices = @transform_9, window_bounds = array<i64: 16, 64>}, {pipeline_mode = #tpu.pipeline_mode<synchronous>, transform_indices = @transform_10, window_bounds = array<i64: 16, 1>}, {transform_indices = @transform_11, window_bounds = array<i64: 4, 16, 256>}]} {
    %c0_i32 = arith.constant 0 : i32
    %0 = arith.index_cast %c0_i32 : i32 to index
    %c0 = arith.constant 0 : index
    %c0_0 = arith.constant 0 : index
    %1 = vector.load %arg1[%0, %c0, %c0_0] : memref<4x16x256xf32, #tpu.memory_space<vmem>>, vector<1x16x256xf32>
    %2 = vector.shape_cast %1 : vector<1x16x256xf32> to vector<16x256xf32>
    %c0_1 = arith.constant 0 : index
    %c0_2 = arith.constant 0 : index
    %3 = vector.load %arg2[%c0_1, %c0_2] : memref<64x16xbf16, #tpu.memory_space<vmem>>, vector<64x16xbf16>
    %4 = arith.truncf %2 : vector<16x256xf32> to vector<16x256xbf16>
    %cst = arith.constant dense<0.000000e+00> : vector<64x256xf32>
    %5 = tpu.matmul %3, %4, %cst {dimension_numbers = #tpu.dot_dimension_numbers<[1], [0], [0], [1], [0, 0, 1, 1], [], []>} : vector<64x16xbf16>, vector<16x256xbf16>, vector<64x256xf32> -> vector<64x256xf32>
    %c0_3 = arith.constant 0 : index
    %c0_4 = arith.constant 0 : index
    %6 = vector.load %arg3[%c0_3, %c0_4] : memref<64x1xf32, #tpu.memory_space<vmem>>, vector<64x1xf32>
    %7 = vector.broadcast %6 : vector<64x1xf32> to vector<64x256xf32>
    %8 = arith.addf %5, %7 : vector<64x256xf32>
    %cst_5 = arith.constant 3.000000e+00 : f32
    %9 = vector.broadcast %cst_5 : f32 to vector<64x256xf32>
    %10 = arith.addf %8, %9 : vector<64x256xf32>
    %cst_6 = arith.constant 0.000000e+00 : f32
    %cst_7 = arith.constant 6.000000e+00 : f32
    %11 = vector.broadcast %cst_6 : f32 to vector<64x256xf32>
    %12 = arith.maximumf %11, %10 : vector<64x256xf32>
    %13 = vector.broadcast %cst_7 : f32 to vector<64x256xf32>
    %14 = arith.minimumf %13, %12 : vector<64x256xf32>
    %15 = arith.mulf %8, %14 : vector<64x256xf32>
    %cst_8 = arith.constant 0.166666672 : f32
    %16 = vector.broadcast %cst_8 : f32 to vector<64x256xf32>
    %17 = arith.mulf %15, %16 : vector<64x256xf32>
    %cst_9 = arith.constant 0.000000e+00 : f32
    %18 = vector.broadcast %cst_9 : f32 to vector<64x256xf32>
    %c17_i32 = arith.constant 17 : i32
    %19 = tpu.dynamic_rotate %17 by %c17_i32 dim 1 : vector<64x256xf32>, i32 -> vector<64x256xf32>
    %c0_10 = arith.constant 0 : index
    %c0_11 = arith.constant 0 : index
    %c0_12 = arith.constant 0 : index
    %20 = vector.load %arg4[%c0_10, %c0_11, %c0_12] : memref<9x64x256xf32, #tpu.memory_space<vmem>>, vector<1x64x256xf32>
    %21 = vector.shape_cast %20 : vector<1x64x256xf32> to vector<64x256xf32>
    %22 = arith.mulf %19, %21 : vector<64x256xf32>
    %23 = arith.addf %18, %22 : vector<64x256xf32>
    %c16_i32 = arith.constant 16 : i32
    %24 = tpu.dynamic_rotate %17 by %c16_i32 dim 1 : vector<64x256xf32>, i32 -> vector<64x256xf32>
    %c1 = arith.constant 1 : index
    %c0_13 = arith.constant 0 : index
    %c0_14 = arith.constant 0 : index
    %25 = vector.load %arg4[%c1, %c0_13, %c0_14] : memref<9x64x256xf32, #tpu.memory_space<vmem>>, vector<1x64x256xf32>
    %26 = vector.shape_cast %25 : vector<1x64x256xf32> to vector<64x256xf32>
    %27 = arith.mulf %24, %26 : vector<64x256xf32>
    %28 = arith.addf %23, %27 : vector<64x256xf32>
    %c15_i32 = arith.constant 15 : i32
    %29 = tpu.dynamic_rotate %17 by %c15_i32 dim 1 : vector<64x256xf32>, i32 -> vector<64x256xf32>
    %c2 = arith.constant 2 : index
    %c0_15 = arith.constant 0 : index
    %c0_16 = arith.constant 0 : index
    %30 = vector.load %arg4[%c2, %c0_15, %c0_16] : memref<9x64x256xf32, #tpu.memory_space<vmem>>, vector<1x64x256xf32>
    %31 = vector.shape_cast %30 : vector<1x64x256xf32> to vector<64x256xf32>
    %32 = arith.mulf %29, %31 : vector<64x256xf32>
    %33 = arith.addf %28, %32 : vector<64x256xf32>
    %c1_i32 = arith.constant 1 : i32
    %34 = tpu.dynamic_rotate %17 by %c1_i32 dim 1 : vector<64x256xf32>, i32 -> vector<64x256xf32>
    %c3 = arith.constant 3 : index
    %c0_17 = arith.constant 0 : index
    %c0_18 = arith.constant 0 : index
    %35 = vector.load %arg4[%c3, %c0_17, %c0_18] : memref<9x64x256xf32, #tpu.memory_space<vmem>>, vector<1x64x256xf32>
    %36 = vector.shape_cast %35 : vector<1x64x256xf32> to vector<64x256xf32>
    %37 = arith.mulf %34, %36 : vector<64x256xf32>
    %38 = arith.addf %33, %37 : vector<64x256xf32>
    %c4 = arith.constant 4 : index
    %c0_19 = arith.constant 0 : index
    %c0_20 = arith.constant 0 : index
    %39 = vector.load %arg4[%c4, %c0_19, %c0_20] : memref<9x64x256xf32, #tpu.memory_space<vmem>>, vector<1x64x256xf32>
    %40 = vector.shape_cast %39 : vector<1x64x256xf32> to vector<64x256xf32>
    %41 = arith.mulf %17, %40 : vector<64x256xf32>
    %42 = arith.addf %38, %41 : vector<64x256xf32>
    %c255_i32 = arith.constant 255 : i32
    %43 = tpu.dynamic_rotate %17 by %c255_i32 dim 1 : vector<64x256xf32>, i32 -> vector<64x256xf32>
    %c5 = arith.constant 5 : index
    %c0_21 = arith.constant 0 : index
    %c0_22 = arith.constant 0 : index
    %44 = vector.load %arg4[%c5, %c0_21, %c0_22] : memref<9x64x256xf32, #tpu.memory_space<vmem>>, vector<1x64x256xf32>
    %45 = vector.shape_cast %44 : vector<1x64x256xf32> to vector<64x256xf32>
    %46 = arith.mulf %43, %45 : vector<64x256xf32>
    %47 = arith.addf %42, %46 : vector<64x256xf32>
    %c241_i32 = arith.constant 241 : i32
    %48 = tpu.dynamic_rotate %17 by %c241_i32 dim 1 : vector<64x256xf32>, i32 -> vector<64x256xf32>
    %c6 = arith.constant 6 : index
    %c0_23 = arith.constant 0 : index
    %c0_24 = arith.constant 0 : index
    %49 = vector.load %arg4[%c6, %c0_23, %c0_24] : memref<9x64x256xf32, #tpu.memory_space<vmem>>, vector<1x64x256xf32>
    %50 = vector.shape_cast %49 : vector<1x64x256xf32> to vector<64x256xf32>
    %51 = arith.mulf %48, %50 : vector<64x256xf32>
    %52 = arith.addf %47, %51 : vector<64x256xf32>
    %c240_i32 = arith.constant 240 : i32
    %53 = tpu.dynamic_rotate %17 by %c240_i32 dim 1 : vector<64x256xf32>, i32 -> vector<64x256xf32>
    %c7 = arith.constant 7 : index
    %c0_25 = arith.constant 0 : index
    %c0_26 = arith.constant 0 : index
    %54 = vector.load %arg4[%c7, %c0_25, %c0_26] : memref<9x64x256xf32, #tpu.memory_space<vmem>>, vector<1x64x256xf32>
    %55 = vector.shape_cast %54 : vector<1x64x256xf32> to vector<64x256xf32>
    %56 = arith.mulf %53, %55 : vector<64x256xf32>
    %57 = arith.addf %52, %56 : vector<64x256xf32>
    %c239_i32 = arith.constant 239 : i32
    %58 = tpu.dynamic_rotate %17 by %c239_i32 dim 1 : vector<64x256xf32>, i32 -> vector<64x256xf32>
    %c8 = arith.constant 8 : index
    %c0_27 = arith.constant 0 : index
    %c0_28 = arith.constant 0 : index
    %59 = vector.load %arg4[%c8, %c0_27, %c0_28] : memref<9x64x256xf32, #tpu.memory_space<vmem>>, vector<1x64x256xf32>
    %60 = vector.shape_cast %59 : vector<1x64x256xf32> to vector<64x256xf32>
    %61 = arith.mulf %58, %60 : vector<64x256xf32>
    %62 = arith.addf %57, %61 : vector<64x256xf32>
    %c0_29 = arith.constant 0 : index
    %c0_30 = arith.constant 0 : index
    %63 = vector.load %arg5[%c0_29, %c0_30] : memref<64x1xf32, #tpu.memory_space<vmem>>, vector<64x1xf32>
    %64 = vector.broadcast %63 : vector<64x1xf32> to vector<64x256xf32>
    %65 = arith.addf %62, %64 : vector<64x256xf32>
    %cst_31 = arith.constant 3.000000e+00 : f32
    %66 = vector.broadcast %cst_31 : f32 to vector<64x256xf32>
    %67 = arith.addf %65, %66 : vector<64x256xf32>
    %cst_32 = arith.constant 0.000000e+00 : f32
    %cst_33 = arith.constant 6.000000e+00 : f32
    %68 = vector.broadcast %cst_32 : f32 to vector<64x256xf32>
    %69 = arith.maximumf %68, %67 : vector<64x256xf32>
    %70 = vector.broadcast %cst_33 : f32 to vector<64x256xf32>
    %71 = arith.minimumf %70, %69 : vector<64x256xf32>
    %72 = arith.mulf %65, %71 : vector<64x256xf32>
    %cst_34 = arith.constant 0.166666672 : f32
    %73 = vector.broadcast %cst_34 : f32 to vector<64x256xf32>
    %74 = arith.mulf %72, %73 : vector<64x256xf32>
    %cst_35 = arith.constant dense<0.000000e+00> : vector<64xf32>
    %75 = vector.multi_reduction <add>, %74, %cst_35 [1] : vector<64x256xf32> to vector<64xf32>
    %76 = vector.shape_cast %75 : vector<64xf32> to vector<64x1xf32>
    %cst_36 = arith.constant 2.560000e+02 : f32
    %77 = vector.broadcast %cst_36 : f32 to vector<64x1xf32>
    %78 = arith.divf %76, %77 : vector<64x1xf32>
    %c0_37 = arith.constant 0 : index
    %c0_38 = arith.constant 0 : index
    %79 = vector.load %arg6[%c0_37, %c0_38] : memref<64x16xf32, #tpu.memory_space<vmem>>, vector<64x16xf32>
    %80 = vector.broadcast %78 : vector<64x1xf32> to vector<64x16xf32>
    %81 = arith.mulf %79, %80 : vector<64x16xf32>
    %cst_39 = arith.constant dense<0.000000e+00> : vector<16xf32>
    %82 = vector.multi_reduction <add>, %81, %cst_39 [0] : vector<64x16xf32> to vector<16xf32>
    %83 = vector.shape_cast %82 : vector<16xf32> to vector<1x16xf32>
    %c0_40 = arith.constant 0 : index
    %c0_41 = arith.constant 0 : index
    %84 = vector.load %arg7[%c0_40, %c0_41] : memref<1x16xf32, #tpu.memory_space<vmem>>, vector<1x16xf32>
    %85 = arith.addf %83, %84 : vector<1x16xf32>
    %cst_42 = arith.constant 0.000000e+00 : f32
    %86 = vector.broadcast %cst_42 : f32 to vector<1x16xf32>
    %87 = arith.maximumf %85, %86 : vector<1x16xf32>
    %c0_43 = arith.constant 0 : index
    %c0_44 = arith.constant 0 : index
    %88 = vector.load %arg8[%c0_43, %c0_44] : memref<64x16xf32, #tpu.memory_space<vmem>>, vector<64x16xf32>
    %89 = vector.broadcast %87 : vector<1x16xf32> to vector<64x16xf32>
    %90 = arith.mulf %88, %89 : vector<64x16xf32>
    %cst_45 = arith.constant dense<0.000000e+00> : vector<64xf32>
    %91 = vector.multi_reduction <add>, %90, %cst_45 [1] : vector<64x16xf32> to vector<64xf32>
    %92 = vector.shape_cast %91 : vector<64xf32> to vector<64x1xf32>
    %c0_46 = arith.constant 0 : index
    %c0_47 = arith.constant 0 : index
    %93 = vector.load %arg9[%c0_46, %c0_47] : memref<64x1xf32, #tpu.memory_space<vmem>>, vector<64x1xf32>
    %94 = arith.addf %92, %93 : vector<64x1xf32>
    %cst_48 = arith.constant 3.000000e+00 : f32
    %95 = vector.broadcast %cst_48 : f32 to vector<64x1xf32>
    %96 = arith.addf %94, %95 : vector<64x1xf32>
    %cst_49 = arith.constant 0.000000e+00 : f32
    %cst_50 = arith.constant 6.000000e+00 : f32
    %97 = vector.broadcast %cst_49 : f32 to vector<64x1xf32>
    %98 = arith.maximumf %97, %96 : vector<64x1xf32>
    %99 = vector.broadcast %cst_50 : f32 to vector<64x1xf32>
    %100 = arith.minimumf %99, %98 : vector<64x1xf32>
    %cst_51 = arith.constant 0.166666672 : f32
    %101 = vector.broadcast %cst_51 : f32 to vector<64x1xf32>
    %102 = arith.mulf %100, %101 : vector<64x1xf32>
    %103 = vector.broadcast %102 : vector<64x1xf32> to vector<64x256xf32>
    %104 = arith.mulf %74, %103 : vector<64x256xf32>
    %c0_52 = arith.constant 0 : index
    %c0_53 = arith.constant 0 : index
    %105 = vector.load %arg10[%c0_52, %c0_53] : memref<16x64xbf16, #tpu.memory_space<vmem>>, vector<16x64xbf16>
    %106 = arith.truncf %104 : vector<64x256xf32> to vector<64x256xbf16>
    %cst_54 = arith.constant dense<0.000000e+00> : vector<16x256xf32>
    %107 = tpu.matmul %105, %106, %cst_54 {dimension_numbers = #tpu.dot_dimension_numbers<[1], [0], [0], [1], [0, 0, 1, 1], [], []>} : vector<16x64xbf16>, vector<64x256xbf16>, vector<16x256xf32> -> vector<16x256xf32>
    %c0_55 = arith.constant 0 : index
    %c0_56 = arith.constant 0 : index
    %108 = vector.load %arg11[%c0_55, %c0_56] : memref<16x1xf32, #tpu.memory_space<vmem>>, vector<16x1xf32>
    %109 = vector.broadcast %108 : vector<16x1xf32> to vector<16x256xf32>
    %110 = arith.addf %107, %109 : vector<16x256xf32>
    %cst_57 = arith.constant 3.000000e+00 : f32
    %111 = vector.broadcast %cst_57 : f32 to vector<16x256xf32>
    %112 = arith.addf %110, %111 : vector<16x256xf32>
    %cst_58 = arith.constant 0.000000e+00 : f32
    %cst_59 = arith.constant 6.000000e+00 : f32
    %113 = vector.broadcast %cst_58 : f32 to vector<16x256xf32>
    %114 = arith.maximumf %113, %112 : vector<16x256xf32>
    %115 = vector.broadcast %cst_59 : f32 to vector<16x256xf32>
    %116 = arith.minimumf %115, %114 : vector<16x256xf32>
    %117 = arith.mulf %110, %116 : vector<16x256xf32>
    %cst_60 = arith.constant 0.166666672 : f32
    %118 = vector.broadcast %cst_60 : f32 to vector<16x256xf32>
    %119 = arith.mulf %117, %118 : vector<16x256xf32>
    %120 = arith.index_cast %c0_i32 : i32 to index
    %c0_61 = arith.constant 0 : index
    %c0_62 = arith.constant 0 : index
    %121 = vector.load %arg1[%120, %c0_61, %c0_62] : memref<4x16x256xf32, #tpu.memory_space<vmem>>, vector<1x16x256xf32>
    %122 = vector.shape_cast %121 : vector<1x16x256xf32> to vector<16x256xf32>
    %123 = arith.addf %119, %122 : vector<16x256xf32>
    %124 = arith.index_cast %c0_i32 : i32 to index
    %c0_63 = arith.constant 0 : index
    %c0_64 = arith.constant 0 : index
    %125 = vector.load %arg12[%124, %c0_63, %c0_64] : memref<4x16x256xf32, #tpu.memory_space<vmem>>, vector<1x16x256xf32>
    %126 = vector.shape_cast %125 : vector<1x16x256xf32> to vector<16x256xf32>
    %127 = vector.shape_cast %123 : vector<16x256xf32> to vector<1x16x256xf32>
    tpu.vector_store %arg12[%124, %c0_63, %c0_64], %127 {strides = array<i32>} : memref<4x16x256xf32, #tpu.memory_space<vmem>>, vector<1x16x256xf32>,
    %c1_i32_65 = arith.constant 1 : i32
    %128 = arith.index_cast %c1_i32_65 : i32 to index
    %c0_66 = arith.constant 0 : index
    %c0_67 = arith.constant 0 : index
    %129 = vector.load %arg1[%128, %c0_66, %c0_67] : memref<4x16x256xf32, #tpu.memory_space<vmem>>, vector<1x16x256xf32>
    %130 = vector.shape_cast %129 : vector<1x16x256xf32> to vector<16x256xf32>
    %c0_68 = arith.constant 0 : index
    %c0_69 = arith.constant 0 : index
    %131 = vector.load %arg2[%c0_68, %c0_69] : memref<64x16xbf16, #tpu.memory_space<vmem>>, vector<64x16xbf16>
    %132 = arith.truncf %130 : vector<16x256xf32> to vector<16x256xbf16>
    %cst_70 = arith.constant dense<0.000000e+00> : vector<64x256xf32>
    %133 = tpu.matmul %131, %132, %cst_70 {dimension_numbers = #tpu.dot_dimension_numbers<[1], [0], [0], [1], [0, 0, 1, 1], [], []>} : vector<64x16xbf16>, vector<16x256xbf16>, vector<64x256xf32> -> vector<64x256xf32>
    %c0_71 = arith.constant 0 : index
    %c0_72 = arith.constant 0 : index
    %134 = vector.load %arg3[%c0_71, %c0_72] : memref<64x1xf32, #tpu.memory_space<vmem>>, vector<64x1xf32>
    %135 = vector.broadcast %134 : vector<64x1xf32> to vector<64x256xf32>
    %136 = arith.addf %133, %135 : vector<64x256xf32>
    %cst_73 = arith.constant 3.000000e+00 : f32
    %137 = vector.broadcast %cst_73 : f32 to vector<64x256xf32>
    %138 = arith.addf %136, %137 : vector<64x256xf32>
    %cst_74 = arith.constant 0.000000e+00 : f32
    %cst_75 = arith.constant 6.000000e+00 : f32
    %139 = vector.broadcast %cst_74 : f32 to vector<64x256xf32>
    %140 = arith.maximumf %139, %138 : vector<64x256xf32>
    %141 = vector.broadcast %cst_75 : f32 to vector<64x256xf32>
    %142 = arith.minimumf %141, %140 : vector<64x256xf32>
    %143 = arith.mulf %136, %142 : vector<64x256xf32>
    %cst_76 = arith.constant 0.166666672 : f32
    %144 = vector.broadcast %cst_76 : f32 to vector<64x256xf32>
    %145 = arith.mulf %143, %144 : vector<64x256xf32>
    %cst_77 = arith.constant 0.000000e+00 : f32
    %146 = vector.broadcast %cst_77 : f32 to vector<64x256xf32>
    %c17_i32_78 = arith.constant 17 : i32
    %147 = tpu.dynamic_rotate %145 by %c17_i32_78 dim 1 : vector<64x256xf32>, i32 -> vector<64x256xf32>
    %c0_79 = arith.constant 0 : index
    %c0_80 = arith.constant 0 : index
    %c0_81 = arith.constant 0 : index
    %148 = vector.load %arg4[%c0_79, %c0_80, %c0_81] : memref<9x64x256xf32, #tpu.memory_space<vmem>>, vector<1x64x256xf32>
    %149 = vector.shape_cast %148 : vector<1x64x256xf32> to vector<64x256xf32>
    %150 = arith.mulf %147, %149 : vector<64x256xf32>
    %151 = arith.addf %146, %150 : vector<64x256xf32>
    %c16_i32_82 = arith.constant 16 : i32
    %152 = tpu.dynamic_rotate %145 by %c16_i32_82 dim 1 : vector<64x256xf32>, i32 -> vector<64x256xf32>
    %c1_83 = arith.constant 1 : index
    %c0_84 = arith.constant 0 : index
    %c0_85 = arith.constant 0 : index
    %153 = vector.load %arg4[%c1_83, %c0_84, %c0_85] : memref<9x64x256xf32, #tpu.memory_space<vmem>>, vector<1x64x256xf32>
    %154 = vector.shape_cast %153 : vector<1x64x256xf32> to vector<64x256xf32>
    %155 = arith.mulf %152, %154 : vector<64x256xf32>
    %156 = arith.addf %151, %155 : vector<64x256xf32>
    %c15_i32_86 = arith.constant 15 : i32
    %157 = tpu.dynamic_rotate %145 by %c15_i32_86 dim 1 : vector<64x256xf32>, i32 -> vector<64x256xf32>
    %c2_87 = arith.constant 2 : index
    %c0_88 = arith.constant 0 : index
    %c0_89 = arith.constant 0 : index
    %158 = vector.load %arg4[%c2_87, %c0_88, %c0_89] : memref<9x64x256xf32, #tpu.memory_space<vmem>>, vector<1x64x256xf32>
    %159 = vector.shape_cast %158 : vector<1x64x256xf32> to vector<64x256xf32>
    %160 = arith.mulf %157, %159 : vector<64x256xf32>
    %161 = arith.addf %156, %160 : vector<64x256xf32>
    %c1_i32_90 = arith.constant 1 : i32
    %162 = tpu.dynamic_rotate %145 by %c1_i32_90 dim 1 : vector<64x256xf32>, i32 -> vector<64x256xf32>
    %c3_91 = arith.constant 3 : index
    %c0_92 = arith.constant 0 : index
    %c0_93 = arith.constant 0 : index
    %163 = vector.load %arg4[%c3_91, %c0_92, %c0_93] : memref<9x64x256xf32, #tpu.memory_space<vmem>>, vector<1x64x256xf32>
    %164 = vector.shape_cast %163 : vector<1x64x256xf32> to vector<64x256xf32>
    %165 = arith.mulf %162, %164 : vector<64x256xf32>
    %166 = arith.addf %161, %165 : vector<64x256xf32>
    %c4_94 = arith.constant 4 : index
    %c0_95 = arith.constant 0 : index
    %c0_96 = arith.constant 0 : index
    %167 = vector.load %arg4[%c4_94, %c0_95, %c0_96] : memref<9x64x256xf32, #tpu.memory_space<vmem>>, vector<1x64x256xf32>
    %168 = vector.shape_cast %167 : vector<1x64x256xf32> to vector<64x256xf32>
    %169 = arith.mulf %145, %168 : vector<64x256xf32>
    %170 = arith.addf %166, %169 : vector<64x256xf32>
    %c255_i32_97 = arith.constant 255 : i32
    %171 = tpu.dynamic_rotate %145 by %c255_i32_97 dim 1 : vector<64x256xf32>, i32 -> vector<64x256xf32>
    %c5_98 = arith.constant 5 : index
    %c0_99 = arith.constant 0 : index
    %c0_100 = arith.constant 0 : index
    %172 = vector.load %arg4[%c5_98, %c0_99, %c0_100] : memref<9x64x256xf32, #tpu.memory_space<vmem>>, vector<1x64x256xf32>
    %173 = vector.shape_cast %172 : vector<1x64x256xf32> to vector<64x256xf32>
    %174 = arith.mulf %171, %173 : vector<64x256xf32>
    %175 = arith.addf %170, %174 : vector<64x256xf32>
    %c241_i32_101 = arith.constant 241 : i32
    %176 = tpu.dynamic_rotate %145 by %c241_i32_101 dim 1 : vector<64x256xf32>, i32 -> vector<64x256xf32>
    %c6_102 = arith.constant 6 : index
    %c0_103 = arith.constant 0 : index
    %c0_104 = arith.constant 0 : index
    %177 = vector.load %arg4[%c6_102, %c0_103, %c0_104] : memref<9x64x256xf32, #tpu.memory_space<vmem>>, vector<1x64x256xf32>
    %178 = vector.shape_cast %177 : vector<1x64x256xf32> to vector<64x256xf32>
    %179 = arith.mulf %176, %178 : vector<64x256xf32>
    %180 = arith.addf %175, %179 : vector<64x256xf32>
    %c240_i32_105 = arith.constant 240 : i32
    %181 = tpu.dynamic_rotate %145 by %c240_i32_105 dim 1 : vector<64x256xf32>, i32 -> vector<64x256xf32>
    %c7_106 = arith.constant 7 : index
    %c0_107 = arith.constant 0 : index
    %c0_108 = arith.constant 0 : index
    %182 = vector.load %arg4[%c7_106, %c0_107, %c0_108] : memref<9x64x256xf32, #tpu.memory_space<vmem>>, vector<1x64x256xf32>
    %183 = vector.shape_cast %182 : vector<1x64x256xf32> to vector<64x256xf32>
    %184 = arith.mulf %181, %183 : vector<64x256xf32>
    %185 = arith.addf %180, %184 : vector<64x256xf32>
    %c239_i32_109 = arith.constant 239 : i32
    %186 = tpu.dynamic_rotate %145 by %c239_i32_109 dim 1 : vector<64x256xf32>, i32 -> vector<64x256xf32>
    %c8_110 = arith.constant 8 : index
    %c0_111 = arith.constant 0 : index
    %c0_112 = arith.constant 0 : index
    %187 = vector.load %arg4[%c8_110, %c0_111, %c0_112] : memref<9x64x256xf32, #tpu.memory_space<vmem>>, vector<1x64x256xf32>
    %188 = vector.shape_cast %187 : vector<1x64x256xf32> to vector<64x256xf32>
    %189 = arith.mulf %186, %188 : vector<64x256xf32>
    %190 = arith.addf %185, %189 : vector<64x256xf32>
    %c0_113 = arith.constant 0 : index
    %c0_114 = arith.constant 0 : index
    %191 = vector.load %arg5[%c0_113, %c0_114] : memref<64x1xf32, #tpu.memory_space<vmem>>, vector<64x1xf32>
    %192 = vector.broadcast %191 : vector<64x1xf32> to vector<64x256xf32>
    %193 = arith.addf %190, %192 : vector<64x256xf32>
    %cst_115 = arith.constant 3.000000e+00 : f32
    %194 = vector.broadcast %cst_115 : f32 to vector<64x256xf32>
    %195 = arith.addf %193, %194 : vector<64x256xf32>
    %cst_116 = arith.constant 0.000000e+00 : f32
    %cst_117 = arith.constant 6.000000e+00 : f32
    %196 = vector.broadcast %cst_116 : f32 to vector<64x256xf32>
    %197 = arith.maximumf %196, %195 : vector<64x256xf32>
    %198 = vector.broadcast %cst_117 : f32 to vector<64x256xf32>
    %199 = arith.minimumf %198, %197 : vector<64x256xf32>
    %200 = arith.mulf %193, %199 : vector<64x256xf32>
    %cst_118 = arith.constant 0.166666672 : f32
    %201 = vector.broadcast %cst_118 : f32 to vector<64x256xf32>
    %202 = arith.mulf %200, %201 : vector<64x256xf32>
    %cst_119 = arith.constant dense<0.000000e+00> : vector<64xf32>
    %203 = vector.multi_reduction <add>, %202, %cst_119 [1] : vector<64x256xf32> to vector<64xf32>
    %204 = vector.shape_cast %203 : vector<64xf32> to vector<64x1xf32>
    %cst_120 = arith.constant 2.560000e+02 : f32
    %205 = vector.broadcast %cst_120 : f32 to vector<64x1xf32>
    %206 = arith.divf %204, %205 : vector<64x1xf32>
    %c0_121 = arith.constant 0 : index
    %c0_122 = arith.constant 0 : index
    %207 = vector.load %arg6[%c0_121, %c0_122] : memref<64x16xf32, #tpu.memory_space<vmem>>, vector<64x16xf32>
    %208 = vector.broadcast %206 : vector<64x1xf32> to vector<64x16xf32>
    %209 = arith.mulf %207, %208 : vector<64x16xf32>
    %cst_123 = arith.constant dense<0.000000e+00> : vector<16xf32>
    %210 = vector.multi_reduction <add>, %209, %cst_123 [0] : vector<64x16xf32> to vector<16xf32>
    %211 = vector.shape_cast %210 : vector<16xf32> to vector<1x16xf32>
    %c0_124 = arith.constant 0 : index
    %c0_125 = arith.constant 0 : index
    %212 = vector.load %arg7[%c0_124, %c0_125] : memref<1x16xf32, #tpu.memory_space<vmem>>, vector<1x16xf32>
    %213 = arith.addf %211, %212 : vector<1x16xf32>
    %cst_126 = arith.constant 0.000000e+00 : f32
    %214 = vector.broadcast %cst_126 : f32 to vector<1x16xf32>
    %215 = arith.maximumf %213, %214 : vector<1x16xf32>
    %c0_127 = arith.constant 0 : index
    %c0_128 = arith.constant 0 : index
    %216 = vector.load %arg8[%c0_127, %c0_128] : memref<64x16xf32, #tpu.memory_space<vmem>>, vector<64x16xf32>
    %217 = vector.broadcast %215 : vector<1x16xf32> to vector<64x16xf32>
    %218 = arith.mulf %216, %217 : vector<64x16xf32>
    %cst_129 = arith.constant dense<0.000000e+00> : vector<64xf32>
    %219 = vector.multi_reduction <add>, %218, %cst_129 [1] : vector<64x16xf32> to vector<64xf32>
    %220 = vector.shape_cast %219 : vector<64xf32> to vector<64x1xf32>
    %c0_130 = arith.constant 0 : index
    %c0_131 = arith.constant 0 : index
    %221 = vector.load %arg9[%c0_130, %c0_131] : memref<64x1xf32, #tpu.memory_space<vmem>>, vector<64x1xf32>
    %222 = arith.addf %220, %221 : vector<64x1xf32>
    %cst_132 = arith.constant 3.000000e+00 : f32
    %223 = vector.broadcast %cst_132 : f32 to vector<64x1xf32>
    %224 = arith.addf %222, %223 : vector<64x1xf32>
    %cst_133 = arith.constant 0.000000e+00 : f32
    %cst_134 = arith.constant 6.000000e+00 : f32
    %225 = vector.broadcast %cst_133 : f32 to vector<64x1xf32>
    %226 = arith.maximumf %225, %224 : vector<64x1xf32>
    %227 = vector.broadcast %cst_134 : f32 to vector<64x1xf32>
    %228 = arith.minimumf %227, %226 : vector<64x1xf32>
    %cst_135 = arith.constant 0.166666672 : f32
    %229 = vector.broadcast %cst_135 : f32 to vector<64x1xf32>
    %230 = arith.mulf %228, %229 : vector<64x1xf32>
    %231 = vector.broadcast %230 : vector<64x1xf32> to vector<64x256xf32>
    %232 = arith.mulf %202, %231 : vector<64x256xf32>
    %c0_136 = arith.constant 0 : index
    %c0_137 = arith.constant 0 : index
    %233 = vector.load %arg10[%c0_136, %c0_137] : memref<16x64xbf16, #tpu.memory_space<vmem>>, vector<16x64xbf16>
    %234 = arith.truncf %232 : vector<64x256xf32> to vector<64x256xbf16>
    %cst_138 = arith.constant dense<0.000000e+00> : vector<16x256xf32>
    %235 = tpu.matmul %233, %234, %cst_138 {dimension_numbers = #tpu.dot_dimension_numbers<[1], [0], [0], [1], [0, 0, 1, 1], [], []>} : vector<16x64xbf16>, vector<64x256xbf16>, vector<16x256xf32> -> vector<16x256xf32>
    %c0_139 = arith.constant 0 : index
    %c0_140 = arith.constant 0 : index
    %236 = vector.load %arg11[%c0_139, %c0_140] : memref<16x1xf32, #tpu.memory_space<vmem>>, vector<16x1xf32>
    %237 = vector.broadcast %236 : vector<16x1xf32> to vector<16x256xf32>
    %238 = arith.addf %235, %237 : vector<16x256xf32>
    %cst_141 = arith.constant 3.000000e+00 : f32
    %239 = vector.broadcast %cst_141 : f32 to vector<16x256xf32>
    %240 = arith.addf %238, %239 : vector<16x256xf32>
    %cst_142 = arith.constant 0.000000e+00 : f32
    %cst_143 = arith.constant 6.000000e+00 : f32
    %241 = vector.broadcast %cst_142 : f32 to vector<16x256xf32>
    %242 = arith.maximumf %241, %240 : vector<16x256xf32>
    %243 = vector.broadcast %cst_143 : f32 to vector<16x256xf32>
    %244 = arith.minimumf %243, %242 : vector<16x256xf32>
    %245 = arith.mulf %238, %244 : vector<16x256xf32>
    %cst_144 = arith.constant 0.166666672 : f32
    %246 = vector.broadcast %cst_144 : f32 to vector<16x256xf32>
    %247 = arith.mulf %245, %246 : vector<16x256xf32>
    %248 = arith.index_cast %c1_i32_65 : i32 to index
    %c0_145 = arith.constant 0 : index
    %c0_146 = arith.constant 0 : index
    %249 = vector.load %arg1[%248, %c0_145, %c0_146] : memref<4x16x256xf32, #tpu.memory_space<vmem>>, vector<1x16x256xf32>
    %250 = vector.shape_cast %249 : vector<1x16x256xf32> to vector<16x256xf32>
    %251 = arith.addf %247, %250 : vector<16x256xf32>
    %252 = arith.index_cast %c1_i32_65 : i32 to index
    %c0_147 = arith.constant 0 : index
    %c0_148 = arith.constant 0 : index
    %253 = vector.load %arg12[%252, %c0_147, %c0_148] : memref<4x16x256xf32, #tpu.memory_space<vmem>>, vector<1x16x256xf32>
    %254 = vector.shape_cast %253 : vector<1x16x256xf32> to vector<16x256xf32>
    %255 = vector.shape_cast %251 : vector<16x256xf32> to vector<1x16x256xf32>
    tpu.vector_store %arg12[%252, %c0_147, %c0_148], %255 {strides = array<i32>} : memref<4x16x256xf32, #tpu.memory_space<vmem>>, vector<1x16x256xf32>,
    %c2_i32 = arith.constant 2 : i32
    %256 = arith.index_cast %c2_i32 : i32 to index
    %c0_149 = arith.constant 0 : index
    %c0_150 = arith.constant 0 : index
    %257 = vector.load %arg1[%256, %c0_149, %c0_150] : memref<4x16x256xf32, #tpu.memory_space<vmem>>, vector<1x16x256xf32>
    %258 = vector.shape_cast %257 : vector<1x16x256xf32> to vector<16x256xf32>
    %c0_151 = arith.constant 0 : index
    %c0_152 = arith.constant 0 : index
    %259 = vector.load %arg2[%c0_151, %c0_152] : memref<64x16xbf16, #tpu.memory_space<vmem>>, vector<64x16xbf16>
    %260 = arith.truncf %258 : vector<16x256xf32> to vector<16x256xbf16>
    %cst_153 = arith.constant dense<0.000000e+00> : vector<64x256xf32>
    %261 = tpu.matmul %259, %260, %cst_153 {dimension_numbers = #tpu.dot_dimension_numbers<[1], [0], [0], [1], [0, 0, 1, 1], [], []>} : vector<64x16xbf16>, vector<16x256xbf16>, vector<64x256xf32> -> vector<64x256xf32>
    %c0_154 = arith.constant 0 : index
    %c0_155 = arith.constant 0 : index
    %262 = vector.load %arg3[%c0_154, %c0_155] : memref<64x1xf32, #tpu.memory_space<vmem>>, vector<64x1xf32>
    %263 = vector.broadcast %262 : vector<64x1xf32> to vector<64x256xf32>
    %264 = arith.addf %261, %263 : vector<64x256xf32>
    %cst_156 = arith.constant 3.000000e+00 : f32
    %265 = vector.broadcast %cst_156 : f32 to vector<64x256xf32>
    %266 = arith.addf %264, %265 : vector<64x256xf32>
    %cst_157 = arith.constant 0.000000e+00 : f32
    %cst_158 = arith.constant 6.000000e+00 : f32
    %267 = vector.broadcast %cst_157 : f32 to vector<64x256xf32>
    %268 = arith.maximumf %267, %266 : vector<64x256xf32>
    %269 = vector.broadcast %cst_158 : f32 to vector<64x256xf32>
    %270 = arith.minimumf %269, %268 : vector<64x256xf32>
    %271 = arith.mulf %264, %270 : vector<64x256xf32>
    %cst_159 = arith.constant 0.166666672 : f32
    %272 = vector.broadcast %cst_159 : f32 to vector<64x256xf32>
    %273 = arith.mulf %271, %272 : vector<64x256xf32>
    %cst_160 = arith.constant 0.000000e+00 : f32
    %274 = vector.broadcast %cst_160 : f32 to vector<64x256xf32>
    %c17_i32_161 = arith.constant 17 : i32
    %275 = tpu.dynamic_rotate %273 by %c17_i32_161 dim 1 : vector<64x256xf32>, i32 -> vector<64x256xf32>
    %c0_162 = arith.constant 0 : index
    %c0_163 = arith.constant 0 : index
    %c0_164 = arith.constant 0 : index
    %276 = vector.load %arg4[%c0_162, %c0_163, %c0_164] : memref<9x64x256xf32, #tpu.memory_space<vmem>>, vector<1x64x256xf32>
    %277 = vector.shape_cast %276 : vector<1x64x256xf32> to vector<64x256xf32>
    %278 = arith.mulf %275, %277 : vector<64x256xf32>
    %279 = arith.addf %274, %278 : vector<64x256xf32>
    %c16_i32_165 = arith.constant 16 : i32
    %280 = tpu.dynamic_rotate %273 by %c16_i32_165 dim 1 : vector<64x256xf32>, i32 -> vector<64x256xf32>
    %c1_166 = arith.constant 1 : index
    %c0_167 = arith.constant 0 : index
    %c0_168 = arith.constant 0 : index
    %281 = vector.load %arg4[%c1_166, %c0_167, %c0_168] : memref<9x64x256xf32, #tpu.memory_space<vmem>>, vector<1x64x256xf32>
    %282 = vector.shape_cast %281 : vector<1x64x256xf32> to vector<64x256xf32>
    %283 = arith.mulf %280, %282 : vector<64x256xf32>
    %284 = arith.addf %279, %283 : vector<64x256xf32>
    %c15_i32_169 = arith.constant 15 : i32
    %285 = tpu.dynamic_rotate %273 by %c15_i32_169 dim 1 : vector<64x256xf32>, i32 -> vector<64x256xf32>
    %c2_170 = arith.constant 2 : index
    %c0_171 = arith.constant 0 : index
    %c0_172 = arith.constant 0 : index
    %286 = vector.load %arg4[%c2_170, %c0_171, %c0_172] : memref<9x64x256xf32, #tpu.memory_space<vmem>>, vector<1x64x256xf32>
    %287 = vector.shape_cast %286 : vector<1x64x256xf32> to vector<64x256xf32>
    %288 = arith.mulf %285, %287 : vector<64x256xf32>
    %289 = arith.addf %284, %288 : vector<64x256xf32>
    %c1_i32_173 = arith.constant 1 : i32
    %290 = tpu.dynamic_rotate %273 by %c1_i32_173 dim 1 : vector<64x256xf32>, i32 -> vector<64x256xf32>
    %c3_174 = arith.constant 3 : index
    %c0_175 = arith.constant 0 : index
    %c0_176 = arith.constant 0 : index
    %291 = vector.load %arg4[%c3_174, %c0_175, %c0_176] : memref<9x64x256xf32, #tpu.memory_space<vmem>>, vector<1x64x256xf32>
    %292 = vector.shape_cast %291 : vector<1x64x256xf32> to vector<64x256xf32>
    %293 = arith.mulf %290, %292 : vector<64x256xf32>
    %294 = arith.addf %289, %293 : vector<64x256xf32>
    %c4_177 = arith.constant 4 : index
    %c0_178 = arith.constant 0 : index
    %c0_179 = arith.constant 0 : index
    %295 = vector.load %arg4[%c4_177, %c0_178, %c0_179] : memref<9x64x256xf32, #tpu.memory_space<vmem>>, vector<1x64x256xf32>
    %296 = vector.shape_cast %295 : vector<1x64x256xf32> to vector<64x256xf32>
    %297 = arith.mulf %273, %296 : vector<64x256xf32>
    %298 = arith.addf %294, %297 : vector<64x256xf32>
    %c255_i32_180 = arith.constant 255 : i32
    %299 = tpu.dynamic_rotate %273 by %c255_i32_180 dim 1 : vector<64x256xf32>, i32 -> vector<64x256xf32>
    %c5_181 = arith.constant 5 : index
    %c0_182 = arith.constant 0 : index
    %c0_183 = arith.constant 0 : index
    %300 = vector.load %arg4[%c5_181, %c0_182, %c0_183] : memref<9x64x256xf32, #tpu.memory_space<vmem>>, vector<1x64x256xf32>
    %301 = vector.shape_cast %300 : vector<1x64x256xf32> to vector<64x256xf32>
    %302 = arith.mulf %299, %301 : vector<64x256xf32>
    %303 = arith.addf %298, %302 : vector<64x256xf32>
    %c241_i32_184 = arith.constant 241 : i32
    %304 = tpu.dynamic_rotate %273 by %c241_i32_184 dim 1 : vector<64x256xf32>, i32 -> vector<64x256xf32>
    %c6_185 = arith.constant 6 : index
    %c0_186 = arith.constant 0 : index
    %c0_187 = arith.constant 0 : index
    %305 = vector.load %arg4[%c6_185, %c0_186, %c0_187] : memref<9x64x256xf32, #tpu.memory_space<vmem>>, vector<1x64x256xf32>
    %306 = vector.shape_cast %305 : vector<1x64x256xf32> to vector<64x256xf32>
    %307 = arith.mulf %304, %306 : vector<64x256xf32>
    %308 = arith.addf %303, %307 : vector<64x256xf32>
    %c240_i32_188 = arith.constant 240 : i32
    %309 = tpu.dynamic_rotate %273 by %c240_i32_188 dim 1 : vector<64x256xf32>, i32 -> vector<64x256xf32>
    %c7_189 = arith.constant 7 : index
    %c0_190 = arith.constant 0 : index
    %c0_191 = arith.constant 0 : index
    %310 = vector.load %arg4[%c7_189, %c0_190, %c0_191] : memref<9x64x256xf32, #tpu.memory_space<vmem>>, vector<1x64x256xf32>
    %311 = vector.shape_cast %310 : vector<1x64x256xf32> to vector<64x256xf32>
    %312 = arith.mulf %309, %311 : vector<64x256xf32>
    %313 = arith.addf %308, %312 : vector<64x256xf32>
    %c239_i32_192 = arith.constant 239 : i32
    %314 = tpu.dynamic_rotate %273 by %c239_i32_192 dim 1 : vector<64x256xf32>, i32 -> vector<64x256xf32>
    %c8_193 = arith.constant 8 : index
    %c0_194 = arith.constant 0 : index
    %c0_195 = arith.constant 0 : index
    %315 = vector.load %arg4[%c8_193, %c0_194, %c0_195] : memref<9x64x256xf32, #tpu.memory_space<vmem>>, vector<1x64x256xf32>
    %316 = vector.shape_cast %315 : vector<1x64x256xf32> to vector<64x256xf32>
    %317 = arith.mulf %314, %316 : vector<64x256xf32>
    %318 = arith.addf %313, %317 : vector<64x256xf32>
    %c0_196 = arith.constant 0 : index
    %c0_197 = arith.constant 0 : index
    %319 = vector.load %arg5[%c0_196, %c0_197] : memref<64x1xf32, #tpu.memory_space<vmem>>, vector<64x1xf32>
    %320 = vector.broadcast %319 : vector<64x1xf32> to vector<64x256xf32>
    %321 = arith.addf %318, %320 : vector<64x256xf32>
    %cst_198 = arith.constant 3.000000e+00 : f32
    %322 = vector.broadcast %cst_198 : f32 to vector<64x256xf32>
    %323 = arith.addf %321, %322 : vector<64x256xf32>
    %cst_199 = arith.constant 0.000000e+00 : f32
    %cst_200 = arith.constant 6.000000e+00 : f32
    %324 = vector.broadcast %cst_199 : f32 to vector<64x256xf32>
    %325 = arith.maximumf %324, %323 : vector<64x256xf32>
    %326 = vector.broadcast %cst_200 : f32 to vector<64x256xf32>
    %327 = arith.minimumf %326, %325 : vector<64x256xf32>
    %328 = arith.mulf %321, %327 : vector<64x256xf32>
    %cst_201 = arith.constant 0.166666672 : f32
    %329 = vector.broadcast %cst_201 : f32 to vector<64x256xf32>
    %330 = arith.mulf %328, %329 : vector<64x256xf32>
    %cst_202 = arith.constant dense<0.000000e+00> : vector<64xf32>
    %331 = vector.multi_reduction <add>, %330, %cst_202 [1] : vector<64x256xf32> to vector<64xf32>
    %332 = vector.shape_cast %331 : vector<64xf32> to vector<64x1xf32>
    %cst_203 = arith.constant 2.560000e+02 : f32
    %333 = vector.broadcast %cst_203 : f32 to vector<64x1xf32>
    %334 = arith.divf %332, %333 : vector<64x1xf32>
    %c0_204 = arith.constant 0 : index
    %c0_205 = arith.constant 0 : index
    %335 = vector.load %arg6[%c0_204, %c0_205] : memref<64x16xf32, #tpu.memory_space<vmem>>, vector<64x16xf32>
    %336 = vector.broadcast %334 : vector<64x1xf32> to vector<64x16xf32>
    %337 = arith.mulf %335, %336 : vector<64x16xf32>
    %cst_206 = arith.constant dense<0.000000e+00> : vector<16xf32>
    %338 = vector.multi_reduction <add>, %337, %cst_206 [0] : vector<64x16xf32> to vector<16xf32>
    %339 = vector.shape_cast %338 : vector<16xf32> to vector<1x16xf32>
    %c0_207 = arith.constant 0 : index
    %c0_208 = arith.constant 0 : index
    %340 = vector.load %arg7[%c0_207, %c0_208] : memref<1x16xf32, #tpu.memory_space<vmem>>, vector<1x16xf32>
    %341 = arith.addf %339, %340 : vector<1x16xf32>
    %cst_209 = arith.constant 0.000000e+00 : f32
    %342 = vector.broadcast %cst_209 : f32 to vector<1x16xf32>
    %343 = arith.maximumf %341, %342 : vector<1x16xf32>
    %c0_210 = arith.constant 0 : index
    %c0_211 = arith.constant 0 : index
    %344 = vector.load %arg8[%c0_210, %c0_211] : memref<64x16xf32, #tpu.memory_space<vmem>>, vector<64x16xf32>
    %345 = vector.broadcast %343 : vector<1x16xf32> to vector<64x16xf32>
    %346 = arith.mulf %344, %345 : vector<64x16xf32>
    %cst_212 = arith.constant dense<0.000000e+00> : vector<64xf32>
    %347 = vector.multi_reduction <add>, %346, %cst_212 [1] : vector<64x16xf32> to vector<64xf32>
    %348 = vector.shape_cast %347 : vector<64xf32> to vector<64x1xf32>
    %c0_213 = arith.constant 0 : index
    %c0_214 = arith.constant 0 : index
    %349 = vector.load %arg9[%c0_213, %c0_214] : memref<64x1xf32, #tpu.memory_space<vmem>>, vector<64x1xf32>
    %350 = arith.addf %348, %349 : vector<64x1xf32>
    %cst_215 = arith.constant 3.000000e+00 : f32
    %351 = vector.broadcast %cst_215 : f32 to vector<64x1xf32>
    %352 = arith.addf %350, %351 : vector<64x1xf32>
    %cst_216 = arith.constant 0.000000e+00 : f32
    %cst_217 = arith.constant 6.000000e+00 : f32
    %353 = vector.broadcast %cst_216 : f32 to vector<64x1xf32>
    %354 = arith.maximumf %353, %352 : vector<64x1xf32>
    %355 = vector.broadcast %cst_217 : f32 to vector<64x1xf32>
    %356 = arith.minimumf %355, %354 : vector<64x1xf32>
    %cst_218 = arith.constant 0.166666672 : f32
    %357 = vector.broadcast %cst_218 : f32 to vector<64x1xf32>
    %358 = arith.mulf %356, %357 : vector<64x1xf32>
    %359 = vector.broadcast %358 : vector<64x1xf32> to vector<64x256xf32>
    %360 = arith.mulf %330, %359 : vector<64x256xf32>
    %c0_219 = arith.constant 0 : index
    %c0_220 = arith.constant 0 : index
    %361 = vector.load %arg10[%c0_219, %c0_220] : memref<16x64xbf16, #tpu.memory_space<vmem>>, vector<16x64xbf16>
    %362 = arith.truncf %360 : vector<64x256xf32> to vector<64x256xbf16>
    %cst_221 = arith.constant dense<0.000000e+00> : vector<16x256xf32>
    %363 = tpu.matmul %361, %362, %cst_221 {dimension_numbers = #tpu.dot_dimension_numbers<[1], [0], [0], [1], [0, 0, 1, 1], [], []>} : vector<16x64xbf16>, vector<64x256xbf16>, vector<16x256xf32> -> vector<16x256xf32>
    %c0_222 = arith.constant 0 : index
    %c0_223 = arith.constant 0 : index
    %364 = vector.load %arg11[%c0_222, %c0_223] : memref<16x1xf32, #tpu.memory_space<vmem>>, vector<16x1xf32>
    %365 = vector.broadcast %364 : vector<16x1xf32> to vector<16x256xf32>
    %366 = arith.addf %363, %365 : vector<16x256xf32>
    %cst_224 = arith.constant 3.000000e+00 : f32
    %367 = vector.broadcast %cst_224 : f32 to vector<16x256xf32>
    %368 = arith.addf %366, %367 : vector<16x256xf32>
    %cst_225 = arith.constant 0.000000e+00 : f32
    %cst_226 = arith.constant 6.000000e+00 : f32
    %369 = vector.broadcast %cst_225 : f32 to vector<16x256xf32>
    %370 = arith.maximumf %369, %368 : vector<16x256xf32>
    %371 = vector.broadcast %cst_226 : f32 to vector<16x256xf32>
    %372 = arith.minimumf %371, %370 : vector<16x256xf32>
    %373 = arith.mulf %366, %372 : vector<16x256xf32>
    %cst_227 = arith.constant 0.166666672 : f32
    %374 = vector.broadcast %cst_227 : f32 to vector<16x256xf32>
    %375 = arith.mulf %373, %374 : vector<16x256xf32>
    %376 = arith.index_cast %c2_i32 : i32 to index
    %c0_228 = arith.constant 0 : index
    %c0_229 = arith.constant 0 : index
    %377 = vector.load %arg1[%376, %c0_228, %c0_229] : memref<4x16x256xf32, #tpu.memory_space<vmem>>, vector<1x16x256xf32>
    %378 = vector.shape_cast %377 : vector<1x16x256xf32> to vector<16x256xf32>
    %379 = arith.addf %375, %378 : vector<16x256xf32>
    %380 = arith.index_cast %c2_i32 : i32 to index
    %c0_230 = arith.constant 0 : index
    %c0_231 = arith.constant 0 : index
    %381 = vector.load %arg12[%380, %c0_230, %c0_231] : memref<4x16x256xf32, #tpu.memory_space<vmem>>, vector<1x16x256xf32>
    %382 = vector.shape_cast %381 : vector<1x16x256xf32> to vector<16x256xf32>
    %383 = vector.shape_cast %379 : vector<16x256xf32> to vector<1x16x256xf32>
    tpu.vector_store %arg12[%380, %c0_230, %c0_231], %383 {strides = array<i32>} : memref<4x16x256xf32, #tpu.memory_space<vmem>>, vector<1x16x256xf32>,
    %c3_i32 = arith.constant 3 : i32
    %384 = arith.index_cast %c3_i32 : i32 to index
    %c0_232 = arith.constant 0 : index
    %c0_233 = arith.constant 0 : index
    %385 = vector.load %arg1[%384, %c0_232, %c0_233] : memref<4x16x256xf32, #tpu.memory_space<vmem>>, vector<1x16x256xf32>
    %386 = vector.shape_cast %385 : vector<1x16x256xf32> to vector<16x256xf32>
    %c0_234 = arith.constant 0 : index
    %c0_235 = arith.constant 0 : index
    %387 = vector.load %arg2[%c0_234, %c0_235] : memref<64x16xbf16, #tpu.memory_space<vmem>>, vector<64x16xbf16>
    %388 = arith.truncf %386 : vector<16x256xf32> to vector<16x256xbf16>
    %cst_236 = arith.constant dense<0.000000e+00> : vector<64x256xf32>
    %389 = tpu.matmul %387, %388, %cst_236 {dimension_numbers = #tpu.dot_dimension_numbers<[1], [0], [0], [1], [0, 0, 1, 1], [], []>} : vector<64x16xbf16>, vector<16x256xbf16>, vector<64x256xf32> -> vector<64x256xf32>
    %c0_237 = arith.constant 0 : index
    %c0_238 = arith.constant 0 : index
    %390 = vector.load %arg3[%c0_237, %c0_238] : memref<64x1xf32, #tpu.memory_space<vmem>>, vector<64x1xf32>
    %391 = vector.broadcast %390 : vector<64x1xf32> to vector<64x256xf32>
    %392 = arith.addf %389, %391 : vector<64x256xf32>
    %cst_239 = arith.constant 3.000000e+00 : f32
    %393 = vector.broadcast %cst_239 : f32 to vector<64x256xf32>
    %394 = arith.addf %392, %393 : vector<64x256xf32>
    %cst_240 = arith.constant 0.000000e+00 : f32
    %cst_241 = arith.constant 6.000000e+00 : f32
    %395 = vector.broadcast %cst_240 : f32 to vector<64x256xf32>
    %396 = arith.maximumf %395, %394 : vector<64x256xf32>
    %397 = vector.broadcast %cst_241 : f32 to vector<64x256xf32>
    %398 = arith.minimumf %397, %396 : vector<64x256xf32>
    %399 = arith.mulf %392, %398 : vector<64x256xf32>
    %cst_242 = arith.constant 0.166666672 : f32
    %400 = vector.broadcast %cst_242 : f32 to vector<64x256xf32>
    %401 = arith.mulf %399, %400 : vector<64x256xf32>
    %cst_243 = arith.constant 0.000000e+00 : f32
    %402 = vector.broadcast %cst_243 : f32 to vector<64x256xf32>
    %c17_i32_244 = arith.constant 17 : i32
    %403 = tpu.dynamic_rotate %401 by %c17_i32_244 dim 1 : vector<64x256xf32>, i32 -> vector<64x256xf32>
    %c0_245 = arith.constant 0 : index
    %c0_246 = arith.constant 0 : index
    %c0_247 = arith.constant 0 : index
    %404 = vector.load %arg4[%c0_245, %c0_246, %c0_247] : memref<9x64x256xf32, #tpu.memory_space<vmem>>, vector<1x64x256xf32>
    %405 = vector.shape_cast %404 : vector<1x64x256xf32> to vector<64x256xf32>
    %406 = arith.mulf %403, %405 : vector<64x256xf32>
    %407 = arith.addf %402, %406 : vector<64x256xf32>
    %c16_i32_248 = arith.constant 16 : i32
    %408 = tpu.dynamic_rotate %401 by %c16_i32_248 dim 1 : vector<64x256xf32>, i32 -> vector<64x256xf32>
    %c1_249 = arith.constant 1 : index
    %c0_250 = arith.constant 0 : index
    %c0_251 = arith.constant 0 : index
    %409 = vector.load %arg4[%c1_249, %c0_250, %c0_251] : memref<9x64x256xf32, #tpu.memory_space<vmem>>, vector<1x64x256xf32>
    %410 = vector.shape_cast %409 : vector<1x64x256xf32> to vector<64x256xf32>
    %411 = arith.mulf %408, %410 : vector<64x256xf32>
    %412 = arith.addf %407, %411 : vector<64x256xf32>
    %c15_i32_252 = arith.constant 15 : i32
    %413 = tpu.dynamic_rotate %401 by %c15_i32_252 dim 1 : vector<64x256xf32>, i32 -> vector<64x256xf32>
    %c2_253 = arith.constant 2 : index
    %c0_254 = arith.constant 0 : index
    %c0_255 = arith.constant 0 : index
    %414 = vector.load %arg4[%c2_253, %c0_254, %c0_255] : memref<9x64x256xf32, #tpu.memory_space<vmem>>, vector<1x64x256xf32>
    %415 = vector.shape_cast %414 : vector<1x64x256xf32> to vector<64x256xf32>
    %416 = arith.mulf %413, %415 : vector<64x256xf32>
    %417 = arith.addf %412, %416 : vector<64x256xf32>
    %c1_i32_256 = arith.constant 1 : i32
    %418 = tpu.dynamic_rotate %401 by %c1_i32_256 dim 1 : vector<64x256xf32>, i32 -> vector<64x256xf32>
    %c3_257 = arith.constant 3 : index
    %c0_258 = arith.constant 0 : index
    %c0_259 = arith.constant 0 : index
    %419 = vector.load %arg4[%c3_257, %c0_258, %c0_259] : memref<9x64x256xf32, #tpu.memory_space<vmem>>, vector<1x64x256xf32>
    %420 = vector.shape_cast %419 : vector<1x64x256xf32> to vector<64x256xf32>
    %421 = arith.mulf %418, %420 : vector<64x256xf32>
    %422 = arith.addf %417, %421 : vector<64x256xf32>
    %c4_260 = arith.constant 4 : index
    %c0_261 = arith.constant 0 : index
    %c0_262 = arith.constant 0 : index
    %423 = vector.load %arg4[%c4_260, %c0_261, %c0_262] : memref<9x64x256xf32, #tpu.memory_space<vmem>>, vector<1x64x256xf32>
    %424 = vector.shape_cast %423 : vector<1x64x256xf32> to vector<64x256xf32>
    %425 = arith.mulf %401, %424 : vector<64x256xf32>
    %426 = arith.addf %422, %425 : vector<64x256xf32>
    %c255_i32_263 = arith.constant 255 : i32
    %427 = tpu.dynamic_rotate %401 by %c255_i32_263 dim 1 : vector<64x256xf32>, i32 -> vector<64x256xf32>
    %c5_264 = arith.constant 5 : index
    %c0_265 = arith.constant 0 : index
    %c0_266 = arith.constant 0 : index
    %428 = vector.load %arg4[%c5_264, %c0_265, %c0_266] : memref<9x64x256xf32, #tpu.memory_space<vmem>>, vector<1x64x256xf32>
    %429 = vector.shape_cast %428 : vector<1x64x256xf32> to vector<64x256xf32>
    %430 = arith.mulf %427, %429 : vector<64x256xf32>
    %431 = arith.addf %426, %430 : vector<64x256xf32>
    %c241_i32_267 = arith.constant 241 : i32
    %432 = tpu.dynamic_rotate %401 by %c241_i32_267 dim 1 : vector<64x256xf32>, i32 -> vector<64x256xf32>
    %c6_268 = arith.constant 6 : index
    %c0_269 = arith.constant 0 : index
    %c0_270 = arith.constant 0 : index
    %433 = vector.load %arg4[%c6_268, %c0_269, %c0_270] : memref<9x64x256xf32, #tpu.memory_space<vmem>>, vector<1x64x256xf32>
    %434 = vector.shape_cast %433 : vector<1x64x256xf32> to vector<64x256xf32>
    %435 = arith.mulf %432, %434 : vector<64x256xf32>
    %436 = arith.addf %431, %435 : vector<64x256xf32>
    %c240_i32_271 = arith.constant 240 : i32
    %437 = tpu.dynamic_rotate %401 by %c240_i32_271 dim 1 : vector<64x256xf32>, i32 -> vector<64x256xf32>
    %c7_272 = arith.constant 7 : index
    %c0_273 = arith.constant 0 : index
    %c0_274 = arith.constant 0 : index
    %438 = vector.load %arg4[%c7_272, %c0_273, %c0_274] : memref<9x64x256xf32, #tpu.memory_space<vmem>>, vector<1x64x256xf32>
    %439 = vector.shape_cast %438 : vector<1x64x256xf32> to vector<64x256xf32>
    %440 = arith.mulf %437, %439 : vector<64x256xf32>
    %441 = arith.addf %436, %440 : vector<64x256xf32>
    %c239_i32_275 = arith.constant 239 : i32
    %442 = tpu.dynamic_rotate %401 by %c239_i32_275 dim 1 : vector<64x256xf32>, i32 -> vector<64x256xf32>
    %c8_276 = arith.constant 8 : index
    %c0_277 = arith.constant 0 : index
    %c0_278 = arith.constant 0 : index
    %443 = vector.load %arg4[%c8_276, %c0_277, %c0_278] : memref<9x64x256xf32, #tpu.memory_space<vmem>>, vector<1x64x256xf32>
    %444 = vector.shape_cast %443 : vector<1x64x256xf32> to vector<64x256xf32>
    %445 = arith.mulf %442, %444 : vector<64x256xf32>
    %446 = arith.addf %441, %445 : vector<64x256xf32>
    %c0_279 = arith.constant 0 : index
    %c0_280 = arith.constant 0 : index
    %447 = vector.load %arg5[%c0_279, %c0_280] : memref<64x1xf32, #tpu.memory_space<vmem>>, vector<64x1xf32>
    %448 = vector.broadcast %447 : vector<64x1xf32> to vector<64x256xf32>
    %449 = arith.addf %446, %448 : vector<64x256xf32>
    %cst_281 = arith.constant 3.000000e+00 : f32
    %450 = vector.broadcast %cst_281 : f32 to vector<64x256xf32>
    %451 = arith.addf %449, %450 : vector<64x256xf32>
    %cst_282 = arith.constant 0.000000e+00 : f32
    %cst_283 = arith.constant 6.000000e+00 : f32
    %452 = vector.broadcast %cst_282 : f32 to vector<64x256xf32>
    %453 = arith.maximumf %452, %451 : vector<64x256xf32>
    %454 = vector.broadcast %cst_283 : f32 to vector<64x256xf32>
    %455 = arith.minimumf %454, %453 : vector<64x256xf32>
    %456 = arith.mulf %449, %455 : vector<64x256xf32>
    %cst_284 = arith.constant 0.166666672 : f32
    %457 = vector.broadcast %cst_284 : f32 to vector<64x256xf32>
    %458 = arith.mulf %456, %457 : vector<64x256xf32>
    %cst_285 = arith.constant dense<0.000000e+00> : vector<64xf32>
    %459 = vector.multi_reduction <add>, %458, %cst_285 [1] : vector<64x256xf32> to vector<64xf32>
    %460 = vector.shape_cast %459 : vector<64xf32> to vector<64x1xf32>
    %cst_286 = arith.constant 2.560000e+02 : f32
    %461 = vector.broadcast %cst_286 : f32 to vector<64x1xf32>
    %462 = arith.divf %460, %461 : vector<64x1xf32>
    %c0_287 = arith.constant 0 : index
    %c0_288 = arith.constant 0 : index
    %463 = vector.load %arg6[%c0_287, %c0_288] : memref<64x16xf32, #tpu.memory_space<vmem>>, vector<64x16xf32>
    %464 = vector.broadcast %462 : vector<64x1xf32> to vector<64x16xf32>
    %465 = arith.mulf %463, %464 : vector<64x16xf32>
    %cst_289 = arith.constant dense<0.000000e+00> : vector<16xf32>
    %466 = vector.multi_reduction <add>, %465, %cst_289 [0] : vector<64x16xf32> to vector<16xf32>
    %467 = vector.shape_cast %466 : vector<16xf32> to vector<1x16xf32>
    %c0_290 = arith.constant 0 : index
    %c0_291 = arith.constant 0 : index
    %468 = vector.load %arg7[%c0_290, %c0_291] : memref<1x16xf32, #tpu.memory_space<vmem>>, vector<1x16xf32>
    %469 = arith.addf %467, %468 : vector<1x16xf32>
    %cst_292 = arith.constant 0.000000e+00 : f32
    %470 = vector.broadcast %cst_292 : f32 to vector<1x16xf32>
    %471 = arith.maximumf %469, %470 : vector<1x16xf32>
    %c0_293 = arith.constant 0 : index
    %c0_294 = arith.constant 0 : index
    %472 = vector.load %arg8[%c0_293, %c0_294] : memref<64x16xf32, #tpu.memory_space<vmem>>, vector<64x16xf32>
    %473 = vector.broadcast %471 : vector<1x16xf32> to vector<64x16xf32>
    %474 = arith.mulf %472, %473 : vector<64x16xf32>
    %cst_295 = arith.constant dense<0.000000e+00> : vector<64xf32>
    %475 = vector.multi_reduction <add>, %474, %cst_295 [1] : vector<64x16xf32> to vector<64xf32>
    %476 = vector.shape_cast %475 : vector<64xf32> to vector<64x1xf32>
    %c0_296 = arith.constant 0 : index
    %c0_297 = arith.constant 0 : index
    %477 = vector.load %arg9[%c0_296, %c0_297] : memref<64x1xf32, #tpu.memory_space<vmem>>, vector<64x1xf32>
    %478 = arith.addf %476, %477 : vector<64x1xf32>
    %cst_298 = arith.constant 3.000000e+00 : f32
    %479 = vector.broadcast %cst_298 : f32 to vector<64x1xf32>
    %480 = arith.addf %478, %479 : vector<64x1xf32>
    %cst_299 = arith.constant 0.000000e+00 : f32
    %cst_300 = arith.constant 6.000000e+00 : f32
    %481 = vector.broadcast %cst_299 : f32 to vector<64x1xf32>
    %482 = arith.maximumf %481, %480 : vector<64x1xf32>
    %483 = vector.broadcast %cst_300 : f32 to vector<64x1xf32>
    %484 = arith.minimumf %483, %482 : vector<64x1xf32>
    %cst_301 = arith.constant 0.166666672 : f32
    %485 = vector.broadcast %cst_301 : f32 to vector<64x1xf32>
    %486 = arith.mulf %484, %485 : vector<64x1xf32>
    %487 = vector.broadcast %486 : vector<64x1xf32> to vector<64x256xf32>
    %488 = arith.mulf %458, %487 : vector<64x256xf32>
    %c0_302 = arith.constant 0 : index
    %c0_303 = arith.constant 0 : index
    %489 = vector.load %arg10[%c0_302, %c0_303] : memref<16x64xbf16, #tpu.memory_space<vmem>>, vector<16x64xbf16>
    %490 = arith.truncf %488 : vector<64x256xf32> to vector<64x256xbf16>
    %cst_304 = arith.constant dense<0.000000e+00> : vector<16x256xf32>
    %491 = tpu.matmul %489, %490, %cst_304 {dimension_numbers = #tpu.dot_dimension_numbers<[1], [0], [0], [1], [0, 0, 1, 1], [], []>} : vector<16x64xbf16>, vector<64x256xbf16>, vector<16x256xf32> -> vector<16x256xf32>
    %c0_305 = arith.constant 0 : index
    %c0_306 = arith.constant 0 : index
    %492 = vector.load %arg11[%c0_305, %c0_306] : memref<16x1xf32, #tpu.memory_space<vmem>>, vector<16x1xf32>
    %493 = vector.broadcast %492 : vector<16x1xf32> to vector<16x256xf32>
    %494 = arith.addf %491, %493 : vector<16x256xf32>
    %cst_307 = arith.constant 3.000000e+00 : f32
    %495 = vector.broadcast %cst_307 : f32 to vector<16x256xf32>
    %496 = arith.addf %494, %495 : vector<16x256xf32>
    %cst_308 = arith.constant 0.000000e+00 : f32
    %cst_309 = arith.constant 6.000000e+00 : f32
    %497 = vector.broadcast %cst_308 : f32 to vector<16x256xf32>
    %498 = arith.maximumf %497, %496 : vector<16x256xf32>
    %499 = vector.broadcast %cst_309 : f32 to vector<16x256xf32>
    %500 = arith.minimumf %499, %498 : vector<16x256xf32>
    %501 = arith.mulf %494, %500 : vector<16x256xf32>
    %cst_310 = arith.constant 0.166666672 : f32
    %502 = vector.broadcast %cst_310 : f32 to vector<16x256xf32>
    %503 = arith.mulf %501, %502 : vector<16x256xf32>
    %504 = arith.index_cast %c3_i32 : i32 to index
    %c0_311 = arith.constant 0 : index
    %c0_312 = arith.constant 0 : index
    %505 = vector.load %arg1[%504, %c0_311, %c0_312] : memref<4x16x256xf32, #tpu.memory_space<vmem>>, vector<1x16x256xf32>
    %506 = vector.shape_cast %505 : vector<1x16x256xf32> to vector<16x256xf32>
    %507 = arith.addf %503, %506 : vector<16x256xf32>
    %508 = arith.index_cast %c3_i32 : i32 to index
    %c0_313 = arith.constant 0 : index
    %c0_314 = arith.constant 0 : index
    %509 = vector.load %arg12[%508, %c0_313, %c0_314] : memref<4x16x256xf32, #tpu.memory_space<vmem>>, vector<1x16x256xf32>
    %510 = vector.shape_cast %509 : vector<1x16x256xf32> to vector<16x256xf32>
    %511 = vector.shape_cast %507 : vector<16x256xf32> to vector<1x16x256xf32>
    tpu.vector_store %arg12[%508, %c0_313, %c0_314], %511 {strides = array<i32>} : memref<4x16x256xf32, #tpu.memory_space<vmem>>, vector<1x16x256xf32>,
    %c4_i32 = arith.constant 4 : i32
    return
  }
  func.func @transform_0(%arg0: i32) -> (i32, i32, i32) {
    %c0_i32 = arith.constant 0 : i32
    %c0_i32_0 = arith.constant 0 : i32
    %c0_i32_1 = arith.constant 0 : i32
    return %arg0, %c0_i32, %c0_i32_0 : i32, i32, i32
  }
  func.func @transform_1(%arg0: i32) -> (i32, i32) {
    %c0_i32 = arith.constant 0 : i32
    %c0_i32_0 = arith.constant 0 : i32
    %c0_i32_1 = arith.constant 0 : i32
    return %c0_i32, %c0_i32_0 : i32, i32
  }
  func.func @transform_2(%arg0: i32) -> (i32, i32) {
    %c0_i32 = arith.constant 0 : i32
    %c0_i32_0 = arith.constant 0 : i32
    %c0_i32_1 = arith.constant 0 : i32
    return %c0_i32, %c0_i32_0 : i32, i32
  }
  func.func @transform_3(%arg0: i32) -> (i32, i32, i32) {
    %c0_i32 = arith.constant 0 : i32
    %c0_i32_0 = arith.constant 0 : i32
    %c0_i32_1 = arith.constant 0 : i32
    %c0_i32_2 = arith.constant 0 : i32
    return %c0_i32, %c0_i32_0, %c0_i32_1 : i32, i32, i32
  }
  func.func @transform_4(%arg0: i32) -> (i32, i32) {
    %c0_i32 = arith.constant 0 : i32
    %c0_i32_0 = arith.constant 0 : i32
    %c0_i32_1 = arith.constant 0 : i32
    return %c0_i32, %c0_i32_0 : i32, i32
  }
  func.func @transform_5(%arg0: i32) -> (i32, i32) {
    %c0_i32 = arith.constant 0 : i32
    %c0_i32_0 = arith.constant 0 : i32
    %c0_i32_1 = arith.constant 0 : i32
    return %c0_i32, %c0_i32_0 : i32, i32
  }
  func.func @transform_6(%arg0: i32) -> (i32, i32) {
    %c0_i32 = arith.constant 0 : i32
    %c0_i32_0 = arith.constant 0 : i32
    %c0_i32_1 = arith.constant 0 : i32
    return %c0_i32, %c0_i32_0 : i32, i32
  }
  func.func @transform_7(%arg0: i32) -> (i32, i32) {
    %c0_i32 = arith.constant 0 : i32
    %c0_i32_0 = arith.constant 0 : i32
    %c0_i32_1 = arith.constant 0 : i32
    return %c0_i32, %c0_i32_0 : i32, i32
  }
  func.func @transform_8(%arg0: i32) -> (i32, i32) {
    %c0_i32 = arith.constant 0 : i32
    %c0_i32_0 = arith.constant 0 : i32
    %c0_i32_1 = arith.constant 0 : i32
    return %c0_i32, %c0_i32_0 : i32, i32
  }
  func.func @transform_9(%arg0: i32) -> (i32, i32) {
    %c0_i32 = arith.constant 0 : i32
    %c0_i32_0 = arith.constant 0 : i32
    %c0_i32_1 = arith.constant 0 : i32
    return %c0_i32, %c0_i32_0 : i32, i32
  }
  func.func @transform_10(%arg0: i32) -> (i32, i32) {
    %c0_i32 = arith.constant 0 : i32
    %c0_i32_0 = arith.constant 0 : i32
    %c0_i32_1 = arith.constant 0 : i32
    return %c0_i32, %c0_i32_0 : i32, i32
  }
  func.func @transform_11(%arg0: i32) -> (i32, i32, i32) {
    %c0_i32 = arith.constant 0 : i32
    %c0_i32_0 = arith.constant 0 : i32
    %c0_i32_1 = arith.constant 0 : i32
    return %arg0, %c0_i32, %c0_i32_0 : i32, i32, i32
  }
}

</mosaic_0001>

<llo_original>
// kernel: tpu_custom_call.1
$region0: #{tpu_custom_call.1}
  #allocation0 [shape = 'u32[]', space=smem, size = 0x4, offset = 0x4, fixed_abs, tag = 'smem constant byte address 0x4 - core index']
  #allocation1 [shape = 'u32[144,128]{1,0:T(1,128)}', space=vmem, size = 0x12000, scoped, tag = 'internal scratch']
  %s0 = inlined_call_operand.vmem [shape: f32[8,16,256], index: 0, kind: input, shape index: {}]
  %s1 = inlined_call_operand.vmem [shape: bf16[64,16], index: 1, kind: input, shape index: {}]
  %s2 = inlined_call_operand.vmem [shape: f32[64,1], index: 2, kind: input, shape index: {}]
  %s3 = inlined_call_operand.hbm [shape: f32[9,64,256], index: 3, kind: input, shape index: {}]
  %s4 = inlined_call_operand.vmem [shape: f32[64,1], index: 4, kind: input, shape index: {}]
  %s5 = inlined_call_operand.vmem [shape: f32[64,16], index: 5, kind: input, shape index: {}]
  %s6 = inlined_call_operand.vmem [shape: f32[1,16], index: 6, kind: input, shape index: {}]
  %s7 = inlined_call_operand.vmem [shape: f32[64,16], index: 7, kind: input, shape index: {}]
  %s8 = inlined_call_operand.vmem [shape: f32[64,1], index: 8, kind: input, shape index: {}]
  %s9 = inlined_call_operand.vmem [shape: bf16[16,64], index: 9, kind: input, shape index: {}]
  %s10 = inlined_call_operand.vmem [shape: f32[16,1], index: 10, kind: input, shape index: {}]
  %s11 = inlined_call_operand.hbm [shape: f32[8,16,256], index: 11, kind: output, shape index: {}]
  %s12 = sld [smem:[#allocation0]]
  $region81: #{tpu_custom_call.1} parent=0
    _
  %s14 = ssub.s32 1, %s12
  %s15 = scalar_select 0, %s14, %s12
  $region1: #{tpu_custom_call.1} parent=0
    #allocation2 [shape = 'u8[589824]{0}', space=vmem, size = 0x90000, scoped, tag = 'input window, operand 3, single buffered']
    #allocation3 [shape = 's32[2]{0}', space=sflag, size = 0x8, scoped, tag = 'scoped memory for tpu_custom_call.1']
    #allocation4 [shape = 's32[2]{0}', space=sflag, size = 0x8, scoped, tag = 'scoped memory for tpu_custom_call.1']
    #allocation5 [shape = 'u8[131072]{0}', space=vmem, size = 0x20000, scoped, tag = 'output window, operand 0']
    %16 = vsyncpa [#allocation3], 0
    %17 = vsyncpa [#allocation4], 0
    %s18 = scalar_lea.sflag [#allocation4], 1
    %19 = vsyncpa %s18, 0
    loop: start=0, step=1, limit=4
    $region2: #{tpu_custom_call.1} parent=1 // loop_pre_header
      _
    $region3: #{tpu_custom_call.1} parent=1 // loop_header
      %s21 = sphi 0, %s25
      %p22 = scmp.ge.s32.totalorder %s21, 4
      %s31 = sphi 0, %s33
      %s34 = sphi 0, %s31
      %s35 = sphi 0, %s34
      %s51 = sphi 0, %s35
      %s55 = sphi 0, %s55
      %s57 = sphi 0, %s55
      %s58 = sphi 0, %s57
      %s72 = sphi 0, %s58
      %s76 = sphi 0, %s76
      %s78 = sphi 0, %s76
      %s79 = sphi 0, %s78
      %s93 = sphi 0, %s79
      %s97 = sphi 0, %s97
      %s99 = sphi 0, %s97
      %s100 = sphi 0, %s99
      %s114 = sphi 0, %s100
      %s118 = sphi 0, %s118
      %s120 = sphi 0, %s118
      %s121 = sphi 0, %s120
      %s135 = sphi 0, %s121
      %s139 = sphi 0, %s139
      %s141 = sphi 0, %s139
      %s142 = sphi 0, %s141
      %s156 = sphi 0, %s142
      %s160 = sphi 0, %s160
      %s162 = sphi 0, %s160
      %s163 = sphi 0, %s162
      %s177 = sphi 0, %s163
      %s181 = sphi 0, %s181
      %s183 = sphi 0, %s181
      %s184 = sphi 0, %s183
      %s198 = sphi 0, %s184
      %s202 = sphi 0, %s202
      %s204 = sphi 0, %s202
      %s205 = sphi 0, %s204
      %s219 = sphi 0, %s205
      %s223 = sphi 0, %s223
      %s225 = sphi 0, %s223
      %s226 = sphi 0, %s225
      %s240 = sphi 0, %s226
      %s244 = sphi 0, %s244
      %s246 = sphi 0, %s244
      %s247 = sphi 0, %s246
      %s261 = sphi 0, %s247
      %s267 = sphi 0, %s269
      %s270 = sphi 0, %s267
      %s271 = sphi 0, %s270
      %s287 = sphi 0, %s271
    $region4: #{tpu_custom_call.1} parent=1 // loop_header_branch
      %24 = sbr.rel (%p22) target = $region8
    $region5: #{tpu_custom_call.1} parent=1 // loop_body
      %s26 = ssub.s32 %s21, 1
      %s27 = ssub.s32 %s21, 2
      %s28 = sadd.s32 %s21, 1
      %s29 = ssub.s32 %s21, %s28
      %p30 = scmp.eq.s32.totalorder %s29, 0
      %s32 = sadd.s32 %s31, 1
      %s33 = scalar_select %p30, %s31, %s32
      %p36 = pneg %p30
      %p37 = scmp.eq.s32.totalorder %s21, 1
      %p38 = por %p36, %p37
      %p39 = scmp.ne.s32.totalorder %s31, %s34
      %p40 = scmp.eq.s32.totalorder %s21, 0
      %p41 = por %p39, %p40
      %p42 = scmp.ne.s32.totalorder %s31, %s34
      %p43 = scmp.eq.s32.totalorder %s26, 1
      %p44 = por %p42, %p43
      %p45 = scmp.ne.s32.totalorder %s34, %s35
      %p46 = scmp.eq.s32.totalorder %s26, 0
      %p47 = por %p45, %p46
      %p48 = scmp.ne.s32.totalorder %s34, %s35
      %p49 = scmp.eq.s32.totalorder %s27, 1
      %p50 = por %p48, %p49
      %p52 = scmp.ne.s32.totalorder %s35, %s51
      %p53 = scmp.eq.s32.totalorder %s27, 0
      %p54 = por %p52, %p53
      %s56 = sadd.s32 %s55, 1
      %p59 = scmp.eq.s32.totalorder %s21, 1
      %p60 = scmp.ne.s32.totalorder %s55, %s57
      %p61 = scmp.eq.s32.totalorder %s21, 0
      %p62 = por %p60, %p61
      %p63 = scmp.ne.s32.totalorder %s55, %s57
      %p64 = scmp.eq.s32.totalorder %s26, 1
      %p65 = por %p63, %p64
      %p66 = scmp.ne.s32.totalorder %s57, %s58
      %p67 = scmp.eq.s32.totalorder %s26, 0
      %p68 = por %p66, %p67
      %p69 = scmp.ne.s32.totalorder %s57, %s58
      %p70 = scmp.eq.s32.totalorder %s27, 1
      %p71 = por %p69, %p70
      %p73 = scmp.ne.s32.totalorder %s58, %s72
      %p74 = scmp.eq.s32.totalorder %s27, 0
      %p75 = por %p73, %p74
      %s77 = sadd.s32 %s76, 1
      %p80 = scmp.eq.s32.totalorder %s21, 1
      %p81 = scmp.ne.s32.totalorder %s76, %s78
      %p82 = scmp.eq.s32.totalorder %s21, 0
      %p83 = por %p81, %p82
      %p84 = scmp.ne.s32.totalorder %s76, %s78
      %p85 = scmp.eq.s32.totalorder %s26, 1
      %p86 = por %p84, %p85
      %p87 = scmp.ne.s32.totalorder %s78, %s79
      %p88 = scmp.eq.s32.totalorder %s26, 0
      %p89 = por %p87, %p88
      %p90 = scmp.ne.s32.totalorder %s78, %s79
      %p91 = scmp.eq.s32.totalorder %s27, 1
      %p92 = por %p90, %p91
      %p94 = scmp.ne.s32.totalorder %s79, %s93
      %p95 = scmp.eq.s32.totalorder %s27, 0
      %p96 = por %p94, %p95
      %s98 = sadd.s32 %s97, 1
      %p101 = scmp.eq.s32.totalorder %s21, 1
      %p102 = scmp.ne.s32.totalorder %s97, %s99
      %p103 = scmp.eq.s32.totalorder %s21, 0
      %p104 = por %p102, %p103
      %p105 = scmp.ne.s32.totalorder %s97, %s99
      %p106 = scmp.eq.s32.totalorder %s26, 1
      %p107 = por %p105, %p106
      %p108 = scmp.ne.s32.totalorder %s99, %s100
      %p109 = scmp.eq.s32.totalorder %s26, 0
      %p110 = por %p108, %p109
      %p111 = scmp.ne.s32.totalorder %s99, %s100
      %p112 = scmp.eq.s32.totalorder %s27, 1
      %p113 = por %p111, %p112
      %p115 = scmp.ne.s32.totalorder %s100, %s114
      %p116 = scmp.eq.s32.totalorder %s27, 0
      %p117 = por %p115, %p116
      %s119 = sadd.s32 %s118, 1
      %p122 = scmp.eq.s32.totalorder %s21, 1
      %p123 = scmp.ne.s32.totalorder %s118, %s120
      %p124 = scmp.eq.s32.totalorder %s21, 0
      %p125 = por %p123, %p124
      %p126 = scmp.ne.s32.totalorder %s118, %s120
      %p127 = scmp.eq.s32.totalorder %s26, 1
      %p128 = por %p126, %p127
      %p129 = scmp.ne.s32.totalorder %s120, %s121
      %p130 = scmp.eq.s32.totalorder %s26, 0
      %p131 = por %p129, %p130
      %p132 = scmp.ne.s32.totalorder %s120, %s121
      %p133 = scmp.eq.s32.totalorder %s27, 1
      %p134 = por %p132, %p133
      %p136 = scmp.ne.s32.totalorder %s121, %s135
      %p137 = scmp.eq.s32.totalorder %s27, 0
      %p138 = por %p136, %p137
      %s140 = sadd.s32 %s139, 1
      %p143 = scmp.eq.s32.totalorder %s21, 1
      %p144 = scmp.ne.s32.totalorder %s139, %s141
      %p145 = scmp.eq.s32.totalorder %s21, 0
      %p146 = por %p144, %p145
      %p147 = scmp.ne.s32.totalorder %s139, %s141
      %p148 = scmp.eq.s32.totalorder %s26, 1
      %p149 = por %p147, %p148
      %p150 = scmp.ne.s32.totalorder %s141, %s142
      %p151 = scmp.eq.s32.totalorder %s26, 0
      %p152 = por %p150, %p151
      %p153 = scmp.ne.s32.totalorder %s141, %s142
      %p154 = scmp.eq.s32.totalorder %s27, 1
      %p155 = por %p153, %p154
      %p157 = scmp.ne.s32.totalorder %s142, %s156
      %p158 = scmp.eq.s32.totalorder %s27, 0
      %p159 = por %p157, %p158
      %s161 = sadd.s32 %s160, 1
      %p164 = scmp.eq.s32.totalorder %s21, 1
      %p165 = scmp.ne.s32.totalorder %s160, %s162
      %p166 = scmp.eq.s32.totalorder %s21, 0
      %p167 = por %p165, %p166
      %p168 = scmp.ne.s32.totalorder %s160, %s162
      %p169 = scmp.eq.s32.totalorder %s26, 1
      %p170 = por %p168, %p169
      %p171 = scmp.ne.s32.totalorder %s162, %s163
      %p172 = scmp.eq.s32.totalorder %s26, 0
      %p173 = por %p171, %p172
      %p174 = scmp.ne.s32.totalorder %s162, %s163
      %p175 = scmp.eq.s32.totalorder %s27, 1
      %p176 = por %p174, %p175
      %p178 = scmp.ne.s32.totalorder %s163, %s177
      %p179 = scmp.eq.s32.totalorder %s27, 0
      %p180 = por %p178, %p179
      %s182 = sadd.s32 %s181, 1
      %p185 = scmp.eq.s32.totalorder %s21, 1
      %p186 = scmp.ne.s32.totalorder %s181, %s183
      %p187 = scmp.eq.s32.totalorder %s21, 0
      %p188 = por %p186, %p187
      %p189 = scmp.ne.s32.totalorder %s181, %s183
      %p190 = scmp.eq.s32.totalorder %s26, 1
      %p191 = por %p189, %p190
      %p192 = scmp.ne.s32.totalorder %s183, %s184
      %p193 = scmp.eq.s32.totalorder %s26, 0
      %p194 = por %p192, %p193
      %p195 = scmp.ne.s32.totalorder %s183, %s184
      %p196 = scmp.eq.s32.totalorder %s27, 1
      %p197 = por %p195, %p196
      %p199 = scmp.ne.s32.totalorder %s184, %s198
      %p200 = scmp.eq.s32.totalorder %s27, 0
      %p201 = por %p199, %p200
      %s203 = sadd.s32 %s202, 1
      %p206 = scmp.eq.s32.totalorder %s21, 1
      %p207 = scmp.ne.s32.totalorder %s202, %s204
      %p208 = scmp.eq.s32.totalorder %s21, 0
      %p209 = por %p207, %p208
      %p210 = scmp.ne.s32.totalorder %s202, %s204
      %p211 = scmp.eq.s32.totalorder %s26, 1
      %p212 = por %p210, %p211
      %p213 = scmp.ne.s32.totalorder %s204, %s205
      %p214 = scmp.eq.s32.totalorder %s26, 0
      %p215 = por %p213, %p214
      %p216 = scmp.ne.s32.totalorder %s204, %s205
      %p217 = scmp.eq.s32.totalorder %s27, 1
      %p218 = por %p216, %p217
      %p220 = scmp.ne.s32.totalorder %s205, %s219
      %p221 = scmp.eq.s32.totalorder %s27, 0
      %p222 = por %p220, %p221
      %s224 = sadd.s32 %s223, 1
      %p227 = scmp.eq.s32.totalorder %s21, 1
      %p228 = scmp.ne.s32.totalorder %s223, %s225
      %p229 = scmp.eq.s32.totalorder %s21, 0
      %p230 = por %p228, %p229
      %p231 = scmp.ne.s32.totalorder %s223, %s225
      %p232 = scmp.eq.s32.totalorder %s26, 1
      %p233 = por %p231, %p232
      %p234 = scmp.ne.s32.totalorder %s225, %s226
      %p235 = scmp.eq.s32.totalorder %s26, 0
      %p236 = por %p234, %p235
      %p237 = scmp.ne.s32.totalorder %s225, %s226
      %p238 = scmp.eq.s32.totalorder %s27, 1
      %p239 = por %p237, %p238
      %p241 = scmp.ne.s32.totalorder %s226, %s240
      %p242 = scmp.eq.s32.totalorder %s27, 0
      %p243 = por %p241, %p242
      %s245 = sadd.s32 %s244, 1
      %p248 = scmp.eq.s32.totalorder %s21, 1
      %p249 = scmp.ne.s32.totalorder %s244, %s246
      %p250 = scmp.eq.s32.totalorder %s21, 0
      %p251 = por %p249, %p250
      %p252 = scmp.ne.s32.totalorder %s244, %s246
      %p253 = scmp.eq.s32.totalorder %s26, 1
      %p254 = por %p252, %p253
      %p255 = scmp.ne.s32.totalorder %s246, %s247
      %p256 = scmp.eq.s32.totalorder %s26, 0
      %p257 = por %p255, %p256
      %p258 = scmp.ne.s32.totalorder %s246, %s247
      %p259 = scmp.eq.s32.totalorder %s27, 1
      %p260 = por %p258, %p259
      %p262 = scmp.ne.s32.totalorder %s247, %s261
      %p263 = scmp.eq.s32.totalorder %s27, 0
      %p264 = por %p262, %p263
      %s265 = ssub.s32 %s21, %s28
      %p266 = scmp.eq.s32.totalorder %s265, 0
      %s268 = sadd.s32 %s267, 1
      %s269 = scalar_select %p266, %s267, %s268
      %p272 = pneg %p266
      %p273 = scmp.eq.s32.totalorder %s21, 1
      %p274 = por %p272, %p273
      %p275 = scmp.ne.s32.totalorder %s267, %s270
      %p276 = scmp.eq.s32.totalorder %s21, 0
      %p277 = por %p275, %p276
      %p278 = scmp.ne.s32.totalorder %s267, %s270
      %p279 = scmp.eq.s32.totalorder %s26, 1
      %p280 = por %p278, %p279
      %p281 = scmp.ne.s32.totalorder %s270, %s271
      %p282 = scmp.eq.s32.totalorder %s26, 0
      %p283 = por %p281, %p282
      %p284 = scmp.ne.s32.totalorder %s270, %s271
      %p285 = scmp.eq.s32.totalorder %s27, 1
      %p286 = por %p284, %p285
      %p288 = scmp.ne.s32.totalorder %s271, %s287
      %p289 = scmp.eq.s32.totalorder %s27, 0
      %p290 = por %p288, %p289
      %p291 = scmp.le.s32.totalorder 1, %s21
      %p292 = scmp.lt.s32.totalorder %s21, 3
      %p293 = pnand %p291, %p292
      %p294 = pneg %p293
      // Predicated region
      $region9: #{tpu_custom_call.1} parent=5 // pred_check
        _
      $region10: #{tpu_custom_call.1} parent=5 // pred_check_branch
        %296 = sbr.rel (%p293) target = $region12
      $region11: #{tpu_custom_call.1} parent=5 // pred_region
        %s297 = ssub.s32 %s21, 1
        // Predicated region
        $region13: #{tpu_custom_call.1} parent=11 // pred_check
          %p298 = pneg %p68
        $region14: #{tpu_custom_call.1} parent=11 // pred_check_branch
          %300 = sbr.rel (%p298) target = $region16
        $region15: #{tpu_custom_call.1} parent=11 // pred_region
          _
        $region16: #{tpu_custom_call.1} parent=11 // pred_fallthru
          _
        // Predicated region
        $region17: #{tpu_custom_call.1} parent=11 // pred_check
          %p301 = pneg %p89
        $region18: #{tpu_custom_call.1} parent=11 // pred_check_branch
          %303 = sbr.rel (%p301) target = $region20
        $region19: #{tpu_custom_call.1} parent=11 // pred_region
          _
        $region20: #{tpu_custom_call.1} parent=11 // pred_fallthru
          _
        // Predicated region
        $region21: #{tpu_custom_call.1} parent=11 // pred_check
          %p304 = pneg %p110
        $region22: #{tpu_custom_call.1} parent=11 // pred_check_branch
          %306 = sbr.rel (%p304) target = $region24
        $region23: #{tpu_custom_call.1} parent=11 // pred_region
          %s308 = ssub.s32 18432, 18432
          %309 = vsyncadd [#allocation3], %s308
          %s310 = sshll.u32 [#allocation2], 4
          %s311 = int_to_ptr.vmem [resolvable:$true] %s310
          %316 = dma.hbm_to_vmem [thread:$0]  %s3, 18432, %s311, [#allocation3], 256, 256, 16
        $region24: #{tpu_custom_call.1} parent=11 // pred_fallthru
          _
        // Predicated region
        $region25: #{tpu_custom_call.1} parent=11 // pred_check
          %p317 = pneg %p131
        $region26: #{tpu_custom_call.1} parent=11 // pred_check_branch
          %319 = sbr.rel (%p317) target = $region28
        $region27: #{tpu_custom_call.1} parent=11 // pred_region
          _
        $region28: #{tpu_custom_call.1} parent=11 // pred_fallthru
          _
        // Predicated region
        $region29: #{tpu_custom_call.1} parent=11 // pred_check
          %p320 = pneg %p152
        $region30: #{tpu_custom_call.1} parent=11 // pred_check_branch
          %322 = sbr.rel (%p320) target = $region32
        $region31: #{tpu_custom_call.1} parent=11 // pred_region
          _
        $region32: #{tpu_custom_call.1} parent=11 // pred_fallthru
          _
        // Predicated region
        $region33: #{tpu_custom_call.1} parent=11 // pred_check
          %p323 = pneg %p173
        $region34: #{tpu_custom_call.1} parent=11 // pred_check_branch
          %325 = sbr.rel (%p323) target = $region36
        $region35: #{tpu_custom_call.1} parent=11 // pred_region
          _
        $region36: #{tpu_custom_call.1} parent=11 // pred_fallthru
          _
        // Predicated region
        $region37: #{tpu_custom_call.1} parent=11 // pred_check
          %p326 = pneg %p194
        $region38: #{tpu_custom_call.1} parent=11 // pred_check_branch
          %328 = sbr.rel (%p326) target = $region40
        $region39: #{tpu_custom_call.1} parent=11 // pred_region
          _
        $region40: #{tpu_custom_call.1} parent=11 // pred_fallthru
          _
        // Predicated region
        $region41: #{tpu_custom_call.1} parent=11 // pred_check
          %p329 = pneg %p215
        $region42: #{tpu_custom_call.1} parent=11 // pred_check_branch
          %331 = sbr.rel (%p329) target = $region44
        $region43: #{tpu_custom_call.1} parent=11 // pred_region
          _
        $region44: #{tpu_custom_call.1} parent=11 // pred_fallthru
          _
        // Predicated region
        $region45: #{tpu_custom_call.1} parent=11 // pred_check
          %p332 = pneg %p236
        $region46: #{tpu_custom_call.1} parent=11 // pred_check_branch
          %334 = sbr.rel (%p332) target = $region48
        $region47: #{tpu_custom_call.1} parent=11 // pred_region
          _
        $region48: #{tpu_custom_call.1} parent=11 // pred_fallthru
          _
        // Predicated region
        $region49: #{tpu_custom_call.1} parent=11 // pred_check
          %p335 = pneg %p257
        $region50: #{tpu_custom_call.1} parent=11 // pred_check_branch
          %337 = sbr.rel (%p335) target = $region52
        $region51: #{tpu_custom_call.1} parent=11 // pred_region
          _
        $region52: #{tpu_custom_call.1} parent=11 // pred_fallthru
          _
      $region12: #{tpu_custom_call.1} parent=5 // pred_fallthru
        _
      %p338 = scmp.lt.s32.totalorder %s21, 2
      // Predicated region
      $region53: #{tpu_custom_call.1} parent=5 // pred_check
        %p339 = pneg %p338
      $region54: #{tpu_custom_call.1} parent=5 // pred_check_branch
        %341 = sbr.rel (%p339) target = $region56
      $region55: #{tpu_custom_call.1} parent=5 // pred_region
        // Predicated region
        $region57: #{tpu_custom_call.1} parent=55 // pred_check
          %p342 = pneg %p41
        $region58: #{tpu_custom_call.1} parent=55 // pred_check_branch
          %344 = sbr.rel (%p342) target = $region60
        $region59: #{tpu_custom_call.1} parent=55 // pred_region
          %s345 = smul.u32 4, %s21
          %p346 = scmp.lt.s32.totalorder %s345, 7
          %s347 = scalar_select %p346, %s345, 7
          %s348 = smul.addr %s347, 4
          %s349 = smul.addr %s348, 8
          %s350 = scalar_lea.vmem %s0, %s349
          %s351 = smul.u32 4, %s21
        $region60: #{tpu_custom_call.1} parent=55 // pred_fallthru
          _
      $region56: #{tpu_custom_call.1} parent=5 // pred_fallthru
        _
      %p352 = scmp.le.s32.totalorder 1, %s21
      %p353 = scmp.lt.s32.totalorder %s21, 3
      %p354 = pnand %p352, %p353
      %p355 = pneg %p354
      // Predicated region
      $region61: #{tpu_custom_call.1} parent=5 // pred_check
        _
      $region62: #{tpu_custom_call.1} parent=5 // pred_check_branch
        %357 = sbr.rel (%p354) target = $region64
      $region63: #{tpu_custom_call.1} parent=5 // pred_region
        %s358 = ssub.s32 %s21, 1
        // Predicated region
        $region65: #{tpu_custom_call.1} parent=63 // pred_check
          %p359 = pneg %p110
        $region66: #{tpu_custom_call.1} parent=63 // pred_check_branch
          %361 = sbr.rel (%p359) target = $region68
        $region67: #{tpu_custom_call.1} parent=63 // pred_region
          %362 = dma.done [#allocation3], 18432
        $region68: #{tpu_custom_call.1} parent=63 // pred_fallthru
          _
        %s363 = smul.u32 4, %s26
        %p364 = scmp.lt.s32.totalorder %s363, 7
        %s365 = scalar_select %p364, %s363, 7
        %s366 = smul.addr %s365, 4
        %s367 = smul.addr %s366, 8
        %s368 = scalar_lea.vmem %s0, %s367
        %p369 = pneg %p47
        %p370 = pneg %p44
        %p371 = pneg %p68
        %p372 = pneg %p65
        %p373 = pneg %p89
        %p374 = pneg %p86
        %p375 = pneg %p110
        %p376 = pneg %p107
        %p377 = pneg %p131
        %p378 = pneg %p128
        %p379 = pneg %p152
        %p380 = pneg %p149
        %p381 = pneg %p173
        %p382 = pneg %p170
        %p383 = pneg %p194
        %p384 = pneg %p191
        %p385 = pneg %p215
        %p386 = pneg %p212
        %p387 = pneg %p236
        %p388 = pneg %p233
        %p389 = pneg %p257
        %p390 = pneg %p254
        %p391 = pneg %p283
        %p392 = pneg %p280
        %s393 = sand.u32 %s270, 1
        %s394 = scalar_lea.sflag [#allocation4], %s393
        %s395 = sand.u32 %s270, 1
        %s396 = smul.addr %s395, 128
        %s397 = scalar_lea.vmem [#allocation5], %s396
        %s398 = smul.u32 4, %s26
        %p399 = scmp.lt.s32.totalorder %s398, 7
        %s400 = scalar_select %p399, %s398, 7
        %s401 = smul.addr %s400, 4
        %s402 = smul.addr %s401, 8
        %s403 = scalar_lea.vmem %s0, %s402
        %s404 = smul.u32 4, %s26
        %s405 = smul.u32 4, %s26
        %v407 = vld [vmem:[%s403] sm:$0xff]
        %v408 = vld [vmem:[%s403 + $0x8] sm:$0xff]
        %v409 = vld [vmem:[%s403 + $0x10] sm:$0xff]
        %v410 = vld [vmem:[%s403 + $0x18] sm:$0xff]
        %v411 = vld [vmem:[%s1] sm:$0xf]
        %v412 = vld [vmem:[%s1 + $0x4] sm:$0xf]
        %v413 = vld [vmem:[%s1 + $0x8] sm:$0xf]
        %v414 = vld [vmem:[%s1 + $0xc] sm:$0xf]
        %v415 = vld [vmem:[%s1 + $0x10] sm:$0xf]
        %v416 = vld [vmem:[%s1 + $0x14] sm:$0xf]
        %v417 = vld [vmem:[%s1 + $0x18] sm:$0xf]
        %v418 = vld [vmem:[%s1 + $0x1c] sm:$0xf]
        %v419 = vpack.c.bf16 %v409, %v407
        %v420 = vpack.c.bf16 %v410, %v408
        %v421 = vld [vmem:[%s2] sm:$0xff]
        %v422 = vld [vmem:[%s2 + $0x8] sm:$0xff]
        %v423 = vld [vmem:[%s2 + $0x10] sm:$0xff]
        %v424 = vld [vmem:[%s2 + $0x18] sm:$0xff]
        %v425 = vld [vmem:[%s2 + $0x20] sm:$0xff]
        %v426 = vld [vmem:[%s2 + $0x28] sm:$0xff]
        %v427 = vld [vmem:[%s2 + $0x30] sm:$0xff]
        %v428 = vld [vmem:[%s2 + $0x38] sm:$0xff]
        %430 = vset.pattern.permute.xlu0 0
        %431 = vperm.xlu0 %430, %v421
        %v432 = vpop.permute.xlu0 %431
        %435 = vset.pattern.permute.xlu0 0
        %436 = vperm.xlu0 %435, %v422
        %v437 = vpop.permute.xlu0 %436
        %440 = vset.pattern.permute.xlu0 0
        %441 = vperm.xlu0 %440, %v423
        %v442 = vpop.permute.xlu0 %441
        %445 = vset.pattern.permute.xlu0 0
        %446 = vperm.xlu0 %445, %v424
        %v447 = vpop.permute.xlu0 %446
        %450 = vset.pattern.permute.xlu0 0
        %451 = vperm.xlu0 %450, %v425
        %v452 = vpop.permute.xlu0 %451
        %455 = vset.pattern.permute.xlu0 0
        %456 = vperm.xlu0 %455, %v426
        %v457 = vpop.permute.xlu0 %456
        %460 = vset.pattern.permute.xlu0 0
        %461 = vperm.xlu0 %460, %v427
        %v462 = vpop.permute.xlu0 %461
        %465 = vset.pattern.permute.xlu0 0
        %466 = vperm.xlu0 %465, %v428
        %v467 = vpop.permute.xlu0 %466
        %v477 = vunpack.c.l.b16 %v411
        %v478 = vunpack.c.l.b16 %v412
        %v479 = vunpack.c.l.b16 %v413
        %v480 = vunpack.c.l.b16 %v414
        %v481 = vunpack.c.l.b16 %v415
        %v482 = vunpack.c.l.b16 %v416
        %v483 = vunpack.c.l.b16 %v417
        %v484 = vunpack.c.l.b16 %v418
        %v485 = vpack.c.b16 %v478, %v477
        %v486 = vpack.c.b16 %v480, %v479
        %v487 = vpack.c.b16 %v482, %v481
        %v488 = vpack.c.b16 %v484, %v483
        %vm489 = vcmask 130048
        %v491 = vsel %vm489, %v485, 0
        %v494 = vsel %vm489, %v486, 0
        %v497 = vsel %vm489, %v487, 0
        %v500 = vsel %vm489, %v488, 0
        %502 = vmatprep.subr.bf16.mxu0 %v420
        %503 = vmatpush1.bf16.msra.mxu0 %v419
        %504 = vmatprep.subr.bf16.mxu0 0
        %505 = vmatpush1.bf16.msra.mxu0 0
        %506 = vmatprep.subr.bf16.mxu0 0
        %507 = vmatpush1.bf16.msra.mxu0 0
        %508 = vmatprep.subr.bf16.mxu0 0
        %509 = vmatpush1.bf16.msra.mxu0 0
        %510 = vmatprep.subr.bf16.mxu0 0
        %511 = vmatpush1.bf16.msra.mxu0 0
        %512 = vmatprep.subr.bf16.mxu0 0
        %513 = vmatpush1.bf16.msra.mxu0 0
        %514 = vmatprep.subr.bf16.mxu0 0
        %515 = vmatpush1.bf16.msra.mxu0 0
        %516 = vmatprep.subr.bf16.mxu0 0
        %517 = vmatpush1.bf16.msra.mxu0 0
        %518 = vmatprep.subr.bf16.mxu0 0
        %519 = vmatpush1.bf16.msra.mxu0 0
        %520 = vmatprep.subr.bf16.mxu0 0
        %521 = vmatpush1.bf16.msra.mxu0 0
        %522 = vmatprep.subr.bf16.mxu0 0
        %523 = vmatpush1.bf16.msra.mxu0 0
        %524 = vmatprep.subr.bf16.mxu0 0
        %525 = vmatpush1.bf16.msra.mxu0 0
        %526 = vmatprep.subr.bf16.mxu0 0
        %527 = vmatpush1.bf16.msra.mxu0 0
        %528 = vmatprep.subr.bf16.mxu0 0
        %529 = vmatpush1.bf16.msra.mxu0 0
        %530 = vmatprep.subr.bf16.mxu0 0
        %531 = vmatpush1.bf16.msra.mxu0 0
        %532 = vmatprep.subr.bf16.mxu0 0
        %533 = vmatpush1.bf16.msra.mxu0 0
        %534 = vmatprep.mubr.bf16.mxu0 0
        %535 = vmatmul.mubr.bf16.gmra.mrb[0].mxu0 %v491
        %v536 = vpop.f32.mrb[0].mxu0
        %v537 = vadd.f32 %v432, %v536
        %v538 = vpop.f32.mrb[0].mxu0
        %v539 = vadd.f32 %v432, %v538
        %v540 = vpop.f32.mrb[0].mxu0
        %v541 = vadd.f32 %v437, %v540
        %v542 = vpop.f32.mrb[0].mxu0
        %v543 = vadd.f32 %v437, %v542
        %544 = vmatprep.mubr.bf16.mxu0 0
        %545 = vmatmul.mubr.bf16.gmra.mrb[0].mxu0 %v494
        %v546 = vpop.f32.mrb[0].mxu0
        %v547 = vadd.f32 %v442, %v546
        %v548 = vpop.f32.mrb[0].mxu0
        %v549 = vadd.f32 %v442, %v548
        %v550 = vpop.f32.mrb[0].mxu0
        %v551 = vadd.f32 %v447, %v550
        %v552 = vpop.f32.mrb[0].mxu0
        %v553 = vadd.f32 %v447, %v552
        %554 = vmatprep.mubr.bf16.mxu0 0
        %555 = vmatmul.mubr.bf16.gmra.mrb[0].mxu0 %v497
        %v556 = vpop.f32.mrb[0].mxu0
        %v557 = vadd.f32 %v452, %v556
        %v558 = vpop.f32.mrb[0].mxu0
        %v559 = vadd.f32 %v452, %v558
        %v560 = vpop.f32.mrb[0].mxu0
        %v561 = vadd.f32 %v457, %v560
        %v562 = vpop.f32.mrb[0].mxu0
        %v563 = vadd.f32 %v457, %v562
        %564 = vmatprep.mubr.bf16.mxu0 0
        %565 = vmatmul.mubr.bf16.gmra.mrb[0].mxu0 %v500
        %v566 = vpop.f32.mrb[0].mxu0
        %v567 = vadd.f32 %v462, %v566
        %v568 = vpop.f32.mrb[0].mxu0
        %v569 = vadd.f32 %v462, %v568
        %v570 = vpop.f32.mrb[0].mxu0
        %v571 = vadd.f32 %v467, %v570
        %v572 = vpop.f32.mrb[0].mxu0
        %v573 = vadd.f32 %v467, %v572
        %574 = vdwg.mxu0
        %v575 = vadd.f32 %v537, 3.0
        %v576 = vadd.f32 %v539, 3.0
        %v577 = vadd.f32 %v541, 3.0
        %v578 = vadd.f32 %v543, 3.0
        %v579 = vadd.f32 %v547, 3.0
        %v580 = vadd.f32 %v549, 3.0
        %v581 = vadd.f32 %v551, 3.0
        %v582 = vadd.f32 %v553, 3.0
        %v583 = vadd.f32 %v557, 3.0
        %v584 = vadd.f32 %v559, 3.0
        %v585 = vadd.f32 %v561, 3.0
        %v586 = vadd.f32 %v563, 3.0
        %v587 = vadd.f32 %v567, 3.0
        %v588 = vadd.f32 %v569, 3.0
        %v589 = vadd.f32 %v571, 3.0
        %v590 = vadd.f32 %v573, 3.0
        %v591 = vmax.f32 %v575, 0.0
        %v592 = vmax.f32 %v576, 0.0
        %v593 = vmax.f32 %v577, 0.0
        %v594 = vmax.f32 %v578, 0.0
        %v595 = vmax.f32 %v579, 0.0
        %v596 = vmax.f32 %v580, 0.0
        %v597 = vmax.f32 %v581, 0.0
        %v598 = vmax.f32 %v582, 0.0
        %v599 = vmax.f32 %v583, 0.0
        %v600 = vmax.f32 %v584, 0.0
        %v601 = vmax.f32 %v585, 0.0
        %v602 = vmax.f32 %v586, 0.0
        %v603 = vmax.f32 %v587, 0.0
        %v604 = vmax.f32 %v588, 0.0
        %v605 = vmax.f32 %v589, 0.0
        %v606 = vmax.f32 %v590, 0.0
        %v607 = vmin.f32 %v591, 6.0
        %v608 = vmin.f32 %v592, 6.0
        %v609 = vmin.f32 %v593, 6.0
        %v610 = vmin.f32 %v594, 6.0
        %v611 = vmin.f32 %v595, 6.0
        %v612 = vmin.f32 %v596, 6.0
        %v613 = vmin.f32 %v597, 6.0
        %v614 = vmin.f32 %v598, 6.0
        %v615 = vmin.f32 %v599, 6.0
        %v616 = vmin.f32 %v600, 6.0
        %v617 = vmin.f32 %v601, 6.0
        %v618 = vmin.f32 %v602, 6.0
        %v619 = vmin.f32 %v603, 6.0
        %v620 = vmin.f32 %v604, 6.0
        %v621 = vmin.f32 %v605, 6.0
        %v622 = vmin.f32 %v606, 6.0
        %v623 = vmul.f32 %v537, %v607
        %v624 = vmul.f32 %v539, %v608
        %v625 = vmul.f32 %v541, %v609
        %v626 = vmul.f32 %v543, %v610
        %v627 = vmul.f32 %v547, %v611
        %v628 = vmul.f32 %v549, %v612
        %v629 = vmul.f32 %v551, %v613
        %v630 = vmul.f32 %v553, %v614
        %v631 = vmul.f32 %v557, %v615
        %v632 = vmul.f32 %v559, %v616
        %v633 = vmul.f32 %v561, %v617
        %v634 = vmul.f32 %v563, %v618
        %v635 = vmul.f32 %v567, %v619
        %v636 = vmul.f32 %v569, %v620
        %v637 = vmul.f32 %v571, %v621
        %v638 = vmul.f32 %v573, %v622
        %v639 = vmul.f32 %v623, 0.16666667
        %v640 = vmul.f32 %v624, 0.16666667
        %v641 = vmul.f32 %v625, 0.16666667
        %v642 = vmul.f32 %v626, 0.16666667
        %v643 = vmul.f32 %v627, 0.16666667
        %v644 = vmul.f32 %v628, 0.16666667
        %v645 = vmul.f32 %v629, 0.16666667
        %v646 = vmul.f32 %v630, 0.16666667
        %v647 = vmul.f32 %v631, 0.16666667
        %v648 = vmul.f32 %v632, 0.16666667
        %v649 = vmul.f32 %v633, 0.16666667
        %v650 = vmul.f32 %v634, 0.16666667
        %v651 = vmul.f32 %v635, 0.16666667
        %v652 = vmul.f32 %v636, 0.16666667
        %v653 = vmul.f32 %v637, 0.16666667
        %v654 = vmul.f32 %v638, 0.16666667
        %655 = vrot.lane.b32.xlu0 %v639, 17
        %v656 = vpop.permute.xlu0 %655
        %657 = vrot.lane.b32.xlu0 %v641, 17
        %v658 = vpop.permute.xlu0 %657
        %659 = vrot.lane.b32.xlu0 %v643, 17
        %v660 = vpop.permute.xlu0 %659
        %661 = vrot.lane.b32.xlu0 %v645, 17
        %v662 = vpop.permute.xlu0 %661
        %663 = vrot.lane.b32.xlu0 %v647, 17
        %v664 = vpop.permute.xlu0 %663
        %665 = vrot.lane.b32.xlu0 %v649, 17
        %v666 = vpop.permute.xlu0 %665
        %667 = vrot.lane.b32.xlu0 %v651, 17
        %v668 = vpop.permute.xlu0 %667
        %669 = vrot.lane.b32.xlu0 %v653, 17
        %v670 = vpop.permute.xlu0 %669
        %671 = vrot.lane.b32.xlu0 %v640, 17
        %v672 = vpop.permute.xlu0 %671
        %673 = vrot.lane.b32.xlu0 %v642, 17
        %v674 = vpop.permute.xlu0 %673
        %675 = vrot.lane.b32.xlu0 %v644, 17
        %v676 = vpop.permute.xlu0 %675
        %677 = vrot.lane.b32.xlu0 %v646, 17
        %v678 = vpop.permute.xlu0 %677
        %679 = vrot.lane.b32.xlu0 %v648, 17
        %v680 = vpop.permute.xlu0 %679
        %681 = vrot.lane.b32.xlu0 %v650, 17
        %v682 = vpop.permute.xlu0 %681
        %683 = vrot.lane.b32.xlu0 %v652, 17
        %v684 = vpop.permute.xlu0 %683
        %685 = vrot.lane.b32.xlu0 %v654, 17
        %v686 = vpop.permute.xlu0 %685
        %v687 = vlaneseq
        %v688 = vand.u32 %v687, 127
        %vm689 = vcmp.lt.s32.totalorder %v688, 17
        %v690 = vsel %vm689, %v656, %v672
        %v691 = vsel %vm689, %v658, %v674
        %v692 = vsel %vm689, %v660, %v676
        %v693 = vsel %vm689, %v662, %v678
        %v694 = vsel %vm689, %v664, %v680
        %v695 = vsel %vm689, %v666, %v682
        %v696 = vsel %vm689, %v668, %v684
        %v697 = vsel %vm689, %v670, %v686
        %v698 = vsel %vm689, %v672, %v656
        %v699 = vsel %vm689, %v674, %v658
        %v700 = vsel %vm689, %v676, %v660
        %v701 = vsel %vm689, %v678, %v662
        %v702 = vsel %vm689, %v680, %v664
        %v703 = vsel %vm689, %v682, %v666
        %v704 = vsel %vm689, %v684, %v668
        %v705 = vsel %vm689, %v686, %v670
        %v706 = vld [vmem:[#allocation2] sm:$0xff]
        %v707 = vld [vmem:[#allocation2 + $0x8] sm:$0xff]
        %v708 = vld [vmem:[#allocation2 + $0x10] sm:$0xff]
        %v709 = vld [vmem:[#allocation2 + $0x18] sm:$0xff]
        %v710 = vld [vmem:[#allocation2 + $0x20] sm:$0xff]
        %v711 = vld [vmem:[#allocation2 + $0x28] sm:$0xff]
        %v712 = vld [vmem:[#allocation2 + $0x30] sm:$0xff]
        %v713 = vld [vmem:[#allocation2 + $0x38] sm:$0xff]
        %v714 = vld [vmem:[#allocation2 + $0x40] sm:$0xff]
        %v715 = vld [vmem:[#allocation2 + $0x48] sm:$0xff]
        %v716 = vld [vmem:[#allocation2 + $0x50] sm:$0xff]
        %v717 = vld [vmem:[#allocation2 + $0x58] sm:$0xff]
        %v718 = vld [vmem:[#allocation2 + $0x60] sm:$0xff]
        %v719 = vld [vmem:[#allocation2 + $0x68] sm:$0xff]
        %v720 = vld [vmem:[#allocation2 + $0x70] sm:$0xff]
        %v721 = vld [vmem:[#allocation2 + $0x78] sm:$0xff]
        %v722 = vmul.f32 %v698, %v706
        %v723 = vmul.f32 %v690, %v707
        %v724 = vmul.f32 %v699, %v708
        %v725 = vmul.f32 %v691, %v709
        %v726 = vmul.f32 %v700, %v710
        %v727 = vmul.f32 %v692, %v711
        %v728 = vmul.f32 %v701, %v712
        %v729 = vmul.f32 %v693, %v713
        %v730 = vmul.f32 %v702, %v714
        %v731 = vmul.f32 %v694, %v715
        %v732 = vmul.f32 %v703, %v716
        %v733 = vmul.f32 %v695, %v717
        %v734 = vmul.f32 %v704, %v718
        %v735 = vmul.f32 %v696, %v719
        %v736 = vmul.f32 %v705, %v720
        %v737 = vmul.f32 %v697, %v721
        %v738 = vadd.f32 %v722, 0.0
        %v739 = vadd.f32 %v723, 0.0
        %v740 = vadd.f32 %v724, 0.0
        %v741 = vadd.f32 %v725, 0.0
        %v742 = vadd.f32 %v726, 0.0
        %v743 = vadd.f32 %v727, 0.0
        %v744 = vadd.f32 %v728, 0.0
        %v745 = vadd.f32 %v729, 0.0
        %v746 = vadd.f32 %v730, 0.0
        %v747 = vadd.f32 %v731, 0.0
        %v748 = vadd.f32 %v732, 0.0
        %v749 = vadd.f32 %v733, 0.0
        %v750 = vadd.f32 %v734, 0.0
        %v751 = vadd.f32 %v735, 0.0
        %v752 = vadd.f32 %v736, 0.0
        %v753 = vadd.f32 %v737, 0.0
        %754 = vrot.lane.b32.xlu0 %v639, 16
        %v755 = vpop.permute.xlu0 %754
        %756 = vrot.lane.b32.xlu0 %v641, 16
        %v757 = vpop.permute.xlu0 %756
        %758 = vrot.lane.b32.xlu0 %v643, 16
        %v759 = vpop.permute.xlu0 %758
        %760 = vrot.lane.b32.xlu0 %v645, 16
        %v761 = vpop.permute.xlu0 %760
        %762 = vrot.lane.b32.xlu0 %v647, 16
        %v763 = vpop.permute.xlu0 %762
        %764 = vrot.lane.b32.xlu0 %v649, 16
        %v765 = vpop.permute.xlu0 %764
        %766 = vrot.lane.b32.xlu0 %v651, 16
        %v767 = vpop.permute.xlu0 %766
        %768 = vrot.lane.b32.xlu0 %v653, 16
        %v769 = vpop.permute.xlu0 %768
        %770 = vrot.lane.b32.xlu0 %v640, 16
        %v771 = vpop.permute.xlu0 %770
        %772 = vrot.lane.b32.xlu0 %v642, 16
        %v773 = vpop.permute.xlu0 %772
        %774 = vrot.lane.b32.xlu0 %v644, 16
        %v775 = vpop.permute.xlu0 %774
        %776 = vrot.lane.b32.xlu0 %v646, 16
        %v777 = vpop.permute.xlu0 %776
        %778 = vrot.lane.b32.xlu0 %v648, 16
        %v779 = vpop.permute.xlu0 %778
        %780 = vrot.lane.b32.xlu0 %v650, 16
        %v781 = vpop.permute.xlu0 %780
        %782 = vrot.lane.b32.xlu0 %v652, 16
        %v783 = vpop.permute.xlu0 %782
        %784 = vrot.lane.b32.xlu0 %v654, 16
        %v785 = vpop.permute.xlu0 %784
        %vm786 = vcmp.lt.s32.totalorder %v688, 16
        %v787 = vsel %vm786, %v755, %v771
        %v788 = vsel %vm786, %v757, %v773
        %v789 = vsel %vm786, %v759, %v775
        %v790 = vsel %vm786, %v761, %v777
        %v791 = vsel %vm786, %v763, %v779
        %v792 = vsel %vm786, %v765, %v781
        %v793 = vsel %vm786, %v767, %v783
        %v794 = vsel %vm786, %v769, %v785
        %v795 = vsel %vm786, %v771, %v755
        %v796 = vsel %vm786, %v773, %v757
        %v797 = vsel %vm786, %v775, %v759
        %v798 = vsel %vm786, %v777, %v761
        %v799 = vsel %vm786, %v779, %v763
        %v800 = vsel %vm786, %v781, %v765
        %v801 = vsel %vm786, %v783, %v767
        %v802 = vsel %vm786, %v785, %v769
        %s803 = scalar_lea.vmem [#allocation2], 128
        %v804 = vld [vmem:[%s803] sm:$0xff]
        %v805 = vld [vmem:[%s803 + $0x8] sm:$0xff]
        %v806 = vld [vmem:[%s803 + $0x10] sm:$0xff]
        %v807 = vld [vmem:[%s803 + $0x18] sm:$0xff]
        %v808 = vld [vmem:[%s803 + $0x20] sm:$0xff]
        %v809 = vld [vmem:[%s803 + $0x28] sm:$0xff]
        %v810 = vld [vmem:[%s803 + $0x30] sm:$0xff]
        %v811 = vld [vmem:[%s803 + $0x38] sm:$0xff]
        %v812 = vld [vmem:[%s803 + $0x40] sm:$0xff]
        %v813 = vld [vmem:[%s803 + $0x48] sm:$0xff]
        %v814 = vld [vmem:[%s803 + $0x50] sm:$0xff]
        %v815 = vld [vmem:[%s803 + $0x58] sm:$0xff]
        %v816 = vld [vmem:[%s803 + $0x60] sm:$0xff]
        %v817 = vld [vmem:[%s803 + $0x68] sm:$0xff]
        %v818 = vld [vmem:[%s803 + $0x70] sm:$0xff]
        %v819 = vld [vmem:[%s803 + $0x78] sm:$0xff]
        %v820 = vmul.f32 %v795, %v804
        %v821 = vmul.f32 %v787, %v805
        %v822 = vmul.f32 %v796, %v806
        %v823 = vmul.f32 %v788, %v807
        %v824 = vmul.f32 %v797, %v808
        %v825 = vmul.f32 %v789, %v809
        %v826 = vmul.f32 %v798, %v810
        %v827 = vmul.f32 %v790, %v811
        %v828 = vmul.f32 %v799, %v812
        %v829 = vmul.f32 %v791, %v813
        %v830 = vmul.f32 %v800, %v814
        %v831 = vmul.f32 %v792, %v815
        %v832 = vmul.f32 %v801, %v816
        %v833 = vmul.f32 %v793, %v817
        %v834 = vmul.f32 %v802, %v818
        %v835 = vmul.f32 %v794, %v819
        %v836 = vadd.f32 %v738, %v820
        %v837 = vadd.f32 %v739, %v821
        %v838 = vadd.f32 %v740, %v822
        %v839 = vadd.f32 %v741, %v823
        %v840 = vadd.f32 %v742, %v824
        %v841 = vadd.f32 %v743, %v825
        %v842 = vadd.f32 %v744, %v826
        %v843 = vadd.f32 %v745, %v827
        %v844 = vadd.f32 %v746, %v828
        %v845 = vadd.f32 %v747, %v829
        %v846 = vadd.f32 %v748, %v830
        %v847 = vadd.f32 %v749, %v831
        %v848 = vadd.f32 %v750, %v832
        %v849 = vadd.f32 %v751, %v833
        %v850 = vadd.f32 %v752, %v834
        %v851 = vadd.f32 %v753, %v835
        %852 = vrot.lane.b32.xlu0 %v639, 15
        %v853 = vpop.permute.xlu0 %852
        %854 = vrot.lane.b32.xlu0 %v641, 15
        %v855 = vpop.permute.xlu0 %854
        %856 = vrot.lane.b32.xlu0 %v643, 15
        %v857 = vpop.permute.xlu0 %856
        %858 = vrot.lane.b32.xlu0 %v645, 15
        %v859 = vpop.permute.xlu0 %858
        %860 = vrot.lane.b32.xlu0 %v647, 15
        %v861 = vpop.permute.xlu0 %860
        %862 = vrot.lane.b32.xlu0 %v649, 15
        %v863 = vpop.permute.xlu0 %862
        %864 = vrot.lane.b32.xlu0 %v651, 15
        %v865 = vpop.permute.xlu0 %864
        %866 = vrot.lane.b32.xlu0 %v653, 15
        %v867 = vpop.permute.xlu0 %866
        %868 = vrot.lane.b32.xlu0 %v640, 15
        %v869 = vpop.permute.xlu0 %868
        %870 = vrot.lane.b32.xlu0 %v642, 15
        %v871 = vpop.permute.xlu0 %870
        %872 = vrot.lane.b32.xlu0 %v644, 15
        %v873 = vpop.permute.xlu0 %872
        %874 = vrot.lane.b32.xlu0 %v646, 15
        %v875 = vpop.permute.xlu0 %874
        %876 = vrot.lane.b32.xlu0 %v648, 15
        %v877 = vpop.permute.xlu0 %876
        %878 = vrot.lane.b32.xlu0 %v650, 15
        %v879 = vpop.permute.xlu0 %878
        %880 = vrot.lane.b32.xlu0 %v652, 15
        %v881 = vpop.permute.xlu0 %880
        %882 = vrot.lane.b32.xlu0 %v654, 15
        %v883 = vpop.permute.xlu0 %882
        %vm884 = vcmp.lt.s32.totalorder %v688, 15
        %v885 = vsel %vm884, %v853, %v869
        %v886 = vsel %vm884, %v855, %v871
        %v887 = vsel %vm884, %v857, %v873
        %v888 = vsel %vm884, %v859, %v875
        %v889 = vsel %vm884, %v861, %v877
        %v890 = vsel %vm884, %v863, %v879
        %v891 = vsel %vm884, %v865, %v881
        %v892 = vsel %vm884, %v867, %v883
        %v893 = vsel %vm884, %v869, %v853
        %v894 = vsel %vm884, %v871, %v855
        %v895 = vsel %vm884, %v873, %v857
        %v896 = vsel %vm884, %v875, %v859
        %v897 = vsel %vm884, %v877, %v861
        %v898 = vsel %vm884, %v879, %v863
        %v899 = vsel %vm884, %v881, %v865
        %v900 = vsel %vm884, %v883, %v867
        %s901 = scalar_lea.vmem [#allocation2], 256
        %v902 = vld [vmem:[%s901] sm:$0xff]
        %v903 = vld [vmem:[%s901 + $0x8] sm:$0xff]
        %v904 = vld [vmem:[%s901 + $0x10] sm:$0xff]
        %v905 = vld [vmem:[%s901 + $0x18] sm:$0xff]
        %v906 = vld [vmem:[%s901 + $0x20] sm:$0xff]
        %v907 = vld [vmem:[%s901 + $0x28] sm:$0xff]
        %v908 = vld [vmem:[%s901 + $0x30] sm:$0xff]
        %v909 = vld [vmem:[%s901 + $0x38] sm:$0xff]
        %v910 = vld [vmem:[%s901 + $0x40] sm:$0xff]
        %v911 = vld [vmem:[%s901 + $0x48] sm:$0xff]
        %v912 = vld [vmem:[%s901 + $0x50] sm:$0xff]
        %v913 = vld [vmem:[%s901 + $0x58] sm:$0xff]
        %v914 = vld [vmem:[%s901 + $0x60] sm:$0xff]
        %v915 = vld [vmem:[%s901 + $0x68] sm:$0xff]
        %v916 = vld [vmem:[%s901 + $0x70] sm:$0xff]
        %v917 = vld [vmem:[%s901 + $0x78] sm:$0xff]
        %v918 = vmul.f32 %v893, %v902
        %v919 = vmul.f32 %v885, %v903
        %v920 = vmul.f32 %v894, %v904
        %v921 = vmul.f32 %v886, %v905
        %v922 = vmul.f32 %v895, %v906
        %v923 = vmul.f32 %v887, %v907
        %v924 = vmul.f32 %v896, %v908
        %v925 = vmul.f32 %v888, %v909
        %v926 = vmul.f32 %v897, %v910
        %v927 = vmul.f32 %v889, %v911
        %v928 = vmul.f32 %v898, %v912
        %v929 = vmul.f32 %v890, %v913
        %v930 = vmul.f32 %v899, %v914
        %v931 = vmul.f32 %v891, %v915
        %v932 = vmul.f32 %v900, %v916
        %v933 = vmul.f32 %v892, %v917
        %v934 = vadd.f32 %v836, %v918
        %v935 = vadd.f32 %v837, %v919
        %v936 = vadd.f32 %v838, %v920
        %v937 = vadd.f32 %v839, %v921
        %v938 = vadd.f32 %v840, %v922
        %v939 = vadd.f32 %v841, %v923
        %v940 = vadd.f32 %v842, %v924
        %v941 = vadd.f32 %v843, %v925
        %v942 = vadd.f32 %v844, %v926
        %v943 = vadd.f32 %v845, %v927
        %v944 = vadd.f32 %v846, %v928
        %v945 = vadd.f32 %v847, %v929
        %v946 = vadd.f32 %v848, %v930
        %v947 = vadd.f32 %v849, %v931
        %v948 = vadd.f32 %v850, %v932
        %v949 = vadd.f32 %v851, %v933
        %950 = vrot.lane.b32.xlu0 %v639, 1
        %v951 = vpop.permute.xlu0 %950
        %952 = vrot.lane.b32.xlu0 %v641, 1
        %v953 = vpop.permute.xlu0 %952
        %954 = vrot.lane.b32.xlu0 %v643, 1
        %v955 = vpop.permute.xlu0 %954
        %956 = vrot.lane.b32.xlu0 %v645, 1
        %v957 = vpop.permute.xlu0 %956
        %958 = vrot.lane.b32.xlu0 %v647, 1
        %v959 = vpop.permute.xlu0 %958
        %960 = vrot.lane.b32.xlu0 %v649, 1
        %v961 = vpop.permute.xlu0 %960
        %962 = vrot.lane.b32.xlu0 %v651, 1
        %v963 = vpop.permute.xlu0 %962
        %964 = vrot.lane.b32.xlu0 %v653, 1
        %v965 = vpop.permute.xlu0 %964
        %966 = vrot.lane.b32.xlu0 %v640, 1
        %v967 = vpop.permute.xlu0 %966
        %968 = vrot.lane.b32.xlu0 %v642, 1
        %v969 = vpop.permute.xlu0 %968
        %970 = vrot.lane.b32.xlu0 %v644, 1
        %v971 = vpop.permute.xlu0 %970
        %972 = vrot.lane.b32.xlu0 %v646, 1
        %v973 = vpop.permute.xlu0 %972
        %974 = vrot.lane.b32.xlu0 %v648, 1
        %v975 = vpop.permute.xlu0 %974
        %976 = vrot.lane.b32.xlu0 %v650, 1
        %v977 = vpop.permute.xlu0 %976
        %978 = vrot.lane.b32.xlu0 %v652, 1
        %v979 = vpop.permute.xlu0 %978
        %980 = vrot.lane.b32.xlu0 %v654, 1
        %v981 = vpop.permute.xlu0 %980
        %vm982 = vcmp.lt.s32.totalorder %v688, 1
        %v983 = vsel %vm982, %v951, %v967
        %v984 = vsel %vm982, %v953, %v969
        %v985 = vsel %vm982, %v955, %v971
        %v986 = vsel %vm982, %v957, %v973
        %v987 = vsel %vm982, %v959, %v975
        %v988 = vsel %vm982, %v961, %v977
        %v989 = vsel %vm982, %v963, %v979
        %v990 = vsel %vm982, %v965, %v981
        %v991 = vsel %vm982, %v967, %v951
        %v992 = vsel %vm982, %v969, %v953
        %v993 = vsel %vm982, %v971, %v955
        %v994 = vsel %vm982, %v973, %v957
        %v995 = vsel %vm982, %v975, %v959
        %v996 = vsel %vm982, %v977, %v961
        %v997 = vsel %vm982, %v979, %v963
        %v998 = vsel %vm982, %v981, %v965
        %s999 = scalar_lea.vmem [#allocation2], 384
        %v1000 = vld [vmem:[%s999] sm:$0xff]
        %v1001 = vld [vmem:[%s999 + $0x8] sm:$0xff]
        %v1002 = vld [vmem:[%s999 + $0x10] sm:$0xff]
        %v1003 = vld [vmem:[%s999 + $0x18] sm:$0xff]
        %v1004 = vld [vmem:[%s999 + $0x20] sm:$0xff]
        %v1005 = vld [vmem:[%s999 + $0x28] sm:$0xff]
        %v1006 = vld [vmem:[%s999 + $0x30] sm:$0xff]
        %v1007 = vld [vmem:[%s999 + $0x38] sm:$0xff]
        %v1008 = vld [vmem:[%s999 + $0x40] sm:$0xff]
        %v1009 = vld [vmem:[%s999 + $0x48] sm:$0xff]
        %v1010 = vld [vmem:[%s999 + $0x50] sm:$0xff]
        %v1011 = vld [vmem:[%s999 + $0x58] sm:$0xff]
        %v1012 = vld [vmem:[%s999 + $0x60] sm:$0xff]
        %v1013 = vld [vmem:[%s999 + $0x68] sm:$0xff]
        %v1014 = vld [vmem:[%s999 + $0x70] sm:$0xff]
        %v1015 = vld [vmem:[%s999 + $0x78] sm:$0xff]
        %v1016 = vmul.f32 %v991, %v1000
        %v1017 = vmul.f32 %v983, %v1001
        %v1018 = vmul.f32 %v992, %v1002
        %v1019 = vmul.f32 %v984, %v1003
        %v1020 = vmul.f32 %v993, %v1004
        %v1021 = vmul.f32 %v985, %v1005
        %v1022 = vmul.f32 %v994, %v1006
        %v1023 = vmul.f32 %v986, %v1007
        %v1024 = vmul.f32 %v995, %v1008
        %v1025 = vmul.f32 %v987, %v1009
        %v1026 = vmul.f32 %v996, %v1010
        %v1027 = vmul.f32 %v988, %v1011
        %v1028 = vmul.f32 %v997, %v1012
        %v1029 = vmul.f32 %v989, %v1013
        %v1030 = vmul.f32 %v998, %v1014
        %v1031 = vmul.f32 %v990, %v1015
        %v1032 = vadd.f32 %v934, %v1016
        %v1033 = vadd.f32 %v935, %v1017
        %v1034 = vadd.f32 %v936, %v1018
        %v1035 = vadd.f32 %v937, %v1019
        %v1036 = vadd.f32 %v938, %v1020
        %v1037 = vadd.f32 %v939, %v1021
        %v1038 = vadd.f32 %v940, %v1022
        %v1039 = vadd.f32 %v941, %v1023
        %v1040 = vadd.f32 %v942, %v1024
        %v1041 = vadd.f32 %v943, %v1025
        %v1042 = vadd.f32 %v944, %v1026
        %v1043 = vadd.f32 %v945, %v1027
        %v1044 = vadd.f32 %v946, %v1028
        %v1045 = vadd.f32 %v947, %v1029
        %v1046 = vadd.f32 %v948, %v1030
        %v1047 = vadd.f32 %v949, %v1031
        %s1048 = scalar_lea.vmem [#allocation2], 512
        %v1049 = vld [vmem:[%s1048] sm:$0xff]
        %v1050 = vld [vmem:[%s1048 + $0x8] sm:$0xff]
        %v1051 = vld [vmem:[%s1048 + $0x10] sm:$0xff]
        %v1052 = vld [vmem:[%s1048 + $0x18] sm:$0xff]
        %v1053 = vld [vmem:[%s1048 + $0x20] sm:$0xff]
        %v1054 = vld [vmem:[%s1048 + $0x28] sm:$0xff]
        %v1055 = vld [vmem:[%s1048 + $0x30] sm:$0xff]
        %v1056 = vld [vmem:[%s1048 + $0x38] sm:$0xff]
        %v1057 = vld [vmem:[%s1048 + $0x40] sm:$0xff]
        %v1058 = vld [vmem:[%s1048 + $0x48] sm:$0xff]
        %v1059 = vld [vmem:[%s1048 + $0x50] sm:$0xff]
        %v1060 = vld [vmem:[%s1048 + $0x58] sm:$0xff]
        %v1061 = vld [vmem:[%s1048 + $0x60] sm:$0xff]
        %v1062 = vld [vmem:[%s1048 + $0x68] sm:$0xff]
        %v1063 = vld [vmem:[%s1048 + $0x70] sm:$0xff]
        %v1064 = vld [vmem:[%s1048 + $0x78] sm:$0xff]
        %v1065 = vmul.f32 %v639, %v1049
        %v1066 = vmul.f32 %v640, %v1050
        %v1067 = vmul.f32 %v641, %v1051
        %v1068 = vmul.f32 %v642, %v1052
        %v1069 = vmul.f32 %v643, %v1053
        %v1070 = vmul.f32 %v644, %v1054
        %v1071 = vmul.f32 %v645, %v1055
        %v1072 = vmul.f32 %v646, %v1056
        %v1073 = vmul.f32 %v647, %v1057
        %v1074 = vmul.f32 %v648, %v1058
        %v1075 = vmul.f32 %v649, %v1059
        %v1076 = vmul.f32 %v650, %v1060
        %v1077 = vmul.f32 %v651, %v1061
        %v1078 = vmul.f32 %v652, %v1062
        %v1079 = vmul.f32 %v653, %v1063
        %v1080 = vmul.f32 %v654, %v1064
        %v1081 = vadd.f32 %v1032, %v1065
        %v1082 = vadd.f32 %v1033, %v1066
        %v1083 = vadd.f32 %v1034, %v1067
        %v1084 = vadd.f32 %v1035, %v1068
        %v1085 = vadd.f32 %v1036, %v1069
        %v1086 = vadd.f32 %v1037, %v1070
        %v1087 = vadd.f32 %v1038, %v1071
        %v1088 = vadd.f32 %v1039, %v1072
        %v1089 = vadd.f32 %v1040, %v1073
        %v1090 = vadd.f32 %v1041, %v1074
        %v1091 = vadd.f32 %v1042, %v1075
        %v1092 = vadd.f32 %v1043, %v1076
        %v1093 = vadd.f32 %v1044, %v1077
        %v1094 = vadd.f32 %v1045, %v1078
        %v1095 = vadd.f32 %v1046, %v1079
        %v1096 = vadd.f32 %v1047, %v1080
        %1097 = vrot.lane.b32.xlu0 %v639, 127
        %v1098 = vpop.permute.xlu0 %1097
        %1099 = vrot.lane.b32.xlu0 %v641, 127
        %v1100 = vpop.permute.xlu0 %1099
        %1101 = vrot.lane.b32.xlu0 %v643, 127
        %v1102 = vpop.permute.xlu0 %1101
        %1103 = vrot.lane.b32.xlu0 %v645, 127
        %v1104 = vpop.permute.xlu0 %1103
        %1105 = vrot.lane.b32.xlu0 %v647, 127
        %v1106 = vpop.permute.xlu0 %1105
        %1107 = vrot.lane.b32.xlu0 %v649, 127
        %v1108 = vpop.permute.xlu0 %1107
        %1109 = vrot.lane.b32.xlu0 %v651, 127
        %v1110 = vpop.permute.xlu0 %1109
        %1111 = vrot.lane.b32.xlu0 %v653, 127
        %v1112 = vpop.permute.xlu0 %1111
        %1113 = vrot.lane.b32.xlu0 %v640, 127
        %v1114 = vpop.permute.xlu0 %1113
        %1115 = vrot.lane.b32.xlu0 %v642, 127
        %v1116 = vpop.permute.xlu0 %1115
        %1117 = vrot.lane.b32.xlu0 %v644, 127
        %v1118 = vpop.permute.xlu0 %1117
        %1119 = vrot.lane.b32.xlu0 %v646, 127
        %v1120 = vpop.permute.xlu0 %1119
        %1121 = vrot.lane.b32.xlu0 %v648, 127
        %v1122 = vpop.permute.xlu0 %1121
        %1123 = vrot.lane.b32.xlu0 %v650, 127
        %v1124 = vpop.permute.xlu0 %1123
        %1125 = vrot.lane.b32.xlu0 %v652, 127
        %v1126 = vpop.permute.xlu0 %1125
        %1127 = vrot.lane.b32.xlu0 %v654, 127
        %v1128 = vpop.permute.xlu0 %1127
        %vm1129 = vcmp.lt.s32.totalorder %v688, 127
        %v1130 = vsel %vm1129, %v1098, %v1114
        %v1131 = vsel %vm1129, %v1100, %v1116
        %v1132 = vsel %vm1129, %v1102, %v1118
        %v1133 = vsel %vm1129, %v1104, %v1120
        %v1134 = vsel %vm1129, %v1106, %v1122
        %v1135 = vsel %vm1129, %v1108, %v1124
        %v1136 = vsel %vm1129, %v1110, %v1126
        %v1137 = vsel %vm1129, %v1112, %v1128
        %v1138 = vsel %vm1129, %v1114, %v1098
        %v1139 = vsel %vm1129, %v1116, %v1100
        %v1140 = vsel %vm1129, %v1118, %v1102
        %v1141 = vsel %vm1129, %v1120, %v1104
        %v1142 = vsel %vm1129, %v1122, %v1106
        %v1143 = vsel %vm1129, %v1124, %v1108
        %v1144 = vsel %vm1129, %v1126, %v1110
        %v1145 = vsel %vm1129, %v1128, %v1112
        %s1146 = scalar_lea.vmem [#allocation2], 640
        %v1147 = vld [vmem:[%s1146] sm:$0xff]
        %v1148 = vld [vmem:[%s1146 + $0x8] sm:$0xff]
        %v1149 = vld [vmem:[%s1146 + $0x10] sm:$0xff]
        %v1150 = vld [vmem:[%s1146 + $0x18] sm:$0xff]
        %v1151 = vld [vmem:[%s1146 + $0x20] sm:$0xff]
        %v1152 = vld [vmem:[%s1146 + $0x28] sm:$0xff]
        %v1153 = vld [vmem:[%s1146 + $0x30] sm:$0xff]
        %v1154 = vld [vmem:[%s1146 + $0x38] sm:$0xff]
        %v1155 = vld [vmem:[%s1146 + $0x40] sm:$0xff]
        %v1156 = vld [vmem:[%s1146 + $0x48] sm:$0xff]
        %v1157 = vld [vmem:[%s1146 + $0x50] sm:$0xff]
        %v1158 = vld [vmem:[%s1146 + $0x58] sm:$0xff]
        %v1159 = vld [vmem:[%s1146 + $0x60] sm:$0xff]
        %v1160 = vld [vmem:[%s1146 + $0x68] sm:$0xff]
        %v1161 = vld [vmem:[%s1146 + $0x70] sm:$0xff]
        %v1162 = vld [vmem:[%s1146 + $0x78] sm:$0xff]
        %v1163 = vmul.f32 %v1130, %v1147
        %v1164 = vmul.f32 %v1138, %v1148
        %v1165 = vmul.f32 %v1131, %v1149
        %v1166 = vmul.f32 %v1139, %v1150
        %v1167 = vmul.f32 %v1132, %v1151
        %v1168 = vmul.f32 %v1140, %v1152
        %v1169 = vmul.f32 %v1133, %v1153
        %v1170 = vmul.f32 %v1141, %v1154
        %v1171 = vmul.f32 %v1134, %v1155
        %v1172 = vmul.f32 %v1142, %v1156
        %v1173 = vmul.f32 %v1135, %v1157
        %v1174 = vmul.f32 %v1143, %v1158
        %v1175 = vmul.f32 %v1136, %v1159
        %v1176 = vmul.f32 %v1144, %v1160
        %v1177 = vmul.f32 %v1137, %v1161
        %v1178 = vmul.f32 %v1145, %v1162
        %v1179 = vadd.f32 %v1081, %v1163
        %v1180 = vadd.f32 %v1082, %v1164
        %v1181 = vadd.f32 %v1083, %v1165
        %v1182 = vadd.f32 %v1084, %v1166
        %v1183 = vadd.f32 %v1085, %v1167
        %v1184 = vadd.f32 %v1086, %v1168
        %v1185 = vadd.f32 %v1087, %v1169
        %v1186 = vadd.f32 %v1088, %v1170
        %v1187 = vadd.f32 %v1089, %v1171
        %v1188 = vadd.f32 %v1090, %v1172
        %v1189 = vadd.f32 %v1091, %v1173
        %v1190 = vadd.f32 %v1092, %v1174
        %v1191 = vadd.f32 %v1093, %v1175
        %v1192 = vadd.f32 %v1094, %v1176
        %v1193 = vadd.f32 %v1095, %v1177
        %v1194 = vadd.f32 %v1096, %v1178
        %1195 = vrot.lane.b32.xlu0 %v639, 113
        %v1196 = vpop.permute.xlu0 %1195
        %1197 = vrot.lane.b32.xlu0 %v641, 113
        %v1198 = vpop.permute.xlu0 %1197
        %1199 = vrot.lane.b32.xlu0 %v643, 113
        %v1200 = vpop.permute.xlu0 %1199
        %1201 = vrot.lane.b32.xlu0 %v645, 113
        %v1202 = vpop.permute.xlu0 %1201
        %1203 = vrot.lane.b32.xlu0 %v647, 113
        %v1204 = vpop.permute.xlu0 %1203
        %1205 = vrot.lane.b32.xlu0 %v649, 113
        %v1206 = vpop.permute.xlu0 %1205
        %1207 = vrot.lane.b32.xlu0 %v651, 113
        %v1208 = vpop.permute.xlu0 %1207
        %1209 = vrot.lane.b32.xlu0 %v653, 113
        %v1210 = vpop.permute.xlu0 %1209
        %1211 = vrot.lane.b32.xlu0 %v640, 113
        %v1212 = vpop.permute.xlu0 %1211
        %1213 = vrot.lane.b32.xlu0 %v642, 113
        %v1214 = vpop.permute.xlu0 %1213
        %1215 = vrot.lane.b32.xlu0 %v644, 113
        %v1216 = vpop.permute.xlu0 %1215
        %1217 = vrot.lane.b32.xlu0 %v646, 113
        %v1218 = vpop.permute.xlu0 %1217
        %1219 = vrot.lane.b32.xlu0 %v648, 113
        %v1220 = vpop.permute.xlu0 %1219
        %1221 = vrot.lane.b32.xlu0 %v650, 113
        %v1222 = vpop.permute.xlu0 %1221
        %1223 = vrot.lane.b32.xlu0 %v652, 113
        %v1224 = vpop.permute.xlu0 %1223
        %1225 = vrot.lane.b32.xlu0 %v654, 113
        %v1226 = vpop.permute.xlu0 %1225
        %vm1227 = vcmp.lt.s32.totalorder %v688, 113
        %v1228 = vsel %vm1227, %v1196, %v1212
        %v1229 = vsel %vm1227, %v1198, %v1214
        %v1230 = vsel %vm1227, %v1200, %v1216
        %v1231 = vsel %vm1227, %v1202, %v1218
        %v1232 = vsel %vm1227, %v1204, %v1220
        %v1233 = vsel %vm1227, %v1206, %v1222
        %v1234 = vsel %vm1227, %v1208, %v1224
        %v1235 = vsel %vm1227, %v1210, %v1226
        %v1236 = vsel %vm1227, %v1212, %v1196
        %v1237 = vsel %vm1227, %v1214, %v1198
        %v1238 = vsel %vm1227, %v1216, %v1200
        %v1239 = vsel %vm1227, %v1218, %v1202
        %v1240 = vsel %vm1227, %v1220, %v1204
        %v1241 = vsel %vm1227, %v1222, %v1206
        %v1242 = vsel %vm1227, %v1224, %v1208
        %v1243 = vsel %vm1227, %v1226, %v1210
        %s1244 = scalar_lea.vmem [#allocation2], 768
        %v1245 = vld [vmem:[%s1244] sm:$0xff]
        %v1246 = vld [vmem:[%s1244 + $0x8] sm:$0xff]
        %v1247 = vld [vmem:[%s1244 + $0x10] sm:$0xff]
        %v1248 = vld [vmem:[%s1244 + $0x18] sm:$0xff]
        %v1249 = vld [vmem:[%s1244 + $0x20] sm:$0xff]
        %v1250 = vld [vmem:[%s1244 + $0x28] sm:$0xff]
        %v1251 = vld [vmem:[%s1244 + $0x30] sm:$0xff]
        %v1252 = vld [vmem:[%s1244 + $0x38] sm:$0xff]
        %v1253 = vld [vmem:[%s1244 + $0x40] sm:$0xff]
        %v1254 = vld [vmem:[%s1244 + $0x48] sm:$0xff]
        %v1255 = vld [vmem:[%s1244 + $0x50] sm:$0xff]
        %v1256 = vld [vmem:[%s1244 + $0x58] sm:$0xff]
        %v1257 = vld [vmem:[%s1244 + $0x60] sm:$0xff]
        %v1258 = vld [vmem:[%s1244 + $0x68] sm:$0xff]
        %v1259 = vld [vmem:[%s1244 + $0x70] sm:$0xff]
        %v1260 = vld [vmem:[%s1244 + $0x78] sm:$0xff]
        %v1261 = vmul.f32 %v1228, %v1245
        %v1262 = vmul.f32 %v1236, %v1246
        %v1263 = vmul.f32 %v1229, %v1247
        %v1264 = vmul.f32 %v1237, %v1248
        %v1265 = vmul.f32 %v1230, %v1249
        %v1266 = vmul.f32 %v1238, %v1250
        %v1267 = vmul.f32 %v1231, %v1251
        %v1268 = vmul.f32 %v1239, %v1252
        %v1269 = vmul.f32 %v1232, %v1253
        %v1270 = vmul.f32 %v1240, %v1254
        %v1271 = vmul.f32 %v1233, %v1255
        %v1272 = vmul.f32 %v1241, %v1256
        %v1273 = vmul.f32 %v1234, %v1257
        %v1274 = vmul.f32 %v1242, %v1258
        %v1275 = vmul.f32 %v1235, %v1259
        %v1276 = vmul.f32 %v1243, %v1260
        %v1277 = vadd.f32 %v1179, %v1261
        %v1278 = vadd.f32 %v1180, %v1262
        %v1279 = vadd.f32 %v1181, %v1263
        %v1280 = vadd.f32 %v1182, %v1264
        %v1281 = vadd.f32 %v1183, %v1265
        %v1282 = vadd.f32 %v1184, %v1266
        %v1283 = vadd.f32 %v1185, %v1267
        %v1284 = vadd.f32 %v1186, %v1268
        %v1285 = vadd.f32 %v1187, %v1269
        %v1286 = vadd.f32 %v1188, %v1270
        %v1287 = vadd.f32 %v1189, %v1271
        %v1288 = vadd.f32 %v1190, %v1272
        %v1289 = vadd.f32 %v1191, %v1273
        %v1290 = vadd.f32 %v1192, %v1274
        %v1291 = vadd.f32 %v1193, %v1275
        %v1292 = vadd.f32 %v1194, %v1276
        %1293 = vrot.lane.b32.xlu0 %v639, 112
        %v1294 = vpop.permute.xlu0 %1293
        %1295 = vrot.lane.b32.xlu0 %v641, 112
        %v1296 = vpop.permute.xlu0 %1295
        %1297 = vrot.lane.b32.xlu0 %v643, 112
        %v1298 = vpop.permute.xlu0 %1297
        %1299 = vrot.lane.b32.xlu0 %v645, 112
        %v1300 = vpop.permute.xlu0 %1299
        %1301 = vrot.lane.b32.xlu0 %v647, 112
        %v1302 = vpop.permute.xlu0 %1301
        %1303 = vrot.lane.b32.xlu0 %v649, 112
        %v1304 = vpop.permute.xlu0 %1303
        %1305 = vrot.lane.b32.xlu0 %v651, 112
        %v1306 = vpop.permute.xlu0 %1305
        %1307 = vrot.lane.b32.xlu0 %v653, 112
        %v1308 = vpop.permute.xlu0 %1307
        %1309 = vrot.lane.b32.xlu0 %v640, 112
        %v1310 = vpop.permute.xlu0 %1309
        %1311 = vrot.lane.b32.xlu0 %v642, 112
        %v1312 = vpop.permute.xlu0 %1311
        %1313 = vrot.lane.b32.xlu0 %v644, 112
        %v1314 = vpop.permute.xlu0 %1313
        %1315 = vrot.lane.b32.xlu0 %v646, 112
        %v1316 = vpop.permute.xlu0 %1315
        %1317 = vrot.lane.b32.xlu0 %v648, 112
        %v1318 = vpop.permute.xlu0 %1317
        %1319 = vrot.lane.b32.xlu0 %v650, 112
        %v1320 = vpop.permute.xlu0 %1319
        %1321 = vrot.lane.b32.xlu0 %v652, 112
        %v1322 = vpop.permute.xlu0 %1321
        %1323 = vrot.lane.b32.xlu0 %v654, 112
        %v1324 = vpop.permute.xlu0 %1323
        %vm1325 = vcmp.lt.s32.totalorder %v688, 112
        %v1326 = vsel %vm1325, %v1294, %v1310
        %v1327 = vsel %vm1325, %v1296, %v1312
        %v1328 = vsel %vm1325, %v1298, %v1314
        %v1329 = vsel %vm1325, %v1300, %v1316
        %v1330 = vsel %vm1325, %v1302, %v1318
        %v1331 = vsel %vm1325, %v1304, %v1320
        %v1332 = vsel %vm1325, %v1306, %v1322
        %v1333 = vsel %vm1325, %v1308, %v1324
        %v1334 = vsel %vm1325, %v1310, %v1294
        %v1335 = vsel %vm1325, %v1312, %v1296
        %v1336 = vsel %vm1325, %v1314, %v1298
        %v1337 = vsel %vm1325, %v1316, %v1300
        %v1338 = vsel %vm1325, %v1318, %v1302
        %v1339 = vsel %vm1325, %v1320, %v1304
        %v1340 = vsel %vm1325, %v1322, %v1306
        %v1341 = vsel %vm1325, %v1324, %v1308
        %s1342 = scalar_lea.vmem [#allocation2], 896
        %v1343 = vld [vmem:[%s1342] sm:$0xff]
        %v1344 = vld [vmem:[%s1342 + $0x8] sm:$0xff]
        %v1345 = vld [vmem:[%s1342 + $0x10] sm:$0xff]
        %v1346 = vld [vmem:[%s1342 + $0x18] sm:$0xff]
        %v1347 = vld [vmem:[%s1342 + $0x20] sm:$0xff]
        %v1348 = vld [vmem:[%s1342 + $0x28] sm:$0xff]
        %v1349 = vld [vmem:[%s1342 + $0x30] sm:$0xff]
        %v1350 = vld [vmem:[%s1342 + $0x38] sm:$0xff]
        %v1351 = vld [vmem:[%s1342 + $0x40] sm:$0xff]
        %v1352 = vld [vmem:[%s1342 + $0x48] sm:$0xff]
        %v1353 = vld [vmem:[%s1342 + $0x50] sm:$0xff]
        %v1354 = vld [vmem:[%s1342 + $0x58] sm:$0xff]
        %v1355 = vld [vmem:[%s1342 + $0x60] sm:$0xff]
        %v1356 = vld [vmem:[%s1342 + $0x68] sm:$0xff]
        %v1357 = vld [vmem:[%s1342 + $0x70] sm:$0xff]
        %v1358 = vld [vmem:[%s1342 + $0x78] sm:$0xff]
        %v1359 = vmul.f32 %v1326, %v1343
        %v1360 = vmul.f32 %v1334, %v1344
        %v1361 = vmul.f32 %v1327, %v1345
        %v1362 = vmul.f32 %v1335, %v1346
        %v1363 = vmul.f32 %v1328, %v1347
        %v1364 = vmul.f32 %v1336, %v1348
        %v1365 = vmul.f32 %v1329, %v1349
        %v1366 = vmul.f32 %v1337, %v1350
        %v1367 = vmul.f32 %v1330, %v1351
        %v1368 = vmul.f32 %v1338, %v1352
        %v1369 = vmul.f32 %v1331, %v1353
        %v1370 = vmul.f32 %v1339, %v1354
        %v1371 = vmul.f32 %v1332, %v1355
        %v1372 = vmul.f32 %v1340, %v1356
        %v1373 = vmul.f32 %v1333, %v1357
        %v1374 = vmul.f32 %v1341, %v1358
        %v1375 = vadd.f32 %v1277, %v1359
        %v1376 = vadd.f32 %v1278, %v1360
        %v1377 = vadd.f32 %v1279, %v1361
        %v1378 = vadd.f32 %v1280, %v1362
        %v1379 = vadd.f32 %v1281, %v1363
        %v1380 = vadd.f32 %v1282, %v1364
        %v1381 = vadd.f32 %v1283, %v1365
        %v1382 = vadd.f32 %v1284, %v1366
        %v1383 = vadd.f32 %v1285, %v1367
        %v1384 = vadd.f32 %v1286, %v1368
        %v1385 = vadd.f32 %v1287, %v1369
        %v1386 = vadd.f32 %v1288, %v1370
        %v1387 = vadd.f32 %v1289, %v1371
        %v1388 = vadd.f32 %v1290, %v1372
        %v1389 = vadd.f32 %v1291, %v1373
        %v1390 = vadd.f32 %v1292, %v1374
        %1391 = vrot.lane.b32.xlu0 %v639, 111
        %v1392 = vpop.permute.xlu0 %1391
        %1393 = vrot.lane.b32.xlu0 %v641, 111
        %v1394 = vpop.permute.xlu0 %1393
        %1395 = vrot.lane.b32.xlu0 %v643, 111
        %v1396 = vpop.permute.xlu0 %1395
        %1397 = vrot.lane.b32.xlu0 %v645, 111
        %v1398 = vpop.permute.xlu0 %1397
        %1399 = vrot.lane.b32.xlu0 %v647, 111
        %v1400 = vpop.permute.xlu0 %1399
        %1401 = vrot.lane.b32.xlu0 %v649, 111
        %v1402 = vpop.permute.xlu0 %1401
        %1403 = vrot.lane.b32.xlu0 %v651, 111
        %v1404 = vpop.permute.xlu0 %1403
        %1405 = vrot.lane.b32.xlu0 %v653, 111
        %v1406 = vpop.permute.xlu0 %1405
        %1407 = vrot.lane.b32.xlu0 %v640, 111
        %v1408 = vpop.permute.xlu0 %1407
        %1409 = vrot.lane.b32.xlu0 %v642, 111
        %v1410 = vpop.permute.xlu0 %1409
        %1411 = vrot.lane.b32.xlu0 %v644, 111
        %v1412 = vpop.permute.xlu0 %1411
        %1413 = vrot.lane.b32.xlu0 %v646, 111
        %v1414 = vpop.permute.xlu0 %1413
        %1415 = vrot.lane.b32.xlu0 %v648, 111
        %v1416 = vpop.permute.xlu0 %1415
        %1417 = vrot.lane.b32.xlu0 %v650, 111
        %v1418 = vpop.permute.xlu0 %1417
        %1419 = vrot.lane.b32.xlu0 %v652, 111
        %v1420 = vpop.permute.xlu0 %1419
        %1421 = vrot.lane.b32.xlu0 %v654, 111
        %v1422 = vpop.permute.xlu0 %1421
        %vm1423 = vcmp.lt.s32.totalorder %v688, 111
        %v1424 = vsel %vm1423, %v1392, %v1408
        %v1425 = vsel %vm1423, %v1394, %v1410
        %v1426 = vsel %vm1423, %v1396, %v1412
        %v1427 = vsel %vm1423, %v1398, %v1414
        %v1428 = vsel %vm1423, %v1400, %v1416
        %v1429 = vsel %vm1423, %v1402, %v1418
        %v1430 = vsel %vm1423, %v1404, %v1420
        %v1431 = vsel %vm1423, %v1406, %v1422
        %v1432 = vsel %vm1423, %v1408, %v1392
        %v1433 = vsel %vm1423, %v1410, %v1394
        %v1434 = vsel %vm1423, %v1412, %v1396
        %v1435 = vsel %vm1423, %v1414, %v1398
        %v1436 = vsel %vm1423, %v1416, %v1400
        %v1437 = vsel %vm1423, %v1418, %v1402
        %v1438 = vsel %vm1423, %v1420, %v1404
        %v1439 = vsel %vm1423, %v1422, %v1406
        %s1440 = scalar_lea.vmem [#allocation2], 1024
        %v1441 = vld [vmem:[%s1440] sm:$0xff]
        %v1442 = vld [vmem:[%s1440 + $0x8] sm:$0xff]
        %v1443 = vld [vmem:[%s1440 + $0x10] sm:$0xff]
        %v1444 = vld [vmem:[%s1440 + $0x18] sm:$0xff]
        %v1445 = vld [vmem:[%s1440 + $0x20] sm:$0xff]
        %v1446 = vld [vmem:[%s1440 + $0x28] sm:$0xff]
        %v1447 = vld [vmem:[%s1440 + $0x30] sm:$0xff]
        %v1448 = vld [vmem:[%s1440 + $0x38] sm:$0xff]
        %v1449 = vld [vmem:[%s1440 + $0x40] sm:$0xff]
        %v1450 = vld [vmem:[%s1440 + $0x48] sm:$0xff]
        %v1451 = vld [vmem:[%s1440 + $0x50] sm:$0xff]
        %v1452 = vld [vmem:[%s1440 + $0x58] sm:$0xff]
        %v1453 = vld [vmem:[%s1440 + $0x60] sm:$0xff]
        %v1454 = vld [vmem:[%s1440 + $0x68] sm:$0xff]
        %v1455 = vld [vmem:[%s1440 + $0x70] sm:$0xff]
        %v1456 = vld [vmem:[%s1440 + $0x78] sm:$0xff]
        %v1457 = vmul.f32 %v1424, %v1441
        %v1458 = vmul.f32 %v1432, %v1442
        %v1459 = vmul.f32 %v1425, %v1443
        %v1460 = vmul.f32 %v1433, %v1444
        %v1461 = vmul.f32 %v1426, %v1445
        %v1462 = vmul.f32 %v1434, %v1446
        %v1463 = vmul.f32 %v1427, %v1447
        %v1464 = vmul.f32 %v1435, %v1448
        %v1465 = vmul.f32 %v1428, %v1449
        %v1466 = vmul.f32 %v1436, %v1450
        %v1467 = vmul.f32 %v1429, %v1451
        %v1468 = vmul.f32 %v1437, %v1452
        %v1469 = vmul.f32 %v1430, %v1453
        %v1470 = vmul.f32 %v1438, %v1454
        %v1471 = vmul.f32 %v1431, %v1455
        %v1472 = vmul.f32 %v1439, %v1456
        %v1473 = vadd.f32 %v1375, %v1457
        %v1474 = vadd.f32 %v1376, %v1458
        %v1475 = vadd.f32 %v1377, %v1459
        %v1476 = vadd.f32 %v1378, %v1460
        %v1477 = vadd.f32 %v1379, %v1461
        %v1478 = vadd.f32 %v1380, %v1462
        %v1479 = vadd.f32 %v1381, %v1463
        %v1480 = vadd.f32 %v1382, %v1464
        %v1481 = vadd.f32 %v1383, %v1465
        %v1482 = vadd.f32 %v1384, %v1466
        %v1483 = vadd.f32 %v1385, %v1467
        %v1484 = vadd.f32 %v1386, %v1468
        %v1485 = vadd.f32 %v1387, %v1469
        %v1486 = vadd.f32 %v1388, %v1470
        %v1487 = vadd.f32 %v1389, %v1471
        %v1488 = vadd.f32 %v1390, %v1472
        %v1489 = vld [vmem:[%s4] sm:$0xff]
        %v1490 = vld [vmem:[%s4 + $0x8] sm:$0xff]
        %v1491 = vld [vmem:[%s4 + $0x10] sm:$0xff]
        %v1492 = vld [vmem:[%s4 + $0x18] sm:$0xff]
        %v1493 = vld [vmem:[%s4 + $0x20] sm:$0xff]
        %v1494 = vld [vmem:[%s4 + $0x28] sm:$0xff]
        %v1495 = vld [vmem:[%s4 + $0x30] sm:$0xff]
        %v1496 = vld [vmem:[%s4 + $0x38] sm:$0xff]
        %1498 = vset.pattern.permute.xlu0 0
        %1499 = vperm.xlu0 %1498, %v1489
        %v1500 = vpop.permute.xlu0 %1499
        %1503 = vset.pattern.permute.xlu0 0
        %1504 = vperm.xlu0 %1503, %v1490
        %v1505 = vpop.permute.xlu0 %1504
        %1508 = vset.pattern.permute.xlu0 0
        %1509 = vperm.xlu0 %1508, %v1491
        %v1510 = vpop.permute.xlu0 %1509
        %1513 = vset.pattern.permute.xlu0 0
        %1514 = vperm.xlu0 %1513, %v1492
        %v1515 = vpop.permute.xlu0 %1514
        %1518 = vset.pattern.permute.xlu0 0
        %1519 = vperm.xlu0 %1518, %v1493
        %v1520 = vpop.permute.xlu0 %1519
        %1523 = vset.pattern.permute.xlu0 0
        %1524 = vperm.xlu0 %1523, %v1494
        %v1525 = vpop.permute.xlu0 %1524
        %1528 = vset.pattern.permute.xlu0 0
        %1529 = vperm.xlu0 %1528, %v1495
        %v1530 = vpop.permute.xlu0 %1529
        %1533 = vset.pattern.permute.xlu0 0
        %1534 = vperm.xlu0 %1533, %v1496
        %v1535 = vpop.permute.xlu0 %1534
        %v1537 = vadd.f32 %v1473, %v1500
        %v1538 = vadd.f32 %v1474, %v1500
        %v1539 = vadd.f32 %v1475, %v1505
        %v1540 = vadd.f32 %v1476, %v1505
        %v1541 = vadd.f32 %v1477, %v1510
        %v1542 = vadd.f32 %v1478, %v1510
        %v1543 = vadd.f32 %v1479, %v1515
        %v1544 = vadd.f32 %v1480, %v1515
        %v1545 = vadd.f32 %v1481, %v1520
        %v1546 = vadd.f32 %v1482, %v1520
        %v1547 = vadd.f32 %v1483, %v1525
        %v1548 = vadd.f32 %v1484, %v1525
        %v1549 = vadd.f32 %v1485, %v1530
        %v1550 = vadd.f32 %v1486, %v1530
        %v1551 = vadd.f32 %v1487, %v1535
        %v1552 = vadd.f32 %v1488, %v1535
        %v1553 = vadd.f32 %v1537, 3.0
        %v1554 = vadd.f32 %v1538, 3.0
        %v1555 = vadd.f32 %v1539, 3.0
        %v1556 = vadd.f32 %v1540, 3.0
        %v1557 = vadd.f32 %v1541, 3.0
        %v1558 = vadd.f32 %v1542, 3.0
        %v1559 = vadd.f32 %v1543, 3.0
        %v1560 = vadd.f32 %v1544, 3.0
        %v1561 = vadd.f32 %v1545, 3.0
        %v1562 = vadd.f32 %v1546, 3.0
        %v1563 = vadd.f32 %v1547, 3.0
        %v1564 = vadd.f32 %v1548, 3.0
        %v1565 = vadd.f32 %v1549, 3.0
        %v1566 = vadd.f32 %v1550, 3.0
        %v1567 = vadd.f32 %v1551, 3.0
        %v1568 = vadd.f32 %v1552, 3.0
        %v1569 = vmax.f32 %v1553, 0.0
        %v1570 = vmax.f32 %v1554, 0.0
        %v1571 = vmax.f32 %v1555, 0.0
        %v1572 = vmax.f32 %v1556, 0.0
        %v1573 = vmax.f32 %v1557, 0.0
        %v1574 = vmax.f32 %v1558, 0.0
        %v1575 = vmax.f32 %v1559, 0.0
        %v1576 = vmax.f32 %v1560, 0.0
        %v1577 = vmax.f32 %v1561, 0.0
        %v1578 = vmax.f32 %v1562, 0.0
        %v1579 = vmax.f32 %v1563, 0.0
        %v1580 = vmax.f32 %v1564, 0.0
        %v1581 = vmax.f32 %v1565, 0.0
        %v1582 = vmax.f32 %v1566, 0.0
        %v1583 = vmax.f32 %v1567, 0.0
        %v1584 = vmax.f32 %v1568, 0.0
        %v1585 = vmin.f32 %v1569, 6.0
        %v1586 = vmin.f32 %v1570, 6.0
        %v1587 = vmin.f32 %v1571, 6.0
        %v1588 = vmin.f32 %v1572, 6.0
        %v1589 = vmin.f32 %v1573, 6.0
        %v1590 = vmin.f32 %v1574, 6.0
        %v1591 = vmin.f32 %v1575, 6.0
        %v1592 = vmin.f32 %v1576, 6.0
        %v1593 = vmin.f32 %v1577, 6.0
        %v1594 = vmin.f32 %v1578, 6.0
        %v1595 = vmin.f32 %v1579, 6.0
        %v1596 = vmin.f32 %v1580, 6.0
        %v1597 = vmin.f32 %v1581, 6.0
        %v1598 = vmin.f32 %v1582, 6.0
        %v1599 = vmin.f32 %v1583, 6.0
        %v1600 = vmin.f32 %v1584, 6.0
        %v1601 = vmul.f32 %v1537, %v1585
        %v1602 = vmul.f32 %v1538, %v1586
        %v1603 = vmul.f32 %v1539, %v1587
        %v1604 = vmul.f32 %v1540, %v1588
        %v1605 = vmul.f32 %v1541, %v1589
        %v1606 = vmul.f32 %v1542, %v1590
        %v1607 = vmul.f32 %v1543, %v1591
        %v1608 = vmul.f32 %v1544, %v1592
        %v1609 = vmul.f32 %v1545, %v1593
        %v1610 = vmul.f32 %v1546, %v1594
        %v1611 = vmul.f32 %v1547, %v1595
        %v1612 = vmul.f32 %v1548, %v1596
        %v1613 = vmul.f32 %v1549, %v1597
        %v1614 = vmul.f32 %v1550, %v1598
        %v1615 = vmul.f32 %v1551, %v1599
        %v1616 = vmul.f32 %v1552, %v1600
        %v1617 = vmul.f32 %v1601, 0.16666667
        %v1618 = vmul.f32 %v1602, 0.16666667
        %v1619 = vmul.f32 %v1603, 0.16666667
        %v1620 = vmul.f32 %v1604, 0.16666667
        %v1621 = vmul.f32 %v1605, 0.16666667
        %v1622 = vmul.f32 %v1606, 0.16666667
        %v1623 = vmul.f32 %v1607, 0.16666667
        %v1624 = vmul.f32 %v1608, 0.16666667
        %v1625 = vmul.f32 %v1609, 0.16666667
        %v1626 = vmul.f32 %v1610, 0.16666667
        %v1627 = vmul.f32 %v1611, 0.16666667
        %v1628 = vmul.f32 %v1612, 0.16666667
        %v1629 = vmul.f32 %v1613, 0.16666667
        %v1630 = vmul.f32 %v1614, 0.16666667
        %v1631 = vmul.f32 %v1615, 0.16666667
        %v1632 = vmul.f32 %v1616, 0.16666667
        %v1633 = vadd.f32 %v1617, %v1618
        %1634 = vadd.xlane.f32.xlu0 %v1633
        %v1635 = vpop.xlane.xlu0 %1634
        %v1636 = vadd.f32 %v1619, %v1620
        %1637 = vadd.xlane.f32.xlu0 %v1636
        %v1638 = vpop.xlane.xlu0 %1637
        %v1639 = vadd.f32 %v1621, %v1622
        %1640 = vadd.xlane.f32.xlu0 %v1639
        %v1641 = vpop.xlane.xlu0 %1640
        %v1642 = vadd.f32 %v1623, %v1624
        %1643 = vadd.xlane.f32.xlu0 %v1642
        %v1644 = vpop.xlane.xlu0 %1643
        %v1645 = vadd.f32 %v1625, %v1626
        %1646 = vadd.xlane.f32.xlu0 %v1645
        %v1647 = vpop.xlane.xlu0 %1646
        %v1648 = vadd.f32 %v1627, %v1628
        %1649 = vadd.xlane.f32.xlu0 %v1648
        %v1650 = vpop.xlane.xlu0 %1649
        %v1651 = vadd.f32 %v1629, %v1630
        %1652 = vadd.xlane.f32.xlu0 %v1651
        %v1653 = vpop.xlane.xlu0 %1652
        %v1654 = vadd.f32 %v1631, %v1632
        %1655 = vadd.xlane.f32.xlu0 %v1654
        %v1656 = vpop.xlane.xlu0 %1655
        %v1657 = vrcp.pop 256.0
        %v1658 = vmul.f32 %v1635, %v1657
        %v1659 = vmul.f32 %v1638, %v1657
        %v1660 = vmul.f32 %v1641, %v1657
        %v1661 = vmul.f32 %v1644, %v1657
        %v1662 = vmul.f32 %v1647, %v1657
        %v1663 = vmul.f32 %v1650, %v1657
        %v1664 = vmul.f32 %v1653, %v1657
        %v1665 = vmul.f32 %v1656, %v1657
        %v1666 = vld [vmem:[%s5] sm:$0xff]
        %v1667 = vld [vmem:[%s5 + $0x8] sm:$0xff]
        %v1668 = vld [vmem:[%s5 + $0x10] sm:$0xff]
        %v1669 = vld [vmem:[%s5 + $0x18] sm:$0xff]
        %v1670 = vld [vmem:[%s5 + $0x20] sm:$0xff]
        %v1671 = vld [vmem:[%s5 + $0x28] sm:$0xff]
        %v1672 = vld [vmem:[%s5 + $0x30] sm:$0xff]
        %v1673 = vld [vmem:[%s5 + $0x38] sm:$0xff]
        %v1674 = vmul.f32 %v1666, %v1658
        %v1675 = vmul.f32 %v1667, %v1659
        %v1676 = vmul.f32 %v1668, %v1660
        %v1677 = vmul.f32 %v1669, %v1661
        %v1678 = vmul.f32 %v1670, %v1662
        %v1679 = vmul.f32 %v1671, %v1663
        %v1680 = vmul.f32 %v1672, %v1664
        %v1681 = vmul.f32 %v1673, %v1665
        %v1682 = vsel %vm489, %v1674, 0.0
        %v1683 = vsel %vm489, %v1675, 0.0
        %v1684 = vadd.f32 %v1682, %v1683
        %v1685 = vsel %vm489, %v1676, 0.0
        %v1686 = vadd.f32 %v1684, %v1685
        %v1687 = vsel %vm489, %v1677, 0.0
        %v1688 = vadd.f32 %v1686, %v1687
        %v1689 = vsel %vm489, %v1678, 0.0
        %v1690 = vadd.f32 %v1688, %v1689
        %v1691 = vsel %vm489, %v1679, 0.0
        %v1692 = vadd.f32 %v1690, %v1691
        %v1693 = vsel %vm489, %v1680, 0.0
        %v1694 = vadd.f32 %v1692, %v1693
        %v1695 = vsel %vm489, %v1681, 0.0
        %v1696 = vadd.f32 %v1694, %v1695
        %v1697 = vrot.slane %v1696, 4
        %v1698 = vadd.f32 %v1696, %v1697
        %v1699 = vrot.slane %v1698, 2
        %v1700 = vadd.f32 %v1698, %v1699
        %v1701 = vrot.slane %v1700, 1
        %v1702 = vadd.f32 %v1700, %v1701
        %v1703 = vld [vmem:[%s6] sm:$0x1]
        %v1704 = vadd.f32 %v1702, %v1703
        %v1705 = vmax.f32 %v1704, 0.0
        %v1706 = vld [vmem:[%s7] sm:$0xff]
        %v1707 = vld [vmem:[%s7 + $0x8] sm:$0xff]
        %v1708 = vld [vmem:[%s7 + $0x10] sm:$0xff]
        %v1709 = vld [vmem:[%s7 + $0x18] sm:$0xff]
        %v1710 = vld [vmem:[%s7 + $0x20] sm:$0xff]
        %v1711 = vld [vmem:[%s7 + $0x28] sm:$0xff]
        %v1712 = vld [vmem:[%s7 + $0x30] sm:$0xff]
        %v1713 = vld [vmem:[%s7 + $0x38] sm:$0xff]
        %v1714 = vlaneseq
        %v1715 = vshrl.u32 %v1714, 7
        %v1716 = vsub.s32 0, %v1715
        %v1717 = vrot.slane %v1705, %v1716
        %v1718 = vmul.f32 %v1706, %v1717
        %v1719 = vmul.f32 %v1707, %v1717
        %v1720 = vmul.f32 %v1708, %v1717
        %v1721 = vmul.f32 %v1709, %v1717
        %v1722 = vmul.f32 %v1710, %v1717
        %v1723 = vmul.f32 %v1711, %v1717
        %v1724 = vmul.f32 %v1712, %v1717
        %v1725 = vmul.f32 %v1713, %v1717
        %v1726 = vsel %vm489, %v1718, 0.0
        %1727 = vadd.xlane.f32.xlu0 %v1726
        %v1728 = vpop.xlane.xlu0 %1727
        %v1729 = vsel %vm489, %v1719, 0.0
        %1730 = vadd.xlane.f32.xlu0 %v1729
        %v1731 = vpop.xlane.xlu0 %1730
        %v1732 = vsel %vm489, %v1720, 0.0
        %1733 = vadd.xlane.f32.xlu0 %v1732
        %v1734 = vpop.xlane.xlu0 %1733
        %v1735 = vsel %vm489, %v1721, 0.0
        %1736 = vadd.xlane.f32.xlu0 %v1735
        %v1737 = vpop.xlane.xlu0 %1736
        %v1738 = vsel %vm489, %v1722, 0.0
        %1739 = vadd.xlane.f32.xlu0 %v1738
        %v1740 = vpop.xlane.xlu0 %1739
        %v1741 = vsel %vm489, %v1723, 0.0
        %1742 = vadd.xlane.f32.xlu0 %v1741
        %v1743 = vpop.xlane.xlu0 %1742
        %v1744 = vsel %vm489, %v1724, 0.0
        %1745 = vadd.xlane.f32.xlu0 %v1744
        %v1746 = vpop.xlane.xlu0 %1745
        %v1747 = vsel %vm489, %v1725, 0.0
        %1748 = vadd.xlane.f32.xlu0 %v1747
        %v1749 = vpop.xlane.xlu0 %1748
        %v1750 = vld [vmem:[%s8] sm:$0xff]
        %v1751 = vld [vmem:[%s8 + $0x8] sm:$0xff]
        %v1752 = vld [vmem:[%s8 + $0x10] sm:$0xff]
        %v1753 = vld [vmem:[%s8 + $0x18] sm:$0xff]
        %v1754 = vld [vmem:[%s8 + $0x20] sm:$0xff]
        %v1755 = vld [vmem:[%s8 + $0x28] sm:$0xff]
        %v1756 = vld [vmem:[%s8 + $0x30] sm:$0xff]
        %v1757 = vld [vmem:[%s8 + $0x38] sm:$0xff]
        %v1758 = vadd.f32 %v1728, %v1750
        %v1759 = vadd.f32 %v1731, %v1751
        %v1760 = vadd.f32 %v1734, %v1752
        %v1761 = vadd.f32 %v1737, %v1753
        %v1762 = vadd.f32 %v1740, %v1754
        %v1763 = vadd.f32 %v1743, %v1755
        %v1764 = vadd.f32 %v1746, %v1756
        %v1765 = vadd.f32 %v1749, %v1757
        %v1766 = vadd.f32 %v1758, 3.0
        %v1767 = vadd.f32 %v1759, 3.0
        %v1768 = vadd.f32 %v1760, 3.0
        %v1769 = vadd.f32 %v1761, 3.0
        %v1770 = vadd.f32 %v1762, 3.0
        %v1771 = vadd.f32 %v1763, 3.0
        %v1772 = vadd.f32 %v1764, 3.0
        %v1773 = vadd.f32 %v1765, 3.0
        %v1774 = vmax.f32 %v1766, 0.0
        %v1775 = vmax.f32 %v1767, 0.0
        %v1776 = vmax.f32 %v1768, 0.0
        %v1777 = vmax.f32 %v1769, 0.0
        %v1778 = vmax.f32 %v1770, 0.0
        %v1779 = vmax.f32 %v1771, 0.0
        %v1780 = vmax.f32 %v1772, 0.0
        %v1781 = vmax.f32 %v1773, 0.0
        %v1782 = vmin.f32 %v1774, 6.0
        %v1783 = vmin.f32 %v1775, 6.0
        %v1784 = vmin.f32 %v1776, 6.0
        %v1785 = vmin.f32 %v1777, 6.0
        %v1786 = vmin.f32 %v1778, 6.0
        %v1787 = vmin.f32 %v1779, 6.0
        %v1788 = vmin.f32 %v1780, 6.0
        %v1789 = vmin.f32 %v1781, 6.0
        %v1790 = vmul.f32 %v1782, 0.16666667
        %v1791 = vmul.f32 %v1783, 0.16666667
        %v1792 = vmul.f32 %v1784, 0.16666667
        %v1793 = vmul.f32 %v1785, 0.16666667
        %v1794 = vmul.f32 %v1786, 0.16666667
        %v1795 = vmul.f32 %v1787, 0.16666667
        %v1796 = vmul.f32 %v1788, 0.16666667
        %v1797 = vmul.f32 %v1789, 0.16666667
        %1799 = vset.pattern.permute.xlu0 0
        %1800 = vperm.xlu0 %1799, %v1790
        %v1801 = vpop.permute.xlu0 %1800
        %1804 = vset.pattern.permute.xlu0 0
        %1805 = vperm.xlu0 %1804, %v1791
        %v1806 = vpop.permute.xlu0 %1805
        %1809 = vset.pattern.permute.xlu0 0
        %1810 = vperm.xlu0 %1809, %v1792
        %v1811 = vpop.permute.xlu0 %1810
        %1814 = vset.pattern.permute.xlu0 0
        %1815 = vperm.xlu0 %1814, %v1793
        %v1816 = vpop.permute.xlu0 %1815
        %1819 = vset.pattern.permute.xlu0 0
        %1820 = vperm.xlu0 %1819, %v1794
        %v1821 = vpop.permute.xlu0 %1820
        %1824 = vset.pattern.permute.xlu0 0
        %1825 = vperm.xlu0 %1824, %v1795
        %v1826 = vpop.permute.xlu0 %1825
        %1829 = vset.pattern.permute.xlu0 0
        %1830 = vperm.xlu0 %1829, %v1796
        %v1831 = vpop.permute.xlu0 %1830
        %1834 = vset.pattern.permute.xlu0 0
        %1835 = vperm.xlu0 %1834, %v1797
        %v1836 = vpop.permute.xlu0 %1835
        %v1838 = vmul.f32 %v1617, %v1801
        %v1839 = vmul.f32 %v1618, %v1801
        %v1840 = vmul.f32 %v1619, %v1806
        %v1841 = vmul.f32 %v1620, %v1806
        %v1842 = vmul.f32 %v1621, %v1811
        %v1843 = vmul.f32 %v1622, %v1811
        %v1844 = vmul.f32 %v1623, %v1816
        %v1845 = vmul.f32 %v1624, %v1816
        %v1846 = vmul.f32 %v1625, %v1821
        %v1847 = vmul.f32 %v1626, %v1821
        %v1848 = vmul.f32 %v1627, %v1826
        %v1849 = vmul.f32 %v1628, %v1826
        %v1850 = vmul.f32 %v1629, %v1831
        %v1851 = vmul.f32 %v1630, %v1831
        %v1852 = vmul.f32 %v1631, %v1836
        %v1853 = vmul.f32 %v1632, %v1836
        %v1854 = vld [vmem:[%s9] sm:$0xf]
        %v1855 = vld [vmem:[%s9 + $0x4] sm:$0xf]
        %v1856 = vpack.c.bf16 %v1840, %v1838
        %v1857 = vpack.c.bf16 %v1841, %v1839
        %v1858 = vpack.c.bf16 %v1844, %v1842
        %v1859 = vpack.c.bf16 %v1845, %v1843
        %v1860 = vpack.c.bf16 %v1848, %v1846
        %v1861 = vpack.c.bf16 %v1849, %v1847
        %v1862 = vpack.c.bf16 %v1852, %v1850
        %v1863 = vpack.c.bf16 %v1853, %v1851
        %v1864 = vld [vmem:[%s10] sm:$0xff]
        %v1865 = vld [vmem:[%s10 + $0x8] sm:$0xff]
        %1867 = vset.pattern.permute.xlu0 0
        %1868 = vperm.xlu0 %1867, %v1864
        %v1869 = vpop.permute.xlu0 %1868
        %1872 = vset.pattern.permute.xlu0 0
        %1873 = vperm.xlu0 %1872, %v1865
        %v1874 = vpop.permute.xlu0 %1873
        %v1878 = vunpack.c.l.b16 %v1854
        %v1879 = vunpack.c.l.b16 %v1855
        %v1880 = vpack.c.b16 %v1879, %v1878
        %vm1881 = vcmask 523264
        %v1883 = vsel %vm1881, %v1880, 0
        %1885 = vmatprep.subr.bf16.mxu0 %v1857
        %1886 = vmatpush1.bf16.msra.mxu0 %v1856
        %1887 = vmatprep.subr.bf16.mxu0 %v1859
        %1888 = vmatpush1.bf16.msra.mxu0 %v1858
        %1889 = vmatprep.subr.bf16.mxu0 %v1861
        %1890 = vmatpush1.bf16.msra.mxu0 %v1860
        %1891 = vmatprep.subr.bf16.mxu0 %v1863
        %1892 = vmatpush1.bf16.msra.mxu0 %v1862
        %1893 = vmatprep.subr.bf16.mxu0 0
        %1894 = vmatpush1.bf16.msra.mxu0 0
        %1895 = vmatprep.subr.bf16.mxu0 0
        %1896 = vmatpush1.bf16.msra.mxu0 0
        %1897 = vmatprep.subr.bf16.mxu0 0
        %1898 = vmatpush1.bf16.msra.mxu0 0
        %1899 = vmatprep.subr.bf16.mxu0 0
        %1900 = vmatpush1.bf16.msra.mxu0 0
        %1901 = vmatprep.subr.bf16.mxu0 0
        %1902 = vmatpush1.bf16.msra.mxu0 0
        %1903 = vmatprep.subr.bf16.mxu0 0
        %1904 = vmatpush1.bf16.msra.mxu0 0
        %1905 = vmatprep.subr.bf16.mxu0 0
        %1906 = vmatpush1.bf16.msra.mxu0 0
        %1907 = vmatprep.subr.bf16.mxu0 0
        %1908 = vmatpush1.bf16.msra.mxu0 0
        %1909 = vmatprep.subr.bf16.mxu0 0
        %1910 = vmatpush1.bf16.msra.mxu0 0
        %1911 = vmatprep.subr.bf16.mxu0 0
        %1912 = vmatpush1.bf16.msra.mxu0 0
        %1913 = vmatprep.subr.bf16.mxu0 0
        %1914 = vmatpush1.bf16.msra.mxu0 0
        %1915 = vmatprep.subr.bf16.mxu0 0
        %1916 = vmatpush1.bf16.msra.mxu0 0
        %1917 = vmatprep.mubr.bf16.mxu0 0
        %1918 = vmatmul.mubr.bf16.gmra.mrb[0].mxu0 %v1883
        %v1919 = vpop.f32.mrb[0].mxu0
        %v1920 = vadd.f32 %v1869, %v1919
        %v1921 = vpop.f32.mrb[0].mxu0
        %v1922 = vadd.f32 %v1869, %v1921
        %v1923 = vpop.f32.mrb[0].mxu0
        %v1924 = vadd.f32 %v1874, %v1923
        %v1925 = vpop.f32.mrb[0].mxu0
        %v1926 = vadd.f32 %v1874, %v1925
        %1927 = vdwg.mxu0
        %v1928 = vadd.f32 %v1920, 3.0
        %v1929 = vadd.f32 %v1922, 3.0
        %v1930 = vadd.f32 %v1924, 3.0
        %v1931 = vadd.f32 %v1926, 3.0
        %v1932 = vmax.f32 %v1928, 0.0
        %v1933 = vmax.f32 %v1929, 0.0
        %v1934 = vmax.f32 %v1930, 0.0
        %v1935 = vmax.f32 %v1931, 0.0
        %v1936 = vmin.f32 %v1932, 6.0
        %v1937 = vmin.f32 %v1933, 6.0
        %v1938 = vmin.f32 %v1934, 6.0
        %v1939 = vmin.f32 %v1935, 6.0
        %v1940 = vmul.f32 %v1920, %v1936
        %v1941 = vmul.f32 %v1922, %v1937
        %v1942 = vmul.f32 %v1924, %v1938
        %v1943 = vmul.f32 %v1926, %v1939
        %v1944 = vmul.f32 %v1940, 0.16666667
        %v1945 = vmul.f32 %v1941, 0.16666667
        %v1946 = vmul.f32 %v1942, 0.16666667
        %v1947 = vmul.f32 %v1943, 0.16666667
        %v1948 = vadd.f32 %v1944, %v407
        %v1949 = vadd.f32 %v1945, %v408
        %v1950 = vadd.f32 %v1946, %v409
        %v1951 = vadd.f32 %v1947, %v410
        %1952 = vst [vmem:[%s397] sm:$0xff] %v1948
        %1953 = vst [vmem:[%s397 + $0x8] sm:$0xff] %v1949
        %1954 = vst [vmem:[%s397 + $0x10] sm:$0xff] %v1950
        %1955 = vst [vmem:[%s397 + $0x18] sm:$0xff] %v1951
        %s1956 = scalar_lea.vmem %s403, 32
        %v1957 = vld [vmem:[%s1956] sm:$0xff]
        %v1958 = vld [vmem:[%s1956 + $0x8] sm:$0xff]
        %v1959 = vld [vmem:[%s1956 + $0x10] sm:$0xff]
        %v1960 = vld [vmem:[%s1956 + $0x18] sm:$0xff]
        %v1961 = vld [vmem:[%s1] sm:$0xf]
        %v1962 = vld [vmem:[%s1 + $0x4] sm:$0xf]
        %v1963 = vld [vmem:[%s1 + $0x8] sm:$0xf]
        %v1964 = vld [vmem:[%s1 + $0xc] sm:$0xf]
        %v1965 = vld [vmem:[%s1 + $0x10] sm:$0xf]
        %v1966 = vld [vmem:[%s1 + $0x14] sm:$0xf]
        %v1967 = vld [vmem:[%s1 + $0x18] sm:$0xf]
        %v1968 = vld [vmem:[%s1 + $0x1c] sm:$0xf]
        %v1969 = vpack.c.bf16 %v1959, %v1957
        %v1970 = vpack.c.bf16 %v1960, %v1958
        %v1971 = vld [vmem:[%s2] sm:$0xff]
        %v1972 = vld [vmem:[%s2 + $0x8] sm:$0xff]
        %v1973 = vld [vmem:[%s2 + $0x10] sm:$0xff]
        %v1974 = vld [vmem:[%s2 + $0x18] sm:$0xff]
        %v1975 = vld [vmem:[%s2 + $0x20] sm:$0xff]
        %v1976 = vld [vmem:[%s2 + $0x28] sm:$0xff]
        %v1977 = vld [vmem:[%s2 + $0x30] sm:$0xff]
        %v1978 = vld [vmem:[%s2 + $0x38] sm:$0xff]
        %1980 = vset.pattern.permute.xlu0 0
        %1981 = vperm.xlu0 %1980, %v1971
        %v1982 = vpop.permute.xlu0 %1981
        %1985 = vset.pattern.permute.xlu0 0
        %1986 = vperm.xlu0 %1985, %v1972
        %v1987 = vpop.permute.xlu0 %1986
        %1990 = vset.pattern.permute.xlu0 0
        %1991 = vperm.xlu0 %1990, %v1973
        %v1992 = vpop.permute.xlu0 %1991
        %1995 = vset.pattern.permute.xlu0 0
        %1996 = vperm.xlu0 %1995, %v1974
        %v1997 = vpop.permute.xlu0 %1996
        %2000 = vset.pattern.permute.xlu0 0
        %2001 = vperm.xlu0 %2000, %v1975
        %v2002 = vpop.permute.xlu0 %2001
        %2005 = vset.pattern.permute.xlu0 0
        %2006 = vperm.xlu0 %2005, %v1976
        %v2007 = vpop.permute.xlu0 %2006
        %2010 = vset.pattern.permute.xlu0 0
        %2011 = vperm.xlu0 %2010, %v1977
        %v2012 = vpop.permute.xlu0 %2011
        %2015 = vset.pattern.permute.xlu0 0
        %2016 = vperm.xlu0 %2015, %v1978
        %v2017 = vpop.permute.xlu0 %2016
        %v2027 = vunpack.c.l.b16 %v1961
        %v2028 = vunpack.c.l.b16 %v1962
        %v2029 = vunpack.c.l.b16 %v1963
        %v2030 = vunpack.c.l.b16 %v1964
        %v2031 = vunpack.c.l.b16 %v1965
        %v2032 = vunpack.c.l.b16 %v1966
        %v2033 = vunpack.c.l.b16 %v1967
        %v2034 = vunpack.c.l.b16 %v1968
        %v2035 = vpack.c.b16 %v2028, %v2027
        %v2036 = vpack.c.b16 %v2030, %v2029
        %v2037 = vpack.c.b16 %v2032, %v2031
        %v2038 = vpack.c.b16 %v2034, %v2033
        %v2040 = vsel %vm489, %v2035, 0
        %v2043 = vsel %vm489, %v2036, 0
        %v2046 = vsel %vm489, %v2037, 0
        %v2049 = vsel %vm489, %v2038, 0
        %2051 = vmatprep.subr.bf16.mxu0 %v1970
        %2052 = vmatpush1.bf16.msra.mxu0 %v1969
        %2053 = vmatprep.subr.bf16.mxu0 0
        %2054 = vmatpush1.bf16.msra.mxu0 0
        %2055 = vmatprep.subr.bf16.mxu0 0
        %2056 = vmatpush1.bf16.msra.mxu0 0
        %2057 = vmatprep.subr.bf16.mxu0 0
        %2058 = vmatpush1.bf16.msra.mxu0 0
        %2059 = vmatprep.subr.bf16.mxu0 0
        %2060 = vmatpush1.bf16.msra.mxu0 0
        %2061 = vmatprep.subr.bf16.mxu0 0
        %2062 = vmatpush1.bf16.msra.mxu0 0
        %2063 = vmatprep.subr.bf16.mxu0 0
        %2064 = vmatpush1.bf16.msra.mxu0 0
        %2065 = vmatprep.subr.bf16.mxu0 0
        %2066 = vmatpush1.bf16.msra.mxu0 0
        %2067 = vmatprep.subr.bf16.mxu0 0
        %2068 = vmatpush1.bf16.msra.mxu0 0
        %2069 = vmatprep.subr.bf16.mxu0 0
        %2070 = vmatpush1.bf16.msra.mxu0 0
        %2071 = vmatprep.subr.bf16.mxu0 0
        %2072 = vmatpush1.bf16.msra.mxu0 0
        %2073 = vmatprep.subr.bf16.mxu0 0
        %2074 = vmatpush1.bf16.msra.mxu0 0
        %2075 = vmatprep.subr.bf16.mxu0 0
        %2076 = vmatpush1.bf16.msra.mxu0 0
        %2077 = vmatprep.subr.bf16.mxu0 0
        %2078 = vmatpush1.bf16.msra.mxu0 0
        %2079 = vmatprep.subr.bf16.mxu0 0
        %2080 = vmatpush1.bf16.msra.mxu0 0
        %2081 = vmatprep.subr.bf16.mxu0 0
        %2082 = vmatpush1.bf16.msra.mxu0 0
        %2083 = vmatprep.mubr.bf16.mxu0 0
        %2084 = vmatmul.mubr.bf16.gmra.mrb[0].mxu0 %v2040
        %v2085 = vpop.f32.mrb[0].mxu0
        %v2086 = vadd.f32 %v1982, %v2085
        %v2087 = vpop.f32.mrb[0].mxu0
        %v2088 = vadd.f32 %v1982, %v2087
        %v2089 = vpop.f32.mrb[0].mxu0
        %v2090 = vadd.f32 %v1987, %v2089
        %v2091 = vpop.f32.mrb[0].mxu0
        %v2092 = vadd.f32 %v1987, %v2091
        %2093 = vmatprep.mubr.bf16.mxu0 0
        %2094 = vmatmul.mubr.bf16.gmra.mrb[0].mxu0 %v2043
        %v2095 = vpop.f32.mrb[0].mxu0
        %v2096 = vadd.f32 %v1992, %v2095
        %v2097 = vpop.f32.mrb[0].mxu0
        %v2098 = vadd.f32 %v1992, %v2097
        %v2099 = vpop.f32.mrb[0].mxu0
        %v2100 = vadd.f32 %v1997, %v2099
        %v2101 = vpop.f32.mrb[0].mxu0
        %v2102 = vadd.f32 %v1997, %v2101
        %2103 = vmatprep.mubr.bf16.mxu0 0
        %2104 = vmatmul.mubr.bf16.gmra.mrb[0].mxu0 %v2046
        %v2105 = vpop.f32.mrb[0].mxu0
        %v2106 = vadd.f32 %v2002, %v2105
        %v2107 = vpop.f32.mrb[0].mxu0
        %v2108 = vadd.f32 %v2002, %v2107
        %v2109 = vpop.f32.mrb[0].mxu0
        %v2110 = vadd.f32 %v2007, %v2109
        %v2111 = vpop.f32.mrb[0].mxu0
        %v2112 = vadd.f32 %v2007, %v2111
        %2113 = vmatprep.mubr.bf16.mxu0 0
        %2114 = vmatmul.mubr.bf16.gmra.mrb[0].mxu0 %v2049
        %v2115 = vpop.f32.mrb[0].mxu0
        %v2116 = vadd.f32 %v2012, %v2115
        %v2117 = vpop.f32.mrb[0].mxu0
        %v2118 = vadd.f32 %v2012, %v2117
        %v2119 = vpop.f32.mrb[0].mxu0
        %v2120 = vadd.f32 %v2017, %v2119
        %v2121 = vpop.f32.mrb[0].mxu0
        %v2122 = vadd.f32 %v2017, %v2121
        %2123 = vdwg.mxu0
        %v2124 = vadd.f32 %v2086, 3.0
        %v2125 = vadd.f32 %v2088, 3.0
        %v2126 = vadd.f32 %v2090, 3.0
        %v2127 = vadd.f32 %v2092, 3.0
        %v2128 = vadd.f32 %v2096, 3.0
        %v2129 = vadd.f32 %v2098, 3.0
        %v2130 = vadd.f32 %v2100, 3.0
        %v2131 = vadd.f32 %v2102, 3.0
        %v2132 = vadd.f32 %v2106, 3.0
        %v2133 = vadd.f32 %v2108, 3.0
        %v2134 = vadd.f32 %v2110, 3.0
        %v2135 = vadd.f32 %v2112, 3.0
        %v2136 = vadd.f32 %v2116, 3.0
        %v2137 = vadd.f32 %v2118, 3.0
        %v2138 = vadd.f32 %v2120, 3.0
        %v2139 = vadd.f32 %v2122, 3.0
        %v2140 = vmax.f32 %v2124, 0.0
        %v2141 = vmax.f32 %v2125, 0.0
        %v2142 = vmax.f32 %v2126, 0.0
        %v2143 = vmax.f32 %v2127, 0.0
        %v2144 = vmax.f32 %v2128, 0.0
        %v2145 = vmax.f32 %v2129, 0.0
        %v2146 = vmax.f32 %v2130, 0.0
        %v2147 = vmax.f32 %v2131, 0.0
        %v2148 = vmax.f32 %v2132, 0.0
        %v2149 = vmax.f32 %v2133, 0.0
        %v2150 = vmax.f32 %v2134, 0.0
        %v2151 = vmax.f32 %v2135, 0.0
        %v2152 = vmax.f32 %v2136, 0.0
        %v2153 = vmax.f32 %v2137, 0.0
        %v2154 = vmax.f32 %v2138, 0.0
        %v2155 = vmax.f32 %v2139, 0.0
        %v2156 = vmin.f32 %v2140, 6.0
        %v2157 = vmin.f32 %v2141, 6.0
        %v2158 = vmin.f32 %v2142, 6.0
        %v2159 = vmin.f32 %v2143, 6.0
        %v2160 = vmin.f32 %v2144, 6.0
        %v2161 = vmin.f32 %v2145, 6.0
        %v2162 = vmin.f32 %v2146, 6.0
        %v2163 = vmin.f32 %v2147, 6.0
        %v2164 = vmin.f32 %v2148, 6.0
        %v2165 = vmin.f32 %v2149, 6.0
        %v2166 = vmin.f32 %v2150, 6.0
        %v2167 = vmin.f32 %v2151, 6.0
        %v2168 = vmin.f32 %v2152, 6.0
        %v2169 = vmin.f32 %v2153, 6.0
        %v2170 = vmin.f32 %v2154, 6.0
        %v2171 = vmin.f32 %v2155, 6.0
        %v2172 = vmul.f32 %v2086, %v2156
        %v2173 = vmul.f32 %v2088, %v2157
        %v2174 = vmul.f32 %v2090, %v2158
        %v2175 = vmul.f32 %v2092, %v2159
        %v2176 = vmul.f32 %v2096, %v2160
        %v2177 = vmul.f32 %v2098, %v2161
        %v2178 = vmul.f32 %v2100, %v2162
        %v2179 = vmul.f32 %v2102, %v2163
        %v2180 = vmul.f32 %v2106, %v2164
        %v2181 = vmul.f32 %v2108, %v2165
        %v2182 = vmul.f32 %v2110, %v2166
        %v2183 = vmul.f32 %v2112, %v2167
        %v2184 = vmul.f32 %v2116, %v2168
        %v2185 = vmul.f32 %v2118, %v2169
        %v2186 = vmul.f32 %v2120, %v2170
        %v2187 = vmul.f32 %v2122, %v2171
        %v2188 = vmul.f32 %v2172, 0.16666667
        %v2189 = vmul.f32 %v2173, 0.16666667
        %v2190 = vmul.f32 %v2174, 0.16666667
        %v2191 = vmul.f32 %v2175, 0.16666667
        %v2192 = vmul.f32 %v2176, 0.16666667
        %v2193 = vmul.f32 %v2177, 0.16666667
        %v2194 = vmul.f32 %v2178, 0.16666667
        %v2195 = vmul.f32 %v2179, 0.16666667
        %v2196 = vmul.f32 %v2180, 0.16666667
        %v2197 = vmul.f32 %v2181, 0.16666667
        %v2198 = vmul.f32 %v2182, 0.16666667
        %v2199 = vmul.f32 %v2183, 0.16666667
        %v2200 = vmul.f32 %v2184, 0.16666667
        %v2201 = vmul.f32 %v2185, 0.16666667
        %v2202 = vmul.f32 %v2186, 0.16666667
        %v2203 = vmul.f32 %v2187, 0.16666667
        %2204 = vrot.lane.b32.xlu0 %v2188, 17
        %v2205 = vpop.permute.xlu0 %2204
        %2206 = vrot.lane.b32.xlu0 %v2190, 17
        %v2207 = vpop.permute.xlu0 %2206
        %2208 = vrot.lane.b32.xlu0 %v2192, 17
        %v2209 = vpop.permute.xlu0 %2208
        %2210 = vrot.lane.b32.xlu0 %v2194, 17
        %v2211 = vpop.permute.xlu0 %2210
        %2212 = vrot.lane.b32.xlu0 %v2196, 17
        %v2213 = vpop.permute.xlu0 %2212
        %2214 = vrot.lane.b32.xlu0 %v2198, 17
        %v2215 = vpop.permute.xlu0 %2214
        %2216 = vrot.lane.b32.xlu0 %v2200, 17
        %v2217 = vpop.permute.xlu0 %2216
        %2218 = vrot.lane.b32.xlu0 %v2202, 17
        %v2219 = vpop.permute.xlu0 %2218
        %2220 = vrot.lane.b32.xlu0 %v2189, 17
        %v2221 = vpop.permute.xlu0 %2220
        %2222 = vrot.lane.b32.xlu0 %v2191, 17
        %v2223 = vpop.permute.xlu0 %2222
        %2224 = vrot.lane.b32.xlu0 %v2193, 17
        %v2225 = vpop.permute.xlu0 %2224
        %2226 = vrot.lane.b32.xlu0 %v2195, 17
        %v2227 = vpop.permute.xlu0 %2226
        %2228 = vrot.lane.b32.xlu0 %v2197, 17
        %v2229 = vpop.permute.xlu0 %2228
        %2230 = vrot.lane.b32.xlu0 %v2199, 17
        %v2231 = vpop.permute.xlu0 %2230
        %2232 = vrot.lane.b32.xlu0 %v2201, 17
        %v2233 = vpop.permute.xlu0 %2232
        %2234 = vrot.lane.b32.xlu0 %v2203, 17
        %v2235 = vpop.permute.xlu0 %2234
        %v2236 = vsel %vm689, %v2205, %v2221
        %v2237 = vsel %vm689, %v2207, %v2223
        %v2238 = vsel %vm689, %v2209, %v2225
        %v2239 = vsel %vm689, %v2211, %v2227
        %v2240 = vsel %vm689, %v2213, %v2229
        %v2241 = vsel %vm689, %v2215, %v2231
        %v2242 = vsel %vm689, %v2217, %v2233
        %v2243 = vsel %vm689, %v2219, %v2235
        %v2244 = vsel %vm689, %v2221, %v2205
        %v2245 = vsel %vm689, %v2223, %v2207
        %v2246 = vsel %vm689, %v2225, %v2209
        %v2247 = vsel %vm689, %v2227, %v2211
        %v2248 = vsel %vm689, %v2229, %v2213
        %v2249 = vsel %vm689, %v2231, %v2215
        %v2250 = vsel %vm689, %v2233, %v2217
        %v2251 = vsel %vm689, %v2235, %v2219
        %v2252 = vld [vmem:[#allocation2] sm:$0xff]
        %v2253 = vld [vmem:[#allocation2 + $0x8] sm:$0xff]
        %v2254 = vld [vmem:[#allocation2 + $0x10] sm:$0xff]
        %v2255 = vld [vmem:[#allocation2 + $0x18] sm:$0xff]
        %v2256 = vld [vmem:[#allocation2 + $0x20] sm:$0xff]
        %v2257 = vld [vmem:[#allocation2 + $0x28] sm:$0xff]
        %v2258 = vld [vmem:[#allocation2 + $0x30] sm:$0xff]
        %v2259 = vld [vmem:[#allocation2 + $0x38] sm:$0xff]
        %v2260 = vld [vmem:[#allocation2 + $0x40] sm:$0xff]
        %v2261 = vld [vmem:[#allocation2 + $0x48] sm:$0xff]
        %v2262 = vld [vmem:[#allocation2 + $0x50] sm:$0xff]
        %v2263 = vld [vmem:[#allocation2 + $0x58] sm:$0xff]
        %v2264 = vld [vmem:[#allocation2 + $0x60] sm:$0xff]
        %v2265 = vld [vmem:[#allocation2 + $0x68] sm:$0xff]
        %v2266 = vld [vmem:[#allocation2 + $0x70] sm:$0xff]
        %v2267 = vld [vmem:[#allocation2 + $0x78] sm:$0xff]
        %v2268 = vmul.f32 %v2244, %v2252
        %v2269 = vmul.f32 %v2236, %v2253
        %v2270 = vmul.f32 %v2245, %v2254
        %v2271 = vmul.f32 %v2237, %v2255
        %v2272 = vmul.f32 %v2246, %v2256
        %v2273 = vmul.f32 %v2238, %v2257
        %v2274 = vmul.f32 %v2247, %v2258
        %v2275 = vmul.f32 %v2239, %v2259
        %v2276 = vmul.f32 %v2248, %v2260
        %v2277 = vmul.f32 %v2240, %v2261
        %v2278 = vmul.f32 %v2249, %v2262
        %v2279 = vmul.f32 %v2241, %v2263
        %v2280 = vmul.f32 %v2250, %v2264
        %v2281 = vmul.f32 %v2242, %v2265
        %v2282 = vmul.f32 %v2251, %v2266
        %v2283 = vmul.f32 %v2243, %v2267
        %v2284 = vadd.f32 %v2268, 0.0
        %v2285 = vadd.f32 %v2269, 0.0
        %v2286 = vadd.f32 %v2270, 0.0
        %v2287 = vadd.f32 %v2271, 0.0
        %v2288 = vadd.f32 %v2272, 0.0
        %v2289 = vadd.f32 %v2273, 0.0
        %v2290 = vadd.f32 %v2274, 0.0
        %v2291 = vadd.f32 %v2275, 0.0
        %v2292 = vadd.f32 %v2276, 0.0
        %v2293 = vadd.f32 %v2277, 0.0
        %v2294 = vadd.f32 %v2278, 0.0
        %v2295 = vadd.f32 %v2279, 0.0
        %v2296 = vadd.f32 %v2280, 0.0
        %v2297 = vadd.f32 %v2281, 0.0
        %v2298 = vadd.f32 %v2282, 0.0
        %v2299 = vadd.f32 %v2283, 0.0
        %2300 = vrot.lane.b32.xlu0 %v2188, 16
        %v2301 = vpop.permute.xlu0 %2300
        %2302 = vrot.lane.b32.xlu0 %v2190, 16
        %v2303 = vpop.permute.xlu0 %2302
        %2304 = vrot.lane.b32.xlu0 %v2192, 16
        %v2305 = vpop.permute.xlu0 %2304
        %2306 = vrot.lane.b32.xlu0 %v2194, 16
        %v2307 = vpop.permute.xlu0 %2306
        %2308 = vrot.lane.b32.xlu0 %v2196, 16
        %v2309 = vpop.permute.xlu0 %2308
        %2310 = vrot.lane.b32.xlu0 %v2198, 16
        %v2311 = vpop.permute.xlu0 %2310
        %2312 = vrot.lane.b32.xlu0 %v2200, 16
        %v2313 = vpop.permute.xlu0 %2312
        %2314 = vrot.lane.b32.xlu0 %v2202, 16
        %v2315 = vpop.permute.xlu0 %2314
        %2316 = vrot.lane.b32.xlu0 %v2189, 16
        %v2317 = vpop.permute.xlu0 %2316
        %2318 = vrot.lane.b32.xlu0 %v2191, 16
        %v2319 = vpop.permute.xlu0 %2318
        %2320 = vrot.lane.b32.xlu0 %v2193, 16
        %v2321 = vpop.permute.xlu0 %2320
        %2322 = vrot.lane.b32.xlu0 %v2195, 16
        %v2323 = vpop.permute.xlu0 %2322
        %2324 = vrot.lane.b32.xlu0 %v2197, 16
        %v2325 = vpop.permute.xlu0 %2324
        %2326 = vrot.lane.b32.xlu0 %v2199, 16
        %v2327 = vpop.permute.xlu0 %2326
        %2328 = vrot.lane.b32.xlu0 %v2201, 16
        %v2329 = vpop.permute.xlu0 %2328
        %2330 = vrot.lane.b32.xlu0 %v2203, 16
        %v2331 = vpop.permute.xlu0 %2330
        %v2332 = vsel %vm786, %v2301, %v2317
        %v2333 = vsel %vm786, %v2303, %v2319
        %v2334 = vsel %vm786, %v2305, %v2321
        %v2335 = vsel %vm786, %v2307, %v2323
        %v2336 = vsel %vm786, %v2309, %v2325
        %v2337 = vsel %vm786, %v2311, %v2327
        %v2338 = vsel %vm786, %v2313, %v2329
        %v2339 = vsel %vm786, %v2315, %v2331
        %v2340 = vsel %vm786, %v2317, %v2301
        %v2341 = vsel %vm786, %v2319, %v2303
        %v2342 = vsel %vm786, %v2321, %v2305
        %v2343 = vsel %vm786, %v2323, %v2307
        %v2344 = vsel %vm786, %v2325, %v2309
        %v2345 = vsel %vm786, %v2327, %v2311
        %v2346 = vsel %vm786, %v2329, %v2313
        %v2347 = vsel %vm786, %v2331, %v2315
        %v2348 = vld [vmem:[%s803] sm:$0xff]
        %v2349 = vld [vmem:[%s803 + $0x8] sm:$0xff]
        %v2350 = vld [vmem:[%s803 + $0x10] sm:$0xff]
        %v2351 = vld [vmem:[%s803 + $0x18] sm:$0xff]
        %v2352 = vld [vmem:[%s803 + $0x20] sm:$0xff]
        %v2353 = vld [vmem:[%s803 + $0x28] sm:$0xff]
        %v2354 = vld [vmem:[%s803 + $0x30] sm:$0xff]
        %v2355 = vld [vmem:[%s803 + $0x38] sm:$0xff]
        %v2356 = vld [vmem:[%s803 + $0x40] sm:$0xff]
        %v2357 = vld [vmem:[%s803 + $0x48] sm:$0xff]
        %v2358 = vld [vmem:[%s803 + $0x50] sm:$0xff]
        %v2359 = vld [vmem:[%s803 + $0x58] sm:$0xff]
        %v2360 = vld [vmem:[%s803 + $0x60] sm:$0xff]
        %v2361 = vld [vmem:[%s803 + $0x68] sm:$0xff]
        %v2362 = vld [vmem:[%s803 + $0x70] sm:$0xff]
        %v2363 = vld [vmem:[%s803 + $0x78] sm:$0xff]
        %v2364 = vmul.f32 %v2340, %v2348
        %v2365 = vmul.f32 %v2332, %v2349
        %v2366 = vmul.f32 %v2341, %v2350
        %v2367 = vmul.f32 %v2333, %v2351
        %v2368 = vmul.f32 %v2342, %v2352
        %v2369 = vmul.f32 %v2334, %v2353
        %v2370 = vmul.f32 %v2343, %v2354
        %v2371 = vmul.f32 %v2335, %v2355
        %v2372 = vmul.f32 %v2344, %v2356
        %v2373 = vmul.f32 %v2336, %v2357
        %v2374 = vmul.f32 %v2345, %v2358
        %v2375 = vmul.f32 %v2337, %v2359
        %v2376 = vmul.f32 %v2346, %v2360
        %v2377 = vmul.f32 %v2338, %v2361
        %v2378 = vmul.f32 %v2347, %v2362
        %v2379 = vmul.f32 %v2339, %v2363
        %v2380 = vadd.f32 %v2284, %v2364
        %v2381 = vadd.f32 %v2285, %v2365
        %v2382 = vadd.f32 %v2286, %v2366
        %v2383 = vadd.f32 %v2287, %v2367
        %v2384 = vadd.f32 %v2288, %v2368
        %v2385 = vadd.f32 %v2289, %v2369
        %v2386 = vadd.f32 %v2290, %v2370
        %v2387 = vadd.f32 %v2291, %v2371
        %v2388 = vadd.f32 %v2292, %v2372
        %v2389 = vadd.f32 %v2293, %v2373
        %v2390 = vadd.f32 %v2294, %v2374
        %v2391 = vadd.f32 %v2295, %v2375
        %v2392 = vadd.f32 %v2296, %v2376
        %v2393 = vadd.f32 %v2297, %v2377
        %v2394 = vadd.f32 %v2298, %v2378
        %v2395 = vadd.f32 %v2299, %v2379
        %2396 = vrot.lane.b32.xlu0 %v2188, 15
        %v2397 = vpop.permute.xlu0 %2396
        %2398 = vrot.lane.b32.xlu0 %v2190, 15
        %v2399 = vpop.permute.xlu0 %2398
        %2400 = vrot.lane.b32.xlu0 %v2192, 15
        %v2401 = vpop.permute.xlu0 %2400
        %2402 = vrot.lane.b32.xlu0 %v2194, 15
        %v2403 = vpop.permute.xlu0 %2402
        %2404 = vrot.lane.b32.xlu0 %v2196, 15
        %v2405 = vpop.permute.xlu0 %2404
        %2406 = vrot.lane.b32.xlu0 %v2198, 15
        %v2407 = vpop.permute.xlu0 %2406
        %2408 = vrot.lane.b32.xlu0 %v2200, 15
        %v2409 = vpop.permute.xlu0 %2408
        %2410 = vrot.lane.b32.xlu0 %v2202, 15
        %v2411 = vpop.permute.xlu0 %2410
        %2412 = vrot.lane.b32.xlu0 %v2189, 15
        %v2413 = vpop.permute.xlu0 %2412
        %2414 = vrot.lane.b32.xlu0 %v2191, 15
        %v2415 = vpop.permute.xlu0 %2414
        %2416 = vrot.lane.b32.xlu0 %v2193, 15
        %v2417 = vpop.permute.xlu0 %2416
        %2418 = vrot.lane.b32.xlu0 %v2195, 15
        %v2419 = vpop.permute.xlu0 %2418
        %2420 = vrot.lane.b32.xlu0 %v2197, 15
        %v2421 = vpop.permute.xlu0 %2420
        %2422 = vrot.lane.b32.xlu0 %v2199, 15
        %v2423 = vpop.permute.xlu0 %2422
        %2424 = vrot.lane.b32.xlu0 %v2201, 15
        %v2425 = vpop.permute.xlu0 %2424
        %2426 = vrot.lane.b32.xlu0 %v2203, 15
        %v2427 = vpop.permute.xlu0 %2426
        %v2428 = vsel %vm884, %v2397, %v2413
        %v2429 = vsel %vm884, %v2399, %v2415
        %v2430 = vsel %vm884, %v2401, %v2417
        %v2431 = vsel %vm884, %v2403, %v2419
        %v2432 = vsel %vm884, %v2405, %v2421
        %v2433 = vsel %vm884, %v2407, %v2423
        %v2434 = vsel %vm884, %v2409, %v2425
        %v2435 = vsel %vm884, %v2411, %v2427
        %v2436 = vsel %vm884, %v2413, %v2397
        %v2437 = vsel %vm884, %v2415, %v2399
        %v2438 = vsel %vm884, %v2417, %v2401
        %v2439 = vsel %vm884, %v2419, %v2403
        %v2440 = vsel %vm884, %v2421, %v2405
        %v2441 = vsel %vm884, %v2423, %v2407
        %v2442 = vsel %vm884, %v2425, %v2409
        %v2443 = vsel %vm884, %v2427, %v2411
        %v2444 = vld [vmem:[%s901] sm:$0xff]
        %v2445 = vld [vmem:[%s901 + $0x8] sm:$0xff]
        %v2446 = vld [vmem:[%s901 + $0x10] sm:$0xff]
        %v2447 = vld [vmem:[%s901 + $0x18] sm:$0xff]
        %v2448 = vld [vmem:[%s901 + $0x20] sm:$0xff]
        %v2449 = vld [vmem:[%s901 + $0x28] sm:$0xff]
        %v2450 = vld [vmem:[%s901 + $0x30] sm:$0xff]
        %v2451 = vld [vmem:[%s901 + $0x38] sm:$0xff]
        %v2452 = vld [vmem:[%s901 + $0x40] sm:$0xff]
        %v2453 = vld [vmem:[%s901 + $0x48] sm:$0xff]
        %v2454 = vld [vmem:[%s901 + $0x50] sm:$0xff]
        %v2455 = vld [vmem:[%s901 + $0x58] sm:$0xff]
        %v2456 = vld [vmem:[%s901 + $0x60] sm:$0xff]
        %v2457 = vld [vmem:[%s901 + $0x68] sm:$0xff]
        %v2458 = vld [vmem:[%s901 + $0x70] sm:$0xff]
        %v2459 = vld [vmem:[%s901 + $0x78] sm:$0xff]
        %v2460 = vmul.f32 %v2436, %v2444
        %v2461 = vmul.f32 %v2428, %v2445
        %v2462 = vmul.f32 %v2437, %v2446
        %v2463 = vmul.f32 %v2429, %v2447
        %v2464 = vmul.f32 %v2438, %v2448
        %v2465 = vmul.f32 %v2430, %v2449
        %v2466 = vmul.f32 %v2439, %v2450
        %v2467 = vmul.f32 %v2431, %v2451
        %v2468 = vmul.f32 %v2440, %v2452
        %v2469 = vmul.f32 %v2432, %v2453
        %v2470 = vmul.f32 %v2441, %v2454
        %v2471 = vmul.f32 %v2433, %v2455
        %v2472 = vmul.f32 %v2442, %v2456
        %v2473 = vmul.f32 %v2434, %v2457
        %v2474 = vmul.f32 %v2443, %v2458
        %v2475 = vmul.f32 %v2435, %v2459
        %v2476 = vadd.f32 %v2380, %v2460
        %v2477 = vadd.f32 %v2381, %v2461
        %v2478 = vadd.f32 %v2382, %v2462
        %v2479 = vadd.f32 %v2383, %v2463
        %v2480 = vadd.f32 %v2384, %v2464
        %v2481 = vadd.f32 %v2385, %v2465
        %v2482 = vadd.f32 %v2386, %v2466
        %v2483 = vadd.f32 %v2387, %v2467
        %v2484 = vadd.f32 %v2388, %v2468
        %v2485 = vadd.f32 %v2389, %v2469
        %v2486 = vadd.f32 %v2390, %v2470
        %v2487 = vadd.f32 %v2391, %v2471
        %v2488 = vadd.f32 %v2392, %v2472
        %v2489 = vadd.f32 %v2393, %v2473
        %v2490 = vadd.f32 %v2394, %v2474
        %v2491 = vadd.f32 %v2395, %v2475
        %2492 = vrot.lane.b32.xlu0 %v2188, 1
        %v2493 = vpop.permute.xlu0 %2492
        %2494 = vrot.lane.b32.xlu0 %v2190, 1
        %v2495 = vpop.permute.xlu0 %2494
        %2496 = vrot.lane.b32.xlu0 %v2192, 1
        %v2497 = vpop.permute.xlu0 %2496
        %2498 = vrot.lane.b32.xlu0 %v2194, 1
        %v2499 = vpop.permute.xlu0 %2498
        %2500 = vrot.lane.b32.xlu0 %v2196, 1
        %v2501 = vpop.permute.xlu0 %2500
        %2502 = vrot.lane.b32.xlu0 %v2198, 1
        %v2503 = vpop.permute.xlu0 %2502
        %2504 = vrot.lane.b32.xlu0 %v2200, 1
        %v2505 = vpop.permute.xlu0 %2504
        %2506 = vrot.lane.b32.xlu0 %v2202, 1
        %v2507 = vpop.permute.xlu0 %2506
        %2508 = vrot.lane.b32.xlu0 %v2189, 1
        %v2509 = vpop.permute.xlu0 %2508
        %2510 = vrot.lane.b32.xlu0 %v2191, 1
        %v2511 = vpop.permute.xlu0 %2510
        %2512 = vrot.lane.b32.xlu0 %v2193, 1
        %v2513 = vpop.permute.xlu0 %2512
        %2514 = vrot.lane.b32.xlu0 %v2195, 1
        %v2515 = vpop.permute.xlu0 %2514
        %2516 = vrot.lane.b32.xlu0 %v2197, 1
        %v2517 = vpop.permute.xlu0 %2516
        %2518 = vrot.lane.b32.xlu0 %v2199, 1
        %v2519 = vpop.permute.xlu0 %2518
        %2520 = vrot.lane.b32.xlu0 %v2201, 1
        %v2521 = vpop.permute.xlu0 %2520
        %2522 = vrot.lane.b32.xlu0 %v2203, 1
        %v2523 = vpop.permute.xlu0 %2522
        %v2524 = vsel %vm982, %v2493, %v2509
        %v2525 = vsel %vm982, %v2495, %v2511
        %v2526 = vsel %vm982, %v2497, %v2513
        %v2527 = vsel %vm982, %v2499, %v2515
        %v2528 = vsel %vm982, %v2501, %v2517
        %v2529 = vsel %vm982, %v2503, %v2519
        %v2530 = vsel %vm982, %v2505, %v2521
        %v2531 = vsel %vm982, %v2507, %v2523
        %v2532 = vsel %vm982, %v2509, %v2493
        %v2533 = vsel %vm982, %v2511, %v2495
        %v2534 = vsel %vm982, %v2513, %v2497
        %v2535 = vsel %vm982, %v2515, %v2499
        %v2536 = vsel %vm982, %v2517, %v2501
        %v2537 = vsel %vm982, %v2519, %v2503
        %v2538 = vsel %vm982, %v2521, %v2505
        %v2539 = vsel %vm982, %v2523, %v2507
        %v2540 = vld [vmem:[%s999] sm:$0xff]
        %v2541 = vld [vmem:[%s999 + $0x8] sm:$0xff]
        %v2542 = vld [vmem:[%s999 + $0x10] sm:$0xff]
        %v2543 = vld [vmem:[%s999 + $0x18] sm:$0xff]
        %v2544 = vld [vmem:[%s999 + $0x20] sm:$0xff]
        %v2545 = vld [vmem:[%s999 + $0x28] sm:$0xff]
        %v2546 = vld [vmem:[%s999 + $0x30] sm:$0xff]
        %v2547 = vld [vmem:[%s999 + $0x38] sm:$0xff]
        %v2548 = vld [vmem:[%s999 + $0x40] sm:$0xff]
        %v2549 = vld [vmem:[%s999 + $0x48] sm:$0xff]
        %v2550 = vld [vmem:[%s999 + $0x50] sm:$0xff]
        %v2551 = vld [vmem:[%s999 + $0x58] sm:$0xff]
        %v2552 = vld [vmem:[%s999 + $0x60] sm:$0xff]
        %v2553 = vld [vmem:[%s999 + $0x68] sm:$0xff]
        %v2554 = vld [vmem:[%s999 + $0x70] sm:$0xff]
        %v2555 = vld [vmem:[%s999 + $0x78] sm:$0xff]
        %v2556 = vmul.f32 %v2532, %v2540
        %v2557 = vmul.f32 %v2524, %v2541
        %v2558 = vmul.f32 %v2533, %v2542
        %v2559 = vmul.f32 %v2525, %v2543
        %v2560 = vmul.f32 %v2534, %v2544
        %v2561 = vmul.f32 %v2526, %v2545
        %v2562 = vmul.f32 %v2535, %v2546
        %v2563 = vmul.f32 %v2527, %v2547
        %v2564 = vmul.f32 %v2536, %v2548
        %v2565 = vmul.f32 %v2528, %v2549
        %v2566 = vmul.f32 %v2537, %v2550
        %v2567 = vmul.f32 %v2529, %v2551
        %v2568 = vmul.f32 %v2538, %v2552
        %v2569 = vmul.f32 %v2530, %v2553
        %v2570 = vmul.f32 %v2539, %v2554
        %v2571 = vmul.f32 %v2531, %v2555
        %v2572 = vadd.f32 %v2476, %v2556
        %v2573 = vadd.f32 %v2477, %v2557
        %v2574 = vadd.f32 %v2478, %v2558
        %v2575 = vadd.f32 %v2479, %v2559
        %v2576 = vadd.f32 %v2480, %v2560
        %v2577 = vadd.f32 %v2481, %v2561
        %v2578 = vadd.f32 %v2482, %v2562
        %v2579 = vadd.f32 %v2483, %v2563
        %v2580 = vadd.f32 %v2484, %v2564
        %v2581 = vadd.f32 %v2485, %v2565
        %v2582 = vadd.f32 %v2486, %v2566
        %v2583 = vadd.f32 %v2487, %v2567
        %v2584 = vadd.f32 %v2488, %v2568
        %v2585 = vadd.f32 %v2489, %v2569
        %v2586 = vadd.f32 %v2490, %v2570
        %v2587 = vadd.f32 %v2491, %v2571
        %v2588 = vld [vmem:[%s1048] sm:$0xff]
        %v2589 = vld [vmem:[%s1048 + $0x8] sm:$0xff]
        %v2590 = vld [vmem:[%s1048 + $0x10] sm:$0xff]
        %v2591 = vld [vmem:[%s1048 + $0x18] sm:$0xff]
        %v2592 = vld [vmem:[%s1048 + $0x20] sm:$0xff]
        %v2593 = vld [vmem:[%s1048 + $0x28] sm:$0xff]
        %v2594 = vld [vmem:[%s1048 + $0x30] sm:$0xff]
        %v2595 = vld [vmem:[%s1048 + $0x38] sm:$0xff]
        %v2596 = vld [vmem:[%s1048 + $0x40] sm:$0xff]
        %v2597 = vld [vmem:[%s1048 + $0x48] sm:$0xff]
        %v2598 = vld [vmem:[%s1048 + $0x50] sm:$0xff]
        %v2599 = vld [vmem:[%s1048 + $0x58] sm:$0xff]
        %v2600 = vld [vmem:[%s1048 + $0x60] sm:$0xff]
        %v2601 = vld [vmem:[%s1048 + $0x68] sm:$0xff]
        %v2602 = vld [vmem:[%s1048 + $0x70] sm:$0xff]
        %v2603 = vld [vmem:[%s1048 + $0x78] sm:$0xff]
        %v2604 = vmul.f32 %v2188, %v2588
        %v2605 = vmul.f32 %v2189, %v2589
        %v2606 = vmul.f32 %v2190, %v2590
        %v2607 = vmul.f32 %v2191, %v2591
        %v2608 = vmul.f32 %v2192, %v2592
        %v2609 = vmul.f32 %v2193, %v2593
        %v2610 = vmul.f32 %v2194, %v2594
        %v2611 = vmul.f32 %v2195, %v2595
        %v2612 = vmul.f32 %v2196, %v2596
        %v2613 = vmul.f32 %v2197, %v2597
        %v2614 = vmul.f32 %v2198, %v2598
        %v2615 = vmul.f32 %v2199, %v2599
        %v2616 = vmul.f32 %v2200, %v2600
        %v2617 = vmul.f32 %v2201, %v2601
        %v2618 = vmul.f32 %v2202, %v2602
        %v2619 = vmul.f32 %v2203, %v2603
        %v2620 = vadd.f32 %v2572, %v2604
        %v2621 = vadd.f32 %v2573, %v2605
        %v2622 = vadd.f32 %v2574, %v2606
        %v2623 = vadd.f32 %v2575, %v2607
        %v2624 = vadd.f32 %v2576, %v2608
        %v2625 = vadd.f32 %v2577, %v2609
        %v2626 = vadd.f32 %v2578, %v2610
        %v2627 = vadd.f32 %v2579, %v2611
        %v2628 = vadd.f32 %v2580, %v2612
        %v2629 = vadd.f32 %v2581, %v2613
        %v2630 = vadd.f32 %v2582, %v2614
        %v2631 = vadd.f32 %v2583, %v2615
        %v2632 = vadd.f32 %v2584, %v2616
        %v2633 = vadd.f32 %v2585, %v2617
        %v2634 = vadd.f32 %v2586, %v2618
        %v2635 = vadd.f32 %v2587, %v2619
        %2636 = vrot.lane.b32.xlu0 %v2188, 127
        %v2637 = vpop.permute.xlu0 %2636
        %2638 = vrot.lane.b32.xlu0 %v2190, 127
        %v2639 = vpop.permute.xlu0 %2638
        %2640 = vrot.lane.b32.xlu0 %v2192, 127
        %v2641 = vpop.permute.xlu0 %2640
        %2642 = vrot.lane.b32.xlu0 %v2194, 127
        %v2643 = vpop.permute.xlu0 %2642
        %2644 = vrot.lane.b32.xlu0 %v2196, 127
        %v2645 = vpop.permute.xlu0 %2644
        %2646 = vrot.lane.b32.xlu0 %v2198, 127
        %v2647 = vpop.permute.xlu0 %2646
        %2648 = vrot.lane.b32.xlu0 %v2200, 127
        %v2649 = vpop.permute.xlu0 %2648
        %2650 = vrot.lane.b32.xlu0 %v2202, 127
        %v2651 = vpop.permute.xlu0 %2650
        %2652 = vrot.lane.b32.xlu0 %v2189, 127
        %v2653 = vpop.permute.xlu0 %2652
        %2654 = vrot.lane.b32.xlu0 %v2191, 127
        %v2655 = vpop.permute.xlu0 %2654
        %2656 = vrot.lane.b32.xlu0 %v2193, 127
        %v2657 = vpop.permute.xlu0 %2656
        %2658 = vrot.lane.b32.xlu0 %v2195, 127
        %v2659 = vpop.permute.xlu0 %2658
        %2660 = vrot.lane.b32.xlu0 %v2197, 127
        %v2661 = vpop.permute.xlu0 %2660
        %2662 = vrot.lane.b32.xlu0 %v2199, 127
        %v2663 = vpop.permute.xlu0 %2662
        %2664 = vrot.lane.b32.xlu0 %v2201, 127
        %v2665 = vpop.permute.xlu0 %2664
        %2666 = vrot.lane.b32.xlu0 %v2203, 127
        %v2667 = vpop.permute.xlu0 %2666
        %v2668 = vsel %vm1129, %v2637, %v2653
        %v2669 = vsel %vm1129, %v2639, %v2655
        %v2670 = vsel %vm1129, %v2641, %v2657
        %v2671 = vsel %vm1129, %v2643, %v2659
        %v2672 = vsel %vm1129, %v2645, %v2661
        %v2673 = vsel %vm1129, %v2647, %v2663
        %v2674 = vsel %vm1129, %v2649, %v2665
        %v2675 = vsel %vm1129, %v2651, %v2667
        %v2676 = vsel %vm1129, %v2653, %v2637
        %v2677 = vsel %vm1129, %v2655, %v2639
        %v2678 = vsel %vm1129, %v2657, %v2641
        %v2679 = vsel %vm1129, %v2659, %v2643
        %v2680 = vsel %vm1129, %v2661, %v2645
        %v2681 = vsel %vm1129, %v2663, %v2647
        %v2682 = vsel %vm1129, %v2665, %v2649
        %v2683 = vsel %vm1129, %v2667, %v2651
        %v2684 = vld [vmem:[%s1146] sm:$0xff]
        %v2685 = vld [vmem:[%s1146 + $0x8] sm:$0xff]
        %v2686 = vld [vmem:[%s1146 + $0x10] sm:$0xff]
        %v2687 = vld [vmem:[%s1146 + $0x18] sm:$0xff]
        %v2688 = vld [vmem:[%s1146 + $0x20] sm:$0xff]
        %v2689 = vld [vmem:[%s1146 + $0x28] sm:$0xff]
        %v2690 = vld [vmem:[%s1146 + $0x30] sm:$0xff]
        %v2691 = vld [vmem:[%s1146 + $0x38] sm:$0xff]
        %v2692 = vld [vmem:[%s1146 + $0x40] sm:$0xff]
        %v2693 = vld [vmem:[%s1146 + $0x48] sm:$0xff]
        %v2694 = vld [vmem:[%s1146 + $0x50] sm:$0xff]
        %v2695 = vld [vmem:[%s1146 + $0x58] sm:$0xff]
        %v2696 = vld [vmem:[%s1146 + $0x60] sm:$0xff]
        %v2697 = vld [vmem:[%s1146 + $0x68] sm:$0xff]
        %v2698 = vld [vmem:[%s1146 + $0x70] sm:$0xff]
        %v2699 = vld [vmem:[%s1146 + $0x78] sm:$0xff]
        %v2700 = vmul.f32 %v2668, %v2684
        %v2701 = vmul.f32 %v2676, %v2685
        %v2702 = vmul.f32 %v2669, %v2686
        %v2703 = vmul.f32 %v2677, %v2687
        %v2704 = vmul.f32 %v2670, %v2688
        %v2705 = vmul.f32 %v2678, %v2689
        %v2706 = vmul.f32 %v2671, %v2690
        %v2707 = vmul.f32 %v2679, %v2691
        %v2708 = vmul.f32 %v2672, %v2692
        %v2709 = vmul.f32 %v2680, %v2693
        %v2710 = vmul.f32 %v2673, %v2694
        %v2711 = vmul.f32 %v2681, %v2695
        %v2712 = vmul.f32 %v2674, %v2696
        %v2713 = vmul.f32 %v2682, %v2697
        %v2714 = vmul.f32 %v2675, %v2698
        %v2715 = vmul.f32 %v2683, %v2699
        %v2716 = vadd.f32 %v2620, %v2700
        %v2717 = vadd.f32 %v2621, %v2701
        %v2718 = vadd.f32 %v2622, %v2702
        %v2719 = vadd.f32 %v2623, %v2703
        %v2720 = vadd.f32 %v2624, %v2704
        %v2721 = vadd.f32 %v2625, %v2705
        %v2722 = vadd.f32 %v2626, %v2706
        %v2723 = vadd.f32 %v2627, %v2707
        %v2724 = vadd.f32 %v2628, %v2708
        %v2725 = vadd.f32 %v2629, %v2709
        %v2726 = vadd.f32 %v2630, %v2710
        %v2727 = vadd.f32 %v2631, %v2711
        %v2728 = vadd.f32 %v2632, %v2712
        %v2729 = vadd.f32 %v2633, %v2713
        %v2730 = vadd.f32 %v2634, %v2714
        %v2731 = vadd.f32 %v2635, %v2715
        %2732 = vrot.lane.b32.xlu0 %v2188, 113
        %v2733 = vpop.permute.xlu0 %2732
        %2734 = vrot.lane.b32.xlu0 %v2190, 113
        %v2735 = vpop.permute.xlu0 %2734
        %2736 = vrot.lane.b32.xlu0 %v2192, 113
        %v2737 = vpop.permute.xlu0 %2736
        %2738 = vrot.lane.b32.xlu0 %v2194, 113
        %v2739 = vpop.permute.xlu0 %2738
        %2740 = vrot.lane.b32.xlu0 %v2196, 113
        %v2741 = vpop.permute.xlu0 %2740
        %2742 = vrot.lane.b32.xlu0 %v2198, 113
        %v2743 = vpop.permute.xlu0 %2742
        %2744 = vrot.lane.b32.xlu0 %v2200, 113
        %v2745 = vpop.permute.xlu0 %2744
        %2746 = vrot.lane.b32.xlu0 %v2202, 113
        %v2747 = vpop.permute.xlu0 %2746
        %2748 = vrot.lane.b32.xlu0 %v2189, 113
        %v2749 = vpop.permute.xlu0 %2748
        %2750 = vrot.lane.b32.xlu0 %v2191, 113
        %v2751 = vpop.permute.xlu0 %2750
        %2752 = vrot.lane.b32.xlu0 %v2193, 113
        %v2753 = vpop.permute.xlu0 %2752
        %2754 = vrot.lane.b32.xlu0 %v2195, 113
        %v2755 = vpop.permute.xlu0 %2754
        %2756 = vrot.lane.b32.xlu0 %v2197, 113
        %v2757 = vpop.permute.xlu0 %2756
        %2758 = vrot.lane.b32.xlu0 %v2199, 113
        %v2759 = vpop.permute.xlu0 %2758
        %2760 = vrot.lane.b32.xlu0 %v2201, 113
        %v2761 = vpop.permute.xlu0 %2760
        %2762 = vrot.lane.b32.xlu0 %v2203, 113
        %v2763 = vpop.permute.xlu0 %2762
        %v2764 = vsel %vm1227, %v2733, %v2749
        %v2765 = vsel %vm1227, %v2735, %v2751
        %v2766 = vsel %vm1227, %v2737, %v2753
        %v2767 = vsel %vm1227, %v2739, %v2755
        %v2768 = vsel %vm1227, %v2741, %v2757
        %v2769 = vsel %vm1227, %v2743, %v2759
        %v2770 = vsel %vm1227, %v2745, %v2761
        %v2771 = vsel %vm1227, %v2747, %v2763
        %v2772 = vsel %vm1227, %v2749, %v2733
        %v2773 = vsel %vm1227, %v2751, %v2735
        %v2774 = vsel %vm1227, %v2753, %v2737
        %v2775 = vsel %vm1227, %v2755, %v2739
        %v2776 = vsel %vm1227, %v2757, %v2741
        %v2777 = vsel %vm1227, %v2759, %v2743
        %v2778 = vsel %vm1227, %v2761, %v2745
        %v2779 = vsel %vm1227, %v2763, %v2747
        %v2780 = vld [vmem:[%s1244] sm:$0xff]
        %v2781 = vld [vmem:[%s1244 + $0x8] sm:$0xff]
        %v2782 = vld [vmem:[%s1244 + $0x10] sm:$0xff]
        %v2783 = vld [vmem:[%s1244 + $0x18] sm:$0xff]
        %v2784 = vld [vmem:[%s1244 + $0x20] sm:$0xff]
        %v2785 = vld [vmem:[%s1244 + $0x28] sm:$0xff]
        %v2786 = vld [vmem:[%s1244 + $0x30] sm:$0xff]
        %v2787 = vld [vmem:[%s1244 + $0x38] sm:$0xff]
        %v2788 = vld [vmem:[%s1244 + $0x40] sm:$0xff]
        %v2789 = vld [vmem:[%s1244 + $0x48] sm:$0xff]
        %v2790 = vld [vmem:[%s1244 + $0x50] sm:$0xff]
        %v2791 = vld [vmem:[%s1244 + $0x58] sm:$0xff]
        %v2792 = vld [vmem:[%s1244 + $0x60] sm:$0xff]
        %v2793 = vld [vmem:[%s1244 + $0x68] sm:$0xff]
        %v2794 = vld [vmem:[%s1244 + $0x70] sm:$0xff]
        %v2795 = vld [vmem:[%s1244 + $0x78] sm:$0xff]
        %v2796 = vmul.f32 %v2764, %v2780
        %v2797 = vmul.f32 %v2772, %v2781
        %v2798 = vmul.f32 %v2765, %v2782
        %v2799 = vmul.f32 %v2773, %v2783
        %v2800 = vmul.f32 %v2766, %v2784
        %v2801 = vmul.f32 %v2774, %v2785
        %v2802 = vmul.f32 %v2767, %v2786
        %v2803 = vmul.f32 %v2775, %v2787
        %v2804 = vmul.f32 %v2768, %v2788
        %v2805 = vmul.f32 %v2776, %v2789
        %v2806 = vmul.f32 %v2769, %v2790
        %v2807 = vmul.f32 %v2777, %v2791
        %v2808 = vmul.f32 %v2770, %v2792
        %v2809 = vmul.f32 %v2778, %v2793
        %v2810 = vmul.f32 %v2771, %v2794
        %v2811 = vmul.f32 %v2779, %v2795
        %v2812 = vadd.f32 %v2716, %v2796
        %v2813 = vadd.f32 %v2717, %v2797
        %v2814 = vadd.f32 %v2718, %v2798
        %v2815 = vadd.f32 %v2719, %v2799
        %v2816 = vadd.f32 %v2720, %v2800
        %v2817 = vadd.f32 %v2721, %v2801
        %v2818 = vadd.f32 %v2722, %v2802
        %v2819 = vadd.f32 %v2723, %v2803
        %v2820 = vadd.f32 %v2724, %v2804
        %v2821 = vadd.f32 %v2725, %v2805
        %v2822 = vadd.f32 %v2726, %v2806
        %v2823 = vadd.f32 %v2727, %v2807
        %v2824 = vadd.f32 %v2728, %v2808
        %v2825 = vadd.f32 %v2729, %v2809
        %v2826 = vadd.f32 %v2730, %v2810
        %v2827 = vadd.f32 %v2731, %v2811
        %2828 = vrot.lane.b32.xlu0 %v2188, 112
        %v2829 = vpop.permute.xlu0 %2828
        %2830 = vrot.lane.b32.xlu0 %v2190, 112
        %v2831 = vpop.permute.xlu0 %2830
        %2832 = vrot.lane.b32.xlu0 %v2192, 112
        %v2833 = vpop.permute.xlu0 %2832
        %2834 = vrot.lane.b32.xlu0 %v2194, 112
        %v2835 = vpop.permute.xlu0 %2834
        %2836 = vrot.lane.b32.xlu0 %v2196, 112
        %v2837 = vpop.permute.xlu0 %2836
        %2838 = vrot.lane.b32.xlu0 %v2198, 112
        %v2839 = vpop.permute.xlu0 %2838
        %2840 = vrot.lane.b32.xlu0 %v2200, 112
        %v2841 = vpop.permute.xlu0 %2840
        %2842 = vrot.lane.b32.xlu0 %v2202, 112
        %v2843 = vpop.permute.xlu0 %2842
        %2844 = vrot.lane.b32.xlu0 %v2189, 112
        %v2845 = vpop.permute.xlu0 %2844
        %2846 = vrot.lane.b32.xlu0 %v2191, 112
        %v2847 = vpop.permute.xlu0 %2846
        %2848 = vrot.lane.b32.xlu0 %v2193, 112
        %v2849 = vpop.permute.xlu0 %2848
        %2850 = vrot.lane.b32.xlu0 %v2195, 112
        %v2851 = vpop.permute.xlu0 %2850
        %2852 = vrot.lane.b32.xlu0 %v2197, 112
        %v2853 = vpop.permute.xlu0 %2852
        %2854 = vrot.lane.b32.xlu0 %v2199, 112
        %v2855 = vpop.permute.xlu0 %2854
        %2856 = vrot.lane.b32.xlu0 %v2201, 112
        %v2857 = vpop.permute.xlu0 %2856
        %2858 = vrot.lane.b32.xlu0 %v2203, 112
        %v2859 = vpop.permute.xlu0 %2858
        %v2860 = vsel %vm1325, %v2829, %v2845
        %v2861 = vsel %vm1325, %v2831, %v2847
        %v2862 = vsel %vm1325, %v2833, %v2849
        %v2863 = vsel %vm1325, %v2835, %v2851
        %v2864 = vsel %vm1325, %v2837, %v2853
        %v2865 = vsel %vm1325, %v2839, %v2855
        %v2866 = vsel %vm1325, %v2841, %v2857
        %v2867 = vsel %vm1325, %v2843, %v2859
        %v2868 = vsel %vm1325, %v2845, %v2829
        %v2869 = vsel %vm1325, %v2847, %v2831
        %v2870 = vsel %vm1325, %v2849, %v2833
        %v2871 = vsel %vm1325, %v2851, %v2835
        %v2872 = vsel %vm1325, %v2853, %v2837
        %v2873 = vsel %vm1325, %v2855, %v2839
        %v2874 = vsel %vm1325, %v2857, %v2841
        %v2875 = vsel %vm1325, %v2859, %v2843
        %v2876 = vld [vmem:[%s1342] sm:$0xff]
        %v2877 = vld [vmem:[%s1342 + $0x8] sm:$0xff]
        %v2878 = vld [vmem:[%s1342 + $0x10] sm:$0xff]
        %v2879 = vld [vmem:[%s1342 + $0x18] sm:$0xff]
        %v2880 = vld [vmem:[%s1342 + $0x20] sm:$0xff]
        %v2881 = vld [vmem:[%s1342 + $0x28] sm:$0xff]
        %v2882 = vld [vmem:[%s1342 + $0x30] sm:$0xff]
        %v2883 = vld [vmem:[%s1342 + $0x38] sm:$0xff]
        %v2884 = vld [vmem:[%s1342 + $0x40] sm:$0xff]
        %v2885 = vld [vmem:[%s1342 + $0x48] sm:$0xff]
        %v2886 = vld [vmem:[%s1342 + $0x50] sm:$0xff]
        %v2887 = vld [vmem:[%s1342 + $0x58] sm:$0xff]
        %v2888 = vld [vmem:[%s1342 + $0x60] sm:$0xff]
        %v2889 = vld [vmem:[%s1342 + $0x68] sm:$0xff]
        %v2890 = vld [vmem:[%s1342 + $0x70] sm:$0xff]
        %v2891 = vld [vmem:[%s1342 + $0x78] sm:$0xff]
        %v2892 = vmul.f32 %v2860, %v2876
        %v2893 = vmul.f32 %v2868, %v2877
        %v2894 = vmul.f32 %v2861, %v2878
        %v2895 = vmul.f32 %v2869, %v2879
        %v2896 = vmul.f32 %v2862, %v2880
        %v2897 = vmul.f32 %v2870, %v2881
        %v2898 = vmul.f32 %v2863, %v2882
        %v2899 = vmul.f32 %v2871, %v2883
        %v2900 = vmul.f32 %v2864, %v2884
        %v2901 = vmul.f32 %v2872, %v2885
        %v2902 = vmul.f32 %v2865, %v2886
        %v2903 = vmul.f32 %v2873, %v2887
        %v2904 = vmul.f32 %v2866, %v2888
        %v2905 = vmul.f32 %v2874, %v2889
        %v2906 = vmul.f32 %v2867, %v2890
        %v2907 = vmul.f32 %v2875, %v2891
        %v2908 = vadd.f32 %v2812, %v2892
        %v2909 = vadd.f32 %v2813, %v2893
        %v2910 = vadd.f32 %v2814, %v2894
        %v2911 = vadd.f32 %v2815, %v2895
        %v2912 = vadd.f32 %v2816, %v2896
        %v2913 = vadd.f32 %v2817, %v2897
        %v2914 = vadd.f32 %v2818, %v2898
        %v2915 = vadd.f32 %v2819, %v2899
        %v2916 = vadd.f32 %v2820, %v2900
        %v2917 = vadd.f32 %v2821, %v2901
        %v2918 = vadd.f32 %v2822, %v2902
        %v2919 = vadd.f32 %v2823, %v2903
        %v2920 = vadd.f32 %v2824, %v2904
        %v2921 = vadd.f32 %v2825, %v2905
        %v2922 = vadd.f32 %v2826, %v2906
        %v2923 = vadd.f32 %v2827, %v2907
        %2924 = vrot.lane.b32.xlu0 %v2188, 111
        %v2925 = vpop.permute.xlu0 %2924
        %2926 = vrot.lane.b32.xlu0 %v2190, 111
        %v2927 = vpop.permute.xlu0 %2926
        %2928 = vrot.lane.b32.xlu0 %v2192, 111
        %v2929 = vpop.permute.xlu0 %2928
        %2930 = vrot.lane.b32.xlu0 %v2194, 111
        %v2931 = vpop.permute.xlu0 %2930
        %2932 = vrot.lane.b32.xlu0 %v2196, 111
        %v2933 = vpop.permute.xlu0 %2932
        %2934 = vrot.lane.b32.xlu0 %v2198, 111
        %v2935 = vpop.permute.xlu0 %2934
        %2936 = vrot.lane.b32.xlu0 %v2200, 111
        %v2937 = vpop.permute.xlu0 %2936
        %2938 = vrot.lane.b32.xlu0 %v2202, 111
        %v2939 = vpop.permute.xlu0 %2938
        %2940 = vrot.lane.b32.xlu0 %v2189, 111
        %v2941 = vpop.permute.xlu0 %2940
        %2942 = vrot.lane.b32.xlu0 %v2191, 111
        %v2943 = vpop.permute.xlu0 %2942
        %2944 = vrot.lane.b32.xlu0 %v2193, 111
        %v2945 = vpop.permute.xlu0 %2944
        %2946 = vrot.lane.b32.xlu0 %v2195, 111
        %v2947 = vpop.permute.xlu0 %2946
        %2948 = vrot.lane.b32.xlu0 %v2197, 111
        %v2949 = vpop.permute.xlu0 %2948
        %2950 = vrot.lane.b32.xlu0 %v2199, 111
        %v2951 = vpop.permute.xlu0 %2950
        %2952 = vrot.lane.b32.xlu0 %v2201, 111
        %v2953 = vpop.permute.xlu0 %2952
        %2954 = vrot.lane.b32.xlu0 %v2203, 111
        %v2955 = vpop.permute.xlu0 %2954
        %v2956 = vsel %vm1423, %v2925, %v2941
        %v2957 = vsel %vm1423, %v2927, %v2943
        %v2958 = vsel %vm1423, %v2929, %v2945
        %v2959 = vsel %vm1423, %v2931, %v2947
        %v2960 = vsel %vm1423, %v2933, %v2949
        %v2961 = vsel %vm1423, %v2935, %v2951
        %v2962 = vsel %vm1423, %v2937, %v2953
        %v2963 = vsel %vm1423, %v2939, %v2955
        %v2964 = vsel %vm1423, %v2941, %v2925
        %v2965 = vsel %vm1423, %v2943, %v2927
        %v2966 = vsel %vm1423, %v2945, %v2929
        %v2967 = vsel %vm1423, %v2947, %v2931
        %v2968 = vsel %vm1423, %v2949, %v2933
        %v2969 = vsel %vm1423, %v2951, %v2935
        %v2970 = vsel %vm1423, %v2953, %v2937
        %v2971 = vsel %vm1423, %v2955, %v2939
        %v2972 = vld [vmem:[%s1440] sm:$0xff]
        %v2973 = vld [vmem:[%s1440 + $0x8] sm:$0xff]
        %v2974 = vld [vmem:[%s1440 + $0x10] sm:$0xff]
        %v2975 = vld [vmem:[%s1440 + $0x18] sm:$0xff]
        %v2976 = vld [vmem:[%s1440 + $0x20] sm:$0xff]
        %v2977 = vld [vmem:[%s1440 + $0x28] sm:$0xff]
        %v2978 = vld [vmem:[%s1440 + $0x30] sm:$0xff]
        %v2979 = vld [vmem:[%s1440 + $0x38] sm:$0xff]
        %v2980 = vld [vmem:[%s1440 + $0x40] sm:$0xff]
        %v2981 = vld [vmem:[%s1440 + $0x48] sm:$0xff]
        %v2982 = vld [vmem:[%s1440 + $0x50] sm:$0xff]
        %v2983 = vld [vmem:[%s1440 + $0x58] sm:$0xff]
        %v2984 = vld [vmem:[%s1440 + $0x60] sm:$0xff]
        %v2985 = vld [vmem:[%s1440 + $0x68] sm:$0xff]
        %v2986 = vld [vmem:[%s1440 + $0x70] sm:$0xff]
        %v2987 = vld [vmem:[%s1440 + $0x78] sm:$0xff]
        %v2988 = vmul.f32 %v2956, %v2972
        %v2989 = vmul.f32 %v2964, %v2973
        %v2990 = vmul.f32 %v2957, %v2974
        %v2991 = vmul.f32 %v2965, %v2975
        %v2992 = vmul.f32 %v2958, %v2976
        %v2993 = vmul.f32 %v2966, %v2977
        %v2994 = vmul.f32 %v2959, %v2978
        %v2995 = vmul.f32 %v2967, %v2979
        %v2996 = vmul.f32 %v2960, %v2980
        %v2997 = vmul.f32 %v2968, %v2981
        %v2998 = vmul.f32 %v2961, %v2982
        %v2999 = vmul.f32 %v2969, %v2983
        %v3000 = vmul.f32 %v2962, %v2984
        %v3001 = vmul.f32 %v2970, %v2985
        %v3002 = vmul.f32 %v2963, %v2986
        %v3003 = vmul.f32 %v2971, %v2987
        %v3004 = vadd.f32 %v2908, %v2988
        %v3005 = vadd.f32 %v2909, %v2989
        %v3006 = vadd.f32 %v2910, %v2990
        %v3007 = vadd.f32 %v2911, %v2991
        %v3008 = vadd.f32 %v2912, %v2992
        %v3009 = vadd.f32 %v2913, %v2993
        %v3010 = vadd.f32 %v2914, %v2994
        %v3011 = vadd.f32 %v2915, %v2995
        %v3012 = vadd.f32 %v2916, %v2996
        %v3013 = vadd.f32 %v2917, %v2997
        %v3014 = vadd.f32 %v2918, %v2998
        %v3015 = vadd.f32 %v2919, %v2999
        %v3016 = vadd.f32 %v2920, %v3000
        %v3017 = vadd.f32 %v2921, %v3001
        %v3018 = vadd.f32 %v2922, %v3002
        %v3019 = vadd.f32 %v2923, %v3003
        %v3020 = vld [vmem:[%s4] sm:$0xff]
        %v3021 = vld [vmem:[%s4 + $0x8] sm:$0xff]
        %v3022 = vld [vmem:[%s4 + $0x10] sm:$0xff]
        %v3023 = vld [vmem:[%s4 + $0x18] sm:$0xff]
        %v3024 = vld [vmem:[%s4 + $0x20] sm:$0xff]
        %v3025 = vld [vmem:[%s4 + $0x28] sm:$0xff]
        %v3026 = vld [vmem:[%s4 + $0x30] sm:$0xff]
        %v3027 = vld [vmem:[%s4 + $0x38] sm:$0xff]
        %3029 = vset.pattern.permute.xlu0 0
        %3030 = vperm.xlu0 %3029, %v3020
        %v3031 = vpop.permute.xlu0 %3030
        %3034 = vset.pattern.permute.xlu0 0
        %3035 = vperm.xlu0 %3034, %v3021
        %v3036 = vpop.permute.xlu0 %3035
        %3039 = vset.pattern.permute.xlu0 0
        %3040 = vperm.xlu0 %3039, %v3022
        %v3041 = vpop.permute.xlu0 %3040
        %3044 = vset.pattern.permute.xlu0 0
        %3045 = vperm.xlu0 %3044, %v3023
        %v3046 = vpop.permute.xlu0 %3045
        %3049 = vset.pattern.permute.xlu0 0
        %3050 = vperm.xlu0 %3049, %v3024
        %v3051 = vpop.permute.xlu0 %3050
        %3054 = vset.pattern.permute.xlu0 0
        %3055 = vperm.xlu0 %3054, %v3025
        %v3056 = vpop.permute.xlu0 %3055
        %3059 = vset.pattern.permute.xlu0 0
        %3060 = vperm.xlu0 %3059, %v3026
        %v3061 = vpop.permute.xlu0 %3060
        %3064 = vset.pattern.permute.xlu0 0
        %3065 = vperm.xlu0 %3064, %v3027
        %v3066 = vpop.permute.xlu0 %3065
        %v3068 = vadd.f32 %v3004, %v3031
        %v3069 = vadd.f32 %v3005, %v3031
        %v3070 = vadd.f32 %v3006, %v3036
        %v3071 = vadd.f32 %v3007, %v3036
        %v3072 = vadd.f32 %v3008, %v3041
        %v3073 = vadd.f32 %v3009, %v3041
        %v3074 = vadd.f32 %v3010, %v3046
        %v3075 = vadd.f32 %v3011, %v3046
        %v3076 = vadd.f32 %v3012, %v3051
        %v3077 = vadd.f32 %v3013, %v3051
        %v3078 = vadd.f32 %v3014, %v3056
        %v3079 = vadd.f32 %v3015, %v3056
        %v3080 = vadd.f32 %v3016, %v3061
        %v3081 = vadd.f32 %v3017, %v3061
        %v3082 = vadd.f32 %v3018, %v3066
        %v3083 = vadd.f32 %v3019, %v3066
        %v3084 = vadd.f32 %v3068, 3.0
        %v3085 = vadd.f32 %v3069, 3.0
        %v3086 = vadd.f32 %v3070, 3.0
        %v3087 = vadd.f32 %v3071, 3.0
        %v3088 = vadd.f32 %v3072, 3.0
        %v3089 = vadd.f32 %v3073, 3.0
        %v3090 = vadd.f32 %v3074, 3.0
        %v3091 = vadd.f32 %v3075, 3.0
        %v3092 = vadd.f32 %v3076, 3.0
        %v3093 = vadd.f32 %v3077, 3.0
        %v3094 = vadd.f32 %v3078, 3.0
        %v3095 = vadd.f32 %v3079, 3.0
        %v3096 = vadd.f32 %v3080, 3.0
        %v3097 = vadd.f32 %v3081, 3.0
        %v3098 = vadd.f32 %v3082, 3.0
        %v3099 = vadd.f32 %v3083, 3.0
        %v3100 = vmax.f32 %v3084, 0.0
        %v3101 = vmax.f32 %v3085, 0.0
        %v3102 = vmax.f32 %v3086, 0.0
        %v3103 = vmax.f32 %v3087, 0.0
        %v3104 = vmax.f32 %v3088, 0.0
        %v3105 = vmax.f32 %v3089, 0.0
        %v3106 = vmax.f32 %v3090, 0.0
        %v3107 = vmax.f32 %v3091, 0.0
        %v3108 = vmax.f32 %v3092, 0.0
        %v3109 = vmax.f32 %v3093, 0.0
        %v3110 = vmax.f32 %v3094, 0.0
        %v3111 = vmax.f32 %v3095, 0.0
        %v3112 = vmax.f32 %v3096, 0.0
        %v3113 = vmax.f32 %v3097, 0.0
        %v3114 = vmax.f32 %v3098, 0.0
        %v3115 = vmax.f32 %v3099, 0.0
        %v3116 = vmin.f32 %v3100, 6.0
        %v3117 = vmin.f32 %v3101, 6.0
        %v3118 = vmin.f32 %v3102, 6.0
        %v3119 = vmin.f32 %v3103, 6.0
        %v3120 = vmin.f32 %v3104, 6.0
        %v3121 = vmin.f32 %v3105, 6.0
        %v3122 = vmin.f32 %v3106, 6.0
        %v3123 = vmin.f32 %v3107, 6.0
        %v3124 = vmin.f32 %v3108, 6.0
        %v3125 = vmin.f32 %v3109, 6.0
        %v3126 = vmin.f32 %v3110, 6.0
        %v3127 = vmin.f32 %v3111, 6.0
        %v3128 = vmin.f32 %v3112, 6.0
        %v3129 = vmin.f32 %v3113, 6.0
        %v3130 = vmin.f32 %v3114, 6.0
        %v3131 = vmin.f32 %v3115, 6.0
        %v3132 = vmul.f32 %v3068, %v3116
        %v3133 = vmul.f32 %v3069, %v3117
        %v3134 = vmul.f32 %v3070, %v3118
        %v3135 = vmul.f32 %v3071, %v3119
        %v3136 = vmul.f32 %v3072, %v3120
        %v3137 = vmul.f32 %v3073, %v3121
        %v3138 = vmul.f32 %v3074, %v3122
        %v3139 = vmul.f32 %v3075, %v3123
        %v3140 = vmul.f32 %v3076, %v3124
        %v3141 = vmul.f32 %v3077, %v3125
        %v3142 = vmul.f32 %v3078, %v3126
        %v3143 = vmul.f32 %v3079, %v3127
        %v3144 = vmul.f32 %v3080, %v3128
        %v3145 = vmul.f32 %v3081, %v3129
        %v3146 = vmul.f32 %v3082, %v3130
        %v3147 = vmul.f32 %v3083, %v3131
        %v3148 = vmul.f32 %v3132, 0.16666667
        %v3149 = vmul.f32 %v3133, 0.16666667
        %v3150 = vmul.f32 %v3134, 0.16666667
        %v3151 = vmul.f32 %v3135, 0.16666667
        %v3152 = vmul.f32 %v3136, 0.16666667
        %v3153 = vmul.f32 %v3137, 0.16666667
        %v3154 = vmul.f32 %v3138, 0.16666667
        %v3155 = vmul.f32 %v3139, 0.16666667
        %v3156 = vmul.f32 %v3140, 0.16666667
        %v3157 = vmul.f32 %v3141, 0.16666667
        %v3158 = vmul.f32 %v3142, 0.16666667
        %v3159 = vmul.f32 %v3143, 0.16666667
        %v3160 = vmul.f32 %v3144, 0.16666667
        %v3161 = vmul.f32 %v3145, 0.16666667
        %v3162 = vmul.f32 %v3146, 0.16666667
        %v3163 = vmul.f32 %v3147, 0.16666667
        %v3164 = vadd.f32 %v3148, %v3149
        %3165 = vadd.xlane.f32.xlu0 %v3164
        %v3166 = vpop.xlane.xlu0 %3165
        %v3167 = vadd.f32 %v3150, %v3151
        %3168 = vadd.xlane.f32.xlu0 %v3167
        %v3169 = vpop.xlane.xlu0 %3168
        %v3170 = vadd.f32 %v3152, %v3153
        %3171 = vadd.xlane.f32.xlu0 %v3170
        %v3172 = vpop.xlane.xlu0 %3171
        %v3173 = vadd.f32 %v3154, %v3155
        %3174 = vadd.xlane.f32.xlu0 %v3173
        %v3175 = vpop.xlane.xlu0 %3174
        %v3176 = vadd.f32 %v3156, %v3157
        %3177 = vadd.xlane.f32.xlu0 %v3176
        %v3178 = vpop.xlane.xlu0 %3177
        %v3179 = vadd.f32 %v3158, %v3159
        %3180 = vadd.xlane.f32.xlu0 %v3179
        %v3181 = vpop.xlane.xlu0 %3180
        %v3182 = vadd.f32 %v3160, %v3161
        %3183 = vadd.xlane.f32.xlu0 %v3182
        %v3184 = vpop.xlane.xlu0 %3183
        %v3185 = vadd.f32 %v3162, %v3163
        %3186 = vadd.xlane.f32.xlu0 %v3185
        %v3187 = vpop.xlane.xlu0 %3186
        %v3188 = vmul.f32 %v3166, %v1657
        %v3189 = vmul.f32 %v3169, %v1657
        %v3190 = vmul.f32 %v3172, %v1657
        %v3191 = vmul.f32 %v3175, %v1657
        %v3192 = vmul.f32 %v3178, %v1657
        %v3193 = vmul.f32 %v3181, %v1657
        %v3194 = vmul.f32 %v3184, %v1657
        %v3195 = vmul.f32 %v3187, %v1657
        %v3196 = vld [vmem:[%s5] sm:$0xff]
        %v3197 = vld [vmem:[%s5 + $0x8] sm:$0xff]
        %v3198 = vld [vmem:[%s5 + $0x10] sm:$0xff]
        %v3199 = vld [vmem:[%s5 + $0x18] sm:$0xff]
        %v3200 = vld [vmem:[%s5 + $0x20] sm:$0xff]
        %v3201 = vld [vmem:[%s5 + $0x28] sm:$0xff]
        %v3202 = vld [vmem:[%s5 + $0x30] sm:$0xff]
        %v3203 = vld [vmem:[%s5 + $0x38] sm:$0xff]
        %v3204 = vmul.f32 %v3196, %v3188
        %v3205 = vmul.f32 %v3197, %v3189
        %v3206 = vmul.f32 %v3198, %v3190
        %v3207 = vmul.f32 %v3199, %v3191
        %v3208 = vmul.f32 %v3200, %v3192
        %v3209 = vmul.f32 %v3201, %v3193
        %v3210 = vmul.f32 %v3202, %v3194
        %v3211 = vmul.f32 %v3203, %v3195
        %v3212 = vsel %vm489, %v3204, 0.0
        %v3213 = vsel %vm489, %v3205, 0.0
        %v3214 = vadd.f32 %v3212, %v3213
        %v3215 = vsel %vm489, %v3206, 0.0
        %v3216 = vadd.f32 %v3214, %v3215
        %v3217 = vsel %vm489, %v3207, 0.0
        %v3218 = vadd.f32 %v3216, %v3217
        %v3219 = vsel %vm489, %v3208, 0.0
        %v3220 = vadd.f32 %v3218, %v3219
        %v3221 = vsel %vm489, %v3209, 0.0
        %v3222 = vadd.f32 %v3220, %v3221
        %v3223 = vsel %vm489, %v3210, 0.0
        %v3224 = vadd.f32 %v3222, %v3223
        %v3225 = vsel %vm489, %v3211, 0.0
        %v3226 = vadd.f32 %v3224, %v3225
        %v3227 = vrot.slane %v3226, 4
        %v3228 = vadd.f32 %v3226, %v3227
        %v3229 = vrot.slane %v3228, 2
        %v3230 = vadd.f32 %v3228, %v3229
        %v3231 = vrot.slane %v3230, 1
        %v3232 = vadd.f32 %v3230, %v3231
        %v3233 = vld [vmem:[%s6] sm:$0x1]
        %v3234 = vadd.f32 %v3232, %v3233
        %v3235 = vmax.f32 %v3234, 0.0
        %v3236 = vld [vmem:[%s7] sm:$0xff]
        %v3237 = vld [vmem:[%s7 + $0x8] sm:$0xff]
        %v3238 = vld [vmem:[%s7 + $0x10] sm:$0xff]
        %v3239 = vld [vmem:[%s7 + $0x18] sm:$0xff]
        %v3240 = vld [vmem:[%s7 + $0x20] sm:$0xff]
        %v3241 = vld [vmem:[%s7 + $0x28] sm:$0xff]
        %v3242 = vld [vmem:[%s7 + $0x30] sm:$0xff]
        %v3243 = vld [vmem:[%s7 + $0x38] sm:$0xff]
        %v3244 = vlaneseq
        %v3245 = vshrl.u32 %v3244, 7
        %v3246 = vsub.s32 0, %v3245
        %v3247 = vrot.slane %v3235, %v3246
        %v3248 = vmul.f32 %v3236, %v3247
        %v3249 = vmul.f32 %v3237, %v3247
        %v3250 = vmul.f32 %v3238, %v3247
        %v3251 = vmul.f32 %v3239, %v3247
        %v3252 = vmul.f32 %v3240, %v3247
        %v3253 = vmul.f32 %v3241, %v3247
        %v3254 = vmul.f32 %v3242, %v3247
        %v3255 = vmul.f32 %v3243, %v3247
        %v3256 = vsel %vm489, %v3248, 0.0
        %3257 = vadd.xlane.f32.xlu0 %v3256
        %v3258 = vpop.xlane.xlu0 %3257
        %v3259 = vsel %vm489, %v3249, 0.0
        %3260 = vadd.xlane.f32.xlu0 %v3259
        %v3261 = vpop.xlane.xlu0 %3260
        %v3262 = vsel %vm489, %v3250, 0.0
        %3263 = vadd.xlane.f32.xlu0 %v3262
        %v3264 = vpop.xlane.xlu0 %3263
        %v3265 = vsel %vm489, %v3251, 0.0
        %3266 = vadd.xlane.f32.xlu0 %v3265
        %v3267 = vpop.xlane.xlu0 %3266
        %v3268 = vsel %vm489, %v3252, 0.0
        %3269 = vadd.xlane.f32.xlu0 %v3268
        %v3270 = vpop.xlane.xlu0 %3269
        %v3271 = vsel %vm489, %v3253, 0.0
        %3272 = vadd.xlane.f32.xlu0 %v3271
        %v3273 = vpop.xlane.xlu0 %3272
        %v3274 = vsel %vm489, %v3254, 0.0
        %3275 = vadd.xlane.f32.xlu0 %v3274
        %v3276 = vpop.xlane.xlu0 %3275
        %v3277 = vsel %vm489, %v3255, 0.0
        %3278 = vadd.xlane.f32.xlu0 %v3277
        %v3279 = vpop.xlane.xlu0 %3278
        %v3280 = vld [vmem:[%s8] sm:$0xff]
        %v3281 = vld [vmem:[%s8 + $0x8] sm:$0xff]
        %v3282 = vld [vmem:[%s8 + $0x10] sm:$0xff]
        %v3283 = vld [vmem:[%s8 + $0x18] sm:$0xff]
        %v3284 = vld [vmem:[%s8 + $0x20] sm:$0xff]
        %v3285 = vld [vmem:[%s8 + $0x28] sm:$0xff]
        %v3286 = vld [vmem:[%s8 + $0x30] sm:$0xff]
        %v3287 = vld [vmem:[%s8 + $0x38] sm:$0xff]
        %v3288 = vadd.f32 %v3258, %v3280
        %v3289 = vadd.f32 %v3261, %v3281
        %v3290 = vadd.f32 %v3264, %v3282
        %v3291 = vadd.f32 %v3267, %v3283
        %v3292 = vadd.f32 %v3270, %v3284
        %v3293 = vadd.f32 %v3273, %v3285
        %v3294 = vadd.f32 %v3276, %v3286
        %v3295 = vadd.f32 %v3279, %v3287
        %v3296 = vadd.f32 %v3288, 3.0
        %v3297 = vadd.f32 %v3289, 3.0
        %v3298 = vadd.f32 %v3290, 3.0
        %v3299 = vadd.f32 %v3291, 3.0
        %v3300 = vadd.f32 %v3292, 3.0
        %v3301 = vadd.f32 %v3293, 3.0
        %v3302 = vadd.f32 %v3294, 3.0
        %v3303 = vadd.f32 %v3295, 3.0
        %v3304 = vmax.f32 %v3296, 0.0
        %v3305 = vmax.f32 %v3297, 0.0
        %v3306 = vmax.f32 %v3298, 0.0
        %v3307 = vmax.f32 %v3299, 0.0
        %v3308 = vmax.f32 %v3300, 0.0
        %v3309 = vmax.f32 %v3301, 0.0
        %v3310 = vmax.f32 %v3302, 0.0
        %v3311 = vmax.f32 %v3303, 0.0
        %v3312 = vmin.f32 %v3304, 6.0
        %v3313 = vmin.f32 %v3305, 6.0
        %v3314 = vmin.f32 %v3306, 6.0
        %v3315 = vmin.f32 %v3307, 6.0
        %v3316 = vmin.f32 %v3308, 6.0
        %v3317 = vmin.f32 %v3309, 6.0
        %v3318 = vmin.f32 %v3310, 6.0
        %v3319 = vmin.f32 %v3311, 6.0
        %v3320 = vmul.f32 %v3312, 0.16666667
        %v3321 = vmul.f32 %v3313, 0.16666667
        %v3322 = vmul.f32 %v3314, 0.16666667
        %v3323 = vmul.f32 %v3315, 0.16666667
        %v3324 = vmul.f32 %v3316, 0.16666667
        %v3325 = vmul.f32 %v3317, 0.16666667
        %v3326 = vmul.f32 %v3318, 0.16666667
        %v3327 = vmul.f32 %v3319, 0.16666667
        %3329 = vset.pattern.permute.xlu0 0
        %3330 = vperm.xlu0 %3329, %v3320
        %v3331 = vpop.permute.xlu0 %3330
        %3334 = vset.pattern.permute.xlu0 0
        %3335 = vperm.xlu0 %3334, %v3321
        %v3336 = vpop.permute.xlu0 %3335
        %3339 = vset.pattern.permute.xlu0 0
        %3340 = vperm.xlu0 %3339, %v3322
        %v3341 = vpop.permute.xlu0 %3340
        %3344 = vset.pattern.permute.xlu0 0
        %3345 = vperm.xlu0 %3344, %v3323
        %v3346 = vpop.permute.xlu0 %3345
        %3349 = vset.pattern.permute.xlu0 0
        %3350 = vperm.xlu0 %3349, %v3324
        %v3351 = vpop.permute.xlu0 %3350
        %3354 = vset.pattern.permute.xlu0 0
        %3355 = vperm.xlu0 %3354, %v3325
        %v3356 = vpop.permute.xlu0 %3355
        %3359 = vset.pattern.permute.xlu0 0
        %3360 = vperm.xlu0 %3359, %v3326
        %v3361 = vpop.permute.xlu0 %3360
        %3364 = vset.pattern.permute.xlu0 0
        %3365 = vperm.xlu0 %3364, %v3327
        %v3366 = vpop.permute.xlu0 %3365
        %v3368 = vmul.f32 %v3148, %v3331
        %v3369 = vmul.f32 %v3149, %v3331
        %v3370 = vmul.f32 %v3150, %v3336
        %v3371 = vmul.f32 %v3151, %v3336
        %v3372 = vmul.f32 %v3152, %v3341
        %v3373 = vmul.f32 %v3153, %v3341
        %v3374 = vmul.f32 %v3154, %v3346
        %v3375 = vmul.f32 %v3155, %v3346
        %v3376 = vmul.f32 %v3156, %v3351
        %v3377 = vmul.f32 %v3157, %v3351
        %v3378 = vmul.f32 %v3158, %v3356
        %v3379 = vmul.f32 %v3159, %v3356
        %v3380 = vmul.f32 %v3160, %v3361
        %v3381 = vmul.f32 %v3161, %v3361
        %v3382 = vmul.f32 %v3162, %v3366
        %v3383 = vmul.f32 %v3163, %v3366
        %v3384 = vld [vmem:[%s9] sm:$0xf]
        %v3385 = vld [vmem:[%s9 + $0x4] sm:$0xf]
        %v3386 = vpack.c.bf16 %v3370, %v3368
        %v3387 = vpack.c.bf16 %v3371, %v3369
        %v3388 = vpack.c.bf16 %v3374, %v3372
        %v3389 = vpack.c.bf16 %v3375, %v3373
        %v3390 = vpack.c.bf16 %v3378, %v3376
        %v3391 = vpack.c.bf16 %v3379, %v3377
        %v3392 = vpack.c.bf16 %v3382, %v3380
        %v3393 = vpack.c.bf16 %v3383, %v3381
        %v3394 = vld [vmem:[%s10] sm:$0xff]
        %v3395 = vld [vmem:[%s10 + $0x8] sm:$0xff]
        %3397 = vset.pattern.permute.xlu0 0
        %3398 = vperm.xlu0 %3397, %v3394
        %v3399 = vpop.permute.xlu0 %3398
        %3402 = vset.pattern.permute.xlu0 0
        %3403 = vperm.xlu0 %3402, %v3395
        %v3404 = vpop.permute.xlu0 %3403
        %v3408 = vunpack.c.l.b16 %v3384
        %v3409 = vunpack.c.l.b16 %v3385
        %v3410 = vpack.c.b16 %v3409, %v3408
        %v3412 = vsel %vm1881, %v3410, 0
        %3414 = vmatprep.subr.bf16.mxu0 %v3387
        %3415 = vmatpush1.bf16.msra.mxu0 %v3386
        %3416 = vmatprep.subr.bf16.mxu0 %v3389
        %3417 = vmatpush1.bf16.msra.mxu0 %v3388
        %3418 = vmatprep.subr.bf16.mxu0 %v3391
        %3419 = vmatpush1.bf16.msra.mxu0 %v3390
        %3420 = vmatprep.subr.bf16.mxu0 %v3393
        %3421 = vmatpush1.bf16.msra.mxu0 %v3392
        %3422 = vmatprep.subr.bf16.mxu0 0
        %3423 = vmatpush1.bf16.msra.mxu0 0
        %3424 = vmatprep.subr.bf16.mxu0 0
        %3425 = vmatpush1.bf16.msra.mxu0 0
        %3426 = vmatprep.subr.bf16.mxu0 0
        %3427 = vmatpush1.bf16.msra.mxu0 0
        %3428 = vmatprep.subr.bf16.mxu0 0
        %3429 = vmatpush1.bf16.msra.mxu0 0
        %3430 = vmatprep.subr.bf16.mxu0 0
        %3431 = vmatpush1.bf16.msra.mxu0 0
        %3432 = vmatprep.subr.bf16.mxu0 0
        %3433 = vmatpush1.bf16.msra.mxu0 0
        %3434 = vmatprep.subr.bf16.mxu0 0
        %3435 = vmatpush1.bf16.msra.mxu0 0
        %3436 = vmatprep.subr.bf16.mxu0 0
        %3437 = vmatpush1.bf16.msra.mxu0 0
        %3438 = vmatprep.subr.bf16.mxu0 0
        %3439 = vmatpush1.bf16.msra.mxu0 0
        %3440 = vmatprep.subr.bf16.mxu0 0
        %3441 = vmatpush1.bf16.msra.mxu0 0
        %3442 = vmatprep.subr.bf16.mxu0 0
        %3443 = vmatpush1.bf16.msra.mxu0 0
        %3444 = vmatprep.subr.bf16.mxu0 0
        %3445 = vmatpush1.bf16.msra.mxu0 0
        %3446 = vmatprep.mubr.bf16.mxu0 0
        %3447 = vmatmul.mubr.bf16.gmra.mrb[0].mxu0 %v3412
        %v3448 = vpop.f32.mrb[0].mxu0
        %v3449 = vadd.f32 %v3399, %v3448
        %v3450 = vpop.f32.mrb[0].mxu0
        %v3451 = vadd.f32 %v3399, %v3450
        %v3452 = vpop.f32.mrb[0].mxu0
        %v3453 = vadd.f32 %v3404, %v3452
        %v3454 = vpop.f32.mrb[0].mxu0
        %v3455 = vadd.f32 %v3404, %v3454
        %3456 = vdwg.mxu0
        %v3457 = vadd.f32 %v3449, 3.0
        %v3458 = vadd.f32 %v3451, 3.0
        %v3459 = vadd.f32 %v3453, 3.0
        %v3460 = vadd.f32 %v3455, 3.0
        %v3461 = vmax.f32 %v3457, 0.0
        %v3462 = vmax.f32 %v3458, 0.0
        %v3463 = vmax.f32 %v3459, 0.0
        %v3464 = vmax.f32 %v3460, 0.0
        %v3465 = vmin.f32 %v3461, 6.0
        %v3466 = vmin.f32 %v3462, 6.0
        %v3467 = vmin.f32 %v3463, 6.0
        %v3468 = vmin.f32 %v3464, 6.0
        %v3469 = vmul.f32 %v3449, %v3465
        %v3470 = vmul.f32 %v3451, %v3466
        %v3471 = vmul.f32 %v3453, %v3467
        %v3472 = vmul.f32 %v3455, %v3468
        %v3473 = vmul.f32 %v3469, 0.16666667
        %v3474 = vmul.f32 %v3470, 0.16666667
        %v3475 = vmul.f32 %v3471, 0.16666667
        %v3476 = vmul.f32 %v3472, 0.16666667
        %v3477 = vadd.f32 %v3473, %v1957
        %v3478 = vadd.f32 %v3474, %v1958
        %v3479 = vadd.f32 %v3475, %v1959
        %v3480 = vadd.f32 %v3476, %v1960
        %s3481 = scalar_lea.vmem %s397, 32 [#allocation5]
        %3482 = vst [vmem:[%s3481] sm:$0xff] %v3477
        %3483 = vst [vmem:[%s3481 + $0x8] sm:$0xff] %v3478
        %3484 = vst [vmem:[%s3481 + $0x10] sm:$0xff] %v3479
        %3485 = vst [vmem:[%s3481 + $0x18] sm:$0xff] %v3480
        %s3486 = scalar_lea.vmem %s403, 64
        %v3487 = vld [vmem:[%s3486] sm:$0xff]
        %v3488 = vld [vmem:[%s3486 + $0x8] sm:$0xff]
        %v3489 = vld [vmem:[%s3486 + $0x10] sm:$0xff]
        %v3490 = vld [vmem:[%s3486 + $0x18] sm:$0xff]
        %v3491 = vld [vmem:[%s1] sm:$0xf]
        %v3492 = vld [vmem:[%s1 + $0x4] sm:$0xf]
        %v3493 = vld [vmem:[%s1 + $0x8] sm:$0xf]
        %v3494 = vld [vmem:[%s1 + $0xc] sm:$0xf]
        %v3495 = vld [vmem:[%s1 + $0x10] sm:$0xf]
        %v3496 = vld [vmem:[%s1 + $0x14] sm:$0xf]
        %v3497 = vld [vmem:[%s1 + $0x18] sm:$0xf]
        %v3498 = vld [vmem:[%s1 + $0x1c] sm:$0xf]
        %v3499 = vpack.c.bf16 %v3489, %v3487
        %v3500 = vpack.c.bf16 %v3490, %v3488
        %v3501 = vld [vmem:[%s2] sm:$0xff]
        %v3502 = vld [vmem:[%s2 + $0x8] sm:$0xff]
        %v3503 = vld [vmem:[%s2 + $0x10] sm:$0xff]
        %v3504 = vld [vmem:[%s2 + $0x18] sm:$0xff]
        %v3505 = vld [vmem:[%s2 + $0x20] sm:$0xff]
        %v3506 = vld [vmem:[%s2 + $0x28] sm:$0xff]
        %v3507 = vld [vmem:[%s2 + $0x30] sm:$0xff]
        %v3508 = vld [vmem:[%s2 + $0x38] sm:$0xff]
        %3510 = vset.pattern.permute.xlu0 0
        %3511 = vperm.xlu0 %3510, %v3501
        %v3512 = vpop.permute.xlu0 %3511
        %3515 = vset.pattern.permute.xlu0 0
        %3516 = vperm.xlu0 %3515, %v3502
        %v3517 = vpop.permute.xlu0 %3516
        %3520 = vset.pattern.permute.xlu0 0
        %3521 = vperm.xlu0 %3520, %v3503
        %v3522 = vpop.permute.xlu0 %3521
        %3525 = vset.pattern.permute.xlu0 0
        %3526 = vperm.xlu0 %3525, %v3504
        %v3527 = vpop.permute.xlu0 %3526
        %3530 = vset.pattern.permute.xlu0 0
        %3531 = vperm.xlu0 %3530, %v3505
        %v3532 = vpop.permute.xlu0 %3531
        %3535 = vset.pattern.permute.xlu0 0
        %3536 = vperm.xlu0 %3535, %v3506
        %v3537 = vpop.permute.xlu0 %3536
        %3540 = vset.pattern.permute.xlu0 0
        %3541 = vperm.xlu0 %3540, %v3507
        %v3542 = vpop.permute.xlu0 %3541
        %3545 = vset.pattern.permute.xlu0 0
        %3546 = vperm.xlu0 %3545, %v3508
        %v3547 = vpop.permute.xlu0 %3546
        %v3557 = vunpack.c.l.b16 %v3491
        %v3558 = vunpack.c.l.b16 %v3492
        %v3559 = vunpack.c.l.b16 %v3493
        %v3560 = vunpack.c.l.b16 %v3494
        %v3561 = vunpack.c.l.b16 %v3495
        %v3562 = vunpack.c.l.b16 %v3496
        %v3563 = vunpack.c.l.b16 %v3497
        %v3564 = vunpack.c.l.b16 %v3498
        %v3565 = vpack.c.b16 %v3558, %v3557
        %v3566 = vpack.c.b16 %v3560, %v3559
        %v3567 = vpack.c.b16 %v3562, %v3561
        %v3568 = vpack.c.b16 %v3564, %v3563
        %v3570 = vsel %vm489, %v3565, 0
        %v3573 = vsel %vm489, %v3566, 0
        %v3576 = vsel %vm489, %v3567, 0
        %v3579 = vsel %vm489, %v3568, 0
        %3581 = vmatprep.subr.bf16.mxu0 %v3500
        %3582 = vmatpush1.bf16.msra.mxu0 %v3499
        %3583 = vmatprep.subr.bf16.mxu0 0
        %3584 = vmatpush1.bf16.msra.mxu0 0
        %3585 = vmatprep.subr.bf16.mxu0 0
        %3586 = vmatpush1.bf16.msra.mxu0 0
        %3587 = vmatprep.subr.bf16.mxu0 0
        %3588 = vmatpush1.bf16.msra.mxu0 0
        %3589 = vmatprep.subr.bf16.mxu0 0
        %3590 = vmatpush1.bf16.msra.mxu0 0
        %3591 = vmatprep.subr.bf16.mxu0 0
        %3592 = vmatpush1.bf16.msra.mxu0 0
        %3593 = vmatprep.subr.bf16.mxu0 0
        %3594 = vmatpush1.bf16.msra.mxu0 0
        %3595 = vmatprep.subr.bf16.mxu0 0
        %3596 = vmatpush1.bf16.msra.mxu0 0
        %3597 = vmatprep.subr.bf16.mxu0 0
        %3598 = vmatpush1.bf16.msra.mxu0 0
        %3599 = vmatprep.subr.bf16.mxu0 0
        %3600 = vmatpush1.bf16.msra.mxu0 0
        %3601 = vmatprep.subr.bf16.mxu0 0
        %3602 = vmatpush1.bf16.msra.mxu0 0
        %3603 = vmatprep.subr.bf16.mxu0 0
        %3604 = vmatpush1.bf16.msra.mxu0 0
        %3605 = vmatprep.subr.bf16.mxu0 0
        %3606 = vmatpush1.bf16.msra.mxu0 0
        %3607 = vmatprep.subr.bf16.mxu0 0
        %3608 = vmatpush1.bf16.msra.mxu0 0
        %3609 = vmatprep.subr.bf16.mxu0 0
        %3610 = vmatpush1.bf16.msra.mxu0 0
        %3611 = vmatprep.subr.bf16.mxu0 0
        %3612 = vmatpush1.bf16.msra.mxu0 0
        %3613 = vmatprep.mubr.bf16.mxu0 0
        %3614 = vmatmul.mubr.bf16.gmra.mrb[0].mxu0 %v3570
        %v3615 = vpop.f32.mrb[0].mxu0
        %v3616 = vadd.f32 %v3512, %v3615
        %v3617 = vpop.f32.mrb[0].mxu0
        %v3618 = vadd.f32 %v3512, %v3617
        %v3619 = vpop.f32.mrb[0].mxu0
        %v3620 = vadd.f32 %v3517, %v3619
        %v3621 = vpop.f32.mrb[0].mxu0
        %v3622 = vadd.f32 %v3517, %v3621
        %3623 = vmatprep.mubr.bf16.mxu0 0
        %3624 = vmatmul.mubr.bf16.gmra.mrb[0].mxu0 %v3573
        %v3625 = vpop.f32.mrb[0].mxu0
        %v3626 = vadd.f32 %v3522, %v3625
        %v3627 = vpop.f32.mrb[0].mxu0
        %v3628 = vadd.f32 %v3522, %v3627
        %v3629 = vpop.f32.mrb[0].mxu0
        %v3630 = vadd.f32 %v3527, %v3629
        %v3631 = vpop.f32.mrb[0].mxu0
        %v3632 = vadd.f32 %v3527, %v3631
        %3633 = vmatprep.mubr.bf16.mxu0 0
        %3634 = vmatmul.mubr.bf16.gmra.mrb[0].mxu0 %v3576
        %v3635 = vpop.f32.mrb[0].mxu0
        %v3636 = vadd.f32 %v3532, %v3635
        %v3637 = vpop.f32.mrb[0].mxu0
        %v3638 = vadd.f32 %v3532, %v3637
        %v3639 = vpop.f32.mrb[0].mxu0
        %v3640 = vadd.f32 %v3537, %v3639
        %v3641 = vpop.f32.mrb[0].mxu0
        %v3642 = vadd.f32 %v3537, %v3641
        %3643 = vmatprep.mubr.bf16.mxu0 0
        %3644 = vmatmul.mubr.bf16.gmra.mrb[0].mxu0 %v3579
        %v3645 = vpop.f32.mrb[0].mxu0
        %v3646 = vadd.f32 %v3542, %v3645
        %v3647 = vpop.f32.mrb[0].mxu0
        %v3648 = vadd.f32 %v3542, %v3647
        %v3649 = vpop.f32.mrb[0].mxu0
        %v3650 = vadd.f32 %v3547, %v3649
        %v3651 = vpop.f32.mrb[0].mxu0
        %v3652 = vadd.f32 %v3547, %v3651
        %3653 = vdwg.mxu0
        %v3654 = vadd.f32 %v3616, 3.0
        %v3655 = vadd.f32 %v3618, 3.0
        %v3656 = vadd.f32 %v3620, 3.0
        %v3657 = vadd.f32 %v3622, 3.0
        %v3658 = vadd.f32 %v3626, 3.0
        %v3659 = vadd.f32 %v3628, 3.0
        %v3660 = vadd.f32 %v3630, 3.0
        %v3661 = vadd.f32 %v3632, 3.0
        %v3662 = vadd.f32 %v3636, 3.0
        %v3663 = vadd.f32 %v3638, 3.0
        %v3664 = vadd.f32 %v3640, 3.0
        %v3665 = vadd.f32 %v3642, 3.0
        %v3666 = vadd.f32 %v3646, 3.0
        %v3667 = vadd.f32 %v3648, 3.0
        %v3668 = vadd.f32 %v3650, 3.0
        %v3669 = vadd.f32 %v3652, 3.0
        %v3670 = vmax.f32 %v3654, 0.0
        %v3671 = vmax.f32 %v3655, 0.0
        %v3672 = vmax.f32 %v3656, 0.0
        %v3673 = vmax.f32 %v3657, 0.0
        %v3674 = vmax.f32 %v3658, 0.0
        %v3675 = vmax.f32 %v3659, 0.0
        %v3676 = vmax.f32 %v3660, 0.0
        %v3677 = vmax.f32 %v3661, 0.0
        %v3678 = vmax.f32 %v3662, 0.0
        %v3679 = vmax.f32 %v3663, 0.0
        %v3680 = vmax.f32 %v3664, 0.0
        %v3681 = vmax.f32 %v3665, 0.0
        %v3682 = vmax.f32 %v3666, 0.0
        %v3683 = vmax.f32 %v3667, 0.0
        %v3684 = vmax.f32 %v3668, 0.0
        %v3685 = vmax.f32 %v3669, 0.0
        %v3686 = vmin.f32 %v3670, 6.0
        %v3687 = vmin.f32 %v3671, 6.0
        %v3688 = vmin.f32 %v3672, 6.0
        %v3689 = vmin.f32 %v3673, 6.0
        %v3690 = vmin.f32 %v3674, 6.0
        %v3691 = vmin.f32 %v3675, 6.0
        %v3692 = vmin.f32 %v3676, 6.0
        %v3693 = vmin.f32 %v3677, 6.0
        %v3694 = vmin.f32 %v3678, 6.0
        %v3695 = vmin.f32 %v3679, 6.0
        %v3696 = vmin.f32 %v3680, 6.0
        %v3697 = vmin.f32 %v3681, 6.0
        %v3698 = vmin.f32 %v3682, 6.0
        %v3699 = vmin.f32 %v3683, 6.0
        %v3700 = vmin.f32 %v3684, 6.0
        %v3701 = vmin.f32 %v3685, 6.0
        %v3702 = vmul.f32 %v3616, %v3686
        %v3703 = vmul.f32 %v3618, %v3687
        %v3704 = vmul.f32 %v3620, %v3688
        %v3705 = vmul.f32 %v3622, %v3689
        %v3706 = vmul.f32 %v3626, %v3690
        %v3707 = vmul.f32 %v3628, %v3691
        %v3708 = vmul.f32 %v3630, %v3692
        %v3709 = vmul.f32 %v3632, %v3693
        %v3710 = vmul.f32 %v3636, %v3694
        %v3711 = vmul.f32 %v3638, %v3695
        %v3712 = vmul.f32 %v3640, %v3696
        %v3713 = vmul.f32 %v3642, %v3697
        %v3714 = vmul.f32 %v3646, %v3698
        %v3715 = vmul.f32 %v3648, %v3699
        %v3716 = vmul.f32 %v3650, %v3700
        %v3717 = vmul.f32 %v3652, %v3701
        %v3718 = vmul.f32 %v3702, 0.16666667
        %v3719 = vmul.f32 %v3703, 0.16666667
        %v3720 = vmul.f32 %v3704, 0.16666667
        %v3721 = vmul.f32 %v3705, 0.16666667
        %v3722 = vmul.f32 %v3706, 0.16666667
        %v3723 = vmul.f32 %v3707, 0.16666667
        %v3724 = vmul.f32 %v3708, 0.16666667
        %v3725 = vmul.f32 %v3709, 0.16666667
        %v3726 = vmul.f32 %v3710, 0.16666667
        %v3727 = vmul.f32 %v3711, 0.16666667
        %v3728 = vmul.f32 %v3712, 0.16666667
        %v3729 = vmul.f32 %v3713, 0.16666667
        %v3730 = vmul.f32 %v3714, 0.16666667
        %v3731 = vmul.f32 %v3715, 0.16666667
        %v3732 = vmul.f32 %v3716, 0.16666667
        %v3733 = vmul.f32 %v3717, 0.16666667
        %3734 = vrot.lane.b32.xlu0 %v3718, 17
        %v3735 = vpop.permute.xlu0 %3734
        %3736 = vrot.lane.b32.xlu0 %v3720, 17
        %v3737 = vpop.permute.xlu0 %3736
        %3738 = vrot.lane.b32.xlu0 %v3722, 17
        %v3739 = vpop.permute.xlu0 %3738
        %3740 = vrot.lane.b32.xlu0 %v3724, 17
        %v3741 = vpop.permute.xlu0 %3740
        %3742 = vrot.lane.b32.xlu0 %v3726, 17
        %v3743 = vpop.permute.xlu0 %3742
        %3744 = vrot.lane.b32.xlu0 %v3728, 17
        %v3745 = vpop.permute.xlu0 %3744
        %3746 = vrot.lane.b32.xlu0 %v3730, 17
        %v3747 = vpop.permute.xlu0 %3746
        %3748 = vrot.lane.b32.xlu0 %v3732, 17
        %v3749 = vpop.permute.xlu0 %3748
        %3750 = vrot.lane.b32.xlu0 %v3719, 17
        %v3751 = vpop.permute.xlu0 %3750
        %3752 = vrot.lane.b32.xlu0 %v3721, 17
        %v3753 = vpop.permute.xlu0 %3752
        %3754 = vrot.lane.b32.xlu0 %v3723, 17
        %v3755 = vpop.permute.xlu0 %3754
        %3756 = vrot.lane.b32.xlu0 %v3725, 17
        %v3757 = vpop.permute.xlu0 %3756
        %3758 = vrot.lane.b32.xlu0 %v3727, 17
        %v3759 = vpop.permute.xlu0 %3758
        %3760 = vrot.lane.b32.xlu0 %v3729, 17
        %v3761 = vpop.permute.xlu0 %3760
        %3762 = vrot.lane.b32.xlu0 %v3731, 17
        %v3763 = vpop.permute.xlu0 %3762
        %3764 = vrot.lane.b32.xlu0 %v3733, 17
        %v3765 = vpop.permute.xlu0 %3764
        %v3766 = vsel %vm689, %v3735, %v3751
        %v3767 = vsel %vm689, %v3737, %v3753
        %v3768 = vsel %vm689, %v3739, %v3755
        %v3769 = vsel %vm689, %v3741, %v3757
        %v3770 = vsel %vm689, %v3743, %v3759
        %v3771 = vsel %vm689, %v3745, %v3761
        %v3772 = vsel %vm689, %v3747, %v3763
        %v3773 = vsel %vm689, %v3749, %v3765
        %v3774 = vsel %vm689, %v3751, %v3735
        %v3775 = vsel %vm689, %v3753, %v3737
        %v3776 = vsel %vm689, %v3755, %v3739
        %v3777 = vsel %vm689, %v3757, %v3741
        %v3778 = vsel %vm689, %v3759, %v3743
        %v3779 = vsel %vm689, %v3761, %v3745
        %v3780 = vsel %vm689, %v3763, %v3747
        %v3781 = vsel %vm689, %v3765, %v3749
        %v3782 = vld [vmem:[#allocation2] sm:$0xff]
        %v3783 = vld [vmem:[#allocation2 + $0x8] sm:$0xff]
        %v3784 = vld [vmem:[#allocation2 + $0x10] sm:$0xff]
        %v3785 = vld [vmem:[#allocation2 + $0x18] sm:$0xff]
        %v3786 = vld [vmem:[#allocation2 + $0x20] sm:$0xff]
        %v3787 = vld [vmem:[#allocation2 + $0x28] sm:$0xff]
        %v3788 = vld [vmem:[#allocation2 + $0x30] sm:$0xff]
        %v3789 = vld [vmem:[#allocation2 + $0x38] sm:$0xff]
        %v3790 = vld [vmem:[#allocation2 + $0x40] sm:$0xff]
        %v3791 = vld [vmem:[#allocation2 + $0x48] sm:$0xff]
        %v3792 = vld [vmem:[#allocation2 + $0x50] sm:$0xff]
        %v3793 = vld [vmem:[#allocation2 + $0x58] sm:$0xff]
        %v3794 = vld [vmem:[#allocation2 + $0x60] sm:$0xff]
        %v3795 = vld [vmem:[#allocation2 + $0x68] sm:$0xff]
        %v3796 = vld [vmem:[#allocation2 + $0x70] sm:$0xff]
        %v3797 = vld [vmem:[#allocation2 + $0x78] sm:$0xff]
        %v3798 = vmul.f32 %v3774, %v3782
        %v3799 = vmul.f32 %v3766, %v3783
        %v3800 = vmul.f32 %v3775, %v3784
        %v3801 = vmul.f32 %v3767, %v3785
        %v3802 = vmul.f32 %v3776, %v3786
        %v3803 = vmul.f32 %v3768, %v3787
        %v3804 = vmul.f32 %v3777, %v3788
        %v3805 = vmul.f32 %v3769, %v3789
        %v3806 = vmul.f32 %v3778, %v3790
        %v3807 = vmul.f32 %v3770, %v3791
        %v3808 = vmul.f32 %v3779, %v3792
        %v3809 = vmul.f32 %v3771, %v3793
        %v3810 = vmul.f32 %v3780, %v3794
        %v3811 = vmul.f32 %v3772, %v3795
        %v3812 = vmul.f32 %v3781, %v3796
        %v3813 = vmul.f32 %v3773, %v3797
        %v3814 = vadd.f32 %v3798, 0.0
        %v3815 = vadd.f32 %v3799, 0.0
        %v3816 = vadd.f32 %v3800, 0.0
        %v3817 = vadd.f32 %v3801, 0.0
        %v3818 = vadd.f32 %v3802, 0.0
        %v3819 = vadd.f32 %v3803, 0.0
        %v3820 = vadd.f32 %v3804, 0.0
        %v3821 = vadd.f32 %v3805, 0.0
        %v3822 = vadd.f32 %v3806, 0.0
        %v3823 = vadd.f32 %v3807, 0.0
        %v3824 = vadd.f32 %v3808, 0.0
        %v3825 = vadd.f32 %v3809, 0.0
        %v3826 = vadd.f32 %v3810, 0.0
        %v3827 = vadd.f32 %v3811, 0.0
        %v3828 = vadd.f32 %v3812, 0.0
        %v3829 = vadd.f32 %v3813, 0.0
        %3830 = vrot.lane.b32.xlu0 %v3718, 16
        %v3831 = vpop.permute.xlu0 %3830
        %3832 = vrot.lane.b32.xlu0 %v3720, 16
        %v3833 = vpop.permute.xlu0 %3832
        %3834 = vrot.lane.b32.xlu0 %v3722, 16
        %v3835 = vpop.permute.xlu0 %3834
        %3836 = vrot.lane.b32.xlu0 %v3724, 16
        %v3837 = vpop.permute.xlu0 %3836
        %3838 = vrot.lane.b32.xlu0 %v3726, 16
        %v3839 = vpop.permute.xlu0 %3838
        %3840 = vrot.lane.b32.xlu0 %v3728, 16
        %v3841 = vpop.permute.xlu0 %3840
        %3842 = vrot.lane.b32.xlu0 %v3730, 16
        %v3843 = vpop.permute.xlu0 %3842
        %3844 = vrot.lane.b32.xlu0 %v3732, 16
        %v3845 = vpop.permute.xlu0 %3844
        %3846 = vrot.lane.b32.xlu0 %v3719, 16
        %v3847 = vpop.permute.xlu0 %3846
        %3848 = vrot.lane.b32.xlu0 %v3721, 16
        %v3849 = vpop.permute.xlu0 %3848
        %3850 = vrot.lane.b32.xlu0 %v3723, 16
        %v3851 = vpop.permute.xlu0 %3850
        %3852 = vrot.lane.b32.xlu0 %v3725, 16
        %v3853 = vpop.permute.xlu0 %3852
        %3854 = vrot.lane.b32.xlu0 %v3727, 16
        %v3855 = vpop.permute.xlu0 %3854
        %3856 = vrot.lane.b32.xlu0 %v3729, 16
        %v3857 = vpop.permute.xlu0 %3856
        %3858 = vrot.lane.b32.xlu0 %v3731, 16
        %v3859 = vpop.permute.xlu0 %3858
        %3860 = vrot.lane.b32.xlu0 %v3733, 16
        %v3861 = vpop.permute.xlu0 %3860
        %v3862 = vsel %vm786, %v3831, %v3847
        %v3863 = vsel %vm786, %v3833, %v3849
        %v3864 = vsel %vm786, %v3835, %v3851
        %v3865 = vsel %vm786, %v3837, %v3853
        %v3866 = vsel %vm786, %v3839, %v3855
        %v3867 = vsel %vm786, %v3841, %v3857
        %v3868 = vsel %vm786, %v3843, %v3859
        %v3869 = vsel %vm786, %v3845, %v3861
        %v3870 = vsel %vm786, %v3847, %v3831
        %v3871 = vsel %vm786, %v3849, %v3833
        %v3872 = vsel %vm786, %v3851, %v3835
        %v3873 = vsel %vm786, %v3853, %v3837
        %v3874 = vsel %vm786, %v3855, %v3839
        %v3875 = vsel %vm786, %v3857, %v3841
        %v3876 = vsel %vm786, %v3859, %v3843
        %v3877 = vsel %vm786, %v3861, %v3845
        %v3878 = vld [vmem:[%s803] sm:$0xff]
        %v3879 = vld [vmem:[%s803 + $0x8] sm:$0xff]
        %v3880 = vld [vmem:[%s803 + $0x10] sm:$0xff]
        %v3881 = vld [vmem:[%s803 + $0x18] sm:$0xff]
        %v3882 = vld [vmem:[%s803 + $0x20] sm:$0xff]
        %v3883 = vld [vmem:[%s803 + $0x28] sm:$0xff]
        %v3884 = vld [vmem:[%s803 + $0x30] sm:$0xff]
        %v3885 = vld [vmem:[%s803 + $0x38] sm:$0xff]
        %v3886 = vld [vmem:[%s803 + $0x40] sm:$0xff]
        %v3887 = vld [vmem:[%s803 + $0x48] sm:$0xff]
        %v3888 = vld [vmem:[%s803 + $0x50] sm:$0xff]
        %v3889 = vld [vmem:[%s803 + $0x58] sm:$0xff]
        %v3890 = vld [vmem:[%s803 + $0x60] sm:$0xff]
        %v3891 = vld [vmem:[%s803 + $0x68] sm:$0xff]
        %v3892 = vld [vmem:[%s803 + $0x70] sm:$0xff]
        %v3893 = vld [vmem:[%s803 + $0x78] sm:$0xff]
        %v3894 = vmul.f32 %v3870, %v3878
        %v3895 = vmul.f32 %v3862, %v3879
        %v3896 = vmul.f32 %v3871, %v3880
        %v3897 = vmul.f32 %v3863, %v3881
        %v3898 = vmul.f32 %v3872, %v3882
        %v3899 = vmul.f32 %v3864, %v3883
        %v3900 = vmul.f32 %v3873, %v3884
        %v3901 = vmul.f32 %v3865, %v3885
        %v3902 = vmul.f32 %v3874, %v3886
        %v3903 = vmul.f32 %v3866, %v3887
        %v3904 = vmul.f32 %v3875, %v3888
        %v3905 = vmul.f32 %v3867, %v3889
        %v3906 = vmul.f32 %v3876, %v3890
        %v3907 = vmul.f32 %v3868, %v3891
        %v3908 = vmul.f32 %v3877, %v3892
        %v3909 = vmul.f32 %v3869, %v3893
        %v3910 = vadd.f32 %v3814, %v3894
        %v3911 = vadd.f32 %v3815, %v3895
        %v3912 = vadd.f32 %v3816, %v3896
        %v3913 = vadd.f32 %v3817, %v3897
        %v3914 = vadd.f32 %v3818, %v3898
        %v3915 = vadd.f32 %v3819, %v3899
        %v3916 = vadd.f32 %v3820, %v3900
        %v3917 = vadd.f32 %v3821, %v3901
        %v3918 = vadd.f32 %v3822, %v3902
        %v3919 = vadd.f32 %v3823, %v3903
        %v3920 = vadd.f32 %v3824, %v3904
        %v3921 = vadd.f32 %v3825, %v3905
        %v3922 = vadd.f32 %v3826, %v3906
        %v3923 = vadd.f32 %v3827, %v3907
        %v3924 = vadd.f32 %v3828, %v3908
        %v3925 = vadd.f32 %v3829, %v3909
        %3926 = vrot.lane.b32.xlu0 %v3718, 15
        %v3927 = vpop.permute.xlu0 %3926
        %3928 = vrot.lane.b32.xlu0 %v3720, 15
        %v3929 = vpop.permute.xlu0 %3928
        %3930 = vrot.lane.b32.xlu0 %v3722, 15
        %v3931 = vpop.permute.xlu0 %3930
        %3932 = vrot.lane.b32.xlu0 %v3724, 15
        %v3933 = vpop.permute.xlu0 %3932
        %3934 = vrot.lane.b32.xlu0 %v3726, 15
        %v3935 = vpop.permute.xlu0 %3934
        %3936 = vrot.lane.b32.xlu0 %v3728, 15
        %v3937 = vpop.permute.xlu0 %3936
        %3938 = vrot.lane.b32.xlu0 %v3730, 15
        %v3939 = vpop.permute.xlu0 %3938
        %3940 = vrot.lane.b32.xlu0 %v3732, 15
        %v3941 = vpop.permute.xlu0 %3940
        %3942 = vrot.lane.b32.xlu0 %v3719, 15
        %v3943 = vpop.permute.xlu0 %3942
        %3944 = vrot.lane.b32.xlu0 %v3721, 15
        %v3945 = vpop.permute.xlu0 %3944
        %3946 = vrot.lane.b32.xlu0 %v3723, 15
        %v3947 = vpop.permute.xlu0 %3946
        %3948 = vrot.lane.b32.xlu0 %v3725, 15
        %v3949 = vpop.permute.xlu0 %3948
        %3950 = vrot.lane.b32.xlu0 %v3727, 15
        %v3951 = vpop.permute.xlu0 %3950
        %3952 = vrot.lane.b32.xlu0 %v3729, 15
        %v3953 = vpop.permute.xlu0 %3952
        %3954 = vrot.lane.b32.xlu0 %v3731, 15
        %v3955 = vpop.permute.xlu0 %3954
        %3956 = vrot.lane.b32.xlu0 %v3733, 15
        %v3957 = vpop.permute.xlu0 %3956
        %v3958 = vsel %vm884, %v3927, %v3943
        %v3959 = vsel %vm884, %v3929, %v3945
        %v3960 = vsel %vm884, %v3931, %v3947
        %v3961 = vsel %vm884, %v3933, %v3949
        %v3962 = vsel %vm884, %v3935, %v3951
        %v3963 = vsel %vm884, %v3937, %v3953
        %v3964 = vsel %vm884, %v3939, %v3955
        %v3965 = vsel %vm884, %v3941, %v3957
        %v3966 = vsel %vm884, %v3943, %v3927
        %v3967 = vsel %vm884, %v3945, %v3929
        %v3968 = vsel %vm884, %v3947, %v3931
        %v3969 = vsel %vm884, %v3949, %v3933
        %v3970 = vsel %vm884, %v3951, %v3935
        %v3971 = vsel %vm884, %v3953, %v3937
        %v3972 = vsel %vm884, %v3955, %v3939
        %v3973 = vsel %vm884, %v3957, %v3941
        %v3974 = vld [vmem:[%s901] sm:$0xff]
        %v3975 = vld [vmem:[%s901 + $0x8] sm:$0xff]
        %v3976 = vld [vmem:[%s901 + $0x10] sm:$0xff]
        %v3977 = vld [vmem:[%s901 + $0x18] sm:$0xff]
        %v3978 = vld [vmem:[%s901 + $0x20] sm:$0xff]
        %v3979 = vld [vmem:[%s901 + $0x28] sm:$0xff]
        %v3980 = vld [vmem:[%s901 + $0x30] sm:$0xff]
        %v3981 = vld [vmem:[%s901 + $0x38] sm:$0xff]
        %v3982 = vld [vmem:[%s901 + $0x40] sm:$0xff]
        %v3983 = vld [vmem:[%s901 + $0x48] sm:$0xff]
        %v3984 = vld [vmem:[%s901 + $0x50] sm:$0xff]
        %v3985 = vld [vmem:[%s901 + $0x58] sm:$0xff]
        %v3986 = vld [vmem:[%s901 + $0x60] sm:$0xff]
        %v3987 = vld [vmem:[%s901 + $0x68] sm:$0xff]
        %v3988 = vld [vmem:[%s901 + $0x70] sm:$0xff]
        %v3989 = vld [vmem:[%s901 + $0x78] sm:$0xff]
        %v3990 = vmul.f32 %v3966, %v3974
        %v3991 = vmul.f32 %v3958, %v3975
        %v3992 = vmul.f32 %v3967, %v3976
        %v3993 = vmul.f32 %v3959, %v3977
        %v3994 = vmul.f32 %v3968, %v3978
        %v3995 = vmul.f32 %v3960, %v3979
        %v3996 = vmul.f32 %v3969, %v3980
        %v3997 = vmul.f32 %v3961, %v3981
        %v3998 = vmul.f32 %v3970, %v3982
        %v3999 = vmul.f32 %v3962, %v3983
        %v4000 = vmul.f32 %v3971, %v3984
        %v4001 = vmul.f32 %v3963, %v3985
        %v4002 = vmul.f32 %v3972, %v3986
        %v4003 = vmul.f32 %v3964, %v3987
        %v4004 = vmul.f32 %v3973, %v3988
        %v4005 = vmul.f32 %v3965, %v3989
        %v4006 = vadd.f32 %v3910, %v3990
        %v4007 = vadd.f32 %v3911, %v3991
        %v4008 = vadd.f32 %v3912, %v3992
        %v4009 = vadd.f32 %v3913, %v3993
        %v4010 = vadd.f32 %v3914, %v3994
        %v4011 = vadd.f32 %v3915, %v3995
        %v4012 = vadd.f32 %v3916, %v3996
        %v4013 = vadd.f32 %v3917, %v3997
        %v4014 = vadd.f32 %v3918, %v3998
        %v4015 = vadd.f32 %v3919, %v3999
        %v4016 = vadd.f32 %v3920, %v4000
        %v4017 = vadd.f32 %v3921, %v4001
        %v4018 = vadd.f32 %v3922, %v4002
        %v4019 = vadd.f32 %v3923, %v4003
        %v4020 = vadd.f32 %v3924, %v4004
        %v4021 = vadd.f32 %v3925, %v4005
        %4022 = vrot.lane.b32.xlu0 %v3718, 1
        %v4023 = vpop.permute.xlu0 %4022
        %4024 = vrot.lane.b32.xlu0 %v3720, 1
        %v4025 = vpop.permute.xlu0 %4024
        %4026 = vrot.lane.b32.xlu0 %v3722, 1
        %v4027 = vpop.permute.xlu0 %4026
        %4028 = vrot.lane.b32.xlu0 %v3724, 1
        %v4029 = vpop.permute.xlu0 %4028
        %4030 = vrot.lane.b32.xlu0 %v3726, 1
        %v4031 = vpop.permute.xlu0 %4030
        %4032 = vrot.lane.b32.xlu0 %v3728, 1
        %v4033 = vpop.permute.xlu0 %4032
        %4034 = vrot.lane.b32.xlu0 %v3730, 1
        %v4035 = vpop.permute.xlu0 %4034
        %4036 = vrot.lane.b32.xlu0 %v3732, 1
        %v4037 = vpop.permute.xlu0 %4036
        %4038 = vrot.lane.b32.xlu0 %v3719, 1
        %v4039 = vpop.permute.xlu0 %4038
        %4040 = vrot.lane.b32.xlu0 %v3721, 1
        %v4041 = vpop.permute.xlu0 %4040
        %4042 = vrot.lane.b32.xlu0 %v3723, 1
        %v4043 = vpop.permute.xlu0 %4042
        %4044 = vrot.lane.b32.xlu0 %v3725, 1
        %v4045 = vpop.permute.xlu0 %4044
        %4046 = vrot.lane.b32.xlu0 %v3727, 1
        %v4047 = vpop.permute.xlu0 %4046
        %4048 = vrot.lane.b32.xlu0 %v3729, 1
        %v4049 = vpop.permute.xlu0 %4048
        %4050 = vrot.lane.b32.xlu0 %v3731, 1
        %v4051 = vpop.permute.xlu0 %4050
        %4052 = vrot.lane.b32.xlu0 %v3733, 1
        %v4053 = vpop.permute.xlu0 %4052
        %v4054 = vsel %vm982, %v4023, %v4039
        %v4055 = vsel %vm982, %v4025, %v4041
        %v4056 = vsel %vm982, %v4027, %v4043
        %v4057 = vsel %vm982, %v4029, %v4045
        %v4058 = vsel %vm982, %v4031, %v4047
        %v4059 = vsel %vm982, %v4033, %v4049
        %v4060 = vsel %vm982, %v4035, %v4051
        %v4061 = vsel %vm982, %v4037, %v4053
        %v4062 = vsel %vm982, %v4039, %v4023
        %v4063 = vsel %vm982, %v4041, %v4025
        %v4064 = vsel %vm982, %v4043, %v4027
        %v4065 = vsel %vm982, %v4045, %v4029
        %v4066 = vsel %vm982, %v4047, %v4031
        %v4067 = vsel %vm982, %v4049, %v4033
        %v4068 = vsel %vm982, %v4051, %v4035
        %v4069 = vsel %vm982, %v4053, %v4037
        %v4070 = vld [vmem:[%s999] sm:$0xff]
        %v4071 = vld [vmem:[%s999 + $0x8] sm:$0xff]
        %v4072 = vld [vmem:[%s999 + $0x10] sm:$0xff]
        %v4073 = vld [vmem:[%s999 + $0x18] sm:$0xff]
        %v4074 = vld [vmem:[%s999 + $0x20] sm:$0xff]
        %v4075 = vld [vmem:[%s999 + $0x28] sm:$0xff]
        %v4076 = vld [vmem:[%s999 + $0x30] sm:$0xff]
        %v4077 = vld [vmem:[%s999 + $0x38] sm:$0xff]
        %v4078 = vld [vmem:[%s999 + $0x40] sm:$0xff]
        %v4079 = vld [vmem:[%s999 + $0x48] sm:$0xff]
        %v4080 = vld [vmem:[%s999 + $0x50] sm:$0xff]
        %v4081 = vld [vmem:[%s999 + $0x58] sm:$0xff]
        %v4082 = vld [vmem:[%s999 + $0x60] sm:$0xff]
        %v4083 = vld [vmem:[%s999 + $0x68] sm:$0xff]
        %v4084 = vld [vmem:[%s999 + $0x70] sm:$0xff]
        %v4085 = vld [vmem:[%s999 + $0x78] sm:$0xff]
        %v4086 = vmul.f32 %v4062, %v4070
        %v4087 = vmul.f32 %v4054, %v4071
        %v4088 = vmul.f32 %v4063, %v4072
        %v4089 = vmul.f32 %v4055, %v4073
        %v4090 = vmul.f32 %v4064, %v4074
        %v4091 = vmul.f32 %v4056, %v4075
        %v4092 = vmul.f32 %v4065, %v4076
        %v4093 = vmul.f32 %v4057, %v4077
        %v4094 = vmul.f32 %v4066, %v4078
        %v4095 = vmul.f32 %v4058, %v4079
        %v4096 = vmul.f32 %v4067, %v4080
        %v4097 = vmul.f32 %v4059, %v4081
        %v4098 = vmul.f32 %v4068, %v4082
        %v4099 = vmul.f32 %v4060, %v4083
        %v4100 = vmul.f32 %v4069, %v4084
        %v4101 = vmul.f32 %v4061, %v4085
        %v4102 = vadd.f32 %v4006, %v4086
        %v4103 = vadd.f32 %v4007, %v4087
        %v4104 = vadd.f32 %v4008, %v4088
        %v4105 = vadd.f32 %v4009, %v4089
        %v4106 = vadd.f32 %v4010, %v4090
        %v4107 = vadd.f32 %v4011, %v4091
        %v4108 = vadd.f32 %v4012, %v4092
        %v4109 = vadd.f32 %v4013, %v4093
        %v4110 = vadd.f32 %v4014, %v4094
        %v4111 = vadd.f32 %v4015, %v4095
        %v4112 = vadd.f32 %v4016, %v4096
        %v4113 = vadd.f32 %v4017, %v4097
        %v4114 = vadd.f32 %v4018, %v4098
        %v4115 = vadd.f32 %v4019, %v4099
        %v4116 = vadd.f32 %v4020, %v4100
        %v4117 = vadd.f32 %v4021, %v4101
        %v4118 = vld [vmem:[%s1048] sm:$0xff]
        %v4119 = vld [vmem:[%s1048 + $0x8] sm:$0xff]
        %v4120 = vld [vmem:[%s1048 + $0x10] sm:$0xff]
        %v4121 = vld [vmem:[%s1048 + $0x18] sm:$0xff]
        %v4122 = vld [vmem:[%s1048 + $0x20] sm:$0xff]
        %v4123 = vld [vmem:[%s1048 + $0x28] sm:$0xff]
        %v4124 = vld [vmem:[%s1048 + $0x30] sm:$0xff]
        %v4125 = vld [vmem:[%s1048 + $0x38] sm:$0xff]
        %v4126 = vld [vmem:[%s1048 + $0x40] sm:$0xff]
        %v4127 = vld [vmem:[%s1048 + $0x48] sm:$0xff]
        %v4128 = vld [vmem:[%s1048 + $0x50] sm:$0xff]
        %v4129 = vld [vmem:[%s1048 + $0x58] sm:$0xff]
        %v4130 = vld [vmem:[%s1048 + $0x60] sm:$0xff]
        %v4131 = vld [vmem:[%s1048 + $0x68] sm:$0xff]
        %v4132 = vld [vmem:[%s1048 + $0x70] sm:$0xff]
        %v4133 = vld [vmem:[%s1048 + $0x78] sm:$0xff]
        %v4134 = vmul.f32 %v3718, %v4118
        %v4135 = vmul.f32 %v3719, %v4119
        %v4136 = vmul.f32 %v3720, %v4120
        %v4137 = vmul.f32 %v3721, %v4121
        %v4138 = vmul.f32 %v3722, %v4122
        %v4139 = vmul.f32 %v3723, %v4123
        %v4140 = vmul.f32 %v3724, %v4124
        %v4141 = vmul.f32 %v3725, %v4125
        %v4142 = vmul.f32 %v3726, %v4126
        %v4143 = vmul.f32 %v3727, %v4127
        %v4144 = vmul.f32 %v3728, %v4128
        %v4145 = vmul.f32 %v3729, %v4129
        %v4146 = vmul.f32 %v3730, %v4130
        %v4147 = vmul.f32 %v3731, %v4131
        %v4148 = vmul.f32 %v3732, %v4132
        %v4149 = vmul.f32 %v3733, %v4133
        %v4150 = vadd.f32 %v4102, %v4134
        %v4151 = vadd.f32 %v4103, %v4135
        %v4152 = vadd.f32 %v4104, %v4136
        %v4153 = vadd.f32 %v4105, %v4137
        %v4154 = vadd.f32 %v4106, %v4138
        %v4155 = vadd.f32 %v4107, %v4139
        %v4156 = vadd.f32 %v4108, %v4140
        %v4157 = vadd.f32 %v4109, %v4141
        %v4158 = vadd.f32 %v4110, %v4142
        %v4159 = vadd.f32 %v4111, %v4143
        %v4160 = vadd.f32 %v4112, %v4144
        %v4161 = vadd.f32 %v4113, %v4145
        %v4162 = vadd.f32 %v4114, %v4146
        %v4163 = vadd.f32 %v4115, %v4147
        %v4164 = vadd.f32 %v4116, %v4148
        %v4165 = vadd.f32 %v4117, %v4149
        %4166 = vrot.lane.b32.xlu0 %v3718, 127
        %v4167 = vpop.permute.xlu0 %4166
        %4168 = vrot.lane.b32.xlu0 %v3720, 127
        %v4169 = vpop.permute.xlu0 %4168
        %4170 = vrot.lane.b32.xlu0 %v3722, 127
        %v4171 = vpop.permute.xlu0 %4170
        %4172 = vrot.lane.b32.xlu0 %v3724, 127
        %v4173 = vpop.permute.xlu0 %4172
        %4174 = vrot.lane.b32.xlu0 %v3726, 127
        %v4175 = vpop.permute.xlu0 %4174
        %4176 = vrot.lane.b32.xlu0 %v3728, 127
        %v4177 = vpop.permute.xlu0 %4176
        %4178 = vrot.lane.b32.xlu0 %v3730, 127
        %v4179 = vpop.permute.xlu0 %4178
        %4180 = vrot.lane.b32.xlu0 %v3732, 127
        %v4181 = vpop.permute.xlu0 %4180
        %4182 = vrot.lane.b32.xlu0 %v3719, 127
        %v4183 = vpop.permute.xlu0 %4182
        %4184 = vrot.lane.b32.xlu0 %v3721, 127
        %v4185 = vpop.permute.xlu0 %4184
        %4186 = vrot.lane.b32.xlu0 %v3723, 127
        %v4187 = vpop.permute.xlu0 %4186
        %4188 = vrot.lane.b32.xlu0 %v3725, 127
        %v4189 = vpop.permute.xlu0 %4188
        %4190 = vrot.lane.b32.xlu0 %v3727, 127
        %v4191 = vpop.permute.xlu0 %4190
        %4192 = vrot.lane.b32.xlu0 %v3729, 127
        %v4193 = vpop.permute.xlu0 %4192
        %4194 = vrot.lane.b32.xlu0 %v3731, 127
        %v4195 = vpop.permute.xlu0 %4194
        %4196 = vrot.lane.b32.xlu0 %v3733, 127
        %v4197 = vpop.permute.xlu0 %4196
        %v4198 = vsel %vm1129, %v4167, %v4183
        %v4199 = vsel %vm1129, %v4169, %v4185
        %v4200 = vsel %vm1129, %v4171, %v4187
        %v4201 = vsel %vm1129, %v4173, %v4189
        %v4202 = vsel %vm1129, %v4175, %v4191
        %v4203 = vsel %vm1129, %v4177, %v4193
        %v4204 = vsel %vm1129, %v4179, %v4195
        %v4205 = vsel %vm1129, %v4181, %v4197
        %v4206 = vsel %vm1129, %v4183, %v4167
        %v4207 = vsel %vm1129, %v4185, %v4169
        %v4208 = vsel %vm1129, %v4187, %v4171
        %v4209 = vsel %vm1129, %v4189, %v4173
        %v4210 = vsel %vm1129, %v4191, %v4175
        %v4211 = vsel %vm1129, %v4193, %v4177
        %v4212 = vsel %vm1129, %v4195, %v4179
        %v4213 = vsel %vm1129, %v4197, %v4181
        %v4214 = vld [vmem:[%s1146] sm:$0xff]
        %v4215 = vld [vmem:[%s1146 + $0x8] sm:$0xff]
        %v4216 = vld [vmem:[%s1146 + $0x10] sm:$0xff]
        %v4217 = vld [vmem:[%s1146 + $0x18] sm:$0xff]
        %v4218 = vld [vmem:[%s1146 + $0x20] sm:$0xff]
        %v4219 = vld [vmem:[%s1146 + $0x28] sm:$0xff]
        %v4220 = vld [vmem:[%s1146 + $0x30] sm:$0xff]
        %v4221 = vld [vmem:[%s1146 + $0x38] sm:$0xff]
        %v4222 = vld [vmem:[%s1146 + $0x40] sm:$0xff]
        %v4223 = vld [vmem:[%s1146 + $0x48] sm:$0xff]
        %v4224 = vld [vmem:[%s1146 + $0x50] sm:$0xff]
        %v4225 = vld [vmem:[%s1146 + $0x58] sm:$0xff]
        %v4226 = vld [vmem:[%s1146 + $0x60] sm:$0xff]
        %v4227 = vld [vmem:[%s1146 + $0x68] sm:$0xff]
        %v4228 = vld [vmem:[%s1146 + $0x70] sm:$0xff]
        %v4229 = vld [vmem:[%s1146 + $0x78] sm:$0xff]
        %v4230 = vmul.f32 %v4198, %v4214
        %v4231 = vmul.f32 %v4206, %v4215
        %v4232 = vmul.f32 %v4199, %v4216
        %v4233 = vmul.f32 %v4207, %v4217
        %v4234 = vmul.f32 %v4200, %v4218
        %v4235 = vmul.f32 %v4208, %v4219
        %v4236 = vmul.f32 %v4201, %v4220
        %v4237 = vmul.f32 %v4209, %v4221
        %v4238 = vmul.f32 %v4202, %v4222
        %v4239 = vmul.f32 %v4210, %v4223
        %v4240 = vmul.f32 %v4203, %v4224
        %v4241 = vmul.f32 %v4211, %v4225
        %v4242 = vmul.f32 %v4204, %v4226
        %v4243 = vmul.f32 %v4212, %v4227
        %v4244 = vmul.f32 %v4205, %v4228
        %v4245 = vmul.f32 %v4213, %v4229
        %v4246 = vadd.f32 %v4150, %v4230
        %v4247 = vadd.f32 %v4151, %v4231
        %v4248 = vadd.f32 %v4152, %v4232
        %v4249 = vadd.f32 %v4153, %v4233
        %v4250 = vadd.f32 %v4154, %v4234
        %v4251 = vadd.f32 %v4155, %v4235
        %v4252 = vadd.f32 %v4156, %v4236
        %v4253 = vadd.f32 %v4157, %v4237
        %v4254 = vadd.f32 %v4158, %v4238
        %v4255 = vadd.f32 %v4159, %v4239
        %v4256 = vadd.f32 %v4160, %v4240
        %v4257 = vadd.f32 %v4161, %v4241
        %v4258 = vadd.f32 %v4162, %v4242
        %v4259 = vadd.f32 %v4163, %v4243
        %v4260 = vadd.f32 %v4164, %v4244
        %v4261 = vadd.f32 %v4165, %v4245
        %4262 = vrot.lane.b32.xlu0 %v3718, 113
        %v4263 = vpop.permute.xlu0 %4262
        %4264 = vrot.lane.b32.xlu0 %v3720, 113
        %v4265 = vpop.permute.xlu0 %4264
        %4266 = vrot.lane.b32.xlu0 %v3722, 113
        %v4267 = vpop.permute.xlu0 %4266
        %4268 = vrot.lane.b32.xlu0 %v3724, 113
        %v4269 = vpop.permute.xlu0 %4268
        %4270 = vrot.lane.b32.xlu0 %v3726, 113
        %v4271 = vpop.permute.xlu0 %4270
        %4272 = vrot.lane.b32.xlu0 %v3728, 113
        %v4273 = vpop.permute.xlu0 %4272
        %4274 = vrot.lane.b32.xlu0 %v3730, 113
        %v4275 = vpop.permute.xlu0 %4274
        %4276 = vrot.lane.b32.xlu0 %v3732, 113
        %v4277 = vpop.permute.xlu0 %4276
        %4278 = vrot.lane.b32.xlu0 %v3719, 113
        %v4279 = vpop.permute.xlu0 %4278
        %4280 = vrot.lane.b32.xlu0 %v3721, 113
        %v4281 = vpop.permute.xlu0 %4280
        %4282 = vrot.lane.b32.xlu0 %v3723, 113
        %v4283 = vpop.permute.xlu0 %4282
        %4284 = vrot.lane.b32.xlu0 %v3725, 113
        %v4285 = vpop.permute.xlu0 %4284
        %4286 = vrot.lane.b32.xlu0 %v3727, 113
        %v4287 = vpop.permute.xlu0 %4286
        %4288 = vrot.lane.b32.xlu0 %v3729, 113
        %v4289 = vpop.permute.xlu0 %4288
        %4290 = vrot.lane.b32.xlu0 %v3731, 113
        %v4291 = vpop.permute.xlu0 %4290
        %4292 = vrot.lane.b32.xlu0 %v3733, 113
        %v4293 = vpop.permute.xlu0 %4292
        %v4294 = vsel %vm1227, %v4263, %v4279
        %v4295 = vsel %vm1227, %v4265, %v4281
        %v4296 = vsel %vm1227, %v4267, %v4283
        %v4297 = vsel %vm1227, %v4269, %v4285
        %v4298 = vsel %vm1227, %v4271, %v4287
        %v4299 = vsel %vm1227, %v4273, %v4289
        %v4300 = vsel %vm1227, %v4275, %v4291
        %v4301 = vsel %vm1227, %v4277, %v4293
        %v4302 = vsel %vm1227, %v4279, %v4263
        %v4303 = vsel %vm1227, %v4281, %v4265
        %v4304 = vsel %vm1227, %v4283, %v4267
        %v4305 = vsel %vm1227, %v4285, %v4269
        %v4306 = vsel %vm1227, %v4287, %v4271
        %v4307 = vsel %vm1227, %v4289, %v4273
        %v4308 = vsel %vm1227, %v4291, %v4275
        %v4309 = vsel %vm1227, %v4293, %v4277
        %v4310 = vld [vmem:[%s1244] sm:$0xff]
        %v4311 = vld [vmem:[%s1244 + $0x8] sm:$0xff]
        %v4312 = vld [vmem:[%s1244 + $0x10] sm:$0xff]
        %v4313 = vld [vmem:[%s1244 + $0x18] sm:$0xff]
        %v4314 = vld [vmem:[%s1244 + $0x20] sm:$0xff]
        %v4315 = vld [vmem:[%s1244 + $0x28] sm:$0xff]
        %v4316 = vld [vmem:[%s1244 + $0x30] sm:$0xff]
        %v4317 = vld [vmem:[%s1244 + $0x38] sm:$0xff]
        %v4318 = vld [vmem:[%s1244 + $0x40] sm:$0xff]
        %v4319 = vld [vmem:[%s1244 + $0x48] sm:$0xff]
        %v4320 = vld [vmem:[%s1244 + $0x50] sm:$0xff]
        %v4321 = vld [vmem:[%s1244 + $0x58] sm:$0xff]
        %v4322 = vld [vmem:[%s1244 + $0x60] sm:$0xff]
        %v4323 = vld [vmem:[%s1244 + $0x68] sm:$0xff]
        %v4324 = vld [vmem:[%s1244 + $0x70] sm:$0xff]
        %v4325 = vld [vmem:[%s1244 + $0x78] sm:$0xff]
        %v4326 = vmul.f32 %v4294, %v4310
        %v4327 = vmul.f32 %v4302, %v4311
        %v4328 = vmul.f32 %v4295, %v4312
        %v4329 = vmul.f32 %v4303, %v4313
        %v4330 = vmul.f32 %v4296, %v4314
        %v4331 = vmul.f32 %v4304, %v4315
        %v4332 = vmul.f32 %v4297, %v4316
        %v4333 = vmul.f32 %v4305, %v4317
        %v4334 = vmul.f32 %v4298, %v4318
        %v4335 = vmul.f32 %v4306, %v4319
        %v4336 = vmul.f32 %v4299, %v4320
        %v4337 = vmul.f32 %v4307, %v4321
        %v4338 = vmul.f32 %v4300, %v4322
        %v4339 = vmul.f32 %v4308, %v4323
        %v4340 = vmul.f32 %v4301, %v4324
        %v4341 = vmul.f32 %v4309, %v4325
        %v4342 = vadd.f32 %v4246, %v4326
        %v4343 = vadd.f32 %v4247, %v4327
        %v4344 = vadd.f32 %v4248, %v4328
        %v4345 = vadd.f32 %v4249, %v4329
        %v4346 = vadd.f32 %v4250, %v4330
        %v4347 = vadd.f32 %v4251, %v4331
        %v4348 = vadd.f32 %v4252, %v4332
        %v4349 = vadd.f32 %v4253, %v4333
        %v4350 = vadd.f32 %v4254, %v4334
        %v4351 = vadd.f32 %v4255, %v4335
        %v4352 = vadd.f32 %v4256, %v4336
        %v4353 = vadd.f32 %v4257, %v4337
        %v4354 = vadd.f32 %v4258, %v4338
        %v4355 = vadd.f32 %v4259, %v4339
        %v4356 = vadd.f32 %v4260, %v4340
        %v4357 = vadd.f32 %v4261, %v4341
        %4358 = vrot.lane.b32.xlu0 %v3718, 112
        %v4359 = vpop.permute.xlu0 %4358
        %4360 = vrot.lane.b32.xlu0 %v3720, 112
        %v4361 = vpop.permute.xlu0 %4360
        %4362 = vrot.lane.b32.xlu0 %v3722, 112
        %v4363 = vpop.permute.xlu0 %4362
        %4364 = vrot.lane.b32.xlu0 %v3724, 112
        %v4365 = vpop.permute.xlu0 %4364
        %4366 = vrot.lane.b32.xlu0 %v3726, 112
        %v4367 = vpop.permute.xlu0 %4366
        %4368 = vrot.lane.b32.xlu0 %v3728, 112
        %v4369 = vpop.permute.xlu0 %4368
        %4370 = vrot.lane.b32.xlu0 %v3730, 112
        %v4371 = vpop.permute.xlu0 %4370
        %4372 = vrot.lane.b32.xlu0 %v3732, 112
        %v4373 = vpop.permute.xlu0 %4372
        %4374 = vrot.lane.b32.xlu0 %v3719, 112
        %v4375 = vpop.permute.xlu0 %4374
        %4376 = vrot.lane.b32.xlu0 %v3721, 112
        %v4377 = vpop.permute.xlu0 %4376
        %4378 = vrot.lane.b32.xlu0 %v3723, 112
        %v4379 = vpop.permute.xlu0 %4378
        %4380 = vrot.lane.b32.xlu0 %v3725, 112
        %v4381 = vpop.permute.xlu0 %4380
        %4382 = vrot.lane.b32.xlu0 %v3727, 112
        %v4383 = vpop.permute.xlu0 %4382
        %4384 = vrot.lane.b32.xlu0 %v3729, 112
        %v4385 = vpop.permute.xlu0 %4384
        %4386 = vrot.lane.b32.xlu0 %v3731, 112
        %v4387 = vpop.permute.xlu0 %4386
        %4388 = vrot.lane.b32.xlu0 %v3733, 112
        %v4389 = vpop.permute.xlu0 %4388
        %v4390 = vsel %vm1325, %v4359, %v4375
        %v4391 = vsel %vm1325, %v4361, %v4377
        %v4392 = vsel %vm1325, %v4363, %v4379
        %v4393 = vsel %vm1325, %v4365, %v4381
        %v4394 = vsel %vm1325, %v4367, %v4383
        %v4395 = vsel %vm1325, %v4369, %v4385
        %v4396 = vsel %vm1325, %v4371, %v4387
        %v4397 = vsel %vm1325, %v4373, %v4389
        %v4398 = vsel %vm1325, %v4375, %v4359
        %v4399 = vsel %vm1325, %v4377, %v4361
        %v4400 = vsel %vm1325, %v4379, %v4363
        %v4401 = vsel %vm1325, %v4381, %v4365
        %v4402 = vsel %vm1325, %v4383, %v4367
        %v4403 = vsel %vm1325, %v4385, %v4369
        %v4404 = vsel %vm1325, %v4387, %v4371
        %v4405 = vsel %vm1325, %v4389, %v4373
        %v4406 = vld [vmem:[%s1342] sm:$0xff]
        %v4407 = vld [vmem:[%s1342 + $0x8] sm:$0xff]
        %v4408 = vld [vmem:[%s1342 + $0x10] sm:$0xff]
        %v4409 = vld [vmem:[%s1342 + $0x18] sm:$0xff]
        %v4410 = vld [vmem:[%s1342 + $0x20] sm:$0xff]
        %v4411 = vld [vmem:[%s1342 + $0x28] sm:$0xff]
        %v4412 = vld [vmem:[%s1342 + $0x30] sm:$0xff]
        %v4413 = vld [vmem:[%s1342 + $0x38] sm:$0xff]
        %v4414 = vld [vmem:[%s1342 + $0x40] sm:$0xff]
        %v4415 = vld [vmem:[%s1342 + $0x48] sm:$0xff]
        %v4416 = vld [vmem:[%s1342 + $0x50] sm:$0xff]
        %v4417 = vld [vmem:[%s1342 + $0x58] sm:$0xff]
        %v4418 = vld [vmem:[%s1342 + $0x60] sm:$0xff]
        %v4419 = vld [vmem:[%s1342 + $0x68] sm:$0xff]
        %v4420 = vld [vmem:[%s1342 + $0x70] sm:$0xff]
        %v4421 = vld [vmem:[%s1342 + $0x78] sm:$0xff]
        %v4422 = vmul.f32 %v4390, %v4406
        %v4423 = vmul.f32 %v4398, %v4407
        %v4424 = vmul.f32 %v4391, %v4408
        %v4425 = vmul.f32 %v4399, %v4409
        %v4426 = vmul.f32 %v4392, %v4410
        %v4427 = vmul.f32 %v4400, %v4411
        %v4428 = vmul.f32 %v4393, %v4412
        %v4429 = vmul.f32 %v4401, %v4413
        %v4430 = vmul.f32 %v4394, %v4414
        %v4431 = vmul.f32 %v4402, %v4415
        %v4432 = vmul.f32 %v4395, %v4416
        %v4433 = vmul.f32 %v4403, %v4417
        %v4434 = vmul.f32 %v4396, %v4418
        %v4435 = vmul.f32 %v4404, %v4419
        %v4436 = vmul.f32 %v4397, %v4420
        %v4437 = vmul.f32 %v4405, %v4421
        %v4438 = vadd.f32 %v4342, %v4422
        %v4439 = vadd.f32 %v4343, %v4423
        %v4440 = vadd.f32 %v4344, %v4424
        %v4441 = vadd.f32 %v4345, %v4425
        %v4442 = vadd.f32 %v4346, %v4426
        %v4443 = vadd.f32 %v4347, %v4427
        %v4444 = vadd.f32 %v4348, %v4428
        %v4445 = vadd.f32 %v4349, %v4429
        %v4446 = vadd.f32 %v4350, %v4430
        %v4447 = vadd.f32 %v4351, %v4431
        %v4448 = vadd.f32 %v4352, %v4432
        %v4449 = vadd.f32 %v4353, %v4433
        %v4450 = vadd.f32 %v4354, %v4434
        %v4451 = vadd.f32 %v4355, %v4435
        %v4452 = vadd.f32 %v4356, %v4436
        %v4453 = vadd.f32 %v4357, %v4437
        %4454 = vrot.lane.b32.xlu0 %v3718, 111
        %v4455 = vpop.permute.xlu0 %4454
        %4456 = vrot.lane.b32.xlu0 %v3720, 111
        %v4457 = vpop.permute.xlu0 %4456
        %4458 = vrot.lane.b32.xlu0 %v3722, 111
        %v4459 = vpop.permute.xlu0 %4458
        %4460 = vrot.lane.b32.xlu0 %v3724, 111
        %v4461 = vpop.permute.xlu0 %4460
        %4462 = vrot.lane.b32.xlu0 %v3726, 111
        %v4463 = vpop.permute.xlu0 %4462
        %4464 = vrot.lane.b32.xlu0 %v3728, 111
        %v4465 = vpop.permute.xlu0 %4464
        %4466 = vrot.lane.b32.xlu0 %v3730, 111
        %v4467 = vpop.permute.xlu0 %4466
        %4468 = vrot.lane.b32.xlu0 %v3732, 111
        %v4469 = vpop.permute.xlu0 %4468
        %4470 = vrot.lane.b32.xlu0 %v3719, 111
        %v4471 = vpop.permute.xlu0 %4470
        %4472 = vrot.lane.b32.xlu0 %v3721, 111
        %v4473 = vpop.permute.xlu0 %4472
        %4474 = vrot.lane.b32.xlu0 %v3723, 111
        %v4475 = vpop.permute.xlu0 %4474
        %4476 = vrot.lane.b32.xlu0 %v3725, 111
        %v4477 = vpop.permute.xlu0 %4476
        %4478 = vrot.lane.b32.xlu0 %v3727, 111
        %v4479 = vpop.permute.xlu0 %4478
        %4480 = vrot.lane.b32.xlu0 %v3729, 111
        %v4481 = vpop.permute.xlu0 %4480
        %4482 = vrot.lane.b32.xlu0 %v3731, 111
        %v4483 = vpop.permute.xlu0 %4482
        %4484 = vrot.lane.b32.xlu0 %v3733, 111
        %v4485 = vpop.permute.xlu0 %4484
        %v4486 = vsel %vm1423, %v4455, %v4471
        %v4487 = vsel %vm1423, %v4457, %v4473
        %v4488 = vsel %vm1423, %v4459, %v4475
        %v4489 = vsel %vm1423, %v4461, %v4477
        %v4490 = vsel %vm1423, %v4463, %v4479
        %v4491 = vsel %vm1423, %v4465, %v4481
        %v4492 = vsel %vm1423, %v4467, %v4483
        %v4493 = vsel %vm1423, %v4469, %v4485
        %v4494 = vsel %vm1423, %v4471, %v4455
        %v4495 = vsel %vm1423, %v4473, %v4457
        %v4496 = vsel %vm1423, %v4475, %v4459
        %v4497 = vsel %vm1423, %v4477, %v4461
        %v4498 = vsel %vm1423, %v4479, %v4463
        %v4499 = vsel %vm1423, %v4481, %v4465
        %v4500 = vsel %vm1423, %v4483, %v4467
        %v4501 = vsel %vm1423, %v4485, %v4469
        %v4502 = vld [vmem:[%s1440] sm:$0xff]
        %v4503 = vld [vmem:[%s1440 + $0x8] sm:$0xff]
        %v4504 = vld [vmem:[%s1440 + $0x10] sm:$0xff]
        %v4505 = vld [vmem:[%s1440 + $0x18] sm:$0xff]
        %v4506 = vld [vmem:[%s1440 + $0x20] sm:$0xff]
        %v4507 = vld [vmem:[%s1440 + $0x28] sm:$0xff]
        %v4508 = vld [vmem:[%s1440 + $0x30] sm:$0xff]
        %v4509 = vld [vmem:[%s1440 + $0x38] sm:$0xff]
        %v4510 = vld [vmem:[%s1440 + $0x40] sm:$0xff]
        %v4511 = vld [vmem:[%s1440 + $0x48] sm:$0xff]
        %v4512 = vld [vmem:[%s1440 + $0x50] sm:$0xff]
        %v4513 = vld [vmem:[%s1440 + $0x58] sm:$0xff]
        %v4514 = vld [vmem:[%s1440 + $0x60] sm:$0xff]
        %v4515 = vld [vmem:[%s1440 + $0x68] sm:$0xff]
        %v4516 = vld [vmem:[%s1440 + $0x70] sm:$0xff]
        %v4517 = vld [vmem:[%s1440 + $0x78] sm:$0xff]
        %v4518 = vmul.f32 %v4486, %v4502
        %v4519 = vmul.f32 %v4494, %v4503
        %v4520 = vmul.f32 %v4487, %v4504
        %v4521 = vmul.f32 %v4495, %v4505
        %v4522 = vmul.f32 %v4488, %v4506
        %v4523 = vmul.f32 %v4496, %v4507
        %v4524 = vmul.f32 %v4489, %v4508
        %v4525 = vmul.f32 %v4497, %v4509
        %v4526 = vmul.f32 %v4490, %v4510
        %v4527 = vmul.f32 %v4498, %v4511
        %v4528 = vmul.f32 %v4491, %v4512
        %v4529 = vmul.f32 %v4499, %v4513
        %v4530 = vmul.f32 %v4492, %v4514
        %v4531 = vmul.f32 %v4500, %v4515
        %v4532 = vmul.f32 %v4493, %v4516
        %v4533 = vmul.f32 %v4501, %v4517
        %v4534 = vadd.f32 %v4438, %v4518
        %v4535 = vadd.f32 %v4439, %v4519
        %v4536 = vadd.f32 %v4440, %v4520
        %v4537 = vadd.f32 %v4441, %v4521
        %v4538 = vadd.f32 %v4442, %v4522
        %v4539 = vadd.f32 %v4443, %v4523
        %v4540 = vadd.f32 %v4444, %v4524
        %v4541 = vadd.f32 %v4445, %v4525
        %v4542 = vadd.f32 %v4446, %v4526
        %v4543 = vadd.f32 %v4447, %v4527
        %v4544 = vadd.f32 %v4448, %v4528
        %v4545 = vadd.f32 %v4449, %v4529
        %v4546 = vadd.f32 %v4450, %v4530
        %v4547 = vadd.f32 %v4451, %v4531
        %v4548 = vadd.f32 %v4452, %v4532
        %v4549 = vadd.f32 %v4453, %v4533
        %v4550 = vld [vmem:[%s4] sm:$0xff]
        %v4551 = vld [vmem:[%s4 + $0x8] sm:$0xff]
        %v4552 = vld [vmem:[%s4 + $0x10] sm:$0xff]
        %v4553 = vld [vmem:[%s4 + $0x18] sm:$0xff]
        %v4554 = vld [vmem:[%s4 + $0x20] sm:$0xff]
        %v4555 = vld [vmem:[%s4 + $0x28] sm:$0xff]
        %v4556 = vld [vmem:[%s4 + $0x30] sm:$0xff]
        %v4557 = vld [vmem:[%s4 + $0x38] sm:$0xff]
        %4559 = vset.pattern.permute.xlu0 0
        %4560 = vperm.xlu0 %4559, %v4550
        %v4561 = vpop.permute.xlu0 %4560
        %4564 = vset.pattern.permute.xlu0 0
        %4565 = vperm.xlu0 %4564, %v4551
        %v4566 = vpop.permute.xlu0 %4565
        %4569 = vset.pattern.permute.xlu0 0
        %4570 = vperm.xlu0 %4569, %v4552
        %v4571 = vpop.permute.xlu0 %4570
        %4574 = vset.pattern.permute.xlu0 0
        %4575 = vperm.xlu0 %4574, %v4553
        %v4576 = vpop.permute.xlu0 %4575
        %4579 = vset.pattern.permute.xlu0 0
        %4580 = vperm.xlu0 %4579, %v4554
        %v4581 = vpop.permute.xlu0 %4580
        %4584 = vset.pattern.permute.xlu0 0
        %4585 = vperm.xlu0 %4584, %v4555
        %v4586 = vpop.permute.xlu0 %4585
        %4589 = vset.pattern.permute.xlu0 0
        %4590 = vperm.xlu0 %4589, %v4556
        %v4591 = vpop.permute.xlu0 %4590
        %4594 = vset.pattern.permute.xlu0 0
        %4595 = vperm.xlu0 %4594, %v4557
        %v4596 = vpop.permute.xlu0 %4595
        %v4598 = vadd.f32 %v4534, %v4561
        %v4599 = vadd.f32 %v4535, %v4561
        %v4600 = vadd.f32 %v4536, %v4566
        %v4601 = vadd.f32 %v4537, %v4566
        %v4602 = vadd.f32 %v4538, %v4571
        %v4603 = vadd.f32 %v4539, %v4571
        %v4604 = vadd.f32 %v4540, %v4576
        %v4605 = vadd.f32 %v4541, %v4576
        %v4606 = vadd.f32 %v4542, %v4581
        %v4607 = vadd.f32 %v4543, %v4581
        %v4608 = vadd.f32 %v4544, %v4586
        %v4609 = vadd.f32 %v4545, %v4586
        %v4610 = vadd.f32 %v4546, %v4591
        %v4611 = vadd.f32 %v4547, %v4591
        %v4612 = vadd.f32 %v4548, %v4596
        %v4613 = vadd.f32 %v4549, %v4596
        %v4614 = vadd.f32 %v4598, 3.0
        %v4615 = vadd.f32 %v4599, 3.0
        %v4616 = vadd.f32 %v4600, 3.0
        %v4617 = vadd.f32 %v4601, 3.0
        %v4618 = vadd.f32 %v4602, 3.0
        %v4619 = vadd.f32 %v4603, 3.0
        %v4620 = vadd.f32 %v4604, 3.0
        %v4621 = vadd.f32 %v4605, 3.0
        %v4622 = vadd.f32 %v4606, 3.0
        %v4623 = vadd.f32 %v4607, 3.0
        %v4624 = vadd.f32 %v4608, 3.0
        %v4625 = vadd.f32 %v4609, 3.0
        %v4626 = vadd.f32 %v4610, 3.0
        %v4627 = vadd.f32 %v4611, 3.0
        %v4628 = vadd.f32 %v4612, 3.0
        %v4629 = vadd.f32 %v4613, 3.0
        %v4630 = vmax.f32 %v4614, 0.0
        %v4631 = vmax.f32 %v4615, 0.0
        %v4632 = vmax.f32 %v4616, 0.0
        %v4633 = vmax.f32 %v4617, 0.0
        %v4634 = vmax.f32 %v4618, 0.0
        %v4635 = vmax.f32 %v4619, 0.0
        %v4636 = vmax.f32 %v4620, 0.0
        %v4637 = vmax.f32 %v4621, 0.0
        %v4638 = vmax.f32 %v4622, 0.0
        %v4639 = vmax.f32 %v4623, 0.0
        %v4640 = vmax.f32 %v4624, 0.0
        %v4641 = vmax.f32 %v4625, 0.0
        %v4642 = vmax.f32 %v4626, 0.0
        %v4643 = vmax.f32 %v4627, 0.0
        %v4644 = vmax.f32 %v4628, 0.0
        %v4645 = vmax.f32 %v4629, 0.0
        %v4646 = vmin.f32 %v4630, 6.0
        %v4647 = vmin.f32 %v4631, 6.0
        %v4648 = vmin.f32 %v4632, 6.0
        %v4649 = vmin.f32 %v4633, 6.0
        %v4650 = vmin.f32 %v4634, 6.0
        %v4651 = vmin.f32 %v4635, 6.0
        %v4652 = vmin.f32 %v4636, 6.0
        %v4653 = vmin.f32 %v4637, 6.0
        %v4654 = vmin.f32 %v4638, 6.0
        %v4655 = vmin.f32 %v4639, 6.0
        %v4656 = vmin.f32 %v4640, 6.0
        %v4657 = vmin.f32 %v4641, 6.0
        %v4658 = vmin.f32 %v4642, 6.0
        %v4659 = vmin.f32 %v4643, 6.0
        %v4660 = vmin.f32 %v4644, 6.0
        %v4661 = vmin.f32 %v4645, 6.0
        %v4662 = vmul.f32 %v4598, %v4646
        %v4663 = vmul.f32 %v4599, %v4647
        %v4664 = vmul.f32 %v4600, %v4648
        %v4665 = vmul.f32 %v4601, %v4649
        %v4666 = vmul.f32 %v4602, %v4650
        %v4667 = vmul.f32 %v4603, %v4651
        %v4668 = vmul.f32 %v4604, %v4652
        %v4669 = vmul.f32 %v4605, %v4653
        %v4670 = vmul.f32 %v4606, %v4654
        %v4671 = vmul.f32 %v4607, %v4655
        %v4672 = vmul.f32 %v4608, %v4656
        %v4673 = vmul.f32 %v4609, %v4657
        %v4674 = vmul.f32 %v4610, %v4658
        %v4675 = vmul.f32 %v4611, %v4659
        %v4676 = vmul.f32 %v4612, %v4660
        %v4677 = vmul.f32 %v4613, %v4661
        %v4678 = vmul.f32 %v4662, 0.16666667
        %v4679 = vmul.f32 %v4663, 0.16666667
        %v4680 = vmul.f32 %v4664, 0.16666667
        %v4681 = vmul.f32 %v4665, 0.16666667
        %v4682 = vmul.f32 %v4666, 0.16666667
        %v4683 = vmul.f32 %v4667, 0.16666667
        %v4684 = vmul.f32 %v4668, 0.16666667
        %v4685 = vmul.f32 %v4669, 0.16666667
        %v4686 = vmul.f32 %v4670, 0.16666667
        %v4687 = vmul.f32 %v4671, 0.16666667
        %v4688 = vmul.f32 %v4672, 0.16666667
        %v4689 = vmul.f32 %v4673, 0.16666667
        %v4690 = vmul.f32 %v4674, 0.16666667
        %v4691 = vmul.f32 %v4675, 0.16666667
        %v4692 = vmul.f32 %v4676, 0.16666667
        %v4693 = vmul.f32 %v4677, 0.16666667
        %v4694 = vadd.f32 %v4678, %v4679
        %4695 = vadd.xlane.f32.xlu0 %v4694
        %v4696 = vpop.xlane.xlu0 %4695
        %v4697 = vadd.f32 %v4680, %v4681
        %4698 = vadd.xlane.f32.xlu0 %v4697
        %v4699 = vpop.xlane.xlu0 %4698
        %v4700 = vadd.f32 %v4682, %v4683
        %4701 = vadd.xlane.f32.xlu0 %v4700
        %v4702 = vpop.xlane.xlu0 %4701
        %v4703 = vadd.f32 %v4684, %v4685
        %4704 = vadd.xlane.f32.xlu0 %v4703
        %v4705 = vpop.xlane.xlu0 %4704
        %v4706 = vadd.f32 %v4686, %v4687
        %4707 = vadd.xlane.f32.xlu0 %v4706
        %v4708 = vpop.xlane.xlu0 %4707
        %v4709 = vadd.f32 %v4688, %v4689
        %4710 = vadd.xlane.f32.xlu0 %v4709
        %v4711 = vpop.xlane.xlu0 %4710
        %v4712 = vadd.f32 %v4690, %v4691
        %4713 = vadd.xlane.f32.xlu0 %v4712
        %v4714 = vpop.xlane.xlu0 %4713
        %v4715 = vadd.f32 %v4692, %v4693
        %4716 = vadd.xlane.f32.xlu0 %v4715
        %v4717 = vpop.xlane.xlu0 %4716
        %v4718 = vmul.f32 %v4696, %v1657
        %v4719 = vmul.f32 %v4699, %v1657
        %v4720 = vmul.f32 %v4702, %v1657
        %v4721 = vmul.f32 %v4705, %v1657
        %v4722 = vmul.f32 %v4708, %v1657
        %v4723 = vmul.f32 %v4711, %v1657
        %v4724 = vmul.f32 %v4714, %v1657
        %v4725 = vmul.f32 %v4717, %v1657
        %v4726 = vld [vmem:[%s5] sm:$0xff]
        %v4727 = vld [vmem:[%s5 + $0x8] sm:$0xff]
        %v4728 = vld [vmem:[%s5 + $0x10] sm:$0xff]
        %v4729 = vld [vmem:[%s5 + $0x18] sm:$0xff]
        %v4730 = vld [vmem:[%s5 + $0x20] sm:$0xff]
        %v4731 = vld [vmem:[%s5 + $0x28] sm:$0xff]
        %v4732 = vld [vmem:[%s5 + $0x30] sm:$0xff]
        %v4733 = vld [vmem:[%s5 + $0x38] sm:$0xff]
        %v4734 = vmul.f32 %v4726, %v4718
        %v4735 = vmul.f32 %v4727, %v4719
        %v4736 = vmul.f32 %v4728, %v4720
        %v4737 = vmul.f32 %v4729, %v4721
        %v4738 = vmul.f32 %v4730, %v4722
        %v4739 = vmul.f32 %v4731, %v4723
        %v4740 = vmul.f32 %v4732, %v4724
        %v4741 = vmul.f32 %v4733, %v4725
        %v4742 = vsel %vm489, %v4734, 0.0
        %v4743 = vsel %vm489, %v4735, 0.0
        %v4744 = vadd.f32 %v4742, %v4743
        %v4745 = vsel %vm489, %v4736, 0.0
        %v4746 = vadd.f32 %v4744, %v4745
        %v4747 = vsel %vm489, %v4737, 0.0
        %v4748 = vadd.f32 %v4746, %v4747
        %v4749 = vsel %vm489, %v4738, 0.0
        %v4750 = vadd.f32 %v4748, %v4749
        %v4751 = vsel %vm489, %v4739, 0.0
        %v4752 = vadd.f32 %v4750, %v4751
        %v4753 = vsel %vm489, %v4740, 0.0
        %v4754 = vadd.f32 %v4752, %v4753
        %v4755 = vsel %vm489, %v4741, 0.0
        %v4756 = vadd.f32 %v4754, %v4755
        %v4757 = vrot.slane %v4756, 4
        %v4758 = vadd.f32 %v4756, %v4757
        %v4759 = vrot.slane %v4758, 2
        %v4760 = vadd.f32 %v4758, %v4759
        %v4761 = vrot.slane %v4760, 1
        %v4762 = vadd.f32 %v4760, %v4761
        %v4763 = vld [vmem:[%s6] sm:$0x1]
        %v4764 = vadd.f32 %v4762, %v4763
        %v4765 = vmax.f32 %v4764, 0.0
        %v4766 = vld [vmem:[%s7] sm:$0xff]
        %v4767 = vld [vmem:[%s7 + $0x8] sm:$0xff]
        %v4768 = vld [vmem:[%s7 + $0x10] sm:$0xff]
        %v4769 = vld [vmem:[%s7 + $0x18] sm:$0xff]
        %v4770 = vld [vmem:[%s7 + $0x20] sm:$0xff]
        %v4771 = vld [vmem:[%s7 + $0x28] sm:$0xff]
        %v4772 = vld [vmem:[%s7 + $0x30] sm:$0xff]
        %v4773 = vld [vmem:[%s7 + $0x38] sm:$0xff]
        %v4774 = vlaneseq
        %v4775 = vshrl.u32 %v4774, 7
        %v4776 = vsub.s32 0, %v4775
        %v4777 = vrot.slane %v4765, %v4776
        %v4778 = vmul.f32 %v4766, %v4777
        %v4779 = vmul.f32 %v4767, %v4777
        %v4780 = vmul.f32 %v4768, %v4777
        %v4781 = vmul.f32 %v4769, %v4777
        %v4782 = vmul.f32 %v4770, %v4777
        %v4783 = vmul.f32 %v4771, %v4777
        %v4784 = vmul.f32 %v4772, %v4777
        %v4785 = vmul.f32 %v4773, %v4777
        %v4786 = vsel %vm489, %v4778, 0.0
        %4787 = vadd.xlane.f32.xlu0 %v4786
        %v4788 = vpop.xlane.xlu0 %4787
        %v4789 = vsel %vm489, %v4779, 0.0
        %4790 = vadd.xlane.f32.xlu0 %v4789
        %v4791 = vpop.xlane.xlu0 %4790
        %v4792 = vsel %vm489, %v4780, 0.0
        %4793 = vadd.xlane.f32.xlu0 %v4792
        %v4794 = vpop.xlane.xlu0 %4793
        %v4795 = vsel %vm489, %v4781, 0.0
        %4796 = vadd.xlane.f32.xlu0 %v4795
        %v4797 = vpop.xlane.xlu0 %4796
        %v4798 = vsel %vm489, %v4782, 0.0
        %4799 = vadd.xlane.f32.xlu0 %v4798
        %v4800 = vpop.xlane.xlu0 %4799
        %v4801 = vsel %vm489, %v4783, 0.0
        %4802 = vadd.xlane.f32.xlu0 %v4801
        %v4803 = vpop.xlane.xlu0 %4802
        %v4804 = vsel %vm489, %v4784, 0.0
        %4805 = vadd.xlane.f32.xlu0 %v4804
        %v4806 = vpop.xlane.xlu0 %4805
        %v4807 = vsel %vm489, %v4785, 0.0
        %4808 = vadd.xlane.f32.xlu0 %v4807
        %v4809 = vpop.xlane.xlu0 %4808
        %v4810 = vld [vmem:[%s8] sm:$0xff]
        %v4811 = vld [vmem:[%s8 + $0x8] sm:$0xff]
        %v4812 = vld [vmem:[%s8 + $0x10] sm:$0xff]
        %v4813 = vld [vmem:[%s8 + $0x18] sm:$0xff]
        %v4814 = vld [vmem:[%s8 + $0x20] sm:$0xff]
        %v4815 = vld [vmem:[%s8 + $0x28] sm:$0xff]
        %v4816 = vld [vmem:[%s8 + $0x30] sm:$0xff]
        %v4817 = vld [vmem:[%s8 + $0x38] sm:$0xff]
        %v4818 = vadd.f32 %v4788, %v4810
        %v4819 = vadd.f32 %v4791, %v4811
        %v4820 = vadd.f32 %v4794, %v4812
        %v4821 = vadd.f32 %v4797, %v4813
        %v4822 = vadd.f32 %v4800, %v4814
        %v4823 = vadd.f32 %v4803, %v4815
        %v4824 = vadd.f32 %v4806, %v4816
        %v4825 = vadd.f32 %v4809, %v4817
        %v4826 = vadd.f32 %v4818, 3.0
        %v4827 = vadd.f32 %v4819, 3.0
        %v4828 = vadd.f32 %v4820, 3.0
        %v4829 = vadd.f32 %v4821, 3.0
        %v4830 = vadd.f32 %v4822, 3.0
        %v4831 = vadd.f32 %v4823, 3.0
        %v4832 = vadd.f32 %v4824, 3.0
        %v4833 = vadd.f32 %v4825, 3.0
        %v4834 = vmax.f32 %v4826, 0.0
        %v4835 = vmax.f32 %v4827, 0.0
        %v4836 = vmax.f32 %v4828, 0.0
        %v4837 = vmax.f32 %v4829, 0.0
        %v4838 = vmax.f32 %v4830, 0.0
        %v4839 = vmax.f32 %v4831, 0.0
        %v4840 = vmax.f32 %v4832, 0.0
        %v4841 = vmax.f32 %v4833, 0.0
        %v4842 = vmin.f32 %v4834, 6.0
        %v4843 = vmin.f32 %v4835, 6.0
        %v4844 = vmin.f32 %v4836, 6.0
        %v4845 = vmin.f32 %v4837, 6.0
        %v4846 = vmin.f32 %v4838, 6.0
        %v4847 = vmin.f32 %v4839, 6.0
        %v4848 = vmin.f32 %v4840, 6.0
        %v4849 = vmin.f32 %v4841, 6.0
        %v4850 = vmul.f32 %v4842, 0.16666667
        %v4851 = vmul.f32 %v4843, 0.16666667
        %v4852 = vmul.f32 %v4844, 0.16666667
        %v4853 = vmul.f32 %v4845, 0.16666667
        %v4854 = vmul.f32 %v4846, 0.16666667
        %v4855 = vmul.f32 %v4847, 0.16666667
        %v4856 = vmul.f32 %v4848, 0.16666667
        %v4857 = vmul.f32 %v4849, 0.16666667
        %4859 = vset.pattern.permute.xlu0 0
        %4860 = vperm.xlu0 %4859, %v4850
        %v4861 = vpop.permute.xlu0 %4860
        %4864 = vset.pattern.permute.xlu0 0
        %4865 = vperm.xlu0 %4864, %v4851
        %v4866 = vpop.permute.xlu0 %4865
        %4869 = vset.pattern.permute.xlu0 0
        %4870 = vperm.xlu0 %4869, %v4852
        %v4871 = vpop.permute.xlu0 %4870
        %4874 = vset.pattern.permute.xlu0 0
        %4875 = vperm.xlu0 %4874, %v4853
        %v4876 = vpop.permute.xlu0 %4875
        %4879 = vset.pattern.permute.xlu0 0
        %4880 = vperm.xlu0 %4879, %v4854
        %v4881 = vpop.permute.xlu0 %4880
        %4884 = vset.pattern.permute.xlu0 0
        %4885 = vperm.xlu0 %4884, %v4855
        %v4886 = vpop.permute.xlu0 %4885
        %4889 = vset.pattern.permute.xlu0 0
        %4890 = vperm.xlu0 %4889, %v4856
        %v4891 = vpop.permute.xlu0 %4890
        %4894 = vset.pattern.permute.xlu0 0
        %4895 = vperm.xlu0 %4894, %v4857
        %v4896 = vpop.permute.xlu0 %4895
        %v4898 = vmul.f32 %v4678, %v4861
        %v4899 = vmul.f32 %v4679, %v4861
        %v4900 = vmul.f32 %v4680, %v4866
        %v4901 = vmul.f32 %v4681, %v4866
        %v4902 = vmul.f32 %v4682, %v4871
        %v4903 = vmul.f32 %v4683, %v4871
        %v4904 = vmul.f32 %v4684, %v4876
        %v4905 = vmul.f32 %v4685, %v4876
        %v4906 = vmul.f32 %v4686, %v4881
        %v4907 = vmul.f32 %v4687, %v4881
        %v4908 = vmul.f32 %v4688, %v4886
        %v4909 = vmul.f32 %v4689, %v4886
        %v4910 = vmul.f32 %v4690, %v4891
        %v4911 = vmul.f32 %v4691, %v4891
        %v4912 = vmul.f32 %v4692, %v4896
        %v4913 = vmul.f32 %v4693, %v4896
        %v4914 = vld [vmem:[%s9] sm:$0xf]
        %v4915 = vld [vmem:[%s9 + $0x4] sm:$0xf]
        %v4916 = vpack.c.bf16 %v4900, %v4898
        %v4917 = vpack.c.bf16 %v4901, %v4899
        %v4918 = vpack.c.bf16 %v4904, %v4902
        %v4919 = vpack.c.bf16 %v4905, %v4903
        %v4920 = vpack.c.bf16 %v4908, %v4906
        %v4921 = vpack.c.bf16 %v4909, %v4907
        %v4922 = vpack.c.bf16 %v4912, %v4910
        %v4923 = vpack.c.bf16 %v4913, %v4911
        %v4924 = vld [vmem:[%s10] sm:$0xff]
        %v4925 = vld [vmem:[%s10 + $0x8] sm:$0xff]
        %4927 = vset.pattern.permute.xlu0 0
        %4928 = vperm.xlu0 %4927, %v4924
        %v4929 = vpop.permute.xlu0 %4928
        %4932 = vset.pattern.permute.xlu0 0
        %4933 = vperm.xlu0 %4932, %v4925
        %v4934 = vpop.permute.xlu0 %4933
        %v4938 = vunpack.c.l.b16 %v4914
        %v4939 = vunpack.c.l.b16 %v4915
        %v4940 = vpack.c.b16 %v4939, %v4938
        %v4942 = vsel %vm1881, %v4940, 0
        %4944 = vmatprep.subr.bf16.mxu0 %v4917
        %4945 = vmatpush1.bf16.msra.mxu0 %v4916
        %4946 = vmatprep.subr.bf16.mxu0 %v4919
        %4947 = vmatpush1.bf16.msra.mxu0 %v4918
        %4948 = vmatprep.subr.bf16.mxu0 %v4921
        %4949 = vmatpush1.bf16.msra.mxu0 %v4920
        %4950 = vmatprep.subr.bf16.mxu0 %v4923
        %4951 = vmatpush1.bf16.msra.mxu0 %v4922
        %4952 = vmatprep.subr.bf16.mxu0 0
        %4953 = vmatpush1.bf16.msra.mxu0 0
        %4954 = vmatprep.subr.bf16.mxu0 0
        %4955 = vmatpush1.bf16.msra.mxu0 0
        %4956 = vmatprep.subr.bf16.mxu0 0
        %4957 = vmatpush1.bf16.msra.mxu0 0
        %4958 = vmatprep.subr.bf16.mxu0 0
        %4959 = vmatpush1.bf16.msra.mxu0 0
        %4960 = vmatprep.subr.bf16.mxu0 0
        %4961 = vmatpush1.bf16.msra.mxu0 0
        %4962 = vmatprep.subr.bf16.mxu0 0
        %4963 = vmatpush1.bf16.msra.mxu0 0
        %4964 = vmatprep.subr.bf16.mxu0 0
        %4965 = vmatpush1.bf16.msra.mxu0 0
        %4966 = vmatprep.subr.bf16.mxu0 0
        %4967 = vmatpush1.bf16.msra.mxu0 0
        %4968 = vmatprep.subr.bf16.mxu0 0
        %4969 = vmatpush1.bf16.msra.mxu0 0
        %4970 = vmatprep.subr.bf16.mxu0 0
        %4971 = vmatpush1.bf16.msra.mxu0 0
        %4972 = vmatprep.subr.bf16.mxu0 0
        %4973 = vmatpush1.bf16.msra.mxu0 0
        %4974 = vmatprep.subr.bf16.mxu0 0
        %4975 = vmatpush1.bf16.msra.mxu0 0
        %4976 = vmatprep.mubr.bf16.mxu0 0
        %4977 = vmatmul.mubr.bf16.gmra.mrb[0].mxu0 %v4942
        %v4978 = vpop.f32.mrb[0].mxu0
        %v4979 = vadd.f32 %v4929, %v4978
        %v4980 = vpop.f32.mrb[0].mxu0
        %v4981 = vadd.f32 %v4929, %v4980
        %v4982 = vpop.f32.mrb[0].mxu0
        %v4983 = vadd.f32 %v4934, %v4982
        %v4984 = vpop.f32.mrb[0].mxu0
        %v4985 = vadd.f32 %v4934, %v4984
        %4986 = vdwg.mxu0
        %v4987 = vadd.f32 %v4979, 3.0
        %v4988 = vadd.f32 %v4981, 3.0
        %v4989 = vadd.f32 %v4983, 3.0
        %v4990 = vadd.f32 %v4985, 3.0
        %v4991 = vmax.f32 %v4987, 0.0
        %v4992 = vmax.f32 %v4988, 0.0
        %v4993 = vmax.f32 %v4989, 0.0
        %v4994 = vmax.f32 %v4990, 0.0
        %v4995 = vmin.f32 %v4991, 6.0
        %v4996 = vmin.f32 %v4992, 6.0
        %v4997 = vmin.f32 %v4993, 6.0
        %v4998 = vmin.f32 %v4994, 6.0
        %v4999 = vmul.f32 %v4979, %v4995
        %v5000 = vmul.f32 %v4981, %v4996
        %v5001 = vmul.f32 %v4983, %v4997
        %v5002 = vmul.f32 %v4985, %v4998
        %v5003 = vmul.f32 %v4999, 0.16666667
        %v5004 = vmul.f32 %v5000, 0.16666667
        %v5005 = vmul.f32 %v5001, 0.16666667
        %v5006 = vmul.f32 %v5002, 0.16666667
        %v5007 = vadd.f32 %v5003, %v3487
        %v5008 = vadd.f32 %v5004, %v3488
        %v5009 = vadd.f32 %v5005, %v3489
        %v5010 = vadd.f32 %v5006, %v3490
        %s5011 = scalar_lea.vmem %s397, 64 [#allocation5]
        %5012 = vst [vmem:[%s5011] sm:$0xff] %v5007
        %5013 = vst [vmem:[%s5011 + $0x8] sm:$0xff] %v5008
        %5014 = vst [vmem:[%s5011 + $0x10] sm:$0xff] %v5009
        %5015 = vst [vmem:[%s5011 + $0x18] sm:$0xff] %v5010
        %s5016 = scalar_lea.vmem %s403, 96
        %v5017 = vld [vmem:[%s5016] sm:$0xff]
        %v5018 = vld [vmem:[%s5016 + $0x8] sm:$0xff]
        %v5019 = vld [vmem:[%s5016 + $0x10] sm:$0xff]
        %v5020 = vld [vmem:[%s5016 + $0x18] sm:$0xff]
        %v5021 = vld [vmem:[%s1] sm:$0xf]
        %v5022 = vld [vmem:[%s1 + $0x4] sm:$0xf]
        %v5023 = vld [vmem:[%s1 + $0x8] sm:$0xf]
        %v5024 = vld [vmem:[%s1 + $0xc] sm:$0xf]
        %v5025 = vld [vmem:[%s1 + $0x10] sm:$0xf]
        %v5026 = vld [vmem:[%s1 + $0x14] sm:$0xf]
        %v5027 = vld [vmem:[%s1 + $0x18] sm:$0xf]
        %v5028 = vld [vmem:[%s1 + $0x1c] sm:$0xf]
        %v5029 = vpack.c.bf16 %v5019, %v5017
        %v5030 = vpack.c.bf16 %v5020, %v5018
        %v5031 = vld [vmem:[%s2] sm:$0xff]
        %v5032 = vld [vmem:[%s2 + $0x8] sm:$0xff]
        %v5033 = vld [vmem:[%s2 + $0x10] sm:$0xff]
        %v5034 = vld [vmem:[%s2 + $0x18] sm:$0xff]
        %v5035 = vld [vmem:[%s2 + $0x20] sm:$0xff]
        %v5036 = vld [vmem:[%s2 + $0x28] sm:$0xff]
        %v5037 = vld [vmem:[%s2 + $0x30] sm:$0xff]
        %v5038 = vld [vmem:[%s2 + $0x38] sm:$0xff]
        %5040 = vset.pattern.permute.xlu0 0
        %5041 = vperm.xlu0 %5040, %v5031
        %v5042 = vpop.permute.xlu0 %5041
        %5045 = vset.pattern.permute.xlu0 0
        %5046 = vperm.xlu0 %5045, %v5032
        %v5047 = vpop.permute.xlu0 %5046
        %5050 = vset.pattern.permute.xlu0 0
        %5051 = vperm.xlu0 %5050, %v5033
        %v5052 = vpop.permute.xlu0 %5051
        %5055 = vset.pattern.permute.xlu0 0
        %5056 = vperm.xlu0 %5055, %v5034
        %v5057 = vpop.permute.xlu0 %5056
        %5060 = vset.pattern.permute.xlu0 0
        %5061 = vperm.xlu0 %5060, %v5035
        %v5062 = vpop.permute.xlu0 %5061
        %5065 = vset.pattern.permute.xlu0 0
        %5066 = vperm.xlu0 %5065, %v5036
        %v5067 = vpop.permute.xlu0 %5066
        %5070 = vset.pattern.permute.xlu0 0
        %5071 = vperm.xlu0 %5070, %v5037
        %v5072 = vpop.permute.xlu0 %5071
        %5075 = vset.pattern.permute.xlu0 0
        %5076 = vperm.xlu0 %5075, %v5038
        %v5077 = vpop.permute.xlu0 %5076
        %v5087 = vunpack.c.l.b16 %v5021
        %v5088 = vunpack.c.l.b16 %v5022
        %v5089 = vunpack.c.l.b16 %v5023
        %v5090 = vunpack.c.l.b16 %v5024
        %v5091 = vunpack.c.l.b16 %v5025
        %v5092 = vunpack.c.l.b16 %v5026
        %v5093 = vunpack.c.l.b16 %v5027
        %v5094 = vunpack.c.l.b16 %v5028
        %v5095 = vpack.c.b16 %v5088, %v5087
        %v5096 = vpack.c.b16 %v5090, %v5089
        %v5097 = vpack.c.b16 %v5092, %v5091
        %v5098 = vpack.c.b16 %v5094, %v5093
        %v5100 = vsel %vm489, %v5095, 0
        %v5103 = vsel %vm489, %v5096, 0
        %v5106 = vsel %vm489, %v5097, 0
        %v5109 = vsel %vm489, %v5098, 0
        %5111 = vmatprep.subr.bf16.mxu0 %v5030
        %5112 = vmatpush1.bf16.msra.mxu0 %v5029
        %5113 = vmatprep.subr.bf16.mxu0 0
        %5114 = vmatpush1.bf16.msra.mxu0 0
        %5115 = vmatprep.subr.bf16.mxu0 0
        %5116 = vmatpush1.bf16.msra.mxu0 0
        %5117 = vmatprep.subr.bf16.mxu0 0
        %5118 = vmatpush1.bf16.msra.mxu0 0
        %5119 = vmatprep.subr.bf16.mxu0 0
        %5120 = vmatpush1.bf16.msra.mxu0 0
        %5121 = vmatprep.subr.bf16.mxu0 0
        %5122 = vmatpush1.bf16.msra.mxu0 0
        %5123 = vmatprep.subr.bf16.mxu0 0
        %5124 = vmatpush1.bf16.msra.mxu0 0
        %5125 = vmatprep.subr.bf16.mxu0 0
        %5126 = vmatpush1.bf16.msra.mxu0 0
        %5127 = vmatprep.subr.bf16.mxu0 0
        %5128 = vmatpush1.bf16.msra.mxu0 0
        %5129 = vmatprep.subr.bf16.mxu0 0
        %5130 = vmatpush1.bf16.msra.mxu0 0
        %5131 = vmatprep.subr.bf16.mxu0 0
        %5132 = vmatpush1.bf16.msra.mxu0 0
        %5133 = vmatprep.subr.bf16.mxu0 0
        %5134 = vmatpush1.bf16.msra.mxu0 0
        %5135 = vmatprep.subr.bf16.mxu0 0
        %5136 = vmatpush1.bf16.msra.mxu0 0
        %5137 = vmatprep.subr.bf16.mxu0 0
        %5138 = vmatpush1.bf16.msra.mxu0 0
        %5139 = vmatprep.subr.bf16.mxu0 0
        %5140 = vmatpush1.bf16.msra.mxu0 0
        %5141 = vmatprep.subr.bf16.mxu0 0
        %5142 = vmatpush1.bf16.msra.mxu0 0
        %5143 = vmatprep.mubr.bf16.mxu0 0
        %5144 = vmatmul.mubr.bf16.gmra.mrb[0].mxu0 %v5100
        %v5145 = vpop.f32.mrb[0].mxu0
        %v5146 = vadd.f32 %v5042, %v5145
        %v5147 = vpop.f32.mrb[0].mxu0
        %v5148 = vadd.f32 %v5042, %v5147
        %v5149 = vpop.f32.mrb[0].mxu0
        %v5150 = vadd.f32 %v5047, %v5149
        %v5151 = vpop.f32.mrb[0].mxu0
        %v5152 = vadd.f32 %v5047, %v5151
        %5153 = vmatprep.mubr.bf16.mxu0 0
        %5154 = vmatmul.mubr.bf16.gmra.mrb[0].mxu0 %v5103
        %v5155 = vpop.f32.mrb[0].mxu0
        %v5156 = vadd.f32 %v5052, %v5155
        %v5157 = vpop.f32.mrb[0].mxu0
        %v5158 = vadd.f32 %v5052, %v5157
        %v5159 = vpop.f32.mrb[0].mxu0
        %v5160 = vadd.f32 %v5057, %v5159
        %v5161 = vpop.f32.mrb[0].mxu0
        %v5162 = vadd.f32 %v5057, %v5161
        %5163 = vmatprep.mubr.bf16.mxu0 0
        %5164 = vmatmul.mubr.bf16.gmra.mrb[0].mxu0 %v5106
        %v5165 = vpop.f32.mrb[0].mxu0
        %v5166 = vadd.f32 %v5062, %v5165
        %v5167 = vpop.f32.mrb[0].mxu0
        %v5168 = vadd.f32 %v5062, %v5167
        %v5169 = vpop.f32.mrb[0].mxu0
        %v5170 = vadd.f32 %v5067, %v5169
        %v5171 = vpop.f32.mrb[0].mxu0
        %v5172 = vadd.f32 %v5067, %v5171
        %5173 = vmatprep.mubr.bf16.mxu0 0
        %5174 = vmatmul.mubr.bf16.gmra.mrb[0].mxu0 %v5109
        %v5175 = vpop.f32.mrb[0].mxu0
        %v5176 = vadd.f32 %v5072, %v5175
        %v5177 = vpop.f32.mrb[0].mxu0
        %v5178 = vadd.f32 %v5072, %v5177
        %v5179 = vpop.f32.mrb[0].mxu0
        %v5180 = vadd.f32 %v5077, %v5179
        %v5181 = vpop.f32.mrb[0].mxu0
        %v5182 = vadd.f32 %v5077, %v5181
        %5183 = vdwg.mxu0
        %v5184 = vadd.f32 %v5146, 3.0
        %v5185 = vadd.f32 %v5148, 3.0
        %v5186 = vadd.f32 %v5150, 3.0
        %v5187 = vadd.f32 %v5152, 3.0
        %v5188 = vadd.f32 %v5156, 3.0
        %v5189 = vadd.f32 %v5158, 3.0
        %v5190 = vadd.f32 %v5160, 3.0
        %v5191 = vadd.f32 %v5162, 3.0
        %v5192 = vadd.f32 %v5166, 3.0
        %v5193 = vadd.f32 %v5168, 3.0
        %v5194 = vadd.f32 %v5170, 3.0
        %v5195 = vadd.f32 %v5172, 3.0
        %v5196 = vadd.f32 %v5176, 3.0
        %v5197 = vadd.f32 %v5178, 3.0
        %v5198 = vadd.f32 %v5180, 3.0
        %v5199 = vadd.f32 %v5182, 3.0
        %v5200 = vmax.f32 %v5184, 0.0
        %v5201 = vmax.f32 %v5185, 0.0
        %v5202 = vmax.f32 %v5186, 0.0
        %v5203 = vmax.f32 %v5187, 0.0
        %v5204 = vmax.f32 %v5188, 0.0
        %v5205 = vmax.f32 %v5189, 0.0
        %v5206 = vmax.f32 %v5190, 0.0
        %v5207 = vmax.f32 %v5191, 0.0
        %v5208 = vmax.f32 %v5192, 0.0
        %v5209 = vmax.f32 %v5193, 0.0
        %v5210 = vmax.f32 %v5194, 0.0
        %v5211 = vmax.f32 %v5195, 0.0
        %v5212 = vmax.f32 %v5196, 0.0
        %v5213 = vmax.f32 %v5197, 0.0
        %v5214 = vmax.f32 %v5198, 0.0
        %v5215 = vmax.f32 %v5199, 0.0
        %v5216 = vmin.f32 %v5200, 6.0
        %v5217 = vmin.f32 %v5201, 6.0
        %v5218 = vmin.f32 %v5202, 6.0
        %v5219 = vmin.f32 %v5203, 6.0
        %v5220 = vmin.f32 %v5204, 6.0
        %v5221 = vmin.f32 %v5205, 6.0
        %v5222 = vmin.f32 %v5206, 6.0
        %v5223 = vmin.f32 %v5207, 6.0
        %v5224 = vmin.f32 %v5208, 6.0
        %v5225 = vmin.f32 %v5209, 6.0
        %v5226 = vmin.f32 %v5210, 6.0
        %v5227 = vmin.f32 %v5211, 6.0
        %v5228 = vmin.f32 %v5212, 6.0
        %v5229 = vmin.f32 %v5213, 6.0
        %v5230 = vmin.f32 %v5214, 6.0
        %v5231 = vmin.f32 %v5215, 6.0
        %v5232 = vmul.f32 %v5146, %v5216
        %v5233 = vmul.f32 %v5148, %v5217
        %v5234 = vmul.f32 %v5150, %v5218
        %v5235 = vmul.f32 %v5152, %v5219
        %v5236 = vmul.f32 %v5156, %v5220
        %v5237 = vmul.f32 %v5158, %v5221
        %v5238 = vmul.f32 %v5160, %v5222
        %v5239 = vmul.f32 %v5162, %v5223
        %v5240 = vmul.f32 %v5166, %v5224
        %v5241 = vmul.f32 %v5168, %v5225
        %v5242 = vmul.f32 %v5170, %v5226
        %v5243 = vmul.f32 %v5172, %v5227
        %v5244 = vmul.f32 %v5176, %v5228
        %v5245 = vmul.f32 %v5178, %v5229
        %v5246 = vmul.f32 %v5180, %v5230
        %v5247 = vmul.f32 %v5182, %v5231
        %v5248 = vmul.f32 %v5232, 0.16666667
        %v5249 = vmul.f32 %v5233, 0.16666667
        %v5250 = vmul.f32 %v5234, 0.16666667
        %v5251 = vmul.f32 %v5235, 0.16666667
        %v5252 = vmul.f32 %v5236, 0.16666667
        %v5253 = vmul.f32 %v5237, 0.16666667
        %v5254 = vmul.f32 %v5238, 0.16666667
        %v5255 = vmul.f32 %v5239, 0.16666667
        %v5256 = vmul.f32 %v5240, 0.16666667
        %v5257 = vmul.f32 %v5241, 0.16666667
        %v5258 = vmul.f32 %v5242, 0.16666667
        %v5259 = vmul.f32 %v5243, 0.16666667
        %v5260 = vmul.f32 %v5244, 0.16666667
        %v5261 = vmul.f32 %v5245, 0.16666667
        %v5262 = vmul.f32 %v5246, 0.16666667
        %v5263 = vmul.f32 %v5247, 0.16666667
        %5264 = vrot.lane.b32.xlu0 %v5248, 17
        %v5265 = vpop.permute.xlu0 %5264
        %5266 = vrot.lane.b32.xlu0 %v5250, 17
        %v5267 = vpop.permute.xlu0 %5266
        %5268 = vrot.lane.b32.xlu0 %v5252, 17
        %v5269 = vpop.permute.xlu0 %5268
        %5270 = vrot.lane.b32.xlu0 %v5254, 17
        %v5271 = vpop.permute.xlu0 %5270
        %5272 = vrot.lane.b32.xlu0 %v5256, 17
        %v5273 = vpop.permute.xlu0 %5272
        %5274 = vrot.lane.b32.xlu0 %v5258, 17
        %v5275 = vpop.permute.xlu0 %5274
        %5276 = vrot.lane.b32.xlu0 %v5260, 17
        %v5277 = vpop.permute.xlu0 %5276
        %5278 = vrot.lane.b32.xlu0 %v5262, 17
        %v5279 = vpop.permute.xlu0 %5278
        %5280 = vrot.lane.b32.xlu0 %v5249, 17
        %v5281 = vpop.permute.xlu0 %5280
        %5282 = vrot.lane.b32.xlu0 %v5251, 17
        %v5283 = vpop.permute.xlu0 %5282
        %5284 = vrot.lane.b32.xlu0 %v5253, 17
        %v5285 = vpop.permute.xlu0 %5284
        %5286 = vrot.lane.b32.xlu0 %v5255, 17
        %v5287 = vpop.permute.xlu0 %5286
        %5288 = vrot.lane.b32.xlu0 %v5257, 17
        %v5289 = vpop.permute.xlu0 %5288
        %5290 = vrot.lane.b32.xlu0 %v5259, 17
        %v5291 = vpop.permute.xlu0 %5290
        %5292 = vrot.lane.b32.xlu0 %v5261, 17
        %v5293 = vpop.permute.xlu0 %5292
        %5294 = vrot.lane.b32.xlu0 %v5263, 17
        %v5295 = vpop.permute.xlu0 %5294
        %v5296 = vsel %vm689, %v5265, %v5281
        %v5297 = vsel %vm689, %v5267, %v5283
        %v5298 = vsel %vm689, %v5269, %v5285
        %v5299 = vsel %vm689, %v5271, %v5287
        %v5300 = vsel %vm689, %v5273, %v5289
        %v5301 = vsel %vm689, %v5275, %v5291
        %v5302 = vsel %vm689, %v5277, %v5293
        %v5303 = vsel %vm689, %v5279, %v5295
        %v5304 = vsel %vm689, %v5281, %v5265
        %v5305 = vsel %vm689, %v5283, %v5267
        %v5306 = vsel %vm689, %v5285, %v5269
        %v5307 = vsel %vm689, %v5287, %v5271
        %v5308 = vsel %vm689, %v5289, %v5273
        %v5309 = vsel %vm689, %v5291, %v5275
        %v5310 = vsel %vm689, %v5293, %v5277
        %v5311 = vsel %vm689, %v5295, %v5279
        %v5312 = vld [vmem:[#allocation2] sm:$0xff]
        %v5313 = vld [vmem:[#allocation2 + $0x8] sm:$0xff]
        %v5314 = vld [vmem:[#allocation2 + $0x10] sm:$0xff]
        %v5315 = vld [vmem:[#allocation2 + $0x18] sm:$0xff]
        %v5316 = vld [vmem:[#allocation2 + $0x20] sm:$0xff]
        %v5317 = vld [vmem:[#allocation2 + $0x28] sm:$0xff]
        %v5318 = vld [vmem:[#allocation2 + $0x30] sm:$0xff]
        %v5319 = vld [vmem:[#allocation2 + $0x38] sm:$0xff]
        %v5320 = vld [vmem:[#allocation2 + $0x40] sm:$0xff]
        %v5321 = vld [vmem:[#allocation2 + $0x48] sm:$0xff]
        %v5322 = vld [vmem:[#allocation2 + $0x50] sm:$0xff]
        %v5323 = vld [vmem:[#allocation2 + $0x58] sm:$0xff]
        %v5324 = vld [vmem:[#allocation2 + $0x60] sm:$0xff]
        %v5325 = vld [vmem:[#allocation2 + $0x68] sm:$0xff]
        %v5326 = vld [vmem:[#allocation2 + $0x70] sm:$0xff]
        %v5327 = vld [vmem:[#allocation2 + $0x78] sm:$0xff]
        %v5328 = vmul.f32 %v5304, %v5312
        %v5329 = vmul.f32 %v5296, %v5313
        %v5330 = vmul.f32 %v5305, %v5314
        %v5331 = vmul.f32 %v5297, %v5315
        %v5332 = vmul.f32 %v5306, %v5316
        %v5333 = vmul.f32 %v5298, %v5317
        %v5334 = vmul.f32 %v5307, %v5318
        %v5335 = vmul.f32 %v5299, %v5319
        %v5336 = vmul.f32 %v5308, %v5320
        %v5337 = vmul.f32 %v5300, %v5321
        %v5338 = vmul.f32 %v5309, %v5322
        %v5339 = vmul.f32 %v5301, %v5323
        %v5340 = vmul.f32 %v5310, %v5324
        %v5341 = vmul.f32 %v5302, %v5325
        %v5342 = vmul.f32 %v5311, %v5326
        %v5343 = vmul.f32 %v5303, %v5327
        %v5344 = vadd.f32 %v5328, 0.0
        %v5345 = vadd.f32 %v5329, 0.0
        %v5346 = vadd.f32 %v5330, 0.0
        %v5347 = vadd.f32 %v5331, 0.0
        %v5348 = vadd.f32 %v5332, 0.0
        %v5349 = vadd.f32 %v5333, 0.0
        %v5350 = vadd.f32 %v5334, 0.0
        %v5351 = vadd.f32 %v5335, 0.0
        %v5352 = vadd.f32 %v5336, 0.0
        %v5353 = vadd.f32 %v5337, 0.0
        %v5354 = vadd.f32 %v5338, 0.0
        %v5355 = vadd.f32 %v5339, 0.0
        %v5356 = vadd.f32 %v5340, 0.0
        %v5357 = vadd.f32 %v5341, 0.0
        %v5358 = vadd.f32 %v5342, 0.0
        %v5359 = vadd.f32 %v5343, 0.0
        %5360 = vrot.lane.b32.xlu0 %v5248, 16
        %v5361 = vpop.permute.xlu0 %5360
        %5362 = vrot.lane.b32.xlu0 %v5250, 16
        %v5363 = vpop.permute.xlu0 %5362
        %5364 = vrot.lane.b32.xlu0 %v5252, 16
        %v5365 = vpop.permute.xlu0 %5364
        %5366 = vrot.lane.b32.xlu0 %v5254, 16
        %v5367 = vpop.permute.xlu0 %5366
        %5368 = vrot.lane.b32.xlu0 %v5256, 16
        %v5369 = vpop.permute.xlu0 %5368
        %5370 = vrot.lane.b32.xlu0 %v5258, 16
        %v5371 = vpop.permute.xlu0 %5370
        %5372 = vrot.lane.b32.xlu0 %v5260, 16
        %v5373 = vpop.permute.xlu0 %5372
        %5374 = vrot.lane.b32.xlu0 %v5262, 16
        %v5375 = vpop.permute.xlu0 %5374
        %5376 = vrot.lane.b32.xlu0 %v5249, 16
        %v5377 = vpop.permute.xlu0 %5376
        %5378 = vrot.lane.b32.xlu0 %v5251, 16
        %v5379 = vpop.permute.xlu0 %5378
        %5380 = vrot.lane.b32.xlu0 %v5253, 16
        %v5381 = vpop.permute.xlu0 %5380
        %5382 = vrot.lane.b32.xlu0 %v5255, 16
        %v5383 = vpop.permute.xlu0 %5382
        %5384 = vrot.lane.b32.xlu0 %v5257, 16
        %v5385 = vpop.permute.xlu0 %5384
        %5386 = vrot.lane.b32.xlu0 %v5259, 16
        %v5387 = vpop.permute.xlu0 %5386
        %5388 = vrot.lane.b32.xlu0 %v5261, 16
        %v5389 = vpop.permute.xlu0 %5388
        %5390 = vrot.lane.b32.xlu0 %v5263, 16
        %v5391 = vpop.permute.xlu0 %5390
        %v5392 = vsel %vm786, %v5361, %v5377
        %v5393 = vsel %vm786, %v5363, %v5379
        %v5394 = vsel %vm786, %v5365, %v5381
        %v5395 = vsel %vm786, %v5367, %v5383
        %v5396 = vsel %vm786, %v5369, %v5385
        %v5397 = vsel %vm786, %v5371, %v5387
        %v5398 = vsel %vm786, %v5373, %v5389
        %v5399 = vsel %vm786, %v5375, %v5391
        %v5400 = vsel %vm786, %v5377, %v5361
        %v5401 = vsel %vm786, %v5379, %v5363
        %v5402 = vsel %vm786, %v5381, %v5365
        %v5403 = vsel %vm786, %v5383, %v5367
        %v5404 = vsel %vm786, %v5385, %v5369
        %v5405 = vsel %vm786, %v5387, %v5371
        %v5406 = vsel %vm786, %v5389, %v5373
        %v5407 = vsel %vm786, %v5391, %v5375
        %v5408 = vld [vmem:[%s803] sm:$0xff]
        %v5409 = vld [vmem:[%s803 + $0x8] sm:$0xff]
        %v5410 = vld [vmem:[%s803 + $0x10] sm:$0xff]
        %v5411 = vld [vmem:[%s803 + $0x18] sm:$0xff]
        %v5412 = vld [vmem:[%s803 + $0x20] sm:$0xff]
        %v5413 = vld [vmem:[%s803 + $0x28] sm:$0xff]
        %v5414 = vld [vmem:[%s803 + $0x30] sm:$0xff]
        %v5415 = vld [vmem:[%s803 + $0x38] sm:$0xff]
        %v5416 = vld [vmem:[%s803 + $0x40] sm:$0xff]
        %v5417 = vld [vmem:[%s803 + $0x48] sm:$0xff]
        %v5418 = vld [vmem:[%s803 + $0x50] sm:$0xff]
        %v5419 = vld [vmem:[%s803 + $0x58] sm:$0xff]
        %v5420 = vld [vmem:[%s803 + $0x60] sm:$0xff]
        %v5421 = vld [vmem:[%s803 + $0x68] sm:$0xff]
        %v5422 = vld [vmem:[%s803 + $0x70] sm:$0xff]
        %v5423 = vld [vmem:[%s803 + $0x78] sm:$0xff]
        %v5424 = vmul.f32 %v5400, %v5408
        %v5425 = vmul.f32 %v5392, %v5409
        %v5426 = vmul.f32 %v5401, %v5410
        %v5427 = vmul.f32 %v5393, %v5411
        %v5428 = vmul.f32 %v5402, %v5412
        %v5429 = vmul.f32 %v5394, %v5413
        %v5430 = vmul.f32 %v5403, %v5414
        %v5431 = vmul.f32 %v5395, %v5415
        %v5432 = vmul.f32 %v5404, %v5416
        %v5433 = vmul.f32 %v5396, %v5417
        %v5434 = vmul.f32 %v5405, %v5418
        %v5435 = vmul.f32 %v5397, %v5419
        %v5436 = vmul.f32 %v5406, %v5420
        %v5437 = vmul.f32 %v5398, %v5421
        %v5438 = vmul.f32 %v5407, %v5422
        %v5439 = vmul.f32 %v5399, %v5423
        %v5440 = vadd.f32 %v5344, %v5424
        %v5441 = vadd.f32 %v5345, %v5425
        %v5442 = vadd.f32 %v5346, %v5426
        %v5443 = vadd.f32 %v5347, %v5427
        %v5444 = vadd.f32 %v5348, %v5428
        %v5445 = vadd.f32 %v5349, %v5429
        %v5446 = vadd.f32 %v5350, %v5430
        %v5447 = vadd.f32 %v5351, %v5431
        %v5448 = vadd.f32 %v5352, %v5432
        %v5449 = vadd.f32 %v5353, %v5433
        %v5450 = vadd.f32 %v5354, %v5434
        %v5451 = vadd.f32 %v5355, %v5435
        %v5452 = vadd.f32 %v5356, %v5436
        %v5453 = vadd.f32 %v5357, %v5437
        %v5454 = vadd.f32 %v5358, %v5438
        %v5455 = vadd.f32 %v5359, %v5439
        %5456 = vrot.lane.b32.xlu0 %v5248, 15
        %v5457 = vpop.permute.xlu0 %5456
        %5458 = vrot.lane.b32.xlu0 %v5250, 15
        %v5459 = vpop.permute.xlu0 %5458
        %5460 = vrot.lane.b32.xlu0 %v5252, 15
        %v5461 = vpop.permute.xlu0 %5460
        %5462 = vrot.lane.b32.xlu0 %v5254, 15
        %v5463 = vpop.permute.xlu0 %5462
        %5464 = vrot.lane.b32.xlu0 %v5256, 15
        %v5465 = vpop.permute.xlu0 %5464
        %5466 = vrot.lane.b32.xlu0 %v5258, 15
        %v5467 = vpop.permute.xlu0 %5466
        %5468 = vrot.lane.b32.xlu0 %v5260, 15
        %v5469 = vpop.permute.xlu0 %5468
        %5470 = vrot.lane.b32.xlu0 %v5262, 15
        %v5471 = vpop.permute.xlu0 %5470
        %5472 = vrot.lane.b32.xlu0 %v5249, 15
        %v5473 = vpop.permute.xlu0 %5472
        %5474 = vrot.lane.b32.xlu0 %v5251, 15
        %v5475 = vpop.permute.xlu0 %5474
        %5476 = vrot.lane.b32.xlu0 %v5253, 15
        %v5477 = vpop.permute.xlu0 %5476
        %5478 = vrot.lane.b32.xlu0 %v5255, 15
        %v5479 = vpop.permute.xlu0 %5478
        %5480 = vrot.lane.b32.xlu0 %v5257, 15
        %v5481 = vpop.permute.xlu0 %5480
        %5482 = vrot.lane.b32.xlu0 %v5259, 15
        %v5483 = vpop.permute.xlu0 %5482
        %5484 = vrot.lane.b32.xlu0 %v5261, 15
        %v5485 = vpop.permute.xlu0 %5484
        %5486 = vrot.lane.b32.xlu0 %v5263, 15
        %v5487 = vpop.permute.xlu0 %5486
        %v5488 = vsel %vm884, %v5457, %v5473
        %v5489 = vsel %vm884, %v5459, %v5475
        %v5490 = vsel %vm884, %v5461, %v5477
        %v5491 = vsel %vm884, %v5463, %v5479
        %v5492 = vsel %vm884, %v5465, %v5481
        %v5493 = vsel %vm884, %v5467, %v5483
        %v5494 = vsel %vm884, %v5469, %v5485
        %v5495 = vsel %vm884, %v5471, %v5487
        %v5496 = vsel %vm884, %v5473, %v5457
        %v5497 = vsel %vm884, %v5475, %v5459
        %v5498 = vsel %vm884, %v5477, %v5461
        %v5499 = vsel %vm884, %v5479, %v5463
        %v5500 = vsel %vm884, %v5481, %v5465
        %v5501 = vsel %vm884, %v5483, %v5467
        %v5502 = vsel %vm884, %v5485, %v5469
        %v5503 = vsel %vm884, %v5487, %v5471
        %v5504 = vld [vmem:[%s901] sm:$0xff]
        %v5505 = vld [vmem:[%s901 + $0x8] sm:$0xff]
        %v5506 = vld [vmem:[%s901 + $0x10] sm:$0xff]
        %v5507 = vld [vmem:[%s901 + $0x18] sm:$0xff]
        %v5508 = vld [vmem:[%s901 + $0x20] sm:$0xff]
        %v5509 = vld [vmem:[%s901 + $0x28] sm:$0xff]
        %v5510 = vld [vmem:[%s901 + $0x30] sm:$0xff]
        %v5511 = vld [vmem:[%s901 + $0x38] sm:$0xff]
        %v5512 = vld [vmem:[%s901 + $0x40] sm:$0xff]
        %v5513 = vld [vmem:[%s901 + $0x48] sm:$0xff]
        %v5514 = vld [vmem:[%s901 + $0x50] sm:$0xff]
        %v5515 = vld [vmem:[%s901 + $0x58] sm:$0xff]
        %v5516 = vld [vmem:[%s901 + $0x60] sm:$0xff]
        %v5517 = vld [vmem:[%s901 + $0x68] sm:$0xff]
        %v5518 = vld [vmem:[%s901 + $0x70] sm:$0xff]
        %v5519 = vld [vmem:[%s901 + $0x78] sm:$0xff]
        %v5520 = vmul.f32 %v5496, %v5504
        %v5521 = vmul.f32 %v5488, %v5505
        %v5522 = vmul.f32 %v5497, %v5506
        %v5523 = vmul.f32 %v5489, %v5507
        %v5524 = vmul.f32 %v5498, %v5508
        %v5525 = vmul.f32 %v5490, %v5509
        %v5526 = vmul.f32 %v5499, %v5510
        %v5527 = vmul.f32 %v5491, %v5511
        %v5528 = vmul.f32 %v5500, %v5512
        %v5529 = vmul.f32 %v5492, %v5513
        %v5530 = vmul.f32 %v5501, %v5514
        %v5531 = vmul.f32 %v5493, %v5515
        %v5532 = vmul.f32 %v5502, %v5516
        %v5533 = vmul.f32 %v5494, %v5517
        %v5534 = vmul.f32 %v5503, %v5518
        %v5535 = vmul.f32 %v5495, %v5519
        %v5536 = vadd.f32 %v5440, %v5520
        %v5537 = vadd.f32 %v5441, %v5521
        %v5538 = vadd.f32 %v5442, %v5522
        %v5539 = vadd.f32 %v5443, %v5523
        %v5540 = vadd.f32 %v5444, %v5524
        %v5541 = vadd.f32 %v5445, %v5525
        %v5542 = vadd.f32 %v5446, %v5526
        %v5543 = vadd.f32 %v5447, %v5527
        %v5544 = vadd.f32 %v5448, %v5528
        %v5545 = vadd.f32 %v5449, %v5529
        %v5546 = vadd.f32 %v5450, %v5530
        %v5547 = vadd.f32 %v5451, %v5531
        %v5548 = vadd.f32 %v5452, %v5532
        %v5549 = vadd.f32 %v5453, %v5533
        %v5550 = vadd.f32 %v5454, %v5534
        %v5551 = vadd.f32 %v5455, %v5535
        %5552 = vrot.lane.b32.xlu0 %v5248, 1
        %v5553 = vpop.permute.xlu0 %5552
        %5554 = vrot.lane.b32.xlu0 %v5250, 1
        %v5555 = vpop.permute.xlu0 %5554
        %5556 = vrot.lane.b32.xlu0 %v5252, 1
        %v5557 = vpop.permute.xlu0 %5556
        %5558 = vrot.lane.b32.xlu0 %v5254, 1
        %v5559 = vpop.permute.xlu0 %5558
        %5560 = vrot.lane.b32.xlu0 %v5256, 1
        %v5561 = vpop.permute.xlu0 %5560
        %5562 = vrot.lane.b32.xlu0 %v5258, 1
        %v5563 = vpop.permute.xlu0 %5562
        %5564 = vrot.lane.b32.xlu0 %v5260, 1
        %v5565 = vpop.permute.xlu0 %5564
        %5566 = vrot.lane.b32.xlu0 %v5262, 1
        %v5567 = vpop.permute.xlu0 %5566
        %5568 = vrot.lane.b32.xlu0 %v5249, 1
        %v5569 = vpop.permute.xlu0 %5568
        %5570 = vrot.lane.b32.xlu0 %v5251, 1
        %v5571 = vpop.permute.xlu0 %5570
        %5572 = vrot.lane.b32.xlu0 %v5253, 1
        %v5573 = vpop.permute.xlu0 %5572
        %5574 = vrot.lane.b32.xlu0 %v5255, 1
        %v5575 = vpop.permute.xlu0 %5574
        %5576 = vrot.lane.b32.xlu0 %v5257, 1
        %v5577 = vpop.permute.xlu0 %5576
        %5578 = vrot.lane.b32.xlu0 %v5259, 1
        %v5579 = vpop.permute.xlu0 %5578
        %5580 = vrot.lane.b32.xlu0 %v5261, 1
        %v5581 = vpop.permute.xlu0 %5580
        %5582 = vrot.lane.b32.xlu0 %v5263, 1
        %v5583 = vpop.permute.xlu0 %5582
        %v5584 = vsel %vm982, %v5553, %v5569
        %v5585 = vsel %vm982, %v5555, %v5571
        %v5586 = vsel %vm982, %v5557, %v5573
        %v5587 = vsel %vm982, %v5559, %v5575
        %v5588 = vsel %vm982, %v5561, %v5577
        %v5589 = vsel %vm982, %v5563, %v5579
        %v5590 = vsel %vm982, %v5565, %v5581
        %v5591 = vsel %vm982, %v5567, %v5583
        %v5592 = vsel %vm982, %v5569, %v5553
        %v5593 = vsel %vm982, %v5571, %v5555
        %v5594 = vsel %vm982, %v5573, %v5557
        %v5595 = vsel %vm982, %v5575, %v5559
        %v5596 = vsel %vm982, %v5577, %v5561
        %v5597 = vsel %vm982, %v5579, %v5563
        %v5598 = vsel %vm982, %v5581, %v5565
        %v5599 = vsel %vm982, %v5583, %v5567
        %v5600 = vld [vmem:[%s999] sm:$0xff]
        %v5601 = vld [vmem:[%s999 + $0x8] sm:$0xff]
        %v5602 = vld [vmem:[%s999 + $0x10] sm:$0xff]
        %v5603 = vld [vmem:[%s999 + $0x18] sm:$0xff]
        %v5604 = vld [vmem:[%s999 + $0x20] sm:$0xff]
        %v5605 = vld [vmem:[%s999 + $0x28] sm:$0xff]
        %v5606 = vld [vmem:[%s999 + $0x30] sm:$0xff]
        %v5607 = vld [vmem:[%s999 + $0x38] sm:$0xff]
        %v5608 = vld [vmem:[%s999 + $0x40] sm:$0xff]
        %v5609 = vld [vmem:[%s999 + $0x48] sm:$0xff]
        %v5610 = vld [vmem:[%s999 + $0x50] sm:$0xff]
        %v5611 = vld [vmem:[%s999 + $0x58] sm:$0xff]
        %v5612 = vld [vmem:[%s999 + $0x60] sm:$0xff]
        %v5613 = vld [vmem:[%s999 + $0x68] sm:$0xff]
        %v5614 = vld [vmem:[%s999 + $0x70] sm:$0xff]
        %v5615 = vld [vmem:[%s999 + $0x78] sm:$0xff]
        %v5616 = vmul.f32 %v5592, %v5600
        %v5617 = vmul.f32 %v5584, %v5601
        %v5618 = vmul.f32 %v5593, %v5602
        %v5619 = vmul.f32 %v5585, %v5603
        %v5620 = vmul.f32 %v5594, %v5604
        %v5621 = vmul.f32 %v5586, %v5605
        %v5622 = vmul.f32 %v5595, %v5606
        %v5623 = vmul.f32 %v5587, %v5607
        %v5624 = vmul.f32 %v5596, %v5608
        %v5625 = vmul.f32 %v5588, %v5609
        %v5626 = vmul.f32 %v5597, %v5610
        %v5627 = vmul.f32 %v5589, %v5611
        %v5628 = vmul.f32 %v5598, %v5612
        %v5629 = vmul.f32 %v5590, %v5613
        %v5630 = vmul.f32 %v5599, %v5614
        %v5631 = vmul.f32 %v5591, %v5615
        %v5632 = vadd.f32 %v5536, %v5616
        %v5633 = vadd.f32 %v5537, %v5617
        %v5634 = vadd.f32 %v5538, %v5618
        %v5635 = vadd.f32 %v5539, %v5619
        %v5636 = vadd.f32 %v5540, %v5620
        %v5637 = vadd.f32 %v5541, %v5621
        %v5638 = vadd.f32 %v5542, %v5622
        %v5639 = vadd.f32 %v5543, %v5623
        %v5640 = vadd.f32 %v5544, %v5624
        %v5641 = vadd.f32 %v5545, %v5625
        %v5642 = vadd.f32 %v5546, %v5626
        %v5643 = vadd.f32 %v5547, %v5627
        %v5644 = vadd.f32 %v5548, %v5628
        %v5645 = vadd.f32 %v5549, %v5629
        %v5646 = vadd.f32 %v5550, %v5630
        %v5647 = vadd.f32 %v5551, %v5631
        %v5648 = vld [vmem:[%s1048] sm:$0xff]
        %v5649 = vld [vmem:[%s1048 + $0x8] sm:$0xff]
        %v5650 = vld [vmem:[%s1048 + $0x10] sm:$0xff]
        %v5651 = vld [vmem:[%s1048 + $0x18] sm:$0xff]
        %v5652 = vld [vmem:[%s1048 + $0x20] sm:$0xff]
        %v5653 = vld [vmem:[%s1048 + $0x28] sm:$0xff]
        %v5654 = vld [vmem:[%s1048 + $0x30] sm:$0xff]
        %v5655 = vld [vmem:[%s1048 + $0x38] sm:$0xff]
        %v5656 = vld [vmem:[%s1048 + $0x40] sm:$0xff]
        %v5657 = vld [vmem:[%s1048 + $0x48] sm:$0xff]
        %v5658 = vld [vmem:[%s1048 + $0x50] sm:$0xff]
        %v5659 = vld [vmem:[%s1048 + $0x58] sm:$0xff]
        %v5660 = vld [vmem:[%s1048 + $0x60] sm:$0xff]
        %v5661 = vld [vmem:[%s1048 + $0x68] sm:$0xff]
        %v5662 = vld [vmem:[%s1048 + $0x70] sm:$0xff]
        %v5663 = vld [vmem:[%s1048 + $0x78] sm:$0xff]
        %v5664 = vmul.f32 %v5248, %v5648
        %v5665 = vmul.f32 %v5249, %v5649
        %v5666 = vmul.f32 %v5250, %v5650
        %v5667 = vmul.f32 %v5251, %v5651
        %v5668 = vmul.f32 %v5252, %v5652
        %v5669 = vmul.f32 %v5253, %v5653
        %v5670 = vmul.f32 %v5254, %v5654
        %v5671 = vmul.f32 %v5255, %v5655
        %v5672 = vmul.f32 %v5256, %v5656
        %v5673 = vmul.f32 %v5257, %v5657
        %v5674 = vmul.f32 %v5258, %v5658
        %v5675 = vmul.f32 %v5259, %v5659
        %v5676 = vmul.f32 %v5260, %v5660
        %v5677 = vmul.f32 %v5261, %v5661
        %v5678 = vmul.f32 %v5262, %v5662
        %v5679 = vmul.f32 %v5263, %v5663
        %v5680 = vadd.f32 %v5632, %v5664
        %v5681 = vadd.f32 %v5633, %v5665
        %v5682 = vadd.f32 %v5634, %v5666
        %v5683 = vadd.f32 %v5635, %v5667
        %v5684 = vadd.f32 %v5636, %v5668
        %v5685 = vadd.f32 %v5637, %v5669
        %v5686 = vadd.f32 %v5638, %v5670
        %v5687 = vadd.f32 %v5639, %v5671
        %v5688 = vadd.f32 %v5640, %v5672
        %v5689 = vadd.f32 %v5641, %v5673
        %v5690 = vadd.f32 %v5642, %v5674
        %v5691 = vadd.f32 %v5643, %v5675
        %v5692 = vadd.f32 %v5644, %v5676
        %v5693 = vadd.f32 %v5645, %v5677
        %v5694 = vadd.f32 %v5646, %v5678
        %v5695 = vadd.f32 %v5647, %v5679
        %5696 = vrot.lane.b32.xlu0 %v5248, 127
        %v5697 = vpop.permute.xlu0 %5696
        %5698 = vrot.lane.b32.xlu0 %v5250, 127
        %v5699 = vpop.permute.xlu0 %5698
        %5700 = vrot.lane.b32.xlu0 %v5252, 127
        %v5701 = vpop.permute.xlu0 %5700
        %5702 = vrot.lane.b32.xlu0 %v5254, 127
        %v5703 = vpop.permute.xlu0 %5702
        %5704 = vrot.lane.b32.xlu0 %v5256, 127
        %v5705 = vpop.permute.xlu0 %5704
        %5706 = vrot.lane.b32.xlu0 %v5258, 127
        %v5707 = vpop.permute.xlu0 %5706
        %5708 = vrot.lane.b32.xlu0 %v5260, 127
        %v5709 = vpop.permute.xlu0 %5708
        %5710 = vrot.lane.b32.xlu0 %v5262, 127
        %v5711 = vpop.permute.xlu0 %5710
        %5712 = vrot.lane.b32.xlu0 %v5249, 127
        %v5713 = vpop.permute.xlu0 %5712
        %5714 = vrot.lane.b32.xlu0 %v5251, 127
        %v5715 = vpop.permute.xlu0 %5714
        %5716 = vrot.lane.b32.xlu0 %v5253, 127
        %v5717 = vpop.permute.xlu0 %5716
        %5718 = vrot.lane.b32.xlu0 %v5255, 127
        %v5719 = vpop.permute.xlu0 %5718
        %5720 = vrot.lane.b32.xlu0 %v5257, 127
        %v5721 = vpop.permute.xlu0 %5720
        %5722 = vrot.lane.b32.xlu0 %v5259, 127
        %v5723 = vpop.permute.xlu0 %5722
        %5724 = vrot.lane.b32.xlu0 %v5261, 127
        %v5725 = vpop.permute.xlu0 %5724
        %5726 = vrot.lane.b32.xlu0 %v5263, 127
        %v5727 = vpop.permute.xlu0 %5726
        %v5728 = vsel %vm1129, %v5697, %v5713
        %v5729 = vsel %vm1129, %v5699, %v5715
        %v5730 = vsel %vm1129, %v5701, %v5717
        %v5731 = vsel %vm1129, %v5703, %v5719
        %v5732 = vsel %vm1129, %v5705, %v5721
        %v5733 = vsel %vm1129, %v5707, %v5723
        %v5734 = vsel %vm1129, %v5709, %v5725
        %v5735 = vsel %vm1129, %v5711, %v5727
        %v5736 = vsel %vm1129, %v5713, %v5697
        %v5737 = vsel %vm1129, %v5715, %v5699
        %v5738 = vsel %vm1129, %v5717, %v5701
        %v5739 = vsel %vm1129, %v5719, %v5703
        %v5740 = vsel %vm1129, %v5721, %v5705
        %v5741 = vsel %vm1129, %v5723, %v5707
        %v5742 = vsel %vm1129, %v5725, %v5709
        %v5743 = vsel %vm1129, %v5727, %v5711
        %v5744 = vld [vmem:[%s1146] sm:$0xff]
        %v5745 = vld [vmem:[%s1146 + $0x8] sm:$0xff]
        %v5746 = vld [vmem:[%s1146 + $0x10] sm:$0xff]
        %v5747 = vld [vmem:[%s1146 + $0x18] sm:$0xff]
        %v5748 = vld [vmem:[%s1146 + $0x20] sm:$0xff]
        %v5749 = vld [vmem:[%s1146 + $0x28] sm:$0xff]
        %v5750 = vld [vmem:[%s1146 + $0x30] sm:$0xff]
        %v5751 = vld [vmem:[%s1146 + $0x38] sm:$0xff]
        %v5752 = vld [vmem:[%s1146 + $0x40] sm:$0xff]
        %v5753 = vld [vmem:[%s1146 + $0x48] sm:$0xff]
        %v5754 = vld [vmem:[%s1146 + $0x50] sm:$0xff]
        %v5755 = vld [vmem:[%s1146 + $0x58] sm:$0xff]
        %v5756 = vld [vmem:[%s1146 + $0x60] sm:$0xff]
        %v5757 = vld [vmem:[%s1146 + $0x68] sm:$0xff]
        %v5758 = vld [vmem:[%s1146 + $0x70] sm:$0xff]
        %v5759 = vld [vmem:[%s1146 + $0x78] sm:$0xff]
        %v5760 = vmul.f32 %v5728, %v5744
        %v5761 = vmul.f32 %v5736, %v5745
        %v5762 = vmul.f32 %v5729, %v5746
        %v5763 = vmul.f32 %v5737, %v5747
        %v5764 = vmul.f32 %v5730, %v5748
        %v5765 = vmul.f32 %v5738, %v5749
        %v5766 = vmul.f32 %v5731, %v5750
        %v5767 = vmul.f32 %v5739, %v5751
        %v5768 = vmul.f32 %v5732, %v5752
        %v5769 = vmul.f32 %v5740, %v5753
        %v5770 = vmul.f32 %v5733, %v5754
        %v5771 = vmul.f32 %v5741, %v5755
        %v5772 = vmul.f32 %v5734, %v5756
        %v5773 = vmul.f32 %v5742, %v5757
        %v5774 = vmul.f32 %v5735, %v5758
        %v5775 = vmul.f32 %v5743, %v5759
        %v5776 = vadd.f32 %v5680, %v5760
        %v5777 = vadd.f32 %v5681, %v5761
        %v5778 = vadd.f32 %v5682, %v5762
        %v5779 = vadd.f32 %v5683, %v5763
        %v5780 = vadd.f32 %v5684, %v5764
        %v5781 = vadd.f32 %v5685, %v5765
        %v5782 = vadd.f32 %v5686, %v5766
        %v5783 = vadd.f32 %v5687, %v5767
        %v5784 = vadd.f32 %v5688, %v5768
        %v5785 = vadd.f32 %v5689, %v5769
        %v5786 = vadd.f32 %v5690, %v5770
        %v5787 = vadd.f32 %v5691, %v5771
        %v5788 = vadd.f32 %v5692, %v5772
        %v5789 = vadd.f32 %v5693, %v5773
        %v5790 = vadd.f32 %v5694, %v5774
        %v5791 = vadd.f32 %v5695, %v5775
        %5792 = vrot.lane.b32.xlu0 %v5248, 113
        %v5793 = vpop.permute.xlu0 %5792
        %5794 = vrot.lane.b32.xlu0 %v5250, 113
        %v5795 = vpop.permute.xlu0 %5794
        %5796 = vrot.lane.b32.xlu0 %v5252, 113
        %v5797 = vpop.permute.xlu0 %5796
        %5798 = vrot.lane.b32.xlu0 %v5254, 113
        %v5799 = vpop.permute.xlu0 %5798
        %5800 = vrot.lane.b32.xlu0 %v5256, 113
        %v5801 = vpop.permute.xlu0 %5800
        %5802 = vrot.lane.b32.xlu0 %v5258, 113
        %v5803 = vpop.permute.xlu0 %5802
        %5804 = vrot.lane.b32.xlu0 %v5260, 113
        %v5805 = vpop.permute.xlu0 %5804
        %5806 = vrot.lane.b32.xlu0 %v5262, 113
        %v5807 = vpop.permute.xlu0 %5806
        %5808 = vrot.lane.b32.xlu0 %v5249, 113
        %v5809 = vpop.permute.xlu0 %5808
        %5810 = vrot.lane.b32.xlu0 %v5251, 113
        %v5811 = vpop.permute.xlu0 %5810
        %5812 = vrot.lane.b32.xlu0 %v5253, 113
        %v5813 = vpop.permute.xlu0 %5812
        %5814 = vrot.lane.b32.xlu0 %v5255, 113
        %v5815 = vpop.permute.xlu0 %5814
        %5816 = vrot.lane.b32.xlu0 %v5257, 113
        %v5817 = vpop.permute.xlu0 %5816
        %5818 = vrot.lane.b32.xlu0 %v5259, 113
        %v5819 = vpop.permute.xlu0 %5818
        %5820 = vrot.lane.b32.xlu0 %v5261, 113
        %v5821 = vpop.permute.xlu0 %5820
        %5822 = vrot.lane.b32.xlu0 %v5263, 113
        %v5823 = vpop.permute.xlu0 %5822
        %v5824 = vsel %vm1227, %v5793, %v5809
        %v5825 = vsel %vm1227, %v5795, %v5811
        %v5826 = vsel %vm1227, %v5797, %v5813
        %v5827 = vsel %vm1227, %v5799, %v5815
        %v5828 = vsel %vm1227, %v5801, %v5817
        %v5829 = vsel %vm1227, %v5803, %v5819
        %v5830 = vsel %vm1227, %v5805, %v5821
        %v5831 = vsel %vm1227, %v5807, %v5823
        %v5832 = vsel %vm1227, %v5809, %v5793
        %v5833 = vsel %vm1227, %v5811, %v5795
        %v5834 = vsel %vm1227, %v5813, %v5797
        %v5835 = vsel %vm1227, %v5815, %v5799
        %v5836 = vsel %vm1227, %v5817, %v5801
        %v5837 = vsel %vm1227, %v5819, %v5803
        %v5838 = vsel %vm1227, %v5821, %v5805
        %v5839 = vsel %vm1227, %v5823, %v5807
        %v5840 = vld [vmem:[%s1244] sm:$0xff]
        %v5841 = vld [vmem:[%s1244 + $0x8] sm:$0xff]
        %v5842 = vld [vmem:[%s1244 + $0x10] sm:$0xff]
        %v5843 = vld [vmem:[%s1244 + $0x18] sm:$0xff]
        %v5844 = vld [vmem:[%s1244 + $0x20] sm:$0xff]
        %v5845 = vld [vmem:[%s1244 + $0x28] sm:$0xff]
        %v5846 = vld [vmem:[%s1244 + $0x30] sm:$0xff]
        %v5847 = vld [vmem:[%s1244 + $0x38] sm:$0xff]
        %v5848 = vld [vmem:[%s1244 + $0x40] sm:$0xff]
        %v5849 = vld [vmem:[%s1244 + $0x48] sm:$0xff]
        %v5850 = vld [vmem:[%s1244 + $0x50] sm:$0xff]
        %v5851 = vld [vmem:[%s1244 + $0x58] sm:$0xff]
        %v5852 = vld [vmem:[%s1244 + $0x60] sm:$0xff]
        %v5853 = vld [vmem:[%s1244 + $0x68] sm:$0xff]
        %v5854 = vld [vmem:[%s1244 + $0x70] sm:$0xff]
        %v5855 = vld [vmem:[%s1244 + $0x78] sm:$0xff]
        %v5856 = vmul.f32 %v5824, %v5840
        %v5857 = vmul.f32 %v5832, %v5841
        %v5858 = vmul.f32 %v5825, %v5842
        %v5859 = vmul.f32 %v5833, %v5843
        %v5860 = vmul.f32 %v5826, %v5844
        %v5861 = vmul.f32 %v5834, %v5845
        %v5862 = vmul.f32 %v5827, %v5846
        %v5863 = vmul.f32 %v5835, %v5847
        %v5864 = vmul.f32 %v5828, %v5848
        %v5865 = vmul.f32 %v5836, %v5849
        %v5866 = vmul.f32 %v5829, %v5850
        %v5867 = vmul.f32 %v5837, %v5851
        %v5868 = vmul.f32 %v5830, %v5852
        %v5869 = vmul.f32 %v5838, %v5853
        %v5870 = vmul.f32 %v5831, %v5854
        %v5871 = vmul.f32 %v5839, %v5855
        %v5872 = vadd.f32 %v5776, %v5856
        %v5873 = vadd.f32 %v5777, %v5857
        %v5874 = vadd.f32 %v5778, %v5858
        %v5875 = vadd.f32 %v5779, %v5859
        %v5876 = vadd.f32 %v5780, %v5860
        %v5877 = vadd.f32 %v5781, %v5861
        %v5878 = vadd.f32 %v5782, %v5862
        %v5879 = vadd.f32 %v5783, %v5863
        %v5880 = vadd.f32 %v5784, %v5864
        %v5881 = vadd.f32 %v5785, %v5865
        %v5882 = vadd.f32 %v5786, %v5866
        %v5883 = vadd.f32 %v5787, %v5867
        %v5884 = vadd.f32 %v5788, %v5868
        %v5885 = vadd.f32 %v5789, %v5869
        %v5886 = vadd.f32 %v5790, %v5870
        %v5887 = vadd.f32 %v5791, %v5871
        %5888 = vrot.lane.b32.xlu0 %v5248, 112
        %v5889 = vpop.permute.xlu0 %5888
        %5890 = vrot.lane.b32.xlu0 %v5250, 112
        %v5891 = vpop.permute.xlu0 %5890
        %5892 = vrot.lane.b32.xlu0 %v5252, 112
        %v5893 = vpop.permute.xlu0 %5892
        %5894 = vrot.lane.b32.xlu0 %v5254, 112
        %v5895 = vpop.permute.xlu0 %5894
        %5896 = vrot.lane.b32.xlu0 %v5256, 112
        %v5897 = vpop.permute.xlu0 %5896
        %5898 = vrot.lane.b32.xlu0 %v5258, 112
        %v5899 = vpop.permute.xlu0 %5898
        %5900 = vrot.lane.b32.xlu0 %v5260, 112
        %v5901 = vpop.permute.xlu0 %5900
        %5902 = vrot.lane.b32.xlu0 %v5262, 112
        %v5903 = vpop.permute.xlu0 %5902
        %5904 = vrot.lane.b32.xlu0 %v5249, 112
        %v5905 = vpop.permute.xlu0 %5904
        %5906 = vrot.lane.b32.xlu0 %v5251, 112
        %v5907 = vpop.permute.xlu0 %5906
        %5908 = vrot.lane.b32.xlu0 %v5253, 112
        %v5909 = vpop.permute.xlu0 %5908
        %5910 = vrot.lane.b32.xlu0 %v5255, 112
        %v5911 = vpop.permute.xlu0 %5910
        %5912 = vrot.lane.b32.xlu0 %v5257, 112
        %v5913 = vpop.permute.xlu0 %5912
        %5914 = vrot.lane.b32.xlu0 %v5259, 112
        %v5915 = vpop.permute.xlu0 %5914
        %5916 = vrot.lane.b32.xlu0 %v5261, 112
        %v5917 = vpop.permute.xlu0 %5916
        %5918 = vrot.lane.b32.xlu0 %v5263, 112
        %v5919 = vpop.permute.xlu0 %5918
        %v5920 = vsel %vm1325, %v5889, %v5905
        %v5921 = vsel %vm1325, %v5891, %v5907
        %v5922 = vsel %vm1325, %v5893, %v5909
        %v5923 = vsel %vm1325, %v5895, %v5911
        %v5924 = vsel %vm1325, %v5897, %v5913
        %v5925 = vsel %vm1325, %v5899, %v5915
        %v5926 = vsel %vm1325, %v5901, %v5917
        %v5927 = vsel %vm1325, %v5903, %v5919
        %v5928 = vsel %vm1325, %v5905, %v5889
        %v5929 = vsel %vm1325, %v5907, %v5891
        %v5930 = vsel %vm1325, %v5909, %v5893
        %v5931 = vsel %vm1325, %v5911, %v5895
        %v5932 = vsel %vm1325, %v5913, %v5897
        %v5933 = vsel %vm1325, %v5915, %v5899
        %v5934 = vsel %vm1325, %v5917, %v5901
        %v5935 = vsel %vm1325, %v5919, %v5903
        %v5936 = vld [vmem:[%s1342] sm:$0xff]
        %v5937 = vld [vmem:[%s1342 + $0x8] sm:$0xff]
        %v5938 = vld [vmem:[%s1342 + $0x10] sm:$0xff]
        %v5939 = vld [vmem:[%s1342 + $0x18] sm:$0xff]
        %v5940 = vld [vmem:[%s1342 + $0x20] sm:$0xff]
        %v5941 = vld [vmem:[%s1342 + $0x28] sm:$0xff]
        %v5942 = vld [vmem:[%s1342 + $0x30] sm:$0xff]
        %v5943 = vld [vmem:[%s1342 + $0x38] sm:$0xff]
        %v5944 = vld [vmem:[%s1342 + $0x40] sm:$0xff]
        %v5945 = vld [vmem:[%s1342 + $0x48] sm:$0xff]
        %v5946 = vld [vmem:[%s1342 + $0x50] sm:$0xff]
        %v5947 = vld [vmem:[%s1342 + $0x58] sm:$0xff]
        %v5948 = vld [vmem:[%s1342 + $0x60] sm:$0xff]
        %v5949 = vld [vmem:[%s1342 + $0x68] sm:$0xff]
        %v5950 = vld [vmem:[%s1342 + $0x70] sm:$0xff]
        %v5951 = vld [vmem:[%s1342 + $0x78] sm:$0xff]
        %v5952 = vmul.f32 %v5920, %v5936
        %v5953 = vmul.f32 %v5928, %v5937
        %v5954 = vmul.f32 %v5921, %v5938
        %v5955 = vmul.f32 %v5929, %v5939
        %v5956 = vmul.f32 %v5922, %v5940
        %v5957 = vmul.f32 %v5930, %v5941
        %v5958 = vmul.f32 %v5923, %v5942
        %v5959 = vmul.f32 %v5931, %v5943
        %v5960 = vmul.f32 %v5924, %v5944
        %v5961 = vmul.f32 %v5932, %v5945
        %v5962 = vmul.f32 %v5925, %v5946
        %v5963 = vmul.f32 %v5933, %v5947
        %v5964 = vmul.f32 %v5926, %v5948
        %v5965 = vmul.f32 %v5934, %v5949
        %v5966 = vmul.f32 %v5927, %v5950
        %v5967 = vmul.f32 %v5935, %v5951
        %v5968 = vadd.f32 %v5872, %v5952
        %v5969 = vadd.f32 %v5873, %v5953
        %v5970 = vadd.f32 %v5874, %v5954
        %v5971 = vadd.f32 %v5875, %v5955
        %v5972 = vadd.f32 %v5876, %v5956
        %v5973 = vadd.f32 %v5877, %v5957
        %v5974 = vadd.f32 %v5878, %v5958
        %v5975 = vadd.f32 %v5879, %v5959
        %v5976 = vadd.f32 %v5880, %v5960
        %v5977 = vadd.f32 %v5881, %v5961
        %v5978 = vadd.f32 %v5882, %v5962
        %v5979 = vadd.f32 %v5883, %v5963
        %v5980 = vadd.f32 %v5884, %v5964
        %v5981 = vadd.f32 %v5885, %v5965
        %v5982 = vadd.f32 %v5886, %v5966
        %v5983 = vadd.f32 %v5887, %v5967
        %5984 = vrot.lane.b32.xlu0 %v5248, 111
        %v5985 = vpop.permute.xlu0 %5984
        %5986 = vrot.lane.b32.xlu0 %v5250, 111
        %v5987 = vpop.permute.xlu0 %5986
        %5988 = vrot.lane.b32.xlu0 %v5252, 111
        %v5989 = vpop.permute.xlu0 %5988
        %5990 = vrot.lane.b32.xlu0 %v5254, 111
        %v5991 = vpop.permute.xlu0 %5990
        %5992 = vrot.lane.b32.xlu0 %v5256, 111
        %v5993 = vpop.permute.xlu0 %5992
        %5994 = vrot.lane.b32.xlu0 %v5258, 111
        %v5995 = vpop.permute.xlu0 %5994
        %5996 = vrot.lane.b32.xlu0 %v5260, 111
        %v5997 = vpop.permute.xlu0 %5996
        %5998 = vrot.lane.b32.xlu0 %v5262, 111
        %v5999 = vpop.permute.xlu0 %5998
        %6000 = vrot.lane.b32.xlu0 %v5249, 111
        %v6001 = vpop.permute.xlu0 %6000
        %6002 = vrot.lane.b32.xlu0 %v5251, 111
        %v6003 = vpop.permute.xlu0 %6002
        %6004 = vrot.lane.b32.xlu0 %v5253, 111
        %v6005 = vpop.permute.xlu0 %6004
        %6006 = vrot.lane.b32.xlu0 %v5255, 111
        %v6007 = vpop.permute.xlu0 %6006
        %6008 = vrot.lane.b32.xlu0 %v5257, 111
        %v6009 = vpop.permute.xlu0 %6008
        %6010 = vrot.lane.b32.xlu0 %v5259, 111
        %v6011 = vpop.permute.xlu0 %6010
        %6012 = vrot.lane.b32.xlu0 %v5261, 111
        %v6013 = vpop.permute.xlu0 %6012
        %6014 = vrot.lane.b32.xlu0 %v5263, 111
        %v6015 = vpop.permute.xlu0 %6014
        %v6016 = vsel %vm1423, %v5985, %v6001
        %v6017 = vsel %vm1423, %v5987, %v6003
        %v6018 = vsel %vm1423, %v5989, %v6005
        %v6019 = vsel %vm1423, %v5991, %v6007
        %v6020 = vsel %vm1423, %v5993, %v6009
        %v6021 = vsel %vm1423, %v5995, %v6011
        %v6022 = vsel %vm1423, %v5997, %v6013
        %v6023 = vsel %vm1423, %v5999, %v6015
        %v6024 = vsel %vm1423, %v6001, %v5985
        %v6025 = vsel %vm1423, %v6003, %v5987
        %v6026 = vsel %vm1423, %v6005, %v5989
        %v6027 = vsel %vm1423, %v6007, %v5991
        %v6028 = vsel %vm1423, %v6009, %v5993
        %v6029 = vsel %vm1423, %v6011, %v5995
        %v6030 = vsel %vm1423, %v6013, %v5997
        %v6031 = vsel %vm1423, %v6015, %v5999
        %v6032 = vld [vmem:[%s1440] sm:$0xff]
        %v6033 = vld [vmem:[%s1440 + $0x8] sm:$0xff]
        %v6034 = vld [vmem:[%s1440 + $0x10] sm:$0xff]
        %v6035 = vld [vmem:[%s1440 + $0x18] sm:$0xff]
        %v6036 = vld [vmem:[%s1440 + $0x20] sm:$0xff]
        %v6037 = vld [vmem:[%s1440 + $0x28] sm:$0xff]
        %v6038 = vld [vmem:[%s1440 + $0x30] sm:$0xff]
        %v6039 = vld [vmem:[%s1440 + $0x38] sm:$0xff]
        %v6040 = vld [vmem:[%s1440 + $0x40] sm:$0xff]
        %v6041 = vld [vmem:[%s1440 + $0x48] sm:$0xff]
        %v6042 = vld [vmem:[%s1440 + $0x50] sm:$0xff]
        %v6043 = vld [vmem:[%s1440 + $0x58] sm:$0xff]
        %v6044 = vld [vmem:[%s1440 + $0x60] sm:$0xff]
        %v6045 = vld [vmem:[%s1440 + $0x68] sm:$0xff]
        %v6046 = vld [vmem:[%s1440 + $0x70] sm:$0xff]
        %v6047 = vld [vmem:[%s1440 + $0x78] sm:$0xff]
        %v6048 = vmul.f32 %v6016, %v6032
        %v6049 = vmul.f32 %v6024, %v6033
        %v6050 = vmul.f32 %v6017, %v6034
        %v6051 = vmul.f32 %v6025, %v6035
        %v6052 = vmul.f32 %v6018, %v6036
        %v6053 = vmul.f32 %v6026, %v6037
        %v6054 = vmul.f32 %v6019, %v6038
        %v6055 = vmul.f32 %v6027, %v6039
        %v6056 = vmul.f32 %v6020, %v6040
        %v6057 = vmul.f32 %v6028, %v6041
        %v6058 = vmul.f32 %v6021, %v6042
        %v6059 = vmul.f32 %v6029, %v6043
        %v6060 = vmul.f32 %v6022, %v6044
        %v6061 = vmul.f32 %v6030, %v6045
        %v6062 = vmul.f32 %v6023, %v6046
        %v6063 = vmul.f32 %v6031, %v6047
        %v6064 = vadd.f32 %v5968, %v6048
        %v6065 = vadd.f32 %v5969, %v6049
        %v6066 = vadd.f32 %v5970, %v6050
        %v6067 = vadd.f32 %v5971, %v6051
        %v6068 = vadd.f32 %v5972, %v6052
        %v6069 = vadd.f32 %v5973, %v6053
        %v6070 = vadd.f32 %v5974, %v6054
        %v6071 = vadd.f32 %v5975, %v6055
        %v6072 = vadd.f32 %v5976, %v6056
        %v6073 = vadd.f32 %v5977, %v6057
        %v6074 = vadd.f32 %v5978, %v6058
        %v6075 = vadd.f32 %v5979, %v6059
        %v6076 = vadd.f32 %v5980, %v6060
        %v6077 = vadd.f32 %v5981, %v6061
        %v6078 = vadd.f32 %v5982, %v6062
        %v6079 = vadd.f32 %v5983, %v6063
        %v6080 = vld [vmem:[%s4] sm:$0xff]
        %v6081 = vld [vmem:[%s4 + $0x8] sm:$0xff]
        %v6082 = vld [vmem:[%s4 + $0x10] sm:$0xff]
        %v6083 = vld [vmem:[%s4 + $0x18] sm:$0xff]
        %v6084 = vld [vmem:[%s4 + $0x20] sm:$0xff]
        %v6085 = vld [vmem:[%s4 + $0x28] sm:$0xff]
        %v6086 = vld [vmem:[%s4 + $0x30] sm:$0xff]
        %v6087 = vld [vmem:[%s4 + $0x38] sm:$0xff]
        %6089 = vset.pattern.permute.xlu0 0
        %6090 = vperm.xlu0 %6089, %v6080
        %v6091 = vpop.permute.xlu0 %6090
        %6094 = vset.pattern.permute.xlu0 0
        %6095 = vperm.xlu0 %6094, %v6081
        %v6096 = vpop.permute.xlu0 %6095
        %6099 = vset.pattern.permute.xlu0 0
        %6100 = vperm.xlu0 %6099, %v6082
        %v6101 = vpop.permute.xlu0 %6100
        %6104 = vset.pattern.permute.xlu0 0
        %6105 = vperm.xlu0 %6104, %v6083
        %v6106 = vpop.permute.xlu0 %6105
        %6109 = vset.pattern.permute.xlu0 0
        %6110 = vperm.xlu0 %6109, %v6084
        %v6111 = vpop.permute.xlu0 %6110
        %6114 = vset.pattern.permute.xlu0 0
        %6115 = vperm.xlu0 %6114, %v6085
        %v6116 = vpop.permute.xlu0 %6115
        %6119 = vset.pattern.permute.xlu0 0
        %6120 = vperm.xlu0 %6119, %v6086
        %v6121 = vpop.permute.xlu0 %6120
        %6124 = vset.pattern.permute.xlu0 0
        %6125 = vperm.xlu0 %6124, %v6087
        %v6126 = vpop.permute.xlu0 %6125
        %v6128 = vadd.f32 %v6064, %v6091
        %v6129 = vadd.f32 %v6065, %v6091
        %v6130 = vadd.f32 %v6066, %v6096
        %v6131 = vadd.f32 %v6067, %v6096
        %v6132 = vadd.f32 %v6068, %v6101
        %v6133 = vadd.f32 %v6069, %v6101
        %v6134 = vadd.f32 %v6070, %v6106
        %v6135 = vadd.f32 %v6071, %v6106
        %v6136 = vadd.f32 %v6072, %v6111
        %v6137 = vadd.f32 %v6073, %v6111
        %v6138 = vadd.f32 %v6074, %v6116
        %v6139 = vadd.f32 %v6075, %v6116
        %v6140 = vadd.f32 %v6076, %v6121
        %v6141 = vadd.f32 %v6077, %v6121
        %v6142 = vadd.f32 %v6078, %v6126
        %v6143 = vadd.f32 %v6079, %v6126
        %v6144 = vadd.f32 %v6128, 3.0
        %v6145 = vadd.f32 %v6129, 3.0
        %v6146 = vadd.f32 %v6130, 3.0
        %v6147 = vadd.f32 %v6131, 3.0
        %v6148 = vadd.f32 %v6132, 3.0
        %v6149 = vadd.f32 %v6133, 3.0
        %v6150 = vadd.f32 %v6134, 3.0
        %v6151 = vadd.f32 %v6135, 3.0
        %v6152 = vadd.f32 %v6136, 3.0
        %v6153 = vadd.f32 %v6137, 3.0
        %v6154 = vadd.f32 %v6138, 3.0
        %v6155 = vadd.f32 %v6139, 3.0
        %v6156 = vadd.f32 %v6140, 3.0
        %v6157 = vadd.f32 %v6141, 3.0
        %v6158 = vadd.f32 %v6142, 3.0
        %v6159 = vadd.f32 %v6143, 3.0
        %v6160 = vmax.f32 %v6144, 0.0
        %v6161 = vmax.f32 %v6145, 0.0
        %v6162 = vmax.f32 %v6146, 0.0
        %v6163 = vmax.f32 %v6147, 0.0
        %v6164 = vmax.f32 %v6148, 0.0
        %v6165 = vmax.f32 %v6149, 0.0
        %v6166 = vmax.f32 %v6150, 0.0
        %v6167 = vmax.f32 %v6151, 0.0
        %v6168 = vmax.f32 %v6152, 0.0
        %v6169 = vmax.f32 %v6153, 0.0
        %v6170 = vmax.f32 %v6154, 0.0
        %v6171 = vmax.f32 %v6155, 0.0
        %v6172 = vmax.f32 %v6156, 0.0
        %v6173 = vmax.f32 %v6157, 0.0
        %v6174 = vmax.f32 %v6158, 0.0
        %v6175 = vmax.f32 %v6159, 0.0
        %v6176 = vmin.f32 %v6160, 6.0
        %v6177 = vmin.f32 %v6161, 6.0
        %v6178 = vmin.f32 %v6162, 6.0
        %v6179 = vmin.f32 %v6163, 6.0
        %v6180 = vmin.f32 %v6164, 6.0
        %v6181 = vmin.f32 %v6165, 6.0
        %v6182 = vmin.f32 %v6166, 6.0
        %v6183 = vmin.f32 %v6167, 6.0
        %v6184 = vmin.f32 %v6168, 6.0
        %v6185 = vmin.f32 %v6169, 6.0
        %v6186 = vmin.f32 %v6170, 6.0
        %v6187 = vmin.f32 %v6171, 6.0
        %v6188 = vmin.f32 %v6172, 6.0
        %v6189 = vmin.f32 %v6173, 6.0
        %v6190 = vmin.f32 %v6174, 6.0
        %v6191 = vmin.f32 %v6175, 6.0
        %v6192 = vmul.f32 %v6128, %v6176
        %v6193 = vmul.f32 %v6129, %v6177
        %v6194 = vmul.f32 %v6130, %v6178
        %v6195 = vmul.f32 %v6131, %v6179
        %v6196 = vmul.f32 %v6132, %v6180
        %v6197 = vmul.f32 %v6133, %v6181
        %v6198 = vmul.f32 %v6134, %v6182
        %v6199 = vmul.f32 %v6135, %v6183
        %v6200 = vmul.f32 %v6136, %v6184
        %v6201 = vmul.f32 %v6137, %v6185
        %v6202 = vmul.f32 %v6138, %v6186
        %v6203 = vmul.f32 %v6139, %v6187
        %v6204 = vmul.f32 %v6140, %v6188
        %v6205 = vmul.f32 %v6141, %v6189
        %v6206 = vmul.f32 %v6142, %v6190
        %v6207 = vmul.f32 %v6143, %v6191
        %v6208 = vmul.f32 %v6192, 0.16666667
        %v6209 = vmul.f32 %v6193, 0.16666667
        %v6210 = vmul.f32 %v6194, 0.16666667
        %v6211 = vmul.f32 %v6195, 0.16666667
        %v6212 = vmul.f32 %v6196, 0.16666667
        %v6213 = vmul.f32 %v6197, 0.16666667
        %v6214 = vmul.f32 %v6198, 0.16666667
        %v6215 = vmul.f32 %v6199, 0.16666667
        %v6216 = vmul.f32 %v6200, 0.16666667
        %v6217 = vmul.f32 %v6201, 0.16666667
        %v6218 = vmul.f32 %v6202, 0.16666667
        %v6219 = vmul.f32 %v6203, 0.16666667
        %v6220 = vmul.f32 %v6204, 0.16666667
        %v6221 = vmul.f32 %v6205, 0.16666667
        %v6222 = vmul.f32 %v6206, 0.16666667
        %v6223 = vmul.f32 %v6207, 0.16666667
        %v6224 = vadd.f32 %v6208, %v6209
        %6225 = vadd.xlane.f32.xlu0 %v6224
        %v6226 = vpop.xlane.xlu0 %6225
        %v6227 = vadd.f32 %v6210, %v6211
        %6228 = vadd.xlane.f32.xlu0 %v6227
        %v6229 = vpop.xlane.xlu0 %6228
        %v6230 = vadd.f32 %v6212, %v6213
        %6231 = vadd.xlane.f32.xlu0 %v6230
        %v6232 = vpop.xlane.xlu0 %6231
        %v6233 = vadd.f32 %v6214, %v6215
        %6234 = vadd.xlane.f32.xlu0 %v6233
        %v6235 = vpop.xlane.xlu0 %6234
        %v6236 = vadd.f32 %v6216, %v6217
        %6237 = vadd.xlane.f32.xlu0 %v6236
        %v6238 = vpop.xlane.xlu0 %6237
        %v6239 = vadd.f32 %v6218, %v6219
        %6240 = vadd.xlane.f32.xlu0 %v6239
        %v6241 = vpop.xlane.xlu0 %6240
        %v6242 = vadd.f32 %v6220, %v6221
        %6243 = vadd.xlane.f32.xlu0 %v6242
        %v6244 = vpop.xlane.xlu0 %6243
        %v6245 = vadd.f32 %v6222, %v6223
        %6246 = vadd.xlane.f32.xlu0 %v6245
        %v6247 = vpop.xlane.xlu0 %6246
        %v6248 = vmul.f32 %v6226, %v1657
        %v6249 = vmul.f32 %v6229, %v1657
        %v6250 = vmul.f32 %v6232, %v1657
        %v6251 = vmul.f32 %v6235, %v1657
        %v6252 = vmul.f32 %v6238, %v1657
        %v6253 = vmul.f32 %v6241, %v1657
        %v6254 = vmul.f32 %v6244, %v1657
        %v6255 = vmul.f32 %v6247, %v1657
        %v6256 = vld [vmem:[%s5] sm:$0xff]
        %v6257 = vld [vmem:[%s5 + $0x8] sm:$0xff]
        %v6258 = vld [vmem:[%s5 + $0x10] sm:$0xff]
        %v6259 = vld [vmem:[%s5 + $0x18] sm:$0xff]
        %v6260 = vld [vmem:[%s5 + $0x20] sm:$0xff]
        %v6261 = vld [vmem:[%s5 + $0x28] sm:$0xff]
        %v6262 = vld [vmem:[%s5 + $0x30] sm:$0xff]
        %v6263 = vld [vmem:[%s5 + $0x38] sm:$0xff]
        %v6264 = vmul.f32 %v6256, %v6248
        %v6265 = vmul.f32 %v6257, %v6249
        %v6266 = vmul.f32 %v6258, %v6250
        %v6267 = vmul.f32 %v6259, %v6251
        %v6268 = vmul.f32 %v6260, %v6252
        %v6269 = vmul.f32 %v6261, %v6253
        %v6270 = vmul.f32 %v6262, %v6254
        %v6271 = vmul.f32 %v6263, %v6255
        %v6272 = vsel %vm489, %v6264, 0.0
        %v6273 = vsel %vm489, %v6265, 0.0
        %v6274 = vadd.f32 %v6272, %v6273
        %v6275 = vsel %vm489, %v6266, 0.0
        %v6276 = vadd.f32 %v6274, %v6275
        %v6277 = vsel %vm489, %v6267, 0.0
        %v6278 = vadd.f32 %v6276, %v6277
        %v6279 = vsel %vm489, %v6268, 0.0
        %v6280 = vadd.f32 %v6278, %v6279
        %v6281 = vsel %vm489, %v6269, 0.0
        %v6282 = vadd.f32 %v6280, %v6281
        %v6283 = vsel %vm489, %v6270, 0.0
        %v6284 = vadd.f32 %v6282, %v6283
        %v6285 = vsel %vm489, %v6271, 0.0
        %v6286 = vadd.f32 %v6284, %v6285
        %v6287 = vrot.slane %v6286, 4
        %v6288 = vadd.f32 %v6286, %v6287
        %v6289 = vrot.slane %v6288, 2
        %v6290 = vadd.f32 %v6288, %v6289
        %v6291 = vrot.slane %v6290, 1
        %v6292 = vadd.f32 %v6290, %v6291
        %v6293 = vld [vmem:[%s6] sm:$0x1]
        %v6294 = vadd.f32 %v6292, %v6293
        %v6295 = vmax.f32 %v6294, 0.0
        %v6296 = vld [vmem:[%s7] sm:$0xff]
        %v6297 = vld [vmem:[%s7 + $0x8] sm:$0xff]
        %v6298 = vld [vmem:[%s7 + $0x10] sm:$0xff]
        %v6299 = vld [vmem:[%s7 + $0x18] sm:$0xff]
        %v6300 = vld [vmem:[%s7 + $0x20] sm:$0xff]
        %v6301 = vld [vmem:[%s7 + $0x28] sm:$0xff]
        %v6302 = vld [vmem:[%s7 + $0x30] sm:$0xff]
        %v6303 = vld [vmem:[%s7 + $0x38] sm:$0xff]
        %v6304 = vlaneseq
        %v6305 = vshrl.u32 %v6304, 7
        %v6306 = vsub.s32 0, %v6305
        %v6307 = vrot.slane %v6295, %v6306
        %v6308 = vmul.f32 %v6296, %v6307
        %v6309 = vmul.f32 %v6297, %v6307
        %v6310 = vmul.f32 %v6298, %v6307
        %v6311 = vmul.f32 %v6299, %v6307
        %v6312 = vmul.f32 %v6300, %v6307
        %v6313 = vmul.f32 %v6301, %v6307
        %v6314 = vmul.f32 %v6302, %v6307
        %v6315 = vmul.f32 %v6303, %v6307
        %v6316 = vsel %vm489, %v6308, 0.0
        %6317 = vadd.xlane.f32.xlu0 %v6316
        %v6318 = vpop.xlane.xlu0 %6317
        %v6319 = vsel %vm489, %v6309, 0.0
        %6320 = vadd.xlane.f32.xlu0 %v6319
        %v6321 = vpop.xlane.xlu0 %6320
        %v6322 = vsel %vm489, %v6310, 0.0
        %6323 = vadd.xlane.f32.xlu0 %v6322
        %v6324 = vpop.xlane.xlu0 %6323
        %v6325 = vsel %vm489, %v6311, 0.0
        %6326 = vadd.xlane.f32.xlu0 %v6325
        %v6327 = vpop.xlane.xlu0 %6326
        %v6328 = vsel %vm489, %v6312, 0.0
        %6329 = vadd.xlane.f32.xlu0 %v6328
        %v6330 = vpop.xlane.xlu0 %6329
        %v6331 = vsel %vm489, %v6313, 0.0
        %6332 = vadd.xlane.f32.xlu0 %v6331
        %v6333 = vpop.xlane.xlu0 %6332
        %v6334 = vsel %vm489, %v6314, 0.0
        %6335 = vadd.xlane.f32.xlu0 %v6334
        %v6336 = vpop.xlane.xlu0 %6335
        %v6337 = vsel %vm489, %v6315, 0.0
        %6338 = vadd.xlane.f32.xlu0 %v6337
        %v6339 = vpop.xlane.xlu0 %6338
        %v6340 = vld [vmem:[%s8] sm:$0xff]
        %v6341 = vld [vmem:[%s8 + $0x8] sm:$0xff]
        %v6342 = vld [vmem:[%s8 + $0x10] sm:$0xff]
        %v6343 = vld [vmem:[%s8 + $0x18] sm:$0xff]
        %v6344 = vld [vmem:[%s8 + $0x20] sm:$0xff]
        %v6345 = vld [vmem:[%s8 + $0x28] sm:$0xff]
        %v6346 = vld [vmem:[%s8 + $0x30] sm:$0xff]
        %v6347 = vld [vmem:[%s8 + $0x38] sm:$0xff]
        %v6348 = vadd.f32 %v6318, %v6340
        %v6349 = vadd.f32 %v6321, %v6341
        %v6350 = vadd.f32 %v6324, %v6342
        %v6351 = vadd.f32 %v6327, %v6343
        %v6352 = vadd.f32 %v6330, %v6344
        %v6353 = vadd.f32 %v6333, %v6345
        %v6354 = vadd.f32 %v6336, %v6346
        %v6355 = vadd.f32 %v6339, %v6347
        %v6356 = vadd.f32 %v6348, 3.0
        %v6357 = vadd.f32 %v6349, 3.0
        %v6358 = vadd.f32 %v6350, 3.0
        %v6359 = vadd.f32 %v6351, 3.0
        %v6360 = vadd.f32 %v6352, 3.0
        %v6361 = vadd.f32 %v6353, 3.0
        %v6362 = vadd.f32 %v6354, 3.0
        %v6363 = vadd.f32 %v6355, 3.0
        %v6364 = vmax.f32 %v6356, 0.0
        %v6365 = vmax.f32 %v6357, 0.0
        %v6366 = vmax.f32 %v6358, 0.0
        %v6367 = vmax.f32 %v6359, 0.0
        %v6368 = vmax.f32 %v6360, 0.0
        %v6369 = vmax.f32 %v6361, 0.0
        %v6370 = vmax.f32 %v6362, 0.0
        %v6371 = vmax.f32 %v6363, 0.0
        %v6372 = vmin.f32 %v6364, 6.0
        %v6373 = vmin.f32 %v6365, 6.0
        %v6374 = vmin.f32 %v6366, 6.0
        %v6375 = vmin.f32 %v6367, 6.0
        %v6376 = vmin.f32 %v6368, 6.0
        %v6377 = vmin.f32 %v6369, 6.0
        %v6378 = vmin.f32 %v6370, 6.0
        %v6379 = vmin.f32 %v6371, 6.0
        %v6380 = vmul.f32 %v6372, 0.16666667
        %v6381 = vmul.f32 %v6373, 0.16666667
        %v6382 = vmul.f32 %v6374, 0.16666667
        %v6383 = vmul.f32 %v6375, 0.16666667
        %v6384 = vmul.f32 %v6376, 0.16666667
        %v6385 = vmul.f32 %v6377, 0.16666667
        %v6386 = vmul.f32 %v6378, 0.16666667
        %v6387 = vmul.f32 %v6379, 0.16666667
        %6389 = vset.pattern.permute.xlu0 0
        %6390 = vperm.xlu0 %6389, %v6380
        %v6391 = vpop.permute.xlu0 %6390
        %6394 = vset.pattern.permute.xlu0 0
        %6395 = vperm.xlu0 %6394, %v6381
        %v6396 = vpop.permute.xlu0 %6395
        %6399 = vset.pattern.permute.xlu0 0
        %6400 = vperm.xlu0 %6399, %v6382
        %v6401 = vpop.permute.xlu0 %6400
        %6404 = vset.pattern.permute.xlu0 0
        %6405 = vperm.xlu0 %6404, %v6383
        %v6406 = vpop.permute.xlu0 %6405
        %6409 = vset.pattern.permute.xlu0 0
        %6410 = vperm.xlu0 %6409, %v6384
        %v6411 = vpop.permute.xlu0 %6410
        %6414 = vset.pattern.permute.xlu0 0
        %6415 = vperm.xlu0 %6414, %v6385
        %v6416 = vpop.permute.xlu0 %6415
        %6419 = vset.pattern.permute.xlu0 0
        %6420 = vperm.xlu0 %6419, %v6386
        %v6421 = vpop.permute.xlu0 %6420
        %6424 = vset.pattern.permute.xlu0 0
        %6425 = vperm.xlu0 %6424, %v6387
        %v6426 = vpop.permute.xlu0 %6425
        %v6428 = vmul.f32 %v6208, %v6391
        %v6429 = vmul.f32 %v6209, %v6391
        %v6430 = vmul.f32 %v6210, %v6396
        %v6431 = vmul.f32 %v6211, %v6396
        %v6432 = vmul.f32 %v6212, %v6401
        %v6433 = vmul.f32 %v6213, %v6401
        %v6434 = vmul.f32 %v6214, %v6406
        %v6435 = vmul.f32 %v6215, %v6406
        %v6436 = vmul.f32 %v6216, %v6411
        %v6437 = vmul.f32 %v6217, %v6411
        %v6438 = vmul.f32 %v6218, %v6416
        %v6439 = vmul.f32 %v6219, %v6416
        %v6440 = vmul.f32 %v6220, %v6421
        %v6441 = vmul.f32 %v6221, %v6421
        %v6442 = vmul.f32 %v6222, %v6426
        %v6443 = vmul.f32 %v6223, %v6426
        %v6444 = vld [vmem:[%s9] sm:$0xf]
        %v6445 = vld [vmem:[%s9 + $0x4] sm:$0xf]
        %v6446 = vpack.c.bf16 %v6430, %v6428
        %v6447 = vpack.c.bf16 %v6431, %v6429
        %v6448 = vpack.c.bf16 %v6434, %v6432
        %v6449 = vpack.c.bf16 %v6435, %v6433
        %v6450 = vpack.c.bf16 %v6438, %v6436
        %v6451 = vpack.c.bf16 %v6439, %v6437
        %v6452 = vpack.c.bf16 %v6442, %v6440
        %v6453 = vpack.c.bf16 %v6443, %v6441
        %v6454 = vld [vmem:[%s10] sm:$0xff]
        %v6455 = vld [vmem:[%s10 + $0x8] sm:$0xff]
        %6457 = vset.pattern.permute.xlu0 0
        %6458 = vperm.xlu0 %6457, %v6454
        %v6459 = vpop.permute.xlu0 %6458
        %6462 = vset.pattern.permute.xlu0 0
        %6463 = vperm.xlu0 %6462, %v6455
        %v6464 = vpop.permute.xlu0 %6463
        %v6468 = vunpack.c.l.b16 %v6444
        %v6469 = vunpack.c.l.b16 %v6445
        %v6470 = vpack.c.b16 %v6469, %v6468
        %v6472 = vsel %vm1881, %v6470, 0
        %6474 = vmatprep.subr.bf16.mxu0 %v6447
        %6475 = vmatpush1.bf16.msra.mxu0 %v6446
        %6476 = vmatprep.subr.bf16.mxu0 %v6449
        %6477 = vmatpush1.bf16.msra.mxu0 %v6448
        %6478 = vmatprep.subr.bf16.mxu0 %v6451
        %6479 = vmatpush1.bf16.msra.mxu0 %v6450
        %6480 = vmatprep.subr.bf16.mxu0 %v6453
        %6481 = vmatpush1.bf16.msra.mxu0 %v6452
        %6482 = vmatprep.subr.bf16.mxu0 0
        %6483 = vmatpush1.bf16.msra.mxu0 0
        %6484 = vmatprep.subr.bf16.mxu0 0
        %6485 = vmatpush1.bf16.msra.mxu0 0
        %6486 = vmatprep.subr.bf16.mxu0 0
        %6487 = vmatpush1.bf16.msra.mxu0 0
        %6488 = vmatprep.subr.bf16.mxu0 0
        %6489 = vmatpush1.bf16.msra.mxu0 0
        %6490 = vmatprep.subr.bf16.mxu0 0
        %6491 = vmatpush1.bf16.msra.mxu0 0
        %6492 = vmatprep.subr.bf16.mxu0 0
        %6493 = vmatpush1.bf16.msra.mxu0 0
        %6494 = vmatprep.subr.bf16.mxu0 0
        %6495 = vmatpush1.bf16.msra.mxu0 0
        %6496 = vmatprep.subr.bf16.mxu0 0
        %6497 = vmatpush1.bf16.msra.mxu0 0
        %6498 = vmatprep.subr.bf16.mxu0 0
        %6499 = vmatpush1.bf16.msra.mxu0 0
        %6500 = vmatprep.subr.bf16.mxu0 0
        %6501 = vmatpush1.bf16.msra.mxu0 0
        %6502 = vmatprep.subr.bf16.mxu0 0
        %6503 = vmatpush1.bf16.msra.mxu0 0
        %6504 = vmatprep.subr.bf16.mxu0 0
        %6505 = vmatpush1.bf16.msra.mxu0 0
        %6506 = vmatprep.mubr.bf16.mxu0 0
        %6507 = vmatmul.mubr.bf16.gmra.mrb[0].mxu0 %v6472
        %v6508 = vpop.f32.mrb[0].mxu0
        %v6509 = vadd.f32 %v6459, %v6508
        %v6510 = vpop.f32.mrb[0].mxu0
        %v6511 = vadd.f32 %v6459, %v6510
        %v6512 = vpop.f32.mrb[0].mxu0
        %v6513 = vadd.f32 %v6464, %v6512
        %v6514 = vpop.f32.mrb[0].mxu0
        %v6515 = vadd.f32 %v6464, %v6514
        %6516 = vdwg.mxu0
        %v6517 = vadd.f32 %v6509, 3.0
        %v6518 = vadd.f32 %v6511, 3.0
        %v6519 = vadd.f32 %v6513, 3.0
        %v6520 = vadd.f32 %v6515, 3.0
        %v6521 = vmax.f32 %v6517, 0.0
        %v6522 = vmax.f32 %v6518, 0.0
        %v6523 = vmax.f32 %v6519, 0.0
        %v6524 = vmax.f32 %v6520, 0.0
        %v6525 = vmin.f32 %v6521, 6.0
        %v6526 = vmin.f32 %v6522, 6.0
        %v6527 = vmin.f32 %v6523, 6.0
        %v6528 = vmin.f32 %v6524, 6.0
        %v6529 = vmul.f32 %v6509, %v6525
        %v6530 = vmul.f32 %v6511, %v6526
        %v6531 = vmul.f32 %v6513, %v6527
        %v6532 = vmul.f32 %v6515, %v6528
        %v6533 = vmul.f32 %v6529, 0.16666667
        %v6534 = vmul.f32 %v6530, 0.16666667
        %v6535 = vmul.f32 %v6531, 0.16666667
        %v6536 = vmul.f32 %v6532, 0.16666667
        %v6537 = vadd.f32 %v6533, %v5017
        %v6538 = vadd.f32 %v6534, %v5018
        %v6539 = vadd.f32 %v6535, %v5019
        %v6540 = vadd.f32 %v6536, %v5020
        %s6541 = scalar_lea.vmem %s397, 96 [#allocation5]
        %6542 = vst [vmem:[%s6541] sm:$0xff] %v6537
        %6543 = vst [vmem:[%s6541 + $0x8] sm:$0xff] %v6538
        %6544 = vst [vmem:[%s6541 + $0x10] sm:$0xff] %v6539
        %6545 = vst [vmem:[%s6541 + $0x18] sm:$0xff] %v6540
        %s6546 = sand.u32 %s270, 1
        %s6547 = scalar_lea.sflag [#allocation4], %s6546
        %s6548 = sand.u32 %s270, 1
        %s6549 = smul.addr %s6548, 128
        %s6550 = scalar_lea.vmem [#allocation5], %s6549
        // Predicated region
        $region69: #{tpu_custom_call.1} parent=63 // pred_check
          %p6551 = pneg %p280
        $region70: #{tpu_custom_call.1} parent=63 // pred_check_branch
          %6553 = sbr.rel (%p6551) target = $region72
        $region71: #{tpu_custom_call.1} parent=63 // pred_region
          %s6554 = smul.u32 4, %s26
          %s6556 = ssub.s32 2048, 2048
          %6557 = vsyncadd %s6547, %s6556
          %s6558 = smul.addr %s6554, 4
          %s6559 = smul.addr %s6558, 128
          %s6560 = scalar_lea.hbm %s11, %s6559
          %s6561 = sshll.u32 %s6550, 4
          %s6562 = int_to_ptr.vmem [resolvable:$true] %s6561
          %6567 = dma.vmem_to_hbm [thread:$0]  %s6562, 2048, %s6560, %s6547, 256, 256, 16
        $region72: #{tpu_custom_call.1} parent=63 // pred_fallthru
          _
      $region64: #{tpu_custom_call.1} parent=5 // pred_fallthru
        _
      %p6568 = scmp.le.s32.totalorder 2, %s21
      // Predicated region
      $region73: #{tpu_custom_call.1} parent=5 // pred_check
        %p6569 = pneg %p6568
      $region74: #{tpu_custom_call.1} parent=5 // pred_check_branch
        %6571 = sbr.rel (%p6569) target = $region76
      $region75: #{tpu_custom_call.1} parent=5 // pred_region
        %s6572 = ssub.s32 %s21, 2
        // Predicated region
        $region77: #{tpu_custom_call.1} parent=75 // pred_check
          %p6573 = pneg %p286
        $region78: #{tpu_custom_call.1} parent=75 // pred_check_branch
          %6575 = sbr.rel (%p6573) target = $region80
        $region79: #{tpu_custom_call.1} parent=75 // pred_region
          %s6576 = sand.u32 %s271, 1
          %s6577 = scalar_lea.sflag [#allocation4], %s6576
          %s6578 = sand.u32 %s271, 1
          %s6579 = smul.addr %s6578, 128
          %s6580 = scalar_lea.vmem [#allocation5], %s6579
          %6581 = dma.done %s6577, 2048
        $region80: #{tpu_custom_call.1} parent=75 // pred_fallthru
          _
      $region76: #{tpu_custom_call.1} parent=5 // pred_fallthru
        _
    $region6: #{tpu_custom_call.1} parent=1 // loop_footer
      %s25 = sadd.s32 1, %s21
    $region7: #{tpu_custom_call.1} parent=1 // loop_footer_branch
      %20 = sbr.rel target = $region3
    $region8: #{tpu_custom_call.1} parent=1 // loop_exit
      _
    %6582 = vsyncpa [#allocation3], 1
    %s6583 = scalar_lea.sflag [#allocation3], 1
    %6584 = vsyncpa %s6583, 1
    %6585 = vsyncpa [#allocation4], 1
    %s6586 = scalar_lea.sflag [#allocation4], 1
    %6587 = vsyncpa %s6586, 1

</llo_original>
